<compile_context>
chip_gen: v7x
topology: tpu7x:2x2x1
jax: 0.10.0
libtpu: 0.0.40
codegen_flags: <defaults>
</compile_context>

<pallas_src>
import functools

import jax
import jax.numpy as jnp
from jax.experimental import pallas as pl
from jax.experimental.pallas import tpu as pltpu


# ----------------------------- Pallas kernel -------------------------------


def _dense_block_kernel(x_ref, sb1_ref, sb2_ref, w2_ref, *rest,
                        num_layers, c0, growth, cmid, h, w):
    # rest layout: [w1_ref_0 .. w1_ref_{L-1}, out_ref, acc_ref]
    #   x_ref   (1, H, W, C0)            f32   input image block
    #   sb1_ref (2L, C_max)              f32   rows 2l / 2l+1 = folded BN1 scale / bias
    #   sb2_ref (2L, Cmid)               f32   rows 2l / 2l+1 = folded BN2 scale / bias
    #   w2_ref  (L, Cmid, 9*G)           bf16  conv2 weights, tap k = dy*3+dx
    #   w1_ref_l (C_in_l, Cmid)          bf16  conv1 (1x1) weights
    #   out_ref (1, H, W, C_final)       f32   Ref-resident concatenated slab
    #   acc_ref (H+2, W+2, G)            f32   conv2 shifted-add accumulator
    w1_refs = rest[:num_layers]
    out_ref = rest[num_layers]
    acc_ref = rest[num_layers + 1]

    # Seed the concatenated feature slab: channels [0, c0) = block input.
    out_ref[0, :, :, pl.ds(0, c0)] = x_ref[0]

    for l in range(num_layers):
        c_in = c0 + l * growth

        # --- BN1 (inference-folded) + ReLU1, read from the Ref-resident slab ---
        s1 = sb1_ref[2 * l:2 * l + 1, :c_in]                  # (1, c_in) f32
        b1 = sb1_ref[2 * l + 1:2 * l + 2, :c_in]
        feat = out_ref[0, :, :, pl.ds(0, c_in)]               # (h, w, c_in) f32
        z = jnp.maximum(feat * s1 + b1, 0.0)

        # --- conv1: 1x1 conv == channel matmul on the MXU (bf16 in, f32 acc) ---
        zf = z.reshape(h * w, c_in).astype(jnp.bfloat16)
        y = jnp.dot(zf, w1_refs[l][...],
                    preferred_element_type=jnp.float32)       # (h*w, cmid) f32

        # --- BN2 (folded) + ReLU2 (f32 VPU math) ---
        s2 = sb2_ref[2 * l:2 * l + 1, :]                      # (1, cmid)
        b2 = sb2_ref[2 * l + 1:2 * l + 2, :]
        z2 = jnp.maximum(y * s2 + b2, 0.0)                    # (h*w, cmid) f32

        # --- conv2 (3x3, pad=1), dual formulation: one matmul, 9 shifted adds ---
        t = jnp.dot(z2.astype(jnp.bfloat16), w2_ref[l],
                    preferred_element_type=jnp.float32)       # (h*w, 9*G) f32
        t3 = t.reshape(h, w, 9 * growth)                      # free: w % 8 == 0

        # out[y, x] = sum_{dy,dx} T_k[y+dy-1, x+dx-1];   acc[y+1, x+1] == out[y, x]
        # => tap k=(dy,dx) adds T_k into acc[2-dy : 2-dy+h, 2-dx : 2-dx+w].
        # Centre tap (dy=dx=1) covers exactly the read-back region -> assign
        # (no accumulator zeroing; halo positions are written but never read).
        acc_ref[pl.ds(1, h), pl.ds(1, w), :] = t3[:, :, 4 * growth:5 * growth]
        for dy in range(3):
            for dx in range(3):
                if dy == 1 and dx == 1:
                    continue
                k = dy * 3 + dx
                acc_ref[pl.ds(2 - dy, h), pl.ds(2 - dx, w), :] += (
                    t3[:, :, k * growth:(k + 1) * growth])

        # New features go straight into the output slab (on-chip concatenation).
        out_ref[0, :, :, pl.ds(c_in, growth)] = acc_ref[pl.ds(1, h), pl.ds(1, w), :]


# ----------------------------- Block wrapper -------------------------------


def _rup(x, m):
    return (x + m - 1) // m * m


def dense_block_forward(x_nchw, layer_params):
    """_DenseBlock forward. Input/output NCHW (PyTorch convention)."""
    x = jnp.transpose(x_nchw, (0, 2, 3, 1)).astype(jnp.float32)   # NCHW -> NHWC
    n, h, w, c0 = x.shape
    num_layers = len(layer_params)
    cmid = layer_params[0][2].shape[1]
    growth = layer_params[0][5].shape[3]
    c_final = c0 + num_layers * growth
    c_max = c0 + (num_layers - 1) * growth

    # Pack per-layer BN scale/bias and conv2 weights into a few arrays
    # (fewer DMA descriptors / padded VMEM tiles than 6*L tiny inputs).
    sb1 = jnp.zeros((2 * num_layers, c_max), jnp.float32)
    sb2 = jnp.zeros((2 * num_layers, cmid), jnp.float32)
    w2_list, w1_list = [], []
    for l, (s1, b1, w1, s2, b2, w2) in enumerate(layer_params):
        c_in = w1.shape[0]
        sb1 = sb1.at[2 * l, :c_in].set(s1.reshape(-1))
        sb1 = sb1.at[2 * l + 1, :c_in].set(b1.reshape(-1))
        sb2 = sb2.at[2 * l].set(s2.reshape(-1))
        sb2 = sb2.at[2 * l + 1].set(b2.reshape(-1))
        # (3,3,Cmid,G) -> (Cmid, 3, 3, G) -> (Cmid, 9*G); tap k = dy*3 + dx.
        w2_list.append(jnp.transpose(w2, (2, 0, 1, 3)).reshape(cmid, 9 * growth))
        w1_list.append(w1.astype(jnp.bfloat16))
    w2all = jnp.stack(w2_list, axis=0).astype(jnp.bfloat16)    # (L, Cmid, 9*G)

    in_specs = [
        pl.BlockSpec((1, h, w, c0), lambda i: (i, 0, 0, 0)),
        pl.BlockSpec((2 * num_layers, c_max), lambda i: (0, 0)),
        pl.BlockSpec((2 * num_layers, cmid), lambda i: (0, 0)),
        pl.BlockSpec((num_layers, cmid, 9 * growth), lambda i: (0, 0, 0)),
    ]
    for w1 in w1_list:
        in_specs.append(pl.BlockSpec((w1.shape[0], cmid), lambda i: (0, 0)))

    # Explicit VMEM budget: double-buffered I/O blocks + params + scratch, with
    # margin; >= 32 MiB default scoped limit, <= 64 MiB v7x physical VMEM.
    est = 0
    est += 2 * 4 * h * _rup(w, 8) * _rup(c0, 128)               # input block x2
    est += 2 * 4 * h * _rup(w, 8) * _rup(c_final, 128)          # output block x2
    est += 2 * 4 * _rup(2 * num_layers, 8) * _rup(c_max, 128)   # sb1 x2
    est += 2 * 4 * _rup(2 * num_layers, 8) * _rup(cmid, 128)    # sb2 x2
    est += 2 * 2 * num_layers * _rup(cmid, 8) * _rup(9 * growth, 128)  # w2all x2
    for w1 in w1_list:
        est += 2 * 2 * _rup(w1.shape[0], 8) * _rup(cmid, 128)   # w1_l x2
    est += 4 * (h + 2) * _rup(w + 2, 8) * _rup(growth, 128)     # acc scratch
    vmem_limit = int(min(max(2 * est, 32 * 1024 * 1024), 64 * 1024 * 1024))

    kernel = functools.partial(
        _dense_block_kernel, num_layers=num_layers, c0=c0, growth=growth,
        cmid=cmid, h=h, w=w)

    # Note: for the toy config C_final(=32) < 128 so the output stores are
    # masked (vst.msk); real DenseNet channel counts are lane-dense.
    out_nhwc = pl.pallas_call(
        kernel,
        out_shape=jax.ShapeDtypeStruct((n, h, w, c_final), jnp.float32),
        grid_spec=pltpu.PrefetchScalarGridSpec(
            num_scalar_prefetch=0,
            grid=(n,),
            in_specs=in_specs,
            out_specs=pl.BlockSpec((1, h, w, c_final), lambda i: (i, 0, 0, 0)),
            scratch_shapes=[pltpu.VMEM((h + 2, w + 2, growth), jnp.float32)],
        ),
        compiler_params=pltpu.CompilerParams(
            dimension_semantics=("parallel",),
            vmem_limit_bytes=vmem_limit,
        ),
    )(x, sb1, sb2, w2all, *w1_list)

    return jnp.transpose(out_nhwc, (0, 3, 1, 2))   # NHWC -> NCHW


# ----------------------- deterministic parameter init ----------------------


def init_dense_block_params(key, num_layers, num_input_features, bn_size,
                            growth_rate, eps=1e-5):
    params = []
    for i in range(num_layers):
        cin = num_input_features + i * growth_rate
        cmid = bn_size * growth_rate
        key, *ks = jax.random.split(key, 11)
        gamma1 = jax.random.uniform(ks[0], (cin,), minval=0.5, maxval=1.5)
        beta1 = 0.1 * jax.random.normal(ks[1], (cin,))
        mean1 = 0.1 * jax.random.normal(ks[2], (cin,))
        var1 = jax.random.uniform(ks[3], (cin,), minval=0.5, maxval=1.5)
        w1 = jax.random.normal(ks[4], (cin, cmid)) / jnp.sqrt(cin)

        gamma2 = jax.random.uniform(ks[5], (cmid,), minval=0.5, maxval=1.5)
        beta2 = 0.1 * jax.random.normal(ks[6], (cmid,))
        mean2 = 0.1 * jax.random.normal(ks[7], (cmid,))
        var2 = jax.random.uniform(ks[8], (cmid,), minval=0.5, maxval=1.5)
        w2 = jax.random.normal(ks[9], (3, 3, cmid, growth_rate)) / jnp.sqrt(9 * cmid)

        s1 = gamma1 / jnp.sqrt(var1 + eps)
        b1 = beta1 - mean1 * s1
        s2 = gamma2 / jnp.sqrt(var2 + eps)
        b2 = beta2 - mean2 * s2

        params.append((
            s1.reshape(1, cin).astype(jnp.float32),
            b1.reshape(1, cin).astype(jnp.float32),
            w1.astype(jnp.float32),
            s2.reshape(1, cmid).astype(jnp.float32),
            b2.reshape(1, cmid).astype(jnp.float32),
            w2.astype(jnp.float32),
        ))
    return params


# ----------------------------- pure-JAX reference ---------------------------


def dense_block_reference(x_nchw, layer_params):
    """Reference with the same numerics as the kernel (bf16 matmul operands,
    f32 accumulation); structure follows the PyTorch module."""
    x = jnp.transpose(x_nchw, (0, 2, 3, 1)).astype(jnp.float32)
    feats = [x]
    for (s1, b1, w1, s2, b2, w2) in layer_params:
        cat = jnp.concatenate(feats, axis=-1)
        z = jnp.maximum(cat * s1.reshape(1, 1, 1, -1) + b1.reshape(1, 1, 1, -1), 0.0)
        y = jnp.einsum("nhwc,cd->nhwd",
                       z.astype(jnp.bfloat16), w1.astype(jnp.bfloat16),
                       preferred_element_type=jnp.float32)
        z2 = jnp.maximum(y * s2.reshape(1, 1, 1, -1) + b2.reshape(1, 1, 1, -1), 0.0)
        new = jax.lax.conv_general_dilated(
            z2.astype(jnp.bfloat16), w2.astype(jnp.bfloat16),
            window_strides=(1, 1), padding="SAME",
            dimension_numbers=("NHWC", "HWIO", "NHWC"),
            preferred_element_type=jnp.float32)
        feats.append(new)
    out = jnp.concatenate(feats, axis=-1)
    return jnp.transpose(out, (0, 3, 1, 2))


# ---------------------------------- main ------------------------------------


if __name__ == "__main__":
    # Small, DenseNet-consistent config.
    num_layers = 3
    num_input_features = 8
    bn_size = 2
    growth_rate = 8
    N, H, W = 2, 16, 16

    key = jax.random.PRNGKey(0)
    key, xkey = jax.random.split(key)
    x = jax.random.normal(xkey, (N, num_input_features, H, W), dtype=jnp.float32)

    layer_params = init_dense_block_params(
        key, num_layers, num_input_features, bn_size, growth_rate)

    fwd = jax.jit(functools.partial(dense_block_forward, layer_params=layer_params))
    out = jax.block_until_ready(fwd(x))

    expected_channels = num_input_features + num_layers * growth_rate
    assert out.shape == (N, expected_channels, H, W), out.shape

    ref = jax.block_until_ready(dense_block_reference(x, layer_params))
    max_err = float(jnp.max(jnp.abs(out - ref)))
    assert jnp.allclose(out, ref, rtol=1e-2, atol=1e-2), max_err

    print("KERNEL_OK")
</pallas_src>

<mosaic_0001>
module attributes {stable_mosaic.version = 11 : i64} {
  func.func @_dense_block_kernel(%arg0: i32, %arg1: memref<1x16x16x8xf32, #tpu.memory_space<vmem>>, %arg2: memref<6x24xf32, #tpu.memory_space<vmem>>, %arg3: memref<6x16xf32, #tpu.memory_space<vmem>>, %arg4: memref<3x16x72xbf16, #tpu.memory_space<vmem>>, %arg5: memref<8x16xbf16, #tpu.memory_space<vmem>>, %arg6: memref<16x16xbf16, #tpu.memory_space<vmem>>, %arg7: memref<24x16xbf16, #tpu.memory_space<vmem>>, %arg8: memref<1x16x16x32xf32, #tpu.memory_space<vmem>>, %arg9: memref<18x18x8xf32, #tpu.memory_space<vmem>>) attributes {dimension_semantics = [#tpu.dimension_semantics<parallel>], iteration_bounds = array<i64: 2>, scalar_prefetch = 0 : i64, scratch_operands = 1 : i64, tpu.core_type = #tpu.core_type<tc>, window_params = [{transform_indices = @transform_0, window_bounds = array<i64: 1, 16, 16, 8>}, {pipeline_mode = #tpu.pipeline_mode<synchronous>, transform_indices = @transform_1, window_bounds = array<i64: 6, 24>}, {pipeline_mode = #tpu.pipeline_mode<synchronous>, transform_indices = @transform_2, window_bounds = array<i64: 6, 16>}, {pipeline_mode = #tpu.pipeline_mode<synchronous>, transform_indices = @transform_3, window_bounds = array<i64: 3, 16, 72>}, {pipeline_mode = #tpu.pipeline_mode<synchronous>, transform_indices = @transform_4, window_bounds = array<i64: 8, 16>}, {pipeline_mode = #tpu.pipeline_mode<synchronous>, transform_indices = @transform_5, window_bounds = array<i64: 16, 16>}, {pipeline_mode = #tpu.pipeline_mode<synchronous>, transform_indices = @transform_6, window_bounds = array<i64: 24, 16>}, {transform_indices = @transform_7, window_bounds = array<i64: 1, 16, 16, 32>}]} {
    %c0 = arith.constant 0 : index
    %c0_0 = arith.constant 0 : index
    %c0_1 = arith.constant 0 : index
    %c0_2 = arith.constant 0 : index
    %0 = vector.load %arg1[%c0, %c0_0, %c0_1, %c0_2] : memref<1x16x16x8xf32, #tpu.memory_space<vmem>>, vector<1x16x16x8xf32>
    %1 = vector.shape_cast %0 : vector<1x16x16x8xf32> to vector<16x16x8xf32>
    %c0_3 = arith.constant 0 : index
    %c0_4 = arith.constant 0 : index
    %c0_5 = arith.constant 0 : index
    %c0_6 = arith.constant 0 : index
    %2 = vector.load %arg8[%c0_3, %c0_4, %c0_5, %c0_6] : memref<1x16x16x32xf32, #tpu.memory_space<vmem>>, vector<1x16x16x8xf32>
    %3 = vector.shape_cast %2 : vector<1x16x16x8xf32> to vector<16x16x8xf32>
    %4 = vector.shape_cast %1 : vector<16x16x8xf32> to vector<1x16x16x8xf32>
    tpu.vector_store %arg8[%c0_3, %c0_4, %c0_5, %c0_6], %4 {strides = array<i32>} : memref<1x16x16x32xf32, #tpu.memory_space<vmem>>, vector<1x16x16x8xf32>,
    %c0_7 = arith.constant 0 : index
    %c0_8 = arith.constant 0 : index
    %5 = vector.load %arg2[%c0_7, %c0_8] : memref<6x24xf32, #tpu.memory_space<vmem>>, vector<1x8xf32>
    %c1 = arith.constant 1 : index
    %c0_9 = arith.constant 0 : index
    %6 = vector.load %arg2[%c1, %c0_9] : memref<6x24xf32, #tpu.memory_space<vmem>>, vector<1x8xf32>
    %c0_10 = arith.constant 0 : index
    %c0_11 = arith.constant 0 : index
    %c0_12 = arith.constant 0 : index
    %c0_13 = arith.constant 0 : index
    %7 = vector.load %arg8[%c0_10, %c0_11, %c0_12, %c0_13] : memref<1x16x16x32xf32, #tpu.memory_space<vmem>>, vector<1x16x16x8xf32>
    %8 = vector.shape_cast %7 : vector<1x16x16x8xf32> to vector<16x16x8xf32>
    %9 = vector.shape_cast %5 : vector<1x8xf32> to vector<1x1x8xf32>
    %10 = vector.broadcast %9 : vector<1x1x8xf32> to vector<16x16x8xf32>
    %11 = arith.mulf %8, %10 : vector<16x16x8xf32>
    %12 = vector.shape_cast %6 : vector<1x8xf32> to vector<1x1x8xf32>
    %13 = vector.broadcast %12 : vector<1x1x8xf32> to vector<16x16x8xf32>
    %14 = arith.addf %11, %13 : vector<16x16x8xf32>
    %cst = arith.constant 0.000000e+00 : f32
    %15 = vector.broadcast %cst : f32 to vector<16x16x8xf32>
    %16 = arith.maximumf %14, %15 : vector<16x16x8xf32>
    %17 = vector.shape_cast %16 : vector<16x16x8xf32> to vector<256x8xf32>
    %18 = arith.truncf %17 : vector<256x8xf32> to vector<256x8xbf16>
    %c0_14 = arith.constant 0 : index
    %c0_15 = arith.constant 0 : index
    %19 = vector.load %arg5[%c0_14, %c0_15] : memref<8x16xbf16, #tpu.memory_space<vmem>>, vector<8x16xbf16>
    %cst_16 = arith.constant dense<0.000000e+00> : vector<256x16xf32>
    %20 = tpu.matmul %18, %19, %cst_16 {dimension_numbers = #tpu.dot_dimension_numbers<[1], [0], [0], [1], [0, 0, 1, 1], [], []>} : vector<256x8xbf16>, vector<8x16xbf16>, vector<256x16xf32> -> vector<256x16xf32>
    %c0_17 = arith.constant 0 : index
    %c0_18 = arith.constant 0 : index
    %21 = vector.load %arg3[%c0_17, %c0_18] : memref<6x16xf32, #tpu.memory_space<vmem>>, vector<1x16xf32>
    %c1_19 = arith.constant 1 : index
    %c0_20 = arith.constant 0 : index
    %22 = vector.load %arg3[%c1_19, %c0_20] : memref<6x16xf32, #tpu.memory_space<vmem>>, vector<1x16xf32>
    %23 = vector.broadcast %21 : vector<1x16xf32> to vector<256x16xf32>
    %24 = arith.mulf %20, %23 : vector<256x16xf32>
    %25 = vector.broadcast %22 : vector<1x16xf32> to vector<256x16xf32>
    %26 = arith.addf %24, %25 : vector<256x16xf32>
    %cst_21 = arith.constant 0.000000e+00 : f32
    %27 = vector.broadcast %cst_21 : f32 to vector<256x16xf32>
    %28 = arith.maximumf %26, %27 : vector<256x16xf32>
    %29 = arith.truncf %28 : vector<256x16xf32> to vector<256x16xbf16>
    %c0_22 = arith.constant 0 : index
    %c0_23 = arith.constant 0 : index
    %c0_24 = arith.constant 0 : index
    %30 = vector.load %arg4[%c0_22, %c0_23, %c0_24] : memref<3x16x72xbf16, #tpu.memory_space<vmem>>, vector<1x16x72xbf16>
    %31 = vector.shape_cast %30 : vector<1x16x72xbf16> to vector<16x72xbf16>
    %cst_25 = arith.constant dense<0.000000e+00> : vector<256x72xf32>
    %32 = tpu.matmul %29, %31, %cst_25 {dimension_numbers = #tpu.dot_dimension_numbers<[1], [0], [0], [1], [0, 0, 1, 1], [], []>} : vector<256x16xbf16>, vector<16x72xbf16>, vector<256x72xf32> -> vector<256x72xf32>
    %33 = vector.shape_cast %32 : vector<256x72xf32> to vector<16x16x72xf32>
    %34 = vector.extract_strided_slice %33 {offsets = [0, 0, 32], sizes = [16, 16, 8], strides = [1, 1, 1]} : vector<16x16x72xf32> to vector<16x16x8xf32>
    %c1_26 = arith.constant 1 : index
    %c1_27 = arith.constant 1 : index
    %c0_28 = arith.constant 0 : index
    %35 = vector.load %arg9[%c1_26, %c1_27, %c0_28] : memref<18x18x8xf32, #tpu.memory_space<vmem>>, vector<16x16x8xf32>
    tpu.vector_store %arg9[%c1_26, %c1_27, %c0_28], %34 {strides = array<i32>} : memref<18x18x8xf32, #tpu.memory_space<vmem>>, vector<16x16x8xf32>,
    %c2 = arith.constant 2 : index
    %c2_29 = arith.constant 2 : index
    %c0_30 = arith.constant 0 : index
    %36 = vector.load %arg9[%c2, %c2_29, %c0_30] : memref<18x18x8xf32, #tpu.memory_space<vmem>>, vector<16x16x8xf32>
    %37 = vector.extract_strided_slice %33 {offsets = [0, 0, 0], sizes = [16, 16, 8], strides = [1, 1, 1]} : vector<16x16x72xf32> to vector<16x16x8xf32>
    %38 = arith.addf %36, %37 : vector<16x16x8xf32>
    %c2_31 = arith.constant 2 : index
    %c2_32 = arith.constant 2 : index
    %c0_33 = arith.constant 0 : index
    %39 = vector.load %arg9[%c2_31, %c2_32, %c0_33] : memref<18x18x8xf32, #tpu.memory_space<vmem>>, vector<16x16x8xf32>
    tpu.vector_store %arg9[%c2_31, %c2_32, %c0_33], %38 {strides = array<i32>} : memref<18x18x8xf32, #tpu.memory_space<vmem>>, vector<16x16x8xf32>,
    %c2_34 = arith.constant 2 : index
    %c1_35 = arith.constant 1 : index
    %c0_36 = arith.constant 0 : index
    %40 = vector.load %arg9[%c2_34, %c1_35, %c0_36] : memref<18x18x8xf32, #tpu.memory_space<vmem>>, vector<16x16x8xf32>
    %41 = vector.extract_strided_slice %33 {offsets = [0, 0, 8], sizes = [16, 16, 8], strides = [1, 1, 1]} : vector<16x16x72xf32> to vector<16x16x8xf32>
    %42 = arith.addf %40, %41 : vector<16x16x8xf32>
    %c2_37 = arith.constant 2 : index
    %c1_38 = arith.constant 1 : index
    %c0_39 = arith.constant 0 : index
    %43 = vector.load %arg9[%c2_37, %c1_38, %c0_39] : memref<18x18x8xf32, #tpu.memory_space<vmem>>, vector<16x16x8xf32>
    tpu.vector_store %arg9[%c2_37, %c1_38, %c0_39], %42 {strides = array<i32>} : memref<18x18x8xf32, #tpu.memory_space<vmem>>, vector<16x16x8xf32>,
    %c2_40 = arith.constant 2 : index
    %c0_41 = arith.constant 0 : index
    %c0_42 = arith.constant 0 : index
    %44 = vector.load %arg9[%c2_40, %c0_41, %c0_42] : memref<18x18x8xf32, #tpu.memory_space<vmem>>, vector<16x16x8xf32>
    %45 = vector.extract_strided_slice %33 {offsets = [0, 0, 16], sizes = [16, 16, 8], strides = [1, 1, 1]} : vector<16x16x72xf32> to vector<16x16x8xf32>
    %46 = arith.addf %44, %45 : vector<16x16x8xf32>
    %c2_43 = arith.constant 2 : index
    %c0_44 = arith.constant 0 : index
    %c0_45 = arith.constant 0 : index
    %47 = vector.load %arg9[%c2_43, %c0_44, %c0_45] : memref<18x18x8xf32, #tpu.memory_space<vmem>>, vector<16x16x8xf32>
    tpu.vector_store %arg9[%c2_43, %c0_44, %c0_45], %46 {strides = array<i32>} : memref<18x18x8xf32, #tpu.memory_space<vmem>>, vector<16x16x8xf32>,
    %c1_46 = arith.constant 1 : index
    %c2_47 = arith.constant 2 : index
    %c0_48 = arith.constant 0 : index
    %48 = vector.load %arg9[%c1_46, %c2_47, %c0_48] : memref<18x18x8xf32, #tpu.memory_space<vmem>>, vector<16x16x8xf32>
    %49 = vector.extract_strided_slice %33 {offsets = [0, 0, 24], sizes = [16, 16, 8], strides = [1, 1, 1]} : vector<16x16x72xf32> to vector<16x16x8xf32>
    %50 = arith.addf %48, %49 : vector<16x16x8xf32>
    %c1_49 = arith.constant 1 : index
    %c2_50 = arith.constant 2 : index
    %c0_51 = arith.constant 0 : index
    %51 = vector.load %arg9[%c1_49, %c2_50, %c0_51] : memref<18x18x8xf32, #tpu.memory_space<vmem>>, vector<16x16x8xf32>
    tpu.vector_store %arg9[%c1_49, %c2_50, %c0_51], %50 {strides = array<i32>} : memref<18x18x8xf32, #tpu.memory_space<vmem>>, vector<16x16x8xf32>,
    %c1_52 = arith.constant 1 : index
    %c0_53 = arith.constant 0 : index
    %c0_54 = arith.constant 0 : index
    %52 = vector.load %arg9[%c1_52, %c0_53, %c0_54] : memref<18x18x8xf32, #tpu.memory_space<vmem>>, vector<16x16x8xf32>
    %53 = vector.extract_strided_slice %33 {offsets = [0, 0, 40], sizes = [16, 16, 8], strides = [1, 1, 1]} : vector<16x16x72xf32> to vector<16x16x8xf32>
    %54 = arith.addf %52, %53 : vector<16x16x8xf32>
    %c1_55 = arith.constant 1 : index
    %c0_56 = arith.constant 0 : index
    %c0_57 = arith.constant 0 : index
    %55 = vector.load %arg9[%c1_55, %c0_56, %c0_57] : memref<18x18x8xf32, #tpu.memory_space<vmem>>, vector<16x16x8xf32>
    tpu.vector_store %arg9[%c1_55, %c0_56, %c0_57], %54 {strides = array<i32>} : memref<18x18x8xf32, #tpu.memory_space<vmem>>, vector<16x16x8xf32>,
    %c0_58 = arith.constant 0 : index
    %c2_59 = arith.constant 2 : index
    %c0_60 = arith.constant 0 : index
    %56 = vector.load %arg9[%c0_58, %c2_59, %c0_60] : memref<18x18x8xf32, #tpu.memory_space<vmem>>, vector<16x16x8xf32>
    %57 = vector.extract_strided_slice %33 {offsets = [0, 0, 48], sizes = [16, 16, 8], strides = [1, 1, 1]} : vector<16x16x72xf32> to vector<16x16x8xf32>
    %58 = arith.addf %56, %57 : vector<16x16x8xf32>
    %c0_61 = arith.constant 0 : index
    %c2_62 = arith.constant 2 : index
    %c0_63 = arith.constant 0 : index
    %59 = vector.load %arg9[%c0_61, %c2_62, %c0_63] : memref<18x18x8xf32, #tpu.memory_space<vmem>>, vector<16x16x8xf32>
    tpu.vector_store %arg9[%c0_61, %c2_62, %c0_63], %58 {strides = array<i32>} : memref<18x18x8xf32, #tpu.memory_space<vmem>>, vector<16x16x8xf32>,
    %c0_64 = arith.constant 0 : index
    %c1_65 = arith.constant 1 : index
    %c0_66 = arith.constant 0 : index
    %60 = vector.load %arg9[%c0_64, %c1_65, %c0_66] : memref<18x18x8xf32, #tpu.memory_space<vmem>>, vector<16x16x8xf32>
    %61 = vector.extract_strided_slice %33 {offsets = [0, 0, 56], sizes = [16, 16, 8], strides = [1, 1, 1]} : vector<16x16x72xf32> to vector<16x16x8xf32>
    %62 = arith.addf %60, %61 : vector<16x16x8xf32>
    %c0_67 = arith.constant 0 : index
    %c1_68 = arith.constant 1 : index
    %c0_69 = arith.constant 0 : index
    %63 = vector.load %arg9[%c0_67, %c1_68, %c0_69] : memref<18x18x8xf32, #tpu.memory_space<vmem>>, vector<16x16x8xf32>
    tpu.vector_store %arg9[%c0_67, %c1_68, %c0_69], %62 {strides = array<i32>} : memref<18x18x8xf32, #tpu.memory_space<vmem>>, vector<16x16x8xf32>,
    %c0_70 = arith.constant 0 : index
    %c0_71 = arith.constant 0 : index
    %c0_72 = arith.constant 0 : index
    %64 = vector.load %arg9[%c0_70, %c0_71, %c0_72] : memref<18x18x8xf32, #tpu.memory_space<vmem>>, vector<16x16x8xf32>
    %65 = vector.extract_strided_slice %33 {offsets = [0, 0, 64], sizes = [16, 16, 8], strides = [1, 1, 1]} : vector<16x16x72xf32> to vector<16x16x8xf32>
    %66 = arith.addf %64, %65 : vector<16x16x8xf32>
    %c0_73 = arith.constant 0 : index
    %c0_74 = arith.constant 0 : index
    %c0_75 = arith.constant 0 : index
    %67 = vector.load %arg9[%c0_73, %c0_74, %c0_75] : memref<18x18x8xf32, #tpu.memory_space<vmem>>, vector<16x16x8xf32>
    tpu.vector_store %arg9[%c0_73, %c0_74, %c0_75], %66 {strides = array<i32>} : memref<18x18x8xf32, #tpu.memory_space<vmem>>, vector<16x16x8xf32>,
    %c1_76 = arith.constant 1 : index
    %c1_77 = arith.constant 1 : index
    %c0_78 = arith.constant 0 : index
    %68 = vector.load %arg9[%c1_76, %c1_77, %c0_78] : memref<18x18x8xf32, #tpu.memory_space<vmem>>, vector<16x16x8xf32>
    %c0_79 = arith.constant 0 : index
    %c0_80 = arith.constant 0 : index
    %c0_81 = arith.constant 0 : index
    %c8 = arith.constant 8 : index
    %69 = vector.load %arg8[%c0_79, %c0_80, %c0_81, %c8] : memref<1x16x16x32xf32, #tpu.memory_space<vmem>>, vector<1x16x16x8xf32>
    %70 = vector.shape_cast %69 : vector<1x16x16x8xf32> to vector<16x16x8xf32>
    %71 = vector.shape_cast %68 : vector<16x16x8xf32> to vector<1x16x16x8xf32>
    tpu.vector_store %arg8[%c0_79, %c0_80, %c0_81, %c8], %71 {strides = array<i32>} : memref<1x16x16x32xf32, #tpu.memory_space<vmem>>, vector<1x16x16x8xf32>,
    %c2_82 = arith.constant 2 : index
    %c0_83 = arith.constant 0 : index
    %72 = vector.load %arg2[%c2_82, %c0_83] : memref<6x24xf32, #tpu.memory_space<vmem>>, vector<1x16xf32>
    %c3 = arith.constant 3 : index
    %c0_84 = arith.constant 0 : index
    %73 = vector.load %arg2[%c3, %c0_84] : memref<6x24xf32, #tpu.memory_space<vmem>>, vector<1x16xf32>
    %c0_85 = arith.constant 0 : index
    %c0_86 = arith.constant 0 : index
    %c0_87 = arith.constant 0 : index
    %c0_88 = arith.constant 0 : index
    %74 = vector.load %arg8[%c0_85, %c0_86, %c0_87, %c0_88] : memref<1x16x16x32xf32, #tpu.memory_space<vmem>>, vector<1x16x16x16xf32>
    %75 = vector.shape_cast %74 : vector<1x16x16x16xf32> to vector<16x16x16xf32>
    %76 = vector.shape_cast %72 : vector<1x16xf32> to vector<1x1x16xf32>
    %77 = vector.broadcast %76 : vector<1x1x16xf32> to vector<16x16x16xf32>
    %78 = arith.mulf %75, %77 : vector<16x16x16xf32>
    %79 = vector.shape_cast %73 : vector<1x16xf32> to vector<1x1x16xf32>
    %80 = vector.broadcast %79 : vector<1x1x16xf32> to vector<16x16x16xf32>
    %81 = arith.addf %78, %80 : vector<16x16x16xf32>
    %cst_89 = arith.constant 0.000000e+00 : f32
    %82 = vector.broadcast %cst_89 : f32 to vector<16x16x16xf32>
    %83 = arith.maximumf %81, %82 : vector<16x16x16xf32>
    %84 = vector.shape_cast %83 : vector<16x16x16xf32> to vector<256x16xf32>
    %85 = arith.truncf %84 : vector<256x16xf32> to vector<256x16xbf16>
    %c0_90 = arith.constant 0 : index
    %c0_91 = arith.constant 0 : index
    %86 = vector.load %arg6[%c0_90, %c0_91] : memref<16x16xbf16, #tpu.memory_space<vmem>>, vector<16x16xbf16>
    %cst_92 = arith.constant dense<0.000000e+00> : vector<256x16xf32>
    %87 = tpu.matmul %85, %86, %cst_92 {dimension_numbers = #tpu.dot_dimension_numbers<[1], [0], [0], [1], [0, 0, 1, 1], [], []>} : vector<256x16xbf16>, vector<16x16xbf16>, vector<256x16xf32> -> vector<256x16xf32>
    %c2_93 = arith.constant 2 : index
    %c0_94 = arith.constant 0 : index
    %88 = vector.load %arg3[%c2_93, %c0_94] : memref<6x16xf32, #tpu.memory_space<vmem>>, vector<1x16xf32>
    %c3_95 = arith.constant 3 : index
    %c0_96 = arith.constant 0 : index
    %89 = vector.load %arg3[%c3_95, %c0_96] : memref<6x16xf32, #tpu.memory_space<vmem>>, vector<1x16xf32>
    %90 = vector.broadcast %88 : vector<1x16xf32> to vector<256x16xf32>
    %91 = arith.mulf %87, %90 : vector<256x16xf32>
    %92 = vector.broadcast %89 : vector<1x16xf32> to vector<256x16xf32>
    %93 = arith.addf %91, %92 : vector<256x16xf32>
    %cst_97 = arith.constant 0.000000e+00 : f32
    %94 = vector.broadcast %cst_97 : f32 to vector<256x16xf32>
    %95 = arith.maximumf %93, %94 : vector<256x16xf32>
    %96 = arith.truncf %95 : vector<256x16xf32> to vector<256x16xbf16>
    %c1_98 = arith.constant 1 : index
    %c0_99 = arith.constant 0 : index
    %c0_100 = arith.constant 0 : index
    %97 = vector.load %arg4[%c1_98, %c0_99, %c0_100] : memref<3x16x72xbf16, #tpu.memory_space<vmem>>, vector<1x16x72xbf16>
    %98 = vector.shape_cast %97 : vector<1x16x72xbf16> to vector<16x72xbf16>
    %cst_101 = arith.constant dense<0.000000e+00> : vector<256x72xf32>
    %99 = tpu.matmul %96, %98, %cst_101 {dimension_numbers = #tpu.dot_dimension_numbers<[1], [0], [0], [1], [0, 0, 1, 1], [], []>} : vector<256x16xbf16>, vector<16x72xbf16>, vector<256x72xf32> -> vector<256x72xf32>
    %100 = vector.shape_cast %99 : vector<256x72xf32> to vector<16x16x72xf32>
    %101 = vector.extract_strided_slice %100 {offsets = [0, 0, 32], sizes = [16, 16, 8], strides = [1, 1, 1]} : vector<16x16x72xf32> to vector<16x16x8xf32>
    %c1_102 = arith.constant 1 : index
    %c1_103 = arith.constant 1 : index
    %c0_104 = arith.constant 0 : index
    %102 = vector.load %arg9[%c1_102, %c1_103, %c0_104] : memref<18x18x8xf32, #tpu.memory_space<vmem>>, vector<16x16x8xf32>
    tpu.vector_store %arg9[%c1_102, %c1_103, %c0_104], %101 {strides = array<i32>} : memref<18x18x8xf32, #tpu.memory_space<vmem>>, vector<16x16x8xf32>,
    %c2_105 = arith.constant 2 : index
    %c2_106 = arith.constant 2 : index
    %c0_107 = arith.constant 0 : index
    %103 = vector.load %arg9[%c2_105, %c2_106, %c0_107] : memref<18x18x8xf32, #tpu.memory_space<vmem>>, vector<16x16x8xf32>
    %104 = vector.extract_strided_slice %100 {offsets = [0, 0, 0], sizes = [16, 16, 8], strides = [1, 1, 1]} : vector<16x16x72xf32> to vector<16x16x8xf32>
    %105 = arith.addf %103, %104 : vector<16x16x8xf32>
    %c2_108 = arith.constant 2 : index
    %c2_109 = arith.constant 2 : index
    %c0_110 = arith.constant 0 : index
    %106 = vector.load %arg9[%c2_108, %c2_109, %c0_110] : memref<18x18x8xf32, #tpu.memory_space<vmem>>, vector<16x16x8xf32>
    tpu.vector_store %arg9[%c2_108, %c2_109, %c0_110], %105 {strides = array<i32>} : memref<18x18x8xf32, #tpu.memory_space<vmem>>, vector<16x16x8xf32>,
    %c2_111 = arith.constant 2 : index
    %c1_112 = arith.constant 1 : index
    %c0_113 = arith.constant 0 : index
    %107 = vector.load %arg9[%c2_111, %c1_112, %c0_113] : memref<18x18x8xf32, #tpu.memory_space<vmem>>, vector<16x16x8xf32>
    %108 = vector.extract_strided_slice %100 {offsets = [0, 0, 8], sizes = [16, 16, 8], strides = [1, 1, 1]} : vector<16x16x72xf32> to vector<16x16x8xf32>
    %109 = arith.addf %107, %108 : vector<16x16x8xf32>
    %c2_114 = arith.constant 2 : index
    %c1_115 = arith.constant 1 : index
    %c0_116 = arith.constant 0 : index
    %110 = vector.load %arg9[%c2_114, %c1_115, %c0_116] : memref<18x18x8xf32, #tpu.memory_space<vmem>>, vector<16x16x8xf32>
    tpu.vector_store %arg9[%c2_114, %c1_115, %c0_116], %109 {strides = array<i32>} : memref<18x18x8xf32, #tpu.memory_space<vmem>>, vector<16x16x8xf32>,
    %c2_117 = arith.constant 2 : index
    %c0_118 = arith.constant 0 : index
    %c0_119 = arith.constant 0 : index
    %111 = vector.load %arg9[%c2_117, %c0_118, %c0_119] : memref<18x18x8xf32, #tpu.memory_space<vmem>>, vector<16x16x8xf32>
    %112 = vector.extract_strided_slice %100 {offsets = [0, 0, 16], sizes = [16, 16, 8], strides = [1, 1, 1]} : vector<16x16x72xf32> to vector<16x16x8xf32>
    %113 = arith.addf %111, %112 : vector<16x16x8xf32>
    %c2_120 = arith.constant 2 : index
    %c0_121 = arith.constant 0 : index
    %c0_122 = arith.constant 0 : index
    %114 = vector.load %arg9[%c2_120, %c0_121, %c0_122] : memref<18x18x8xf32, #tpu.memory_space<vmem>>, vector<16x16x8xf32>
    tpu.vector_store %arg9[%c2_120, %c0_121, %c0_122], %113 {strides = array<i32>} : memref<18x18x8xf32, #tpu.memory_space<vmem>>, vector<16x16x8xf32>,
    %c1_123 = arith.constant 1 : index
    %c2_124 = arith.constant 2 : index
    %c0_125 = arith.constant 0 : index
    %115 = vector.load %arg9[%c1_123, %c2_124, %c0_125] : memref<18x18x8xf32, #tpu.memory_space<vmem>>, vector<16x16x8xf32>
    %116 = vector.extract_strided_slice %100 {offsets = [0, 0, 24], sizes = [16, 16, 8], strides = [1, 1, 1]} : vector<16x16x72xf32> to vector<16x16x8xf32>
    %117 = arith.addf %115, %116 : vector<16x16x8xf32>
    %c1_126 = arith.constant 1 : index
    %c2_127 = arith.constant 2 : index
    %c0_128 = arith.constant 0 : index
    %118 = vector.load %arg9[%c1_126, %c2_127, %c0_128] : memref<18x18x8xf32, #tpu.memory_space<vmem>>, vector<16x16x8xf32>
    tpu.vector_store %arg9[%c1_126, %c2_127, %c0_128], %117 {strides = array<i32>} : memref<18x18x8xf32, #tpu.memory_space<vmem>>, vector<16x16x8xf32>,
    %c1_129 = arith.constant 1 : index
    %c0_130 = arith.constant 0 : index
    %c0_131 = arith.constant 0 : index
    %119 = vector.load %arg9[%c1_129, %c0_130, %c0_131] : memref<18x18x8xf32, #tpu.memory_space<vmem>>, vector<16x16x8xf32>
    %120 = vector.extract_strided_slice %100 {offsets = [0, 0, 40], sizes = [16, 16, 8], strides = [1, 1, 1]} : vector<16x16x72xf32> to vector<16x16x8xf32>
    %121 = arith.addf %119, %120 : vector<16x16x8xf32>
    %c1_132 = arith.constant 1 : index
    %c0_133 = arith.constant 0 : index
    %c0_134 = arith.constant 0 : index
    %122 = vector.load %arg9[%c1_132, %c0_133, %c0_134] : memref<18x18x8xf32, #tpu.memory_space<vmem>>, vector<16x16x8xf32>
    tpu.vector_store %arg9[%c1_132, %c0_133, %c0_134], %121 {strides = array<i32>} : memref<18x18x8xf32, #tpu.memory_space<vmem>>, vector<16x16x8xf32>,
    %c0_135 = arith.constant 0 : index
    %c2_136 = arith.constant 2 : index
    %c0_137 = arith.constant 0 : index
    %123 = vector.load %arg9[%c0_135, %c2_136, %c0_137] : memref<18x18x8xf32, #tpu.memory_space<vmem>>, vector<16x16x8xf32>
    %124 = vector.extract_strided_slice %100 {offsets = [0, 0, 48], sizes = [16, 16, 8], strides = [1, 1, 1]} : vector<16x16x72xf32> to vector<16x16x8xf32>
    %125 = arith.addf %123, %124 : vector<16x16x8xf32>
    %c0_138 = arith.constant 0 : index
    %c2_139 = arith.constant 2 : index
    %c0_140 = arith.constant 0 : index
    %126 = vector.load %arg9[%c0_138, %c2_139, %c0_140] : memref<18x18x8xf32, #tpu.memory_space<vmem>>, vector<16x16x8xf32>
    tpu.vector_store %arg9[%c0_138, %c2_139, %c0_140], %125 {strides = array<i32>} : memref<18x18x8xf32, #tpu.memory_space<vmem>>, vector<16x16x8xf32>,
    %c0_141 = arith.constant 0 : index
    %c1_142 = arith.constant 1 : index
    %c0_143 = arith.constant 0 : index
    %127 = vector.load %arg9[%c0_141, %c1_142, %c0_143] : memref<18x18x8xf32, #tpu.memory_space<vmem>>, vector<16x16x8xf32>
    %128 = vector.extract_strided_slice %100 {offsets = [0, 0, 56], sizes = [16, 16, 8], strides = [1, 1, 1]} : vector<16x16x72xf32> to vector<16x16x8xf32>
    %129 = arith.addf %127, %128 : vector<16x16x8xf32>
    %c0_144 = arith.constant 0 : index
    %c1_145 = arith.constant 1 : index
    %c0_146 = arith.constant 0 : index
    %130 = vector.load %arg9[%c0_144, %c1_145, %c0_146] : memref<18x18x8xf32, #tpu.memory_space<vmem>>, vector<16x16x8xf32>
    tpu.vector_store %arg9[%c0_144, %c1_145, %c0_146], %129 {strides = array<i32>} : memref<18x18x8xf32, #tpu.memory_space<vmem>>, vector<16x16x8xf32>,
    %c0_147 = arith.constant 0 : index
    %c0_148 = arith.constant 0 : index
    %c0_149 = arith.constant 0 : index
    %131 = vector.load %arg9[%c0_147, %c0_148, %c0_149] : memref<18x18x8xf32, #tpu.memory_space<vmem>>, vector<16x16x8xf32>
    %132 = vector.extract_strided_slice %100 {offsets = [0, 0, 64], sizes = [16, 16, 8], strides = [1, 1, 1]} : vector<16x16x72xf32> to vector<16x16x8xf32>
    %133 = arith.addf %131, %132 : vector<16x16x8xf32>
    %c0_150 = arith.constant 0 : index
    %c0_151 = arith.constant 0 : index
    %c0_152 = arith.constant 0 : index
    %134 = vector.load %arg9[%c0_150, %c0_151, %c0_152] : memref<18x18x8xf32, #tpu.memory_space<vmem>>, vector<16x16x8xf32>
    tpu.vector_store %arg9[%c0_150, %c0_151, %c0_152], %133 {strides = array<i32>} : memref<18x18x8xf32, #tpu.memory_space<vmem>>, vector<16x16x8xf32>,
    %c1_153 = arith.constant 1 : index
    %c1_154 = arith.constant 1 : index
    %c0_155 = arith.constant 0 : index
    %135 = vector.load %arg9[%c1_153, %c1_154, %c0_155] : memref<18x18x8xf32, #tpu.memory_space<vmem>>, vector<16x16x8xf32>
    %c0_156 = arith.constant 0 : index
    %c0_157 = arith.constant 0 : index
    %c0_158 = arith.constant 0 : index
    %c16 = arith.constant 16 : index
    %136 = vector.load %arg8[%c0_156, %c0_157, %c0_158, %c16] : memref<1x16x16x32xf32, #tpu.memory_space<vmem>>, vector<1x16x16x8xf32>
    %137 = vector.shape_cast %136 : vector<1x16x16x8xf32> to vector<16x16x8xf32>
    %138 = vector.shape_cast %135 : vector<16x16x8xf32> to vector<1x16x16x8xf32>
    tpu.vector_store %arg8[%c0_156, %c0_157, %c0_158, %c16], %138 {strides = array<i32>} : memref<1x16x16x32xf32, #tpu.memory_space<vmem>>, vector<1x16x16x8xf32>,
    %c4 = arith.constant 4 : index
    %c0_159 = arith.constant 0 : index
    %139 = vector.load %arg2[%c4, %c0_159] : memref<6x24xf32, #tpu.memory_space<vmem>>, vector<1x24xf32>
    %c5 = arith.constant 5 : index
    %c0_160 = arith.constant 0 : index
    %140 = vector.load %arg2[%c5, %c0_160] : memref<6x24xf32, #tpu.memory_space<vmem>>, vector<1x24xf32>
    %c0_161 = arith.constant 0 : index
    %c0_162 = arith.constant 0 : index
    %c0_163 = arith.constant 0 : index
    %c0_164 = arith.constant 0 : index
    %141 = vector.load %arg8[%c0_161, %c0_162, %c0_163, %c0_164] : memref<1x16x16x32xf32, #tpu.memory_space<vmem>>, vector<1x16x16x24xf32>
    %142 = vector.shape_cast %141 : vector<1x16x16x24xf32> to vector<16x16x24xf32>
    %143 = vector.shape_cast %139 : vector<1x24xf32> to vector<1x1x24xf32>
    %144 = vector.broadcast %143 : vector<1x1x24xf32> to vector<16x16x24xf32>
    %145 = arith.mulf %142, %144 : vector<16x16x24xf32>
    %146 = vector.shape_cast %140 : vector<1x24xf32> to vector<1x1x24xf32>
    %147 = vector.broadcast %146 : vector<1x1x24xf32> to vector<16x16x24xf32>
    %148 = arith.addf %145, %147 : vector<16x16x24xf32>
    %cst_165 = arith.constant 0.000000e+00 : f32
    %149 = vector.broadcast %cst_165 : f32 to vector<16x16x24xf32>
    %150 = arith.maximumf %148, %149 : vector<16x16x24xf32>
    %151 = vector.shape_cast %150 : vector<16x16x24xf32> to vector<256x24xf32>
    %152 = arith.truncf %151 : vector<256x24xf32> to vector<256x24xbf16>
    %c0_166 = arith.constant 0 : index
    %c0_167 = arith.constant 0 : index
    %153 = vector.load %arg7[%c0_166, %c0_167] : memref<24x16xbf16, #tpu.memory_space<vmem>>, vector<24x16xbf16>
    %cst_168 = arith.constant dense<0.000000e+00> : vector<256x16xf32>
    %154 = tpu.matmul %152, %153, %cst_168 {dimension_numbers = #tpu.dot_dimension_numbers<[1], [0], [0], [1], [0, 0, 1, 1], [], []>} : vector<256x24xbf16>, vector<24x16xbf16>, vector<256x16xf32> -> vector<256x16xf32>
    %c4_169 = arith.constant 4 : index
    %c0_170 = arith.constant 0 : index
    %155 = vector.load %arg3[%c4_169, %c0_170] : memref<6x16xf32, #tpu.memory_space<vmem>>, vector<1x16xf32>
    %c5_171 = arith.constant 5 : index
    %c0_172 = arith.constant 0 : index
    %156 = vector.load %arg3[%c5_171, %c0_172] : memref<6x16xf32, #tpu.memory_space<vmem>>, vector<1x16xf32>
    %157 = vector.broadcast %155 : vector<1x16xf32> to vector<256x16xf32>
    %158 = arith.mulf %154, %157 : vector<256x16xf32>
    %159 = vector.broadcast %156 : vector<1x16xf32> to vector<256x16xf32>
    %160 = arith.addf %158, %159 : vector<256x16xf32>
    %cst_173 = arith.constant 0.000000e+00 : f32
    %161 = vector.broadcast %cst_173 : f32 to vector<256x16xf32>
    %162 = arith.maximumf %160, %161 : vector<256x16xf32>
    %163 = arith.truncf %162 : vector<256x16xf32> to vector<256x16xbf16>
    %c2_174 = arith.constant 2 : index
    %c0_175 = arith.constant 0 : index
    %c0_176 = arith.constant 0 : index
    %164 = vector.load %arg4[%c2_174, %c0_175, %c0_176] : memref<3x16x72xbf16, #tpu.memory_space<vmem>>, vector<1x16x72xbf16>
    %165 = vector.shape_cast %164 : vector<1x16x72xbf16> to vector<16x72xbf16>
    %cst_177 = arith.constant dense<0.000000e+00> : vector<256x72xf32>
    %166 = tpu.matmul %163, %165, %cst_177 {dimension_numbers = #tpu.dot_dimension_numbers<[1], [0], [0], [1], [0, 0, 1, 1], [], []>} : vector<256x16xbf16>, vector<16x72xbf16>, vector<256x72xf32> -> vector<256x72xf32>
    %167 = vector.shape_cast %166 : vector<256x72xf32> to vector<16x16x72xf32>
    %168 = vector.extract_strided_slice %167 {offsets = [0, 0, 32], sizes = [16, 16, 8], strides = [1, 1, 1]} : vector<16x16x72xf32> to vector<16x16x8xf32>
    %c1_178 = arith.constant 1 : index
    %c1_179 = arith.constant 1 : index
    %c0_180 = arith.constant 0 : index
    %169 = vector.load %arg9[%c1_178, %c1_179, %c0_180] : memref<18x18x8xf32, #tpu.memory_space<vmem>>, vector<16x16x8xf32>
    tpu.vector_store %arg9[%c1_178, %c1_179, %c0_180], %168 {strides = array<i32>} : memref<18x18x8xf32, #tpu.memory_space<vmem>>, vector<16x16x8xf32>,
    %c2_181 = arith.constant 2 : index
    %c2_182 = arith.constant 2 : index
    %c0_183 = arith.constant 0 : index
    %170 = vector.load %arg9[%c2_181, %c2_182, %c0_183] : memref<18x18x8xf32, #tpu.memory_space<vmem>>, vector<16x16x8xf32>
    %171 = vector.extract_strided_slice %167 {offsets = [0, 0, 0], sizes = [16, 16, 8], strides = [1, 1, 1]} : vector<16x16x72xf32> to vector<16x16x8xf32>
    %172 = arith.addf %170, %171 : vector<16x16x8xf32>
    %c2_184 = arith.constant 2 : index
    %c2_185 = arith.constant 2 : index
    %c0_186 = arith.constant 0 : index
    %173 = vector.load %arg9[%c2_184, %c2_185, %c0_186] : memref<18x18x8xf32, #tpu.memory_space<vmem>>, vector<16x16x8xf32>
    tpu.vector_store %arg9[%c2_184, %c2_185, %c0_186], %172 {strides = array<i32>} : memref<18x18x8xf32, #tpu.memory_space<vmem>>, vector<16x16x8xf32>,
    %c2_187 = arith.constant 2 : index
    %c1_188 = arith.constant 1 : index
    %c0_189 = arith.constant 0 : index
    %174 = vector.load %arg9[%c2_187, %c1_188, %c0_189] : memref<18x18x8xf32, #tpu.memory_space<vmem>>, vector<16x16x8xf32>
    %175 = vector.extract_strided_slice %167 {offsets = [0, 0, 8], sizes = [16, 16, 8], strides = [1, 1, 1]} : vector<16x16x72xf32> to vector<16x16x8xf32>
    %176 = arith.addf %174, %175 : vector<16x16x8xf32>
    %c2_190 = arith.constant 2 : index
    %c1_191 = arith.constant 1 : index
    %c0_192 = arith.constant 0 : index
    %177 = vector.load %arg9[%c2_190, %c1_191, %c0_192] : memref<18x18x8xf32, #tpu.memory_space<vmem>>, vector<16x16x8xf32>
    tpu.vector_store %arg9[%c2_190, %c1_191, %c0_192], %176 {strides = array<i32>} : memref<18x18x8xf32, #tpu.memory_space<vmem>>, vector<16x16x8xf32>,
    %c2_193 = arith.constant 2 : index
    %c0_194 = arith.constant 0 : index
    %c0_195 = arith.constant 0 : index
    %178 = vector.load %arg9[%c2_193, %c0_194, %c0_195] : memref<18x18x8xf32, #tpu.memory_space<vmem>>, vector<16x16x8xf32>
    %179 = vector.extract_strided_slice %167 {offsets = [0, 0, 16], sizes = [16, 16, 8], strides = [1, 1, 1]} : vector<16x16x72xf32> to vector<16x16x8xf32>
    %180 = arith.addf %178, %179 : vector<16x16x8xf32>
    %c2_196 = arith.constant 2 : index
    %c0_197 = arith.constant 0 : index
    %c0_198 = arith.constant 0 : index
    %181 = vector.load %arg9[%c2_196, %c0_197, %c0_198] : memref<18x18x8xf32, #tpu.memory_space<vmem>>, vector<16x16x8xf32>
    tpu.vector_store %arg9[%c2_196, %c0_197, %c0_198], %180 {strides = array<i32>} : memref<18x18x8xf32, #tpu.memory_space<vmem>>, vector<16x16x8xf32>,
    %c1_199 = arith.constant 1 : index
    %c2_200 = arith.constant 2 : index
    %c0_201 = arith.constant 0 : index
    %182 = vector.load %arg9[%c1_199, %c2_200, %c0_201] : memref<18x18x8xf32, #tpu.memory_space<vmem>>, vector<16x16x8xf32>
    %183 = vector.extract_strided_slice %167 {offsets = [0, 0, 24], sizes = [16, 16, 8], strides = [1, 1, 1]} : vector<16x16x72xf32> to vector<16x16x8xf32>
    %184 = arith.addf %182, %183 : vector<16x16x8xf32>
    %c1_202 = arith.constant 1 : index
    %c2_203 = arith.constant 2 : index
    %c0_204 = arith.constant 0 : index
    %185 = vector.load %arg9[%c1_202, %c2_203, %c0_204] : memref<18x18x8xf32, #tpu.memory_space<vmem>>, vector<16x16x8xf32>
    tpu.vector_store %arg9[%c1_202, %c2_203, %c0_204], %184 {strides = array<i32>} : memref<18x18x8xf32, #tpu.memory_space<vmem>>, vector<16x16x8xf32>,
    %c1_205 = arith.constant 1 : index
    %c0_206 = arith.constant 0 : index
    %c0_207 = arith.constant 0 : index
    %186 = vector.load %arg9[%c1_205, %c0_206, %c0_207] : memref<18x18x8xf32, #tpu.memory_space<vmem>>, vector<16x16x8xf32>
    %187 = vector.extract_strided_slice %167 {offsets = [0, 0, 40], sizes = [16, 16, 8], strides = [1, 1, 1]} : vector<16x16x72xf32> to vector<16x16x8xf32>
    %188 = arith.addf %186, %187 : vector<16x16x8xf32>
    %c1_208 = arith.constant 1 : index
    %c0_209 = arith.constant 0 : index
    %c0_210 = arith.constant 0 : index
    %189 = vector.load %arg9[%c1_208, %c0_209, %c0_210] : memref<18x18x8xf32, #tpu.memory_space<vmem>>, vector<16x16x8xf32>
    tpu.vector_store %arg9[%c1_208, %c0_209, %c0_210], %188 {strides = array<i32>} : memref<18x18x8xf32, #tpu.memory_space<vmem>>, vector<16x16x8xf32>,
    %c0_211 = arith.constant 0 : index
    %c2_212 = arith.constant 2 : index
    %c0_213 = arith.constant 0 : index
    %190 = vector.load %arg9[%c0_211, %c2_212, %c0_213] : memref<18x18x8xf32, #tpu.memory_space<vmem>>, vector<16x16x8xf32>
    %191 = vector.extract_strided_slice %167 {offsets = [0, 0, 48], sizes = [16, 16, 8], strides = [1, 1, 1]} : vector<16x16x72xf32> to vector<16x16x8xf32>
    %192 = arith.addf %190, %191 : vector<16x16x8xf32>
    %c0_214 = arith.constant 0 : index
    %c2_215 = arith.constant 2 : index
    %c0_216 = arith.constant 0 : index
    %193 = vector.load %arg9[%c0_214, %c2_215, %c0_216] : memref<18x18x8xf32, #tpu.memory_space<vmem>>, vector<16x16x8xf32>
    tpu.vector_store %arg9[%c0_214, %c2_215, %c0_216], %192 {strides = array<i32>} : memref<18x18x8xf32, #tpu.memory_space<vmem>>, vector<16x16x8xf32>,
    %c0_217 = arith.constant 0 : index
    %c1_218 = arith.constant 1 : index
    %c0_219 = arith.constant 0 : index
    %194 = vector.load %arg9[%c0_217, %c1_218, %c0_219] : memref<18x18x8xf32, #tpu.memory_space<vmem>>, vector<16x16x8xf32>
    %195 = vector.extract_strided_slice %167 {offsets = [0, 0, 56], sizes = [16, 16, 8], strides = [1, 1, 1]} : vector<16x16x72xf32> to vector<16x16x8xf32>
    %196 = arith.addf %194, %195 : vector<16x16x8xf32>
    %c0_220 = arith.constant 0 : index
    %c1_221 = arith.constant 1 : index
    %c0_222 = arith.constant 0 : index
    %197 = vector.load %arg9[%c0_220, %c1_221, %c0_222] : memref<18x18x8xf32, #tpu.memory_space<vmem>>, vector<16x16x8xf32>
    tpu.vector_store %arg9[%c0_220, %c1_221, %c0_222], %196 {strides = array<i32>} : memref<18x18x8xf32, #tpu.memory_space<vmem>>, vector<16x16x8xf32>,
    %c0_223 = arith.constant 0 : index
    %c0_224 = arith.constant 0 : index
    %c0_225 = arith.constant 0 : index
    %198 = vector.load %arg9[%c0_223, %c0_224, %c0_225] : memref<18x18x8xf32, #tpu.memory_space<vmem>>, vector<16x16x8xf32>
    %199 = vector.extract_strided_slice %167 {offsets = [0, 0, 64], sizes = [16, 16, 8], strides = [1, 1, 1]} : vector<16x16x72xf32> to vector<16x16x8xf32>
    %200 = arith.addf %198, %199 : vector<16x16x8xf32>
    %c0_226 = arith.constant 0 : index
    %c0_227 = arith.constant 0 : index
    %c0_228 = arith.constant 0 : index
    %201 = vector.load %arg9[%c0_226, %c0_227, %c0_228] : memref<18x18x8xf32, #tpu.memory_space<vmem>>, vector<16x16x8xf32>
    tpu.vector_store %arg9[%c0_226, %c0_227, %c0_228], %200 {strides = array<i32>} : memref<18x18x8xf32, #tpu.memory_space<vmem>>, vector<16x16x8xf32>,
    %c1_229 = arith.constant 1 : index
    %c1_230 = arith.constant 1 : index
    %c0_231 = arith.constant 0 : index
    %202 = vector.load %arg9[%c1_229, %c1_230, %c0_231] : memref<18x18x8xf32, #tpu.memory_space<vmem>>, vector<16x16x8xf32>
    %c0_232 = arith.constant 0 : index
    %c0_233 = arith.constant 0 : index
    %c0_234 = arith.constant 0 : index
    %c24 = arith.constant 24 : index
    %203 = vector.load %arg8[%c0_232, %c0_233, %c0_234, %c24] : memref<1x16x16x32xf32, #tpu.memory_space<vmem>>, vector<1x16x16x8xf32>
    %204 = vector.shape_cast %203 : vector<1x16x16x8xf32> to vector<16x16x8xf32>
    %205 = vector.shape_cast %202 : vector<16x16x8xf32> to vector<1x16x16x8xf32>
    tpu.vector_store %arg8[%c0_232, %c0_233, %c0_234, %c24], %205 {strides = array<i32>} : memref<1x16x16x32xf32, #tpu.memory_space<vmem>>, vector<1x16x16x8xf32>,
    return
  }
  func.func @transform_0(%arg0: i32) -> (i32, i32, i32, i32) {
    %c0_i32 = arith.constant 0 : i32
    %c0_i32_0 = arith.constant 0 : i32
    %c0_i32_1 = arith.constant 0 : i32
    %c0_i32_2 = arith.constant 0 : i32
    return %arg0, %c0_i32, %c0_i32_0, %c0_i32_1 : i32, i32, i32, i32
  }
  func.func @transform_1(%arg0: i32) -> (i32, i32) {
    %c0_i32 = arith.constant 0 : i32
    %c0_i32_0 = arith.constant 0 : i32
    %c0_i32_1 = arith.constant 0 : i32
    return %c0_i32, %c0_i32_0 : i32, i32
  }
  func.func @transform_2(%arg0: i32) -> (i32, i32) {
    %c0_i32 = arith.constant 0 : i32
    %c0_i32_0 = arith.constant 0 : i32
    %c0_i32_1 = arith.constant 0 : i32
    return %c0_i32, %c0_i32_0 : i32, i32
  }
  func.func @transform_3(%arg0: i32) -> (i32, i32, i32) {
    %c0_i32 = arith.constant 0 : i32
    %c0_i32_0 = arith.constant 0 : i32
    %c0_i32_1 = arith.constant 0 : i32
    %c0_i32_2 = arith.constant 0 : i32
    return %c0_i32, %c0_i32_0, %c0_i32_1 : i32, i32, i32
  }
  func.func @transform_4(%arg0: i32) -> (i32, i32) {
    %c0_i32 = arith.constant 0 : i32
    %c0_i32_0 = arith.constant 0 : i32
    %c0_i32_1 = arith.constant 0 : i32
    return %c0_i32, %c0_i32_0 : i32, i32
  }
  func.func @transform_5(%arg0: i32) -> (i32, i32) {
    %c0_i32 = arith.constant 0 : i32
    %c0_i32_0 = arith.constant 0 : i32
    %c0_i32_1 = arith.constant 0 : i32
    return %c0_i32, %c0_i32_0 : i32, i32
  }
  func.func @transform_6(%arg0: i32) -> (i32, i32) {
    %c0_i32 = arith.constant 0 : i32
    %c0_i32_0 = arith.constant 0 : i32
    %c0_i32_1 = arith.constant 0 : i32
    return %c0_i32, %c0_i32_0 : i32, i32
  }
  func.func @transform_7(%arg0: i32) -> (i32, i32, i32, i32) {
    %c0_i32 = arith.constant 0 : i32
    %c0_i32_0 = arith.constant 0 : i32
    %c0_i32_1 = arith.constant 0 : i32
    %c0_i32_2 = arith.constant 0 : i32
    return %arg0, %c0_i32, %c0_i32_0, %c0_i32_1 : i32, i32, i32, i32
  }
}

</mosaic_0001>

<llo_original>
// kernel: dense_block_forward.1
$region0: #{dense_block_forward.1}
  #allocation0 [shape = 'u32[]', space=smem, size = 0x4, offset = 0x4, fixed_abs, tag = 'smem constant byte address 0x4 - core index']
  #allocation1 [shape = 'u32[144,128]{1,0:T(1,128)}', space=vmem, size = 0x12000, scoped, tag = 'internal scratch']
  #allocation2 [shape = 'f32[18,18,8]{2,1,0:T(8,128)}', space=vmem, size = 0x36000, scoped, tag = 'scratch operand']
  %s0 = inlined_call_operand.vmem [shape: f32[2,16,16,8], index: 0, kind: input, shape index: {}]
  %s1 = inlined_call_operand.vmem [shape: f32[6,24], index: 1, kind: input, shape index: {}]
  %s2 = inlined_call_operand.vmem [shape: f32[6,16], index: 2, kind: input, shape index: {}]
  %s3 = inlined_call_operand.vmem [shape: bf16[3,16,72], index: 3, kind: input, shape index: {}]
  %s4 = inlined_call_operand.vmem [shape: bf16[8,16], index: 4, kind: input, shape index: {}]
  %s5 = inlined_call_operand.vmem [shape: bf16[16,16], index: 5, kind: input, shape index: {}]
  %s6 = inlined_call_operand.vmem [shape: bf16[24,16], index: 6, kind: input, shape index: {}]
  %s7 = inlined_call_operand.hbm [shape: f32[2,16,16,32], index: 7, kind: output, shape index: {}]
  %s8 = sld [smem:[#allocation0]]
  $region61: #{dense_block_forward.1} parent=0
    _
  %s10 = ssub.s32 1, %s8
  %s11 = scalar_select 0, %s10, %s8
  $region1: #{dense_block_forward.1} parent=0
    #allocation3 [shape = 'u8[262144]{0}', space=vmem, size = 0x40000, scoped, tag = 'output window, operand 0']
    #allocation4 [shape = 's32[2]{0}', space=sflag, size = 0x8, scoped, tag = 'scoped memory for dense_block_forward.1']
    %12 = vsyncpa [#allocation4], 0
    %s13 = scalar_lea.sflag [#allocation4], 1
    %14 = vsyncpa %s13, 0
    loop: start=0, step=1, limit=4
    $region2: #{dense_block_forward.1} parent=1 // loop_pre_header
      _
    $region3: #{dense_block_forward.1} parent=1 // loop_header
      %s16 = sphi 0, %s20
      %p17 = scmp.ge.s32.totalorder %s16, 4
      %s26 = sphi 0, %s28
      %s29 = sphi 0, %s26
      %s30 = sphi 0, %s29
      %s46 = sphi 0, %s30
      %s50 = sphi 0, %s50
      %s52 = sphi 0, %s50
      %s53 = sphi 0, %s52
      %s67 = sphi 0, %s53
      %s71 = sphi 0, %s71
      %s73 = sphi 0, %s71
      %s74 = sphi 0, %s73
      %s88 = sphi 0, %s74
      %s92 = sphi 0, %s92
      %s94 = sphi 0, %s92
      %s95 = sphi 0, %s94
      %s109 = sphi 0, %s95
      %s113 = sphi 0, %s113
      %s115 = sphi 0, %s113
      %s116 = sphi 0, %s115
      %s130 = sphi 0, %s116
      %s134 = sphi 0, %s134
      %s136 = sphi 0, %s134
      %s137 = sphi 0, %s136
      %s151 = sphi 0, %s137
      %s155 = sphi 0, %s155
      %s157 = sphi 0, %s155
      %s158 = sphi 0, %s157
      %s172 = sphi 0, %s158
      %s178 = sphi 0, %s180
      %s181 = sphi 0, %s178
      %s182 = sphi 0, %s181
      %s198 = sphi 0, %s182
    $region4: #{dense_block_forward.1} parent=1 // loop_header_branch
      %19 = sbr.rel (%p17) target = $region8
    $region5: #{dense_block_forward.1} parent=1 // loop_body
      %s21 = ssub.s32 %s16, 1
      %s22 = ssub.s32 %s16, 2
      %s23 = sadd.s32 %s16, 1
      %s24 = ssub.s32 %s16, %s23
      %p25 = scmp.eq.s32.totalorder %s24, 0
      %s27 = sadd.s32 %s26, 1
      %s28 = scalar_select %p25, %s26, %s27
      %p31 = pneg %p25
      %p32 = scmp.eq.s32.totalorder %s16, 1
      %p33 = por %p31, %p32
      %p34 = scmp.ne.s32.totalorder %s26, %s29
      %p35 = scmp.eq.s32.totalorder %s16, 0
      %p36 = por %p34, %p35
      %p37 = scmp.ne.s32.totalorder %s26, %s29
      %p38 = scmp.eq.s32.totalorder %s21, 1
      %p39 = por %p37, %p38
      %p40 = scmp.ne.s32.totalorder %s29, %s30
      %p41 = scmp.eq.s32.totalorder %s21, 0
      %p42 = por %p40, %p41
      %p43 = scmp.ne.s32.totalorder %s29, %s30
      %p44 = scmp.eq.s32.totalorder %s22, 1
      %p45 = por %p43, %p44
      %p47 = scmp.ne.s32.totalorder %s30, %s46
      %p48 = scmp.eq.s32.totalorder %s22, 0
      %p49 = por %p47, %p48
      %s51 = sadd.s32 %s50, 1
      %p54 = scmp.eq.s32.totalorder %s16, 1
      %p55 = scmp.ne.s32.totalorder %s50, %s52
      %p56 = scmp.eq.s32.totalorder %s16, 0
      %p57 = por %p55, %p56
      %p58 = scmp.ne.s32.totalorder %s50, %s52
      %p59 = scmp.eq.s32.totalorder %s21, 1
      %p60 = por %p58, %p59
      %p61 = scmp.ne.s32.totalorder %s52, %s53
      %p62 = scmp.eq.s32.totalorder %s21, 0
      %p63 = por %p61, %p62
      %p64 = scmp.ne.s32.totalorder %s52, %s53
      %p65 = scmp.eq.s32.totalorder %s22, 1
      %p66 = por %p64, %p65
      %p68 = scmp.ne.s32.totalorder %s53, %s67
      %p69 = scmp.eq.s32.totalorder %s22, 0
      %p70 = por %p68, %p69
      %s72 = sadd.s32 %s71, 1
      %p75 = scmp.eq.s32.totalorder %s16, 1
      %p76 = scmp.ne.s32.totalorder %s71, %s73
      %p77 = scmp.eq.s32.totalorder %s16, 0
      %p78 = por %p76, %p77
      %p79 = scmp.ne.s32.totalorder %s71, %s73
      %p80 = scmp.eq.s32.totalorder %s21, 1
      %p81 = por %p79, %p80
      %p82 = scmp.ne.s32.totalorder %s73, %s74
      %p83 = scmp.eq.s32.totalorder %s21, 0
      %p84 = por %p82, %p83
      %p85 = scmp.ne.s32.totalorder %s73, %s74
      %p86 = scmp.eq.s32.totalorder %s22, 1
      %p87 = por %p85, %p86
      %p89 = scmp.ne.s32.totalorder %s74, %s88
      %p90 = scmp.eq.s32.totalorder %s22, 0
      %p91 = por %p89, %p90
      %s93 = sadd.s32 %s92, 1
      %p96 = scmp.eq.s32.totalorder %s16, 1
      %p97 = scmp.ne.s32.totalorder %s92, %s94
      %p98 = scmp.eq.s32.totalorder %s16, 0
      %p99 = por %p97, %p98
      %p100 = scmp.ne.s32.totalorder %s92, %s94
      %p101 = scmp.eq.s32.totalorder %s21, 1
      %p102 = por %p100, %p101
      %p103 = scmp.ne.s32.totalorder %s94, %s95
      %p104 = scmp.eq.s32.totalorder %s21, 0
      %p105 = por %p103, %p104
      %p106 = scmp.ne.s32.totalorder %s94, %s95
      %p107 = scmp.eq.s32.totalorder %s22, 1
      %p108 = por %p106, %p107
      %p110 = scmp.ne.s32.totalorder %s95, %s109
      %p111 = scmp.eq.s32.totalorder %s22, 0
      %p112 = por %p110, %p111
      %s114 = sadd.s32 %s113, 1
      %p117 = scmp.eq.s32.totalorder %s16, 1
      %p118 = scmp.ne.s32.totalorder %s113, %s115
      %p119 = scmp.eq.s32.totalorder %s16, 0
      %p120 = por %p118, %p119
      %p121 = scmp.ne.s32.totalorder %s113, %s115
      %p122 = scmp.eq.s32.totalorder %s21, 1
      %p123 = por %p121, %p122
      %p124 = scmp.ne.s32.totalorder %s115, %s116
      %p125 = scmp.eq.s32.totalorder %s21, 0
      %p126 = por %p124, %p125
      %p127 = scmp.ne.s32.totalorder %s115, %s116
      %p128 = scmp.eq.s32.totalorder %s22, 1
      %p129 = por %p127, %p128
      %p131 = scmp.ne.s32.totalorder %s116, %s130
      %p132 = scmp.eq.s32.totalorder %s22, 0
      %p133 = por %p131, %p132
      %s135 = sadd.s32 %s134, 1
      %p138 = scmp.eq.s32.totalorder %s16, 1
      %p139 = scmp.ne.s32.totalorder %s134, %s136
      %p140 = scmp.eq.s32.totalorder %s16, 0
      %p141 = por %p139, %p140
      %p142 = scmp.ne.s32.totalorder %s134, %s136
      %p143 = scmp.eq.s32.totalorder %s21, 1
      %p144 = por %p142, %p143
      %p145 = scmp.ne.s32.totalorder %s136, %s137
      %p146 = scmp.eq.s32.totalorder %s21, 0
      %p147 = por %p145, %p146
      %p148 = scmp.ne.s32.totalorder %s136, %s137
      %p149 = scmp.eq.s32.totalorder %s22, 1
      %p150 = por %p148, %p149
      %p152 = scmp.ne.s32.totalorder %s137, %s151
      %p153 = scmp.eq.s32.totalorder %s22, 0
      %p154 = por %p152, %p153
      %s156 = sadd.s32 %s155, 1
      %p159 = scmp.eq.s32.totalorder %s16, 1
      %p160 = scmp.ne.s32.totalorder %s155, %s157
      %p161 = scmp.eq.s32.totalorder %s16, 0
      %p162 = por %p160, %p161
      %p163 = scmp.ne.s32.totalorder %s155, %s157
      %p164 = scmp.eq.s32.totalorder %s21, 1
      %p165 = por %p163, %p164
      %p166 = scmp.ne.s32.totalorder %s157, %s158
      %p167 = scmp.eq.s32.totalorder %s21, 0
      %p168 = por %p166, %p167
      %p169 = scmp.ne.s32.totalorder %s157, %s158
      %p170 = scmp.eq.s32.totalorder %s22, 1
      %p171 = por %p169, %p170
      %p173 = scmp.ne.s32.totalorder %s158, %s172
      %p174 = scmp.eq.s32.totalorder %s22, 0
      %p175 = por %p173, %p174
      %s176 = ssub.s32 %s16, %s23
      %p177 = scmp.eq.s32.totalorder %s176, 0
      %s179 = sadd.s32 %s178, 1
      %s180 = scalar_select %p177, %s178, %s179
      %p183 = pneg %p177
      %p184 = scmp.eq.s32.totalorder %s16, 1
      %p185 = por %p183, %p184
      %p186 = scmp.ne.s32.totalorder %s178, %s181
      %p187 = scmp.eq.s32.totalorder %s16, 0
      %p188 = por %p186, %p187
      %p189 = scmp.ne.s32.totalorder %s178, %s181
      %p190 = scmp.eq.s32.totalorder %s21, 1
      %p191 = por %p189, %p190
      %p192 = scmp.ne.s32.totalorder %s181, %s182
      %p193 = scmp.eq.s32.totalorder %s21, 0
      %p194 = por %p192, %p193
      %p195 = scmp.ne.s32.totalorder %s181, %s182
      %p196 = scmp.eq.s32.totalorder %s22, 1
      %p197 = por %p195, %p196
      %p199 = scmp.ne.s32.totalorder %s182, %s198
      %p200 = scmp.eq.s32.totalorder %s22, 0
      %p201 = por %p199, %p200
      %p202 = scmp.le.s32.totalorder 1, %s16
      %p203 = scmp.lt.s32.totalorder %s16, 3
      %p204 = pnand %p202, %p203
      %p205 = pneg %p204
      // Predicated region
      $region9: #{dense_block_forward.1} parent=5 // pred_check
        _
      $region10: #{dense_block_forward.1} parent=5 // pred_check_branch
        %207 = sbr.rel (%p204) target = $region12
      $region11: #{dense_block_forward.1} parent=5 // pred_region
        %s208 = ssub.s32 %s16, 1
        // Predicated region
        $region13: #{dense_block_forward.1} parent=11 // pred_check
          %p209 = pneg %p63
        $region14: #{dense_block_forward.1} parent=11 // pred_check_branch
          %211 = sbr.rel (%p209) target = $region16
        $region15: #{dense_block_forward.1} parent=11 // pred_region
          _
        $region16: #{dense_block_forward.1} parent=11 // pred_fallthru
          _
        // Predicated region
        $region17: #{dense_block_forward.1} parent=11 // pred_check
          %p212 = pneg %p84
        $region18: #{dense_block_forward.1} parent=11 // pred_check_branch
          %214 = sbr.rel (%p212) target = $region20
        $region19: #{dense_block_forward.1} parent=11 // pred_region
          _
        $region20: #{dense_block_forward.1} parent=11 // pred_fallthru
          _
        // Predicated region
        $region21: #{dense_block_forward.1} parent=11 // pred_check
          %p215 = pneg %p105
        $region22: #{dense_block_forward.1} parent=11 // pred_check_branch
          %217 = sbr.rel (%p215) target = $region24
        $region23: #{dense_block_forward.1} parent=11 // pred_region
          _
        $region24: #{dense_block_forward.1} parent=11 // pred_fallthru
          _
        // Predicated region
        $region25: #{dense_block_forward.1} parent=11 // pred_check
          %p218 = pneg %p126
        $region26: #{dense_block_forward.1} parent=11 // pred_check_branch
          %220 = sbr.rel (%p218) target = $region28
        $region27: #{dense_block_forward.1} parent=11 // pred_region
          _
        $region28: #{dense_block_forward.1} parent=11 // pred_fallthru
          _
        // Predicated region
        $region29: #{dense_block_forward.1} parent=11 // pred_check
          %p221 = pneg %p147
        $region30: #{dense_block_forward.1} parent=11 // pred_check_branch
          %223 = sbr.rel (%p221) target = $region32
        $region31: #{dense_block_forward.1} parent=11 // pred_region
          _
        $region32: #{dense_block_forward.1} parent=11 // pred_fallthru
          _
        // Predicated region
        $region33: #{dense_block_forward.1} parent=11 // pred_check
          %p224 = pneg %p168
        $region34: #{dense_block_forward.1} parent=11 // pred_check_branch
          %226 = sbr.rel (%p224) target = $region36
        $region35: #{dense_block_forward.1} parent=11 // pred_region
          _
        $region36: #{dense_block_forward.1} parent=11 // pred_fallthru
          _
      $region12: #{dense_block_forward.1} parent=5 // pred_fallthru
        _
      %p227 = scmp.lt.s32.totalorder %s16, 2
      // Predicated region
      $region37: #{dense_block_forward.1} parent=5 // pred_check
        %p228 = pneg %p227
      $region38: #{dense_block_forward.1} parent=5 // pred_check_branch
        %230 = sbr.rel (%p228) target = $region40
      $region39: #{dense_block_forward.1} parent=5 // pred_region
        // Predicated region
        $region41: #{dense_block_forward.1} parent=39 // pred_check
          %p231 = pneg %p36
        $region42: #{dense_block_forward.1} parent=39 // pred_check_branch
          %233 = sbr.rel (%p231) target = $region44
        $region43: #{dense_block_forward.1} parent=39 // pred_region
          %p234 = scmp.lt.s32.totalorder %s16, 1
          %s235 = scalar_select %p234, %s16, 1
          %s236 = smul.addr %s235, 32
          %s237 = smul.addr %s236, 8
          %s238 = scalar_lea.vmem %s0, %s237
        $region44: #{dense_block_forward.1} parent=39 // pred_fallthru
          _
      $region40: #{dense_block_forward.1} parent=5 // pred_fallthru
        _
      %p239 = scmp.le.s32.totalorder 1, %s16
      %p240 = scmp.lt.s32.totalorder %s16, 3
      %p241 = pnand %p239, %p240
      %p242 = pneg %p241
      // Predicated region
      $region45: #{dense_block_forward.1} parent=5 // pred_check
        _
      $region46: #{dense_block_forward.1} parent=5 // pred_check_branch
        %244 = sbr.rel (%p241) target = $region48
      $region47: #{dense_block_forward.1} parent=5 // pred_region
        %s245 = ssub.s32 %s16, 1
        %p246 = scmp.lt.s32.totalorder %s21, 1
        %s247 = scalar_select %p246, %s21, 1
        %s248 = smul.addr %s247, 32
        %s249 = smul.addr %s248, 8
        %s250 = scalar_lea.vmem %s0, %s249
        %p251 = pneg %p42
        %p252 = pneg %p39
        %p253 = pneg %p63
        %p254 = pneg %p60
        %p255 = pneg %p84
        %p256 = pneg %p81
        %p257 = pneg %p105
        %p258 = pneg %p102
        %p259 = pneg %p126
        %p260 = pneg %p123
        %p261 = pneg %p147
        %p262 = pneg %p144
        %p263 = pneg %p168
        %p264 = pneg %p165
        %p265 = pneg %p194
        %p266 = pneg %p191
        %s267 = sand.u32 %s181, 1
        %s268 = scalar_lea.sflag [#allocation4], %s267
        %s269 = sand.u32 %s181, 1
        %s270 = smul.addr %s269, 256
        %s271 = scalar_lea.vmem [#allocation3], %s270
        %p272 = scmp.lt.s32.totalorder %s21, 1
        %s273 = scalar_select %p272, %s21, 1
        %s274 = smul.addr %s273, 32
        %s275 = smul.addr %s274, 8
        %s276 = scalar_lea.vmem %s0, %s275
        %v278 = vld [vmem:[%s276] sm:$0xff]
        %v279 = vld [vmem:[%s276 + $0x8] sm:$0xff]
        %v280 = vld [vmem:[%s276 + $0x10] sm:$0xff]
        %v281 = vld [vmem:[%s276 + $0x18] sm:$0xff]
        %v282 = vld [vmem:[%s276 + $0x20] sm:$0xff]
        %v283 = vld [vmem:[%s276 + $0x28] sm:$0xff]
        %v284 = vld [vmem:[%s276 + $0x30] sm:$0xff]
        %v285 = vld [vmem:[%s276 + $0x38] sm:$0xff]
        %v286 = vld [vmem:[%s276 + $0x40] sm:$0xff]
        %v287 = vld [vmem:[%s276 + $0x48] sm:$0xff]
        %v288 = vld [vmem:[%s276 + $0x50] sm:$0xff]
        %v289 = vld [vmem:[%s276 + $0x58] sm:$0xff]
        %v290 = vld [vmem:[%s276 + $0x60] sm:$0xff]
        %v291 = vld [vmem:[%s276 + $0x68] sm:$0xff]
        %v292 = vld [vmem:[%s276 + $0x70] sm:$0xff]
        %v293 = vld [vmem:[%s276 + $0x78] sm:$0xff]
        %v294 = vld [vmem:[%s276 + $0x80] sm:$0xff]
        %v295 = vld [vmem:[%s276 + $0x88] sm:$0xff]
        %v296 = vld [vmem:[%s276 + $0x90] sm:$0xff]
        %v297 = vld [vmem:[%s276 + $0x98] sm:$0xff]
        %v298 = vld [vmem:[%s276 + $0xa0] sm:$0xff]
        %v299 = vld [vmem:[%s276 + $0xa8] sm:$0xff]
        %v300 = vld [vmem:[%s276 + $0xb0] sm:$0xff]
        %v301 = vld [vmem:[%s276 + $0xb8] sm:$0xff]
        %v302 = vld [vmem:[%s276 + $0xc0] sm:$0xff]
        %v303 = vld [vmem:[%s276 + $0xc8] sm:$0xff]
        %v304 = vld [vmem:[%s276 + $0xd0] sm:$0xff]
        %v305 = vld [vmem:[%s276 + $0xd8] sm:$0xff]
        %v306 = vld [vmem:[%s276 + $0xe0] sm:$0xff]
        %v307 = vld [vmem:[%s276 + $0xe8] sm:$0xff]
        %v308 = vld [vmem:[%s276 + $0xf0] sm:$0xff]
        %v309 = vld [vmem:[%s276 + $0xf8] sm:$0xff]
        %vm310 = vcmask 64512
        %311 = vst.msk [vmem:[%s271] sm:$0xff] %vm310, %v278
        %312 = vst.msk [vmem:[%s271 + $0x8] sm:$0xff] %vm310, %v279
        %313 = vst.msk [vmem:[%s271 + $0x10] sm:$0xff] %vm310, %v280
        %314 = vst.msk [vmem:[%s271 + $0x18] sm:$0xff] %vm310, %v281
        %315 = vst.msk [vmem:[%s271 + $0x20] sm:$0xff] %vm310, %v282
        %316 = vst.msk [vmem:[%s271 + $0x28] sm:$0xff] %vm310, %v283
        %317 = vst.msk [vmem:[%s271 + $0x30] sm:$0xff] %vm310, %v284
        %318 = vst.msk [vmem:[%s271 + $0x38] sm:$0xff] %vm310, %v285
        %319 = vst.msk [vmem:[%s271 + $0x40] sm:$0xff] %vm310, %v286
        %320 = vst.msk [vmem:[%s271 + $0x48] sm:$0xff] %vm310, %v287
        %321 = vst.msk [vmem:[%s271 + $0x50] sm:$0xff] %vm310, %v288
        %322 = vst.msk [vmem:[%s271 + $0x58] sm:$0xff] %vm310, %v289
        %323 = vst.msk [vmem:[%s271 + $0x60] sm:$0xff] %vm310, %v290
        %324 = vst.msk [vmem:[%s271 + $0x68] sm:$0xff] %vm310, %v291
        %325 = vst.msk [vmem:[%s271 + $0x70] sm:$0xff] %vm310, %v292
        %326 = vst.msk [vmem:[%s271 + $0x78] sm:$0xff] %vm310, %v293
        %327 = vst.msk [vmem:[%s271 + $0x80] sm:$0xff] %vm310, %v294
        %328 = vst.msk [vmem:[%s271 + $0x88] sm:$0xff] %vm310, %v295
        %329 = vst.msk [vmem:[%s271 + $0x90] sm:$0xff] %vm310, %v296
        %330 = vst.msk [vmem:[%s271 + $0x98] sm:$0xff] %vm310, %v297
        %331 = vst.msk [vmem:[%s271 + $0xa0] sm:$0xff] %vm310, %v298
        %332 = vst.msk [vmem:[%s271 + $0xa8] sm:$0xff] %vm310, %v299
        %333 = vst.msk [vmem:[%s271 + $0xb0] sm:$0xff] %vm310, %v300
        %334 = vst.msk [vmem:[%s271 + $0xb8] sm:$0xff] %vm310, %v301
        %335 = vst.msk [vmem:[%s271 + $0xc0] sm:$0xff] %vm310, %v302
        %336 = vst.msk [vmem:[%s271 + $0xc8] sm:$0xff] %vm310, %v303
        %337 = vst.msk [vmem:[%s271 + $0xd0] sm:$0xff] %vm310, %v304
        %338 = vst.msk [vmem:[%s271 + $0xd8] sm:$0xff] %vm310, %v305
        %339 = vst.msk [vmem:[%s271 + $0xe0] sm:$0xff] %vm310, %v306
        %340 = vst.msk [vmem:[%s271 + $0xe8] sm:$0xff] %vm310, %v307
        %341 = vst.msk [vmem:[%s271 + $0xf0] sm:$0xff] %vm310, %v308
        %342 = vst.msk [vmem:[%s271 + $0xf8] sm:$0xff] %vm310, %v309
        %v343 = vld [vmem:[%s1] sm:$0x1]
        %v344 = vld [vmem:[%s1 + $0x1] sm:$0x1]
        %v345 = vld [vmem:[%s271] sm:$0xff]
        %v346 = vld [vmem:[%s271 + $0x8] sm:$0xff]
        %v347 = vld [vmem:[%s271 + $0x10] sm:$0xff]
        %v348 = vld [vmem:[%s271 + $0x18] sm:$0xff]
        %v349 = vld [vmem:[%s271 + $0x20] sm:$0xff]
        %v350 = vld [vmem:[%s271 + $0x28] sm:$0xff]
        %v351 = vld [vmem:[%s271 + $0x30] sm:$0xff]
        %v352 = vld [vmem:[%s271 + $0x38] sm:$0xff]
        %v353 = vld [vmem:[%s271 + $0x40] sm:$0xff]
        %v354 = vld [vmem:[%s271 + $0x48] sm:$0xff]
        %v355 = vld [vmem:[%s271 + $0x50] sm:$0xff]
        %v356 = vld [vmem:[%s271 + $0x58] sm:$0xff]
        %v357 = vld [vmem:[%s271 + $0x60] sm:$0xff]
        %v358 = vld [vmem:[%s271 + $0x68] sm:$0xff]
        %v359 = vld [vmem:[%s271 + $0x70] sm:$0xff]
        %v360 = vld [vmem:[%s271 + $0x78] sm:$0xff]
        %v361 = vld [vmem:[%s271 + $0x80] sm:$0xff]
        %v362 = vld [vmem:[%s271 + $0x88] sm:$0xff]
        %v363 = vld [vmem:[%s271 + $0x90] sm:$0xff]
        %v364 = vld [vmem:[%s271 + $0x98] sm:$0xff]
        %v365 = vld [vmem:[%s271 + $0xa0] sm:$0xff]
        %v366 = vld [vmem:[%s271 + $0xa8] sm:$0xff]
        %v367 = vld [vmem:[%s271 + $0xb0] sm:$0xff]
        %v368 = vld [vmem:[%s271 + $0xb8] sm:$0xff]
        %v369 = vld [vmem:[%s271 + $0xc0] sm:$0xff]
        %v370 = vld [vmem:[%s271 + $0xc8] sm:$0xff]
        %v371 = vld [vmem:[%s271 + $0xd0] sm:$0xff]
        %v372 = vld [vmem:[%s271 + $0xd8] sm:$0xff]
        %v373 = vld [vmem:[%s271 + $0xe0] sm:$0xff]
        %v374 = vld [vmem:[%s271 + $0xe8] sm:$0xff]
        %v375 = vld [vmem:[%s271 + $0xf0] sm:$0xff]
        %v376 = vld [vmem:[%s271 + $0xf8] sm:$0xff]
        %v377 = vlaneseq
        %v378 = vshrl.u32 %v377, 7
        %v379 = vsub.s32 0, %v378
        %v380 = vrot.slane %v343, %v379
        %v381 = vmul.f32 %v345, %v380
        %v382 = vmul.f32 %v346, %v380
        %v383 = vmul.f32 %v347, %v380
        %v384 = vmul.f32 %v348, %v380
        %v385 = vmul.f32 %v349, %v380
        %v386 = vmul.f32 %v350, %v380
        %v387 = vmul.f32 %v351, %v380
        %v388 = vmul.f32 %v352, %v380
        %v389 = vmul.f32 %v353, %v380
        %v390 = vmul.f32 %v354, %v380
        %v391 = vmul.f32 %v355, %v380
        %v392 = vmul.f32 %v356, %v380
        %v393 = vmul.f32 %v357, %v380
        %v394 = vmul.f32 %v358, %v380
        %v395 = vmul.f32 %v359, %v380
        %v396 = vmul.f32 %v360, %v380
        %v397 = vmul.f32 %v361, %v380
        %v398 = vmul.f32 %v362, %v380
        %v399 = vmul.f32 %v363, %v380
        %v400 = vmul.f32 %v364, %v380
        %v401 = vmul.f32 %v365, %v380
        %v402 = vmul.f32 %v366, %v380
        %v403 = vmul.f32 %v367, %v380
        %v404 = vmul.f32 %v368, %v380
        %v405 = vmul.f32 %v369, %v380
        %v406 = vmul.f32 %v370, %v380
        %v407 = vmul.f32 %v371, %v380
        %v408 = vmul.f32 %v372, %v380
        %v409 = vmul.f32 %v373, %v380
        %v410 = vmul.f32 %v374, %v380
        %v411 = vmul.f32 %v375, %v380
        %v412 = vmul.f32 %v376, %v380
        %v413 = vlaneseq
        %v414 = vshrl.u32 %v413, 7
        %v415 = vsub.s32 0, %v414
        %v416 = vrot.slane %v344, %v415
        %v417 = vadd.f32 %v381, %v416
        %v418 = vadd.f32 %v382, %v416
        %v419 = vadd.f32 %v383, %v416
        %v420 = vadd.f32 %v384, %v416
        %v421 = vadd.f32 %v385, %v416
        %v422 = vadd.f32 %v386, %v416
        %v423 = vadd.f32 %v387, %v416
        %v424 = vadd.f32 %v388, %v416
        %v425 = vadd.f32 %v389, %v416
        %v426 = vadd.f32 %v390, %v416
        %v427 = vadd.f32 %v391, %v416
        %v428 = vadd.f32 %v392, %v416
        %v429 = vadd.f32 %v393, %v416
        %v430 = vadd.f32 %v394, %v416
        %v431 = vadd.f32 %v395, %v416
        %v432 = vadd.f32 %v396, %v416
        %v433 = vadd.f32 %v397, %v416
        %v434 = vadd.f32 %v398, %v416
        %v435 = vadd.f32 %v399, %v416
        %v436 = vadd.f32 %v400, %v416
        %v437 = vadd.f32 %v401, %v416
        %v438 = vadd.f32 %v402, %v416
        %v439 = vadd.f32 %v403, %v416
        %v440 = vadd.f32 %v404, %v416
        %v441 = vadd.f32 %v405, %v416
        %v442 = vadd.f32 %v406, %v416
        %v443 = vadd.f32 %v407, %v416
        %v444 = vadd.f32 %v408, %v416
        %v445 = vadd.f32 %v409, %v416
        %v446 = vadd.f32 %v410, %v416
        %v447 = vadd.f32 %v411, %v416
        %v448 = vadd.f32 %v412, %v416
        %v449 = vmax.f32 %v417, 0.0
        %v450 = vmax.f32 %v418, 0.0
        %v451 = vmax.f32 %v419, 0.0
        %v452 = vmax.f32 %v420, 0.0
        %v453 = vmax.f32 %v421, 0.0
        %v454 = vmax.f32 %v422, 0.0
        %v455 = vmax.f32 %v423, 0.0
        %v456 = vmax.f32 %v424, 0.0
        %v457 = vmax.f32 %v425, 0.0
        %v458 = vmax.f32 %v426, 0.0
        %v459 = vmax.f32 %v427, 0.0
        %v460 = vmax.f32 %v428, 0.0
        %v461 = vmax.f32 %v429, 0.0
        %v462 = vmax.f32 %v430, 0.0
        %v463 = vmax.f32 %v431, 0.0
        %v464 = vmax.f32 %v432, 0.0
        %v465 = vmax.f32 %v433, 0.0
        %v466 = vmax.f32 %v434, 0.0
        %v467 = vmax.f32 %v435, 0.0
        %v468 = vmax.f32 %v436, 0.0
        %v469 = vmax.f32 %v437, 0.0
        %v470 = vmax.f32 %v438, 0.0
        %v471 = vmax.f32 %v439, 0.0
        %v472 = vmax.f32 %v440, 0.0
        %v473 = vmax.f32 %v441, 0.0
        %v474 = vmax.f32 %v442, 0.0
        %v475 = vmax.f32 %v443, 0.0
        %v476 = vmax.f32 %v444, 0.0
        %v477 = vmax.f32 %v445, 0.0
        %v478 = vmax.f32 %v446, 0.0
        %v479 = vmax.f32 %v447, 0.0
        %v480 = vmax.f32 %v448, 0.0
        %v481 = vpack.c.bf16 %v450, %v449
        %v482 = vpack.c.bf16 %v452, %v451
        %v483 = vpack.c.bf16 %v454, %v453
        %v484 = vpack.c.bf16 %v456, %v455
        %v485 = vpack.c.bf16 %v458, %v457
        %v486 = vpack.c.bf16 %v460, %v459
        %v487 = vpack.c.bf16 %v462, %v461
        %v488 = vpack.c.bf16 %v464, %v463
        %v489 = vpack.c.bf16 %v466, %v465
        %v490 = vpack.c.bf16 %v468, %v467
        %v491 = vpack.c.bf16 %v470, %v469
        %v492 = vpack.c.bf16 %v472, %v471
        %v493 = vpack.c.bf16 %v474, %v473
        %v494 = vpack.c.bf16 %v476, %v475
        %v495 = vpack.c.bf16 %v478, %v477
        %v496 = vpack.c.bf16 %v480, %v479
        %v497 = vld [vmem:[%s4] sm:$0xf]
        %v499 = vsel %vm310, %v481, 0
        %v502 = vsel %vm310, %v482, 0
        %v505 = vsel %vm310, %v483, 0
        %v508 = vsel %vm310, %v484, 0
        %v511 = vsel %vm310, %v485, 0
        %v514 = vsel %vm310, %v486, 0
        %v517 = vsel %vm310, %v487, 0
        %v520 = vsel %vm310, %v488, 0
        %v523 = vsel %vm310, %v489, 0
        %v526 = vsel %vm310, %v490, 0
        %v529 = vsel %vm310, %v491, 0
        %v532 = vsel %vm310, %v492, 0
        %v535 = vsel %vm310, %v493, 0
        %v538 = vsel %vm310, %v494, 0
        %v541 = vsel %vm310, %v495, 0
        %v544 = vsel %vm310, %v496, 0
        %vm546 = vcmask 1043456
        %v548 = vsel %vm546, %v497, 0
        %550 = vmatprep.subr.bf16.mxu0 0
        %551 = vmatpush1.bf16.msra.mxu0 %v548
        %552 = vmatprep.subr.bf16.mxu0 0
        %553 = vmatpush1.bf16.msra.mxu0 0
        %554 = vmatprep.subr.bf16.mxu0 0
        %555 = vmatpush1.bf16.msra.mxu0 0
        %556 = vmatprep.subr.bf16.mxu0 0
        %557 = vmatpush1.bf16.msra.mxu0 0
        %558 = vmatprep.subr.bf16.mxu0 0
        %559 = vmatpush1.bf16.msra.mxu0 0
        %560 = vmatprep.subr.bf16.mxu0 0
        %561 = vmatpush1.bf16.msra.mxu0 0
        %562 = vmatprep.subr.bf16.mxu0 0
        %563 = vmatpush1.bf16.msra.mxu0 0
        %564 = vmatprep.subr.bf16.mxu0 0
        %565 = vmatpush1.bf16.msra.mxu0 0
        %566 = vmatprep.subr.bf16.mxu0 0
        %567 = vmatpush1.bf16.msra.mxu0 0
        %568 = vmatprep.subr.bf16.mxu0 0
        %569 = vmatpush1.bf16.msra.mxu0 0
        %570 = vmatprep.subr.bf16.mxu0 0
        %571 = vmatpush1.bf16.msra.mxu0 0
        %572 = vmatprep.subr.bf16.mxu0 0
        %573 = vmatpush1.bf16.msra.mxu0 0
        %574 = vmatprep.subr.bf16.mxu0 0
        %575 = vmatpush1.bf16.msra.mxu0 0
        %576 = vmatprep.subr.bf16.mxu0 0
        %577 = vmatpush1.bf16.msra.mxu0 0
        %578 = vmatprep.subr.bf16.mxu0 0
        %579 = vmatpush1.bf16.msra.mxu0 0
        %580 = vmatprep.subr.bf16.mxu0 0
        %581 = vmatpush1.bf16.msra.mxu0 0
        %582 = vmatprep.mubr.bf16.mxu0 0
        %583 = vmatmul.mubr.bf16.gmra.mrb[0].mxu0 %v499
        %v584 = vpop.f32.mrb[0].mxu0
        %v585 = vadd.f32 0.0, %v584
        %v586 = vpop.f32.mrb[0].mxu0
        %v587 = vpop.f32.mrb[0].mxu0
        %v588 = vadd.f32 0.0, %v587
        %v589 = vpop.f32.mrb[0].mxu0
        %590 = vmatprep.mubr.bf16.mxu0 0
        %591 = vmatmul.mubr.bf16.gmra.mrb[0].mxu0 %v502
        %v592 = vpop.f32.mrb[0].mxu0
        %v593 = vadd.f32 0.0, %v592
        %v594 = vpop.f32.mrb[0].mxu0
        %v595 = vpop.f32.mrb[0].mxu0
        %v596 = vadd.f32 0.0, %v595
        %v597 = vpop.f32.mrb[0].mxu0
        %598 = vmatprep.mubr.bf16.mxu0 0
        %599 = vmatmul.mubr.bf16.gmra.mrb[0].mxu0 %v505
        %v600 = vpop.f32.mrb[0].mxu0
        %v601 = vadd.f32 0.0, %v600
        %v602 = vpop.f32.mrb[0].mxu0
        %v603 = vpop.f32.mrb[0].mxu0
        %v604 = vadd.f32 0.0, %v603
        %v605 = vpop.f32.mrb[0].mxu0
        %606 = vmatprep.mubr.bf16.mxu0 0
        %607 = vmatmul.mubr.bf16.gmra.mrb[0].mxu0 %v508
        %v608 = vpop.f32.mrb[0].mxu0
        %v609 = vadd.f32 0.0, %v608
        %v610 = vpop.f32.mrb[0].mxu0
        %v611 = vpop.f32.mrb[0].mxu0
        %v612 = vadd.f32 0.0, %v611
        %v613 = vpop.f32.mrb[0].mxu0
        %614 = vmatprep.mubr.bf16.mxu0 0
        %615 = vmatmul.mubr.bf16.gmra.mrb[0].mxu0 %v511
        %v616 = vpop.f32.mrb[0].mxu0
        %v617 = vadd.f32 0.0, %v616
        %v618 = vpop.f32.mrb[0].mxu0
        %v619 = vpop.f32.mrb[0].mxu0
        %v620 = vadd.f32 0.0, %v619
        %v621 = vpop.f32.mrb[0].mxu0
        %622 = vmatprep.mubr.bf16.mxu0 0
        %623 = vmatmul.mubr.bf16.gmra.mrb[0].mxu0 %v514
        %v624 = vpop.f32.mrb[0].mxu0
        %v625 = vadd.f32 0.0, %v624
        %v626 = vpop.f32.mrb[0].mxu0
        %v627 = vpop.f32.mrb[0].mxu0
        %v628 = vadd.f32 0.0, %v627
        %v629 = vpop.f32.mrb[0].mxu0
        %630 = vmatprep.mubr.bf16.mxu0 0
        %631 = vmatmul.mubr.bf16.gmra.mrb[0].mxu0 %v517
        %v632 = vpop.f32.mrb[0].mxu0
        %v633 = vadd.f32 0.0, %v632
        %v634 = vpop.f32.mrb[0].mxu0
        %v635 = vpop.f32.mrb[0].mxu0
        %v636 = vadd.f32 0.0, %v635
        %v637 = vpop.f32.mrb[0].mxu0
        %638 = vmatprep.mubr.bf16.mxu0 0
        %639 = vmatmul.mubr.bf16.gmra.mrb[0].mxu0 %v520
        %v640 = vpop.f32.mrb[0].mxu0
        %v641 = vadd.f32 0.0, %v640
        %v642 = vpop.f32.mrb[0].mxu0
        %v643 = vpop.f32.mrb[0].mxu0
        %v644 = vadd.f32 0.0, %v643
        %v645 = vpop.f32.mrb[0].mxu0
        %646 = vmatprep.mubr.bf16.mxu0 0
        %647 = vmatmul.mubr.bf16.gmra.mrb[0].mxu0 %v523
        %v648 = vpop.f32.mrb[0].mxu0
        %v649 = vadd.f32 0.0, %v648
        %v650 = vpop.f32.mrb[0].mxu0
        %v651 = vpop.f32.mrb[0].mxu0
        %v652 = vadd.f32 0.0, %v651
        %v653 = vpop.f32.mrb[0].mxu0
        %654 = vmatprep.mubr.bf16.mxu0 0
        %655 = vmatmul.mubr.bf16.gmra.mrb[0].mxu0 %v526
        %v656 = vpop.f32.mrb[0].mxu0
        %v657 = vadd.f32 0.0, %v656
        %v658 = vpop.f32.mrb[0].mxu0
        %v659 = vpop.f32.mrb[0].mxu0
        %v660 = vadd.f32 0.0, %v659
        %v661 = vpop.f32.mrb[0].mxu0
        %662 = vmatprep.mubr.bf16.mxu0 0
        %663 = vmatmul.mubr.bf16.gmra.mrb[0].mxu0 %v529
        %v664 = vpop.f32.mrb[0].mxu0
        %v665 = vadd.f32 0.0, %v664
        %v666 = vpop.f32.mrb[0].mxu0
        %v667 = vpop.f32.mrb[0].mxu0
        %v668 = vadd.f32 0.0, %v667
        %v669 = vpop.f32.mrb[0].mxu0
        %670 = vmatprep.mubr.bf16.mxu0 0
        %671 = vmatmul.mubr.bf16.gmra.mrb[0].mxu0 %v532
        %v672 = vpop.f32.mrb[0].mxu0
        %v673 = vadd.f32 0.0, %v672
        %v674 = vpop.f32.mrb[0].mxu0
        %v675 = vpop.f32.mrb[0].mxu0
        %v676 = vadd.f32 0.0, %v675
        %v677 = vpop.f32.mrb[0].mxu0
        %678 = vmatprep.mubr.bf16.mxu0 0
        %679 = vmatmul.mubr.bf16.gmra.mrb[0].mxu0 %v535
        %v680 = vpop.f32.mrb[0].mxu0
        %v681 = vadd.f32 0.0, %v680
        %v682 = vpop.f32.mrb[0].mxu0
        %v683 = vpop.f32.mrb[0].mxu0
        %v684 = vadd.f32 0.0, %v683
        %v685 = vpop.f32.mrb[0].mxu0
        %686 = vmatprep.mubr.bf16.mxu0 0
        %687 = vmatmul.mubr.bf16.gmra.mrb[0].mxu0 %v538
        %v688 = vpop.f32.mrb[0].mxu0
        %v689 = vadd.f32 0.0, %v688
        %v690 = vpop.f32.mrb[0].mxu0
        %v691 = vpop.f32.mrb[0].mxu0
        %v692 = vadd.f32 0.0, %v691
        %v693 = vpop.f32.mrb[0].mxu0
        %694 = vmatprep.mubr.bf16.mxu0 0
        %695 = vmatmul.mubr.bf16.gmra.mrb[0].mxu0 %v541
        %v696 = vpop.f32.mrb[0].mxu0
        %v697 = vadd.f32 0.0, %v696
        %v698 = vpop.f32.mrb[0].mxu0
        %v699 = vpop.f32.mrb[0].mxu0
        %v700 = vadd.f32 0.0, %v699
        %v701 = vpop.f32.mrb[0].mxu0
        %702 = vmatprep.mubr.bf16.mxu0 0
        %703 = vmatmul.mubr.bf16.gmra.mrb[0].mxu0 %v544
        %v704 = vpop.f32.mrb[0].mxu0
        %v705 = vadd.f32 0.0, %v704
        %v706 = vpop.f32.mrb[0].mxu0
        %v707 = vpop.f32.mrb[0].mxu0
        %v708 = vadd.f32 0.0, %v707
        %v709 = vpop.f32.mrb[0].mxu0
        %710 = vdwg.mxu0
        %v711 = vld [vmem:[%s2] sm:$0x1]
        %v712 = vld [vmem:[%s2 + $0x1] sm:$0x1]
        %v713 = vlaneseq
        %v714 = vshrl.u32 %v713, 7
        %v715 = vsub.s32 0, %v714
        %v716 = vrot.slane %v711, %v715
        %v717 = vmul.f32 %v585, %v716
        %v718 = vmul.f32 %v588, %v716
        %v719 = vmul.f32 %v593, %v716
        %v720 = vmul.f32 %v596, %v716
        %v721 = vmul.f32 %v601, %v716
        %v722 = vmul.f32 %v604, %v716
        %v723 = vmul.f32 %v609, %v716
        %v724 = vmul.f32 %v612, %v716
        %v725 = vmul.f32 %v617, %v716
        %v726 = vmul.f32 %v620, %v716
        %v727 = vmul.f32 %v625, %v716
        %v728 = vmul.f32 %v628, %v716
        %v729 = vmul.f32 %v633, %v716
        %v730 = vmul.f32 %v636, %v716
        %v731 = vmul.f32 %v641, %v716
        %v732 = vmul.f32 %v644, %v716
        %v733 = vmul.f32 %v649, %v716
        %v734 = vmul.f32 %v652, %v716
        %v735 = vmul.f32 %v657, %v716
        %v736 = vmul.f32 %v660, %v716
        %v737 = vmul.f32 %v665, %v716
        %v738 = vmul.f32 %v668, %v716
        %v739 = vmul.f32 %v673, %v716
        %v740 = vmul.f32 %v676, %v716
        %v741 = vmul.f32 %v681, %v716
        %v742 = vmul.f32 %v684, %v716
        %v743 = vmul.f32 %v689, %v716
        %v744 = vmul.f32 %v692, %v716
        %v745 = vmul.f32 %v697, %v716
        %v746 = vmul.f32 %v700, %v716
        %v747 = vmul.f32 %v705, %v716
        %v748 = vmul.f32 %v708, %v716
        %v749 = vlaneseq
        %v750 = vshrl.u32 %v749, 7
        %v751 = vsub.s32 0, %v750
        %v752 = vrot.slane %v712, %v751
        %v753 = vadd.f32 %v717, %v752
        %v754 = vadd.f32 %v718, %v752
        %v755 = vadd.f32 %v719, %v752
        %v756 = vadd.f32 %v720, %v752
        %v757 = vadd.f32 %v721, %v752
        %v758 = vadd.f32 %v722, %v752
        %v759 = vadd.f32 %v723, %v752
        %v760 = vadd.f32 %v724, %v752
        %v761 = vadd.f32 %v725, %v752
        %v762 = vadd.f32 %v726, %v752
        %v763 = vadd.f32 %v727, %v752
        %v764 = vadd.f32 %v728, %v752
        %v765 = vadd.f32 %v729, %v752
        %v766 = vadd.f32 %v730, %v752
        %v767 = vadd.f32 %v731, %v752
        %v768 = vadd.f32 %v732, %v752
        %v769 = vadd.f32 %v733, %v752
        %v770 = vadd.f32 %v734, %v752
        %v771 = vadd.f32 %v735, %v752
        %v772 = vadd.f32 %v736, %v752
        %v773 = vadd.f32 %v737, %v752
        %v774 = vadd.f32 %v738, %v752
        %v775 = vadd.f32 %v739, %v752
        %v776 = vadd.f32 %v740, %v752
        %v777 = vadd.f32 %v741, %v752
        %v778 = vadd.f32 %v742, %v752
        %v779 = vadd.f32 %v743, %v752
        %v780 = vadd.f32 %v744, %v752
        %v781 = vadd.f32 %v745, %v752
        %v782 = vadd.f32 %v746, %v752
        %v783 = vadd.f32 %v747, %v752
        %v784 = vadd.f32 %v748, %v752
        %v785 = vmax.f32 %v753, 0.0
        %v786 = vmax.f32 %v754, 0.0
        %v787 = vmax.f32 %v755, 0.0
        %v788 = vmax.f32 %v756, 0.0
        %v789 = vmax.f32 %v757, 0.0
        %v790 = vmax.f32 %v758, 0.0
        %v791 = vmax.f32 %v759, 0.0
        %v792 = vmax.f32 %v760, 0.0
        %v793 = vmax.f32 %v761, 0.0
        %v794 = vmax.f32 %v762, 0.0
        %v795 = vmax.f32 %v763, 0.0
        %v796 = vmax.f32 %v764, 0.0
        %v797 = vmax.f32 %v765, 0.0
        %v798 = vmax.f32 %v766, 0.0
        %v799 = vmax.f32 %v767, 0.0
        %v800 = vmax.f32 %v768, 0.0
        %v801 = vmax.f32 %v769, 0.0
        %v802 = vmax.f32 %v770, 0.0
        %v803 = vmax.f32 %v771, 0.0
        %v804 = vmax.f32 %v772, 0.0
        %v805 = vmax.f32 %v773, 0.0
        %v806 = vmax.f32 %v774, 0.0
        %v807 = vmax.f32 %v775, 0.0
        %v808 = vmax.f32 %v776, 0.0
        %v809 = vmax.f32 %v777, 0.0
        %v810 = vmax.f32 %v778, 0.0
        %v811 = vmax.f32 %v779, 0.0
        %v812 = vmax.f32 %v780, 0.0
        %v813 = vmax.f32 %v781, 0.0
        %v814 = vmax.f32 %v782, 0.0
        %v815 = vmax.f32 %v783, 0.0
        %v816 = vmax.f32 %v784, 0.0
        %v817 = vpack.c.bf16 %v786, %v785
        %v818 = vpack.c.bf16 %v788, %v787
        %v819 = vpack.c.bf16 %v790, %v789
        %v820 = vpack.c.bf16 %v792, %v791
        %v821 = vpack.c.bf16 %v794, %v793
        %v822 = vpack.c.bf16 %v796, %v795
        %v823 = vpack.c.bf16 %v798, %v797
        %v824 = vpack.c.bf16 %v800, %v799
        %v825 = vpack.c.bf16 %v802, %v801
        %v826 = vpack.c.bf16 %v804, %v803
        %v827 = vpack.c.bf16 %v806, %v805
        %v828 = vpack.c.bf16 %v808, %v807
        %v829 = vpack.c.bf16 %v810, %v809
        %v830 = vpack.c.bf16 %v812, %v811
        %v831 = vpack.c.bf16 %v814, %v813
        %v832 = vpack.c.bf16 %v816, %v815
        %v833 = vld [vmem:[%s3] sm:$0xf]
        %v834 = vld [vmem:[%s3 + $0x4] sm:$0xf]
        %v837 = vunpack.c.l.b16 %v833
        %v838 = vunpack.c.l.b16 %v834
        %v839 = vpack.c.b16 %v838, %v837
        %vm841 = vcmask 130048
        %v843 = vsel %vm841, %v817, 0
        %v846 = vsel %vm841, %v818, 0
        %v849 = vsel %vm841, %v819, 0
        %v852 = vsel %vm841, %v820, 0
        %v855 = vsel %vm841, %v821, 0
        %v858 = vsel %vm841, %v822, 0
        %v861 = vsel %vm841, %v823, 0
        %v864 = vsel %vm841, %v824, 0
        %v867 = vsel %vm841, %v825, 0
        %v870 = vsel %vm841, %v826, 0
        %v873 = vsel %vm841, %v827, 0
        %v876 = vsel %vm841, %v828, 0
        %v879 = vsel %vm841, %v829, 0
        %v882 = vsel %vm841, %v830, 0
        %v885 = vsel %vm841, %v831, 0
        %v888 = vsel %vm841, %v832, 0
        %890 = vmatprep.subr.bf16.mxu0 0
        %891 = vmatpush1.bf16.msra.mxu0 %v839
        %892 = vmatprep.subr.bf16.mxu0 0
        %893 = vmatpush1.bf16.msra.mxu0 0
        %894 = vmatprep.subr.bf16.mxu0 0
        %895 = vmatpush1.bf16.msra.mxu0 0
        %896 = vmatprep.subr.bf16.mxu0 0
        %897 = vmatpush1.bf16.msra.mxu0 0
        %898 = vmatprep.subr.bf16.mxu0 0
        %899 = vmatpush1.bf16.msra.mxu0 0
        %900 = vmatprep.subr.bf16.mxu0 0
        %901 = vmatpush1.bf16.msra.mxu0 0
        %902 = vmatprep.subr.bf16.mxu0 0
        %903 = vmatpush1.bf16.msra.mxu0 0
        %904 = vmatprep.subr.bf16.mxu0 0
        %905 = vmatpush1.bf16.msra.mxu0 0
        %906 = vmatprep.subr.bf16.mxu0 0
        %907 = vmatpush1.bf16.msra.mxu0 0
        %908 = vmatprep.subr.bf16.mxu0 0
        %909 = vmatpush1.bf16.msra.mxu0 0
        %910 = vmatprep.subr.bf16.mxu0 0
        %911 = vmatpush1.bf16.msra.mxu0 0
        %912 = vmatprep.subr.bf16.mxu0 0
        %913 = vmatpush1.bf16.msra.mxu0 0
        %914 = vmatprep.subr.bf16.mxu0 0
        %915 = vmatpush1.bf16.msra.mxu0 0
        %916 = vmatprep.subr.bf16.mxu0 0
        %917 = vmatpush1.bf16.msra.mxu0 0
        %918 = vmatprep.subr.bf16.mxu0 0
        %919 = vmatpush1.bf16.msra.mxu0 0
        %920 = vmatprep.subr.bf16.mxu0 0
        %921 = vmatpush1.bf16.msra.mxu0 0
        %922 = vmatprep.mubr.bf16.mxu0 0
        %923 = vmatmul.mubr.bf16.gmra.mrb[0].mxu0 %v843
        %v924 = vpop.f32.mrb[0].mxu0
        %v925 = vadd.f32 0.0, %v924
        %v926 = vpop.f32.mrb[0].mxu0
        %v927 = vpop.f32.mrb[0].mxu0
        %v928 = vadd.f32 0.0, %v927
        %v929 = vpop.f32.mrb[0].mxu0
        %930 = vmatprep.mubr.bf16.mxu0 0
        %931 = vmatmul.mubr.bf16.gmra.mrb[0].mxu0 %v846
        %v932 = vpop.f32.mrb[0].mxu0
        %v933 = vadd.f32 0.0, %v932
        %v934 = vpop.f32.mrb[0].mxu0
        %v935 = vpop.f32.mrb[0].mxu0
        %v936 = vadd.f32 0.0, %v935
        %v937 = vpop.f32.mrb[0].mxu0
        %938 = vmatprep.mubr.bf16.mxu0 0
        %939 = vmatmul.mubr.bf16.gmra.mrb[0].mxu0 %v849
        %v940 = vpop.f32.mrb[0].mxu0
        %v941 = vadd.f32 0.0, %v940
        %v942 = vpop.f32.mrb[0].mxu0
        %v943 = vpop.f32.mrb[0].mxu0
        %v944 = vadd.f32 0.0, %v943
        %v945 = vpop.f32.mrb[0].mxu0
        %946 = vmatprep.mubr.bf16.mxu0 0
        %947 = vmatmul.mubr.bf16.gmra.mrb[0].mxu0 %v852
        %v948 = vpop.f32.mrb[0].mxu0
        %v949 = vadd.f32 0.0, %v948
        %v950 = vpop.f32.mrb[0].mxu0
        %v951 = vpop.f32.mrb[0].mxu0
        %v952 = vadd.f32 0.0, %v951
        %v953 = vpop.f32.mrb[0].mxu0
        %954 = vmatprep.mubr.bf16.mxu0 0
        %955 = vmatmul.mubr.bf16.gmra.mrb[0].mxu0 %v855
        %v956 = vpop.f32.mrb[0].mxu0
        %v957 = vadd.f32 0.0, %v956
        %v958 = vpop.f32.mrb[0].mxu0
        %v959 = vpop.f32.mrb[0].mxu0
        %v960 = vadd.f32 0.0, %v959
        %v961 = vpop.f32.mrb[0].mxu0
        %962 = vmatprep.mubr.bf16.mxu0 0
        %963 = vmatmul.mubr.bf16.gmra.mrb[0].mxu0 %v858
        %v964 = vpop.f32.mrb[0].mxu0
        %v965 = vadd.f32 0.0, %v964
        %v966 = vpop.f32.mrb[0].mxu0
        %v967 = vpop.f32.mrb[0].mxu0
        %v968 = vadd.f32 0.0, %v967
        %v969 = vpop.f32.mrb[0].mxu0
        %970 = vmatprep.mubr.bf16.mxu0 0
        %971 = vmatmul.mubr.bf16.gmra.mrb[0].mxu0 %v861
        %v972 = vpop.f32.mrb[0].mxu0
        %v973 = vadd.f32 0.0, %v972
        %v974 = vpop.f32.mrb[0].mxu0
        %v975 = vpop.f32.mrb[0].mxu0
        %v976 = vadd.f32 0.0, %v975
        %v977 = vpop.f32.mrb[0].mxu0
        %978 = vmatprep.mubr.bf16.mxu0 0
        %979 = vmatmul.mubr.bf16.gmra.mrb[0].mxu0 %v864
        %v980 = vpop.f32.mrb[0].mxu0
        %v981 = vadd.f32 0.0, %v980
        %v982 = vpop.f32.mrb[0].mxu0
        %v983 = vpop.f32.mrb[0].mxu0
        %v984 = vadd.f32 0.0, %v983
        %v985 = vpop.f32.mrb[0].mxu0
        %986 = vmatprep.mubr.bf16.mxu0 0
        %987 = vmatmul.mubr.bf16.gmra.mrb[0].mxu0 %v867
        %v988 = vpop.f32.mrb[0].mxu0
        %v989 = vadd.f32 0.0, %v988
        %v990 = vpop.f32.mrb[0].mxu0
        %v991 = vpop.f32.mrb[0].mxu0
        %v992 = vadd.f32 0.0, %v991
        %v993 = vpop.f32.mrb[0].mxu0
        %994 = vmatprep.mubr.bf16.mxu0 0
        %995 = vmatmul.mubr.bf16.gmra.mrb[0].mxu0 %v870
        %v996 = vpop.f32.mrb[0].mxu0
        %v997 = vadd.f32 0.0, %v996
        %v998 = vpop.f32.mrb[0].mxu0
        %v999 = vpop.f32.mrb[0].mxu0
        %v1000 = vadd.f32 0.0, %v999
        %v1001 = vpop.f32.mrb[0].mxu0
        %1002 = vmatprep.mubr.bf16.mxu0 0
        %1003 = vmatmul.mubr.bf16.gmra.mrb[0].mxu0 %v873
        %v1004 = vpop.f32.mrb[0].mxu0
        %v1005 = vadd.f32 0.0, %v1004
        %v1006 = vpop.f32.mrb[0].mxu0
        %v1007 = vpop.f32.mrb[0].mxu0
        %v1008 = vadd.f32 0.0, %v1007
        %v1009 = vpop.f32.mrb[0].mxu0
        %1010 = vmatprep.mubr.bf16.mxu0 0
        %1011 = vmatmul.mubr.bf16.gmra.mrb[0].mxu0 %v876
        %v1012 = vpop.f32.mrb[0].mxu0
        %v1013 = vadd.f32 0.0, %v1012
        %v1014 = vpop.f32.mrb[0].mxu0
        %v1015 = vpop.f32.mrb[0].mxu0
        %v1016 = vadd.f32 0.0, %v1015
        %v1017 = vpop.f32.mrb[0].mxu0
        %1018 = vmatprep.mubr.bf16.mxu0 0
        %1019 = vmatmul.mubr.bf16.gmra.mrb[0].mxu0 %v879
        %v1020 = vpop.f32.mrb[0].mxu0
        %v1021 = vadd.f32 0.0, %v1020
        %v1022 = vpop.f32.mrb[0].mxu0
        %v1023 = vpop.f32.mrb[0].mxu0
        %v1024 = vadd.f32 0.0, %v1023
        %v1025 = vpop.f32.mrb[0].mxu0
        %1026 = vmatprep.mubr.bf16.mxu0 0
        %1027 = vmatmul.mubr.bf16.gmra.mrb[0].mxu0 %v882
        %v1028 = vpop.f32.mrb[0].mxu0
        %v1029 = vadd.f32 0.0, %v1028
        %v1030 = vpop.f32.mrb[0].mxu0
        %v1031 = vpop.f32.mrb[0].mxu0
        %v1032 = vadd.f32 0.0, %v1031
        %v1033 = vpop.f32.mrb[0].mxu0
        %1034 = vmatprep.mubr.bf16.mxu0 0
        %1035 = vmatmul.mubr.bf16.gmra.mrb[0].mxu0 %v885
        %v1036 = vpop.f32.mrb[0].mxu0
        %v1037 = vadd.f32 0.0, %v1036
        %v1038 = vpop.f32.mrb[0].mxu0
        %v1039 = vpop.f32.mrb[0].mxu0
        %v1040 = vadd.f32 0.0, %v1039
        %v1041 = vpop.f32.mrb[0].mxu0
        %1042 = vmatprep.mubr.bf16.mxu0 0
        %1043 = vmatmul.mubr.bf16.gmra.mrb[0].mxu0 %v888
        %v1044 = vpop.f32.mrb[0].mxu0
        %v1045 = vadd.f32 0.0, %v1044
        %v1046 = vpop.f32.mrb[0].mxu0
        %v1047 = vpop.f32.mrb[0].mxu0
        %v1048 = vadd.f32 0.0, %v1047
        %v1049 = vpop.f32.mrb[0].mxu0
        %1050 = vdwg.mxu0
        %1083 = vrot.lane.b32.xlu0 %v925, 96
        %v1084 = vpop.permute.xlu0 %1083
        %1085 = vrot.lane.b32.xlu0 %v928, 96
        %v1086 = vpop.permute.xlu0 %1085
        %1087 = vrot.lane.b32.xlu0 %v933, 96
        %v1088 = vpop.permute.xlu0 %1087
        %1089 = vrot.lane.b32.xlu0 %v936, 96
        %v1090 = vpop.permute.xlu0 %1089
        %1091 = vrot.lane.b32.xlu0 %v941, 96
        %v1092 = vpop.permute.xlu0 %1091
        %1093 = vrot.lane.b32.xlu0 %v944, 96
        %v1094 = vpop.permute.xlu0 %1093
        %1095 = vrot.lane.b32.xlu0 %v949, 96
        %v1096 = vpop.permute.xlu0 %1095
        %1097 = vrot.lane.b32.xlu0 %v952, 96
        %v1098 = vpop.permute.xlu0 %1097
        %1099 = vrot.lane.b32.xlu0 %v957, 96
        %v1100 = vpop.permute.xlu0 %1099
        %1101 = vrot.lane.b32.xlu0 %v960, 96
        %v1102 = vpop.permute.xlu0 %1101
        %1103 = vrot.lane.b32.xlu0 %v965, 96
        %v1104 = vpop.permute.xlu0 %1103
        %1105 = vrot.lane.b32.xlu0 %v968, 96
        %v1106 = vpop.permute.xlu0 %1105
        %1107 = vrot.lane.b32.xlu0 %v973, 96
        %v1108 = vpop.permute.xlu0 %1107
        %1109 = vrot.lane.b32.xlu0 %v976, 96
        %v1110 = vpop.permute.xlu0 %1109
        %1111 = vrot.lane.b32.xlu0 %v981, 96
        %v1112 = vpop.permute.xlu0 %1111
        %1113 = vrot.lane.b32.xlu0 %v984, 96
        %v1114 = vpop.permute.xlu0 %1113
        %1115 = vrot.lane.b32.xlu0 %v989, 96
        %v1116 = vpop.permute.xlu0 %1115
        %1117 = vrot.lane.b32.xlu0 %v992, 96
        %v1118 = vpop.permute.xlu0 %1117
        %1119 = vrot.lane.b32.xlu0 %v997, 96
        %v1120 = vpop.permute.xlu0 %1119
        %1121 = vrot.lane.b32.xlu0 %v1000, 96
        %v1122 = vpop.permute.xlu0 %1121
        %1123 = vrot.lane.b32.xlu0 %v1005, 96
        %v1124 = vpop.permute.xlu0 %1123
        %1125 = vrot.lane.b32.xlu0 %v1008, 96
        %v1126 = vpop.permute.xlu0 %1125
        %1127 = vrot.lane.b32.xlu0 %v1013, 96
        %v1128 = vpop.permute.xlu0 %1127
        %1129 = vrot.lane.b32.xlu0 %v1016, 96
        %v1130 = vpop.permute.xlu0 %1129
        %1131 = vrot.lane.b32.xlu0 %v1021, 96
        %v1132 = vpop.permute.xlu0 %1131
        %1133 = vrot.lane.b32.xlu0 %v1024, 96
        %v1134 = vpop.permute.xlu0 %1133
        %1135 = vrot.lane.b32.xlu0 %v1029, 96
        %v1136 = vpop.permute.xlu0 %1135
        %1137 = vrot.lane.b32.xlu0 %v1032, 96
        %v1138 = vpop.permute.xlu0 %1137
        %1139 = vrot.lane.b32.xlu0 %v1037, 96
        %v1140 = vpop.permute.xlu0 %1139
        %1141 = vrot.lane.b32.xlu0 %v1040, 96
        %v1142 = vpop.permute.xlu0 %1141
        %1143 = vrot.lane.b32.xlu0 %v1045, 96
        %v1144 = vpop.permute.xlu0 %1143
        %1145 = vrot.lane.b32.xlu0 %v1048, 96
        %v1146 = vpop.permute.xlu0 %1145
        %s1179 = scalar_lea.vmem [#allocation2], 24
        %1180 = vst.msk [vmem:[%s1179 + $0x1] sm:$0xff] %vm310, %v1084
        %1181 = vst.msk [vmem:[%s1179 + $0x9] sm:$0xff] %vm310, %v1086
        %1182 = vst.msk [vmem:[%s1179 + $0x19] sm:$0xff] %vm310, %v1088
        %1183 = vst.msk [vmem:[%s1179 + $0x21] sm:$0xff] %vm310, %v1090
        %1184 = vst.msk [vmem:[%s1179 + $0x31] sm:$0xff] %vm310, %v1092
        %1185 = vst.msk [vmem:[%s1179 + $0x39] sm:$0xff] %vm310, %v1094
        %1186 = vst.msk [vmem:[%s1179 + $0x49] sm:$0xff] %vm310, %v1096
        %1187 = vst.msk [vmem:[%s1179 + $0x51] sm:$0xff] %vm310, %v1098
        %1188 = vst.msk [vmem:[%s1179 + $0x61] sm:$0xff] %vm310, %v1100
        %1189 = vst.msk [vmem:[%s1179 + $0x69] sm:$0xff] %vm310, %v1102
        %1190 = vst.msk [vmem:[%s1179 + $0x79] sm:$0xff] %vm310, %v1104
        %1191 = vst.msk [vmem:[%s1179 + $0x81] sm:$0xff] %vm310, %v1106
        %1192 = vst.msk [vmem:[%s1179 + $0x91] sm:$0xff] %vm310, %v1108
        %1193 = vst.msk [vmem:[%s1179 + $0x99] sm:$0xff] %vm310, %v1110
        %1194 = vst.msk [vmem:[%s1179 + $0xa9] sm:$0xff] %vm310, %v1112
        %1195 = vst.msk [vmem:[%s1179 + $0xb1] sm:$0xff] %vm310, %v1114
        %1196 = vst.msk [vmem:[%s1179 + $0xc1] sm:$0xff] %vm310, %v1116
        %1197 = vst.msk [vmem:[%s1179 + $0xc9] sm:$0xff] %vm310, %v1118
        %1198 = vst.msk [vmem:[%s1179 + $0xd9] sm:$0xff] %vm310, %v1120
        %1199 = vst.msk [vmem:[%s1179 + $0xe1] sm:$0xff] %vm310, %v1122
        %1200 = vst.msk [vmem:[%s1179 + $0xf1] sm:$0xff] %vm310, %v1124
        %1201 = vst.msk [vmem:[%s1179 + $0xf9] sm:$0xff] %vm310, %v1126
        %1202 = vst.msk [vmem:[%s1179 + $0x109] sm:$0xff] %vm310, %v1128
        %1203 = vst.msk [vmem:[%s1179 + $0x111] sm:$0xff] %vm310, %v1130
        %1204 = vst.msk [vmem:[%s1179 + $0x121] sm:$0xff] %vm310, %v1132
        %1205 = vst.msk [vmem:[%s1179 + $0x129] sm:$0xff] %vm310, %v1134
        %1206 = vst.msk [vmem:[%s1179 + $0x139] sm:$0xff] %vm310, %v1136
        %1207 = vst.msk [vmem:[%s1179 + $0x141] sm:$0xff] %vm310, %v1138
        %1208 = vst.msk [vmem:[%s1179 + $0x151] sm:$0xff] %vm310, %v1140
        %1209 = vst.msk [vmem:[%s1179 + $0x159] sm:$0xff] %vm310, %v1142
        %1210 = vst.msk [vmem:[%s1179 + $0x169] sm:$0xff] %vm310, %v1144
        %1211 = vst.msk [vmem:[%s1179 + $0x171] sm:$0xff] %vm310, %v1146
        %s1212 = scalar_lea.vmem [#allocation2], 48
        %v1213 = vld [vmem:[%s1212 + $0x2] sm:$0xff]
        %v1214 = vld [vmem:[%s1212 + $0xa] sm:$0xff]
        %v1215 = vld [vmem:[%s1212 + $0x1a] sm:$0xff]
        %v1216 = vld [vmem:[%s1212 + $0x22] sm:$0xff]
        %v1217 = vld [vmem:[%s1212 + $0x32] sm:$0xff]
        %v1218 = vld [vmem:[%s1212 + $0x3a] sm:$0xff]
        %v1219 = vld [vmem:[%s1212 + $0x4a] sm:$0xff]
        %v1220 = vld [vmem:[%s1212 + $0x52] sm:$0xff]
        %v1221 = vld [vmem:[%s1212 + $0x62] sm:$0xff]
        %v1222 = vld [vmem:[%s1212 + $0x6a] sm:$0xff]
        %v1223 = vld [vmem:[%s1212 + $0x7a] sm:$0xff]
        %v1224 = vld [vmem:[%s1212 + $0x82] sm:$0xff]
        %v1225 = vld [vmem:[%s1212 + $0x92] sm:$0xff]
        %v1226 = vld [vmem:[%s1212 + $0x9a] sm:$0xff]
        %v1227 = vld [vmem:[%s1212 + $0xaa] sm:$0xff]
        %v1228 = vld [vmem:[%s1212 + $0xb2] sm:$0xff]
        %v1229 = vld [vmem:[%s1212 + $0xc2] sm:$0xff]
        %v1230 = vld [vmem:[%s1212 + $0xca] sm:$0xff]
        %v1231 = vld [vmem:[%s1212 + $0xda] sm:$0xff]
        %v1232 = vld [vmem:[%s1212 + $0xe2] sm:$0xff]
        %v1233 = vld [vmem:[%s1212 + $0xf2] sm:$0xff]
        %v1234 = vld [vmem:[%s1212 + $0xfa] sm:$0xff]
        %v1235 = vld [vmem:[%s1212 + $0x10a] sm:$0xff]
        %v1236 = vld [vmem:[%s1212 + $0x112] sm:$0xff]
        %v1237 = vld [vmem:[%s1212 + $0x122] sm:$0xff]
        %v1238 = vld [vmem:[%s1212 + $0x12a] sm:$0xff]
        %v1239 = vld [vmem:[%s1212 + $0x13a] sm:$0xff]
        %v1240 = vld [vmem:[%s1212 + $0x142] sm:$0xff]
        %v1241 = vld [vmem:[%s1212 + $0x152] sm:$0xff]
        %v1242 = vld [vmem:[%s1212 + $0x15a] sm:$0xff]
        %v1243 = vld [vmem:[%s1212 + $0x16a] sm:$0xff]
        %v1244 = vld [vmem:[%s1212 + $0x172] sm:$0xff]
        %v1245 = vadd.f32 %v1213, %v925
        %v1246 = vadd.f32 %v1214, %v928
        %v1247 = vadd.f32 %v1215, %v933
        %v1248 = vadd.f32 %v1216, %v936
        %v1249 = vadd.f32 %v1217, %v941
        %v1250 = vadd.f32 %v1218, %v944
        %v1251 = vadd.f32 %v1219, %v949
        %v1252 = vadd.f32 %v1220, %v952
        %v1253 = vadd.f32 %v1221, %v957
        %v1254 = vadd.f32 %v1222, %v960
        %v1255 = vadd.f32 %v1223, %v965
        %v1256 = vadd.f32 %v1224, %v968
        %v1257 = vadd.f32 %v1225, %v973
        %v1258 = vadd.f32 %v1226, %v976
        %v1259 = vadd.f32 %v1227, %v981
        %v1260 = vadd.f32 %v1228, %v984
        %v1261 = vadd.f32 %v1229, %v989
        %v1262 = vadd.f32 %v1230, %v992
        %v1263 = vadd.f32 %v1231, %v997
        %v1264 = vadd.f32 %v1232, %v1000
        %v1265 = vadd.f32 %v1233, %v1005
        %v1266 = vadd.f32 %v1234, %v1008
        %v1267 = vadd.f32 %v1235, %v1013
        %v1268 = vadd.f32 %v1236, %v1016
        %v1269 = vadd.f32 %v1237, %v1021
        %v1270 = vadd.f32 %v1238, %v1024
        %v1271 = vadd.f32 %v1239, %v1029
        %v1272 = vadd.f32 %v1240, %v1032
        %v1273 = vadd.f32 %v1241, %v1037
        %v1274 = vadd.f32 %v1242, %v1040
        %v1275 = vadd.f32 %v1243, %v1045
        %v1276 = vadd.f32 %v1244, %v1048
        %1277 = vst.msk [vmem:[%s1212 + $0x2] sm:$0xff] %vm310, %v1245
        %1278 = vst.msk [vmem:[%s1212 + $0xa] sm:$0xff] %vm310, %v1246
        %1279 = vst.msk [vmem:[%s1212 + $0x1a] sm:$0xff] %vm310, %v1247
        %1280 = vst.msk [vmem:[%s1212 + $0x22] sm:$0xff] %vm310, %v1248
        %1281 = vst.msk [vmem:[%s1212 + $0x32] sm:$0xff] %vm310, %v1249
        %1282 = vst.msk [vmem:[%s1212 + $0x3a] sm:$0xff] %vm310, %v1250
        %1283 = vst.msk [vmem:[%s1212 + $0x4a] sm:$0xff] %vm310, %v1251
        %1284 = vst.msk [vmem:[%s1212 + $0x52] sm:$0xff] %vm310, %v1252
        %1285 = vst.msk [vmem:[%s1212 + $0x62] sm:$0xff] %vm310, %v1253
        %1286 = vst.msk [vmem:[%s1212 + $0x6a] sm:$0xff] %vm310, %v1254
        %1287 = vst.msk [vmem:[%s1212 + $0x7a] sm:$0xff] %vm310, %v1255
        %1288 = vst.msk [vmem:[%s1212 + $0x82] sm:$0xff] %vm310, %v1256
        %1289 = vst.msk [vmem:[%s1212 + $0x92] sm:$0xff] %vm310, %v1257
        %1290 = vst.msk [vmem:[%s1212 + $0x9a] sm:$0xff] %vm310, %v1258
        %1291 = vst.msk [vmem:[%s1212 + $0xaa] sm:$0xff] %vm310, %v1259
        %1292 = vst.msk [vmem:[%s1212 + $0xb2] sm:$0xff] %vm310, %v1260
        %1293 = vst.msk [vmem:[%s1212 + $0xc2] sm:$0xff] %vm310, %v1261
        %1294 = vst.msk [vmem:[%s1212 + $0xca] sm:$0xff] %vm310, %v1262
        %1295 = vst.msk [vmem:[%s1212 + $0xda] sm:$0xff] %vm310, %v1263
        %1296 = vst.msk [vmem:[%s1212 + $0xe2] sm:$0xff] %vm310, %v1264
        %1297 = vst.msk [vmem:[%s1212 + $0xf2] sm:$0xff] %vm310, %v1265
        %1298 = vst.msk [vmem:[%s1212 + $0xfa] sm:$0xff] %vm310, %v1266
        %1299 = vst.msk [vmem:[%s1212 + $0x10a] sm:$0xff] %vm310, %v1267
        %1300 = vst.msk [vmem:[%s1212 + $0x112] sm:$0xff] %vm310, %v1268
        %1301 = vst.msk [vmem:[%s1212 + $0x122] sm:$0xff] %vm310, %v1269
        %1302 = vst.msk [vmem:[%s1212 + $0x12a] sm:$0xff] %vm310, %v1270
        %1303 = vst.msk [vmem:[%s1212 + $0x13a] sm:$0xff] %vm310, %v1271
        %1304 = vst.msk [vmem:[%s1212 + $0x142] sm:$0xff] %vm310, %v1272
        %1305 = vst.msk [vmem:[%s1212 + $0x152] sm:$0xff] %vm310, %v1273
        %1306 = vst.msk [vmem:[%s1212 + $0x15a] sm:$0xff] %vm310, %v1274
        %1307 = vst.msk [vmem:[%s1212 + $0x16a] sm:$0xff] %vm310, %v1275
        %1308 = vst.msk [vmem:[%s1212 + $0x172] sm:$0xff] %vm310, %v1276
        %v1309 = vld [vmem:[%s1212 + $0x1] sm:$0xff]
        %v1310 = vld [vmem:[%s1212 + $0x9] sm:$0xff]
        %v1311 = vld [vmem:[%s1212 + $0x19] sm:$0xff]
        %v1312 = vld [vmem:[%s1212 + $0x21] sm:$0xff]
        %v1313 = vld [vmem:[%s1212 + $0x31] sm:$0xff]
        %v1314 = vld [vmem:[%s1212 + $0x39] sm:$0xff]
        %v1315 = vld [vmem:[%s1212 + $0x49] sm:$0xff]
        %v1316 = vld [vmem:[%s1212 + $0x51] sm:$0xff]
        %v1317 = vld [vmem:[%s1212 + $0x61] sm:$0xff]
        %v1318 = vld [vmem:[%s1212 + $0x69] sm:$0xff]
        %v1319 = vld [vmem:[%s1212 + $0x79] sm:$0xff]
        %v1320 = vld [vmem:[%s1212 + $0x81] sm:$0xff]
        %v1321 = vld [vmem:[%s1212 + $0x91] sm:$0xff]
        %v1322 = vld [vmem:[%s1212 + $0x99] sm:$0xff]
        %v1323 = vld [vmem:[%s1212 + $0xa9] sm:$0xff]
        %v1324 = vld [vmem:[%s1212 + $0xb1] sm:$0xff]
        %v1325 = vld [vmem:[%s1212 + $0xc1] sm:$0xff]
        %v1326 = vld [vmem:[%s1212 + $0xc9] sm:$0xff]
        %v1327 = vld [vmem:[%s1212 + $0xd9] sm:$0xff]
        %v1328 = vld [vmem:[%s1212 + $0xe1] sm:$0xff]
        %v1329 = vld [vmem:[%s1212 + $0xf1] sm:$0xff]
        %v1330 = vld [vmem:[%s1212 + $0xf9] sm:$0xff]
        %v1331 = vld [vmem:[%s1212 + $0x109] sm:$0xff]
        %v1332 = vld [vmem:[%s1212 + $0x111] sm:$0xff]
        %v1333 = vld [vmem:[%s1212 + $0x121] sm:$0xff]
        %v1334 = vld [vmem:[%s1212 + $0x129] sm:$0xff]
        %v1335 = vld [vmem:[%s1212 + $0x139] sm:$0xff]
        %v1336 = vld [vmem:[%s1212 + $0x141] sm:$0xff]
        %v1337 = vld [vmem:[%s1212 + $0x151] sm:$0xff]
        %v1338 = vld [vmem:[%s1212 + $0x159] sm:$0xff]
        %v1339 = vld [vmem:[%s1212 + $0x169] sm:$0xff]
        %v1340 = vld [vmem:[%s1212 + $0x171] sm:$0xff]
        %1341 = vrot.lane.b32.xlu0 %v925, 120
        %v1342 = vpop.permute.xlu0 %1341
        %1343 = vrot.lane.b32.xlu0 %v928, 120
        %v1344 = vpop.permute.xlu0 %1343
        %1345 = vrot.lane.b32.xlu0 %v933, 120
        %v1346 = vpop.permute.xlu0 %1345
        %1347 = vrot.lane.b32.xlu0 %v936, 120
        %v1348 = vpop.permute.xlu0 %1347
        %1349 = vrot.lane.b32.xlu0 %v941, 120
        %v1350 = vpop.permute.xlu0 %1349
        %1351 = vrot.lane.b32.xlu0 %v944, 120
        %v1352 = vpop.permute.xlu0 %1351
        %1353 = vrot.lane.b32.xlu0 %v949, 120
        %v1354 = vpop.permute.xlu0 %1353
        %1355 = vrot.lane.b32.xlu0 %v952, 120
        %v1356 = vpop.permute.xlu0 %1355
        %1357 = vrot.lane.b32.xlu0 %v957, 120
        %v1358 = vpop.permute.xlu0 %1357
        %1359 = vrot.lane.b32.xlu0 %v960, 120
        %v1360 = vpop.permute.xlu0 %1359
        %1361 = vrot.lane.b32.xlu0 %v965, 120
        %v1362 = vpop.permute.xlu0 %1361
        %1363 = vrot.lane.b32.xlu0 %v968, 120
        %v1364 = vpop.permute.xlu0 %1363
        %1365 = vrot.lane.b32.xlu0 %v973, 120
        %v1366 = vpop.permute.xlu0 %1365
        %1367 = vrot.lane.b32.xlu0 %v976, 120
        %v1368 = vpop.permute.xlu0 %1367
        %1369 = vrot.lane.b32.xlu0 %v981, 120
        %v1370 = vpop.permute.xlu0 %1369
        %1371 = vrot.lane.b32.xlu0 %v984, 120
        %v1372 = vpop.permute.xlu0 %1371
        %1373 = vrot.lane.b32.xlu0 %v989, 120
        %v1374 = vpop.permute.xlu0 %1373
        %1375 = vrot.lane.b32.xlu0 %v992, 120
        %v1376 = vpop.permute.xlu0 %1375
        %1377 = vrot.lane.b32.xlu0 %v997, 120
        %v1378 = vpop.permute.xlu0 %1377
        %1379 = vrot.lane.b32.xlu0 %v1000, 120
        %v1380 = vpop.permute.xlu0 %1379
        %1381 = vrot.lane.b32.xlu0 %v1005, 120
        %v1382 = vpop.permute.xlu0 %1381
        %1383 = vrot.lane.b32.xlu0 %v1008, 120
        %v1384 = vpop.permute.xlu0 %1383
        %1385 = vrot.lane.b32.xlu0 %v1013, 120
        %v1386 = vpop.permute.xlu0 %1385
        %1387 = vrot.lane.b32.xlu0 %v1016, 120
        %v1388 = vpop.permute.xlu0 %1387
        %1389 = vrot.lane.b32.xlu0 %v1021, 120
        %v1390 = vpop.permute.xlu0 %1389
        %1391 = vrot.lane.b32.xlu0 %v1024, 120
        %v1392 = vpop.permute.xlu0 %1391
        %1393 = vrot.lane.b32.xlu0 %v1029, 120
        %v1394 = vpop.permute.xlu0 %1393
        %1395 = vrot.lane.b32.xlu0 %v1032, 120
        %v1396 = vpop.permute.xlu0 %1395
        %1397 = vrot.lane.b32.xlu0 %v1037, 120
        %v1398 = vpop.permute.xlu0 %1397
        %1399 = vrot.lane.b32.xlu0 %v1040, 120
        %v1400 = vpop.permute.xlu0 %1399
        %1401 = vrot.lane.b32.xlu0 %v1045, 120
        %v1402 = vpop.permute.xlu0 %1401
        %1403 = vrot.lane.b32.xlu0 %v1048, 120
        %v1404 = vpop.permute.xlu0 %1403
        %v1437 = vadd.f32 %v1309, %v1342
        %v1438 = vadd.f32 %v1310, %v1344
        %v1439 = vadd.f32 %v1311, %v1346
        %v1440 = vadd.f32 %v1312, %v1348
        %v1441 = vadd.f32 %v1313, %v1350
        %v1442 = vadd.f32 %v1314, %v1352
        %v1443 = vadd.f32 %v1315, %v1354
        %v1444 = vadd.f32 %v1316, %v1356
        %v1445 = vadd.f32 %v1317, %v1358
        %v1446 = vadd.f32 %v1318, %v1360
        %v1447 = vadd.f32 %v1319, %v1362
        %v1448 = vadd.f32 %v1320, %v1364
        %v1449 = vadd.f32 %v1321, %v1366
        %v1450 = vadd.f32 %v1322, %v1368
        %v1451 = vadd.f32 %v1323, %v1370
        %v1452 = vadd.f32 %v1324, %v1372
        %v1453 = vadd.f32 %v1325, %v1374
        %v1454 = vadd.f32 %v1326, %v1376
        %v1455 = vadd.f32 %v1327, %v1378
        %v1456 = vadd.f32 %v1328, %v1380
        %v1457 = vadd.f32 %v1329, %v1382
        %v1458 = vadd.f32 %v1330, %v1384
        %v1459 = vadd.f32 %v1331, %v1386
        %v1460 = vadd.f32 %v1332, %v1388
        %v1461 = vadd.f32 %v1333, %v1390
        %v1462 = vadd.f32 %v1334, %v1392
        %v1463 = vadd.f32 %v1335, %v1394
        %v1464 = vadd.f32 %v1336, %v1396
        %v1465 = vadd.f32 %v1337, %v1398
        %v1466 = vadd.f32 %v1338, %v1400
        %v1467 = vadd.f32 %v1339, %v1402
        %v1468 = vadd.f32 %v1340, %v1404
        %1469 = vst.msk [vmem:[%s1212 + $0x1] sm:$0xff] %vm310, %v1437
        %1470 = vst.msk [vmem:[%s1212 + $0x9] sm:$0xff] %vm310, %v1438
        %1471 = vst.msk [vmem:[%s1212 + $0x19] sm:$0xff] %vm310, %v1439
        %1472 = vst.msk [vmem:[%s1212 + $0x21] sm:$0xff] %vm310, %v1440
        %1473 = vst.msk [vmem:[%s1212 + $0x31] sm:$0xff] %vm310, %v1441
        %1474 = vst.msk [vmem:[%s1212 + $0x39] sm:$0xff] %vm310, %v1442
        %1475 = vst.msk [vmem:[%s1212 + $0x49] sm:$0xff] %vm310, %v1443
        %1476 = vst.msk [vmem:[%s1212 + $0x51] sm:$0xff] %vm310, %v1444
        %1477 = vst.msk [vmem:[%s1212 + $0x61] sm:$0xff] %vm310, %v1445
        %1478 = vst.msk [vmem:[%s1212 + $0x69] sm:$0xff] %vm310, %v1446
        %1479 = vst.msk [vmem:[%s1212 + $0x79] sm:$0xff] %vm310, %v1447
        %1480 = vst.msk [vmem:[%s1212 + $0x81] sm:$0xff] %vm310, %v1448
        %1481 = vst.msk [vmem:[%s1212 + $0x91] sm:$0xff] %vm310, %v1449
        %1482 = vst.msk [vmem:[%s1212 + $0x99] sm:$0xff] %vm310, %v1450
        %1483 = vst.msk [vmem:[%s1212 + $0xa9] sm:$0xff] %vm310, %v1451
        %1484 = vst.msk [vmem:[%s1212 + $0xb1] sm:$0xff] %vm310, %v1452
        %1485 = vst.msk [vmem:[%s1212 + $0xc1] sm:$0xff] %vm310, %v1453
        %1486 = vst.msk [vmem:[%s1212 + $0xc9] sm:$0xff] %vm310, %v1454
        %1487 = vst.msk [vmem:[%s1212 + $0xd9] sm:$0xff] %vm310, %v1455
        %1488 = vst.msk [vmem:[%s1212 + $0xe1] sm:$0xff] %vm310, %v1456
        %1489 = vst.msk [vmem:[%s1212 + $0xf1] sm:$0xff] %vm310, %v1457
        %1490 = vst.msk [vmem:[%s1212 + $0xf9] sm:$0xff] %vm310, %v1458
        %1491 = vst.msk [vmem:[%s1212 + $0x109] sm:$0xff] %vm310, %v1459
        %1492 = vst.msk [vmem:[%s1212 + $0x111] sm:$0xff] %vm310, %v1460
        %1493 = vst.msk [vmem:[%s1212 + $0x121] sm:$0xff] %vm310, %v1461
        %1494 = vst.msk [vmem:[%s1212 + $0x129] sm:$0xff] %vm310, %v1462
        %1495 = vst.msk [vmem:[%s1212 + $0x139] sm:$0xff] %vm310, %v1463
        %1496 = vst.msk [vmem:[%s1212 + $0x141] sm:$0xff] %vm310, %v1464
        %1497 = vst.msk [vmem:[%s1212 + $0x151] sm:$0xff] %vm310, %v1465
        %1498 = vst.msk [vmem:[%s1212 + $0x159] sm:$0xff] %vm310, %v1466
        %1499 = vst.msk [vmem:[%s1212 + $0x169] sm:$0xff] %vm310, %v1467
        %1500 = vst.msk [vmem:[%s1212 + $0x171] sm:$0xff] %vm310, %v1468
        %v1501 = vld [vmem:[%s1212] sm:$0xff]
        %v1502 = vld [vmem:[%s1212 + $0x8] sm:$0xff]
        %v1503 = vld [vmem:[%s1212 + $0x18] sm:$0xff]
        %v1504 = vld [vmem:[%s1212 + $0x20] sm:$0xff]
        %v1505 = vld [vmem:[%s1212 + $0x30] sm:$0xff]
        %v1506 = vld [vmem:[%s1212 + $0x38] sm:$0xff]
        %v1507 = vld [vmem:[%s1212 + $0x48] sm:$0xff]
        %v1508 = vld [vmem:[%s1212 + $0x50] sm:$0xff]
        %v1509 = vld [vmem:[%s1212 + $0x60] sm:$0xff]
        %v1510 = vld [vmem:[%s1212 + $0x68] sm:$0xff]
        %v1511 = vld [vmem:[%s1212 + $0x78] sm:$0xff]
        %v1512 = vld [vmem:[%s1212 + $0x80] sm:$0xff]
        %v1513 = vld [vmem:[%s1212 + $0x90] sm:$0xff]
        %v1514 = vld [vmem:[%s1212 + $0x98] sm:$0xff]
        %v1515 = vld [vmem:[%s1212 + $0xa8] sm:$0xff]
        %v1516 = vld [vmem:[%s1212 + $0xb0] sm:$0xff]
        %v1517 = vld [vmem:[%s1212 + $0xc0] sm:$0xff]
        %v1518 = vld [vmem:[%s1212 + $0xc8] sm:$0xff]
        %v1519 = vld [vmem:[%s1212 + $0xd8] sm:$0xff]
        %v1520 = vld [vmem:[%s1212 + $0xe0] sm:$0xff]
        %v1521 = vld [vmem:[%s1212 + $0xf0] sm:$0xff]
        %v1522 = vld [vmem:[%s1212 + $0xf8] sm:$0xff]
        %v1523 = vld [vmem:[%s1212 + $0x108] sm:$0xff]
        %v1524 = vld [vmem:[%s1212 + $0x110] sm:$0xff]
        %v1525 = vld [vmem:[%s1212 + $0x120] sm:$0xff]
        %v1526 = vld [vmem:[%s1212 + $0x128] sm:$0xff]
        %v1527 = vld [vmem:[%s1212 + $0x138] sm:$0xff]
        %v1528 = vld [vmem:[%s1212 + $0x140] sm:$0xff]
        %v1529 = vld [vmem:[%s1212 + $0x150] sm:$0xff]
        %v1530 = vld [vmem:[%s1212 + $0x158] sm:$0xff]
        %v1531 = vld [vmem:[%s1212 + $0x168] sm:$0xff]
        %v1532 = vld [vmem:[%s1212 + $0x170] sm:$0xff]
        %1533 = vrot.lane.b32.xlu0 %v925, 112
        %v1534 = vpop.permute.xlu0 %1533
        %1535 = vrot.lane.b32.xlu0 %v928, 112
        %v1536 = vpop.permute.xlu0 %1535
        %1537 = vrot.lane.b32.xlu0 %v933, 112
        %v1538 = vpop.permute.xlu0 %1537
        %1539 = vrot.lane.b32.xlu0 %v936, 112
        %v1540 = vpop.permute.xlu0 %1539
        %1541 = vrot.lane.b32.xlu0 %v941, 112
        %v1542 = vpop.permute.xlu0 %1541
        %1543 = vrot.lane.b32.xlu0 %v944, 112
        %v1544 = vpop.permute.xlu0 %1543
        %1545 = vrot.lane.b32.xlu0 %v949, 112
        %v1546 = vpop.permute.xlu0 %1545
        %1547 = vrot.lane.b32.xlu0 %v952, 112
        %v1548 = vpop.permute.xlu0 %1547
        %1549 = vrot.lane.b32.xlu0 %v957, 112
        %v1550 = vpop.permute.xlu0 %1549
        %1551 = vrot.lane.b32.xlu0 %v960, 112
        %v1552 = vpop.permute.xlu0 %1551
        %1553 = vrot.lane.b32.xlu0 %v965, 112
        %v1554 = vpop.permute.xlu0 %1553
        %1555 = vrot.lane.b32.xlu0 %v968, 112
        %v1556 = vpop.permute.xlu0 %1555
        %1557 = vrot.lane.b32.xlu0 %v973, 112
        %v1558 = vpop.permute.xlu0 %1557
        %1559 = vrot.lane.b32.xlu0 %v976, 112
        %v1560 = vpop.permute.xlu0 %1559
        %1561 = vrot.lane.b32.xlu0 %v981, 112
        %v1562 = vpop.permute.xlu0 %1561
        %1563 = vrot.lane.b32.xlu0 %v984, 112
        %v1564 = vpop.permute.xlu0 %1563
        %1565 = vrot.lane.b32.xlu0 %v989, 112
        %v1566 = vpop.permute.xlu0 %1565
        %1567 = vrot.lane.b32.xlu0 %v992, 112
        %v1568 = vpop.permute.xlu0 %1567
        %1569 = vrot.lane.b32.xlu0 %v997, 112
        %v1570 = vpop.permute.xlu0 %1569
        %1571 = vrot.lane.b32.xlu0 %v1000, 112
        %v1572 = vpop.permute.xlu0 %1571
        %1573 = vrot.lane.b32.xlu0 %v1005, 112
        %v1574 = vpop.permute.xlu0 %1573
        %1575 = vrot.lane.b32.xlu0 %v1008, 112
        %v1576 = vpop.permute.xlu0 %1575
        %1577 = vrot.lane.b32.xlu0 %v1013, 112
        %v1578 = vpop.permute.xlu0 %1577
        %1579 = vrot.lane.b32.xlu0 %v1016, 112
        %v1580 = vpop.permute.xlu0 %1579
        %1581 = vrot.lane.b32.xlu0 %v1021, 112
        %v1582 = vpop.permute.xlu0 %1581
        %1583 = vrot.lane.b32.xlu0 %v1024, 112
        %v1584 = vpop.permute.xlu0 %1583
        %1585 = vrot.lane.b32.xlu0 %v1029, 112
        %v1586 = vpop.permute.xlu0 %1585
        %1587 = vrot.lane.b32.xlu0 %v1032, 112
        %v1588 = vpop.permute.xlu0 %1587
        %1589 = vrot.lane.b32.xlu0 %v1037, 112
        %v1590 = vpop.permute.xlu0 %1589
        %1591 = vrot.lane.b32.xlu0 %v1040, 112
        %v1592 = vpop.permute.xlu0 %1591
        %1593 = vrot.lane.b32.xlu0 %v1045, 112
        %v1594 = vpop.permute.xlu0 %1593
        %1595 = vrot.lane.b32.xlu0 %v1048, 112
        %v1596 = vpop.permute.xlu0 %1595
        %v1629 = vadd.f32 %v1501, %v1534
        %v1630 = vadd.f32 %v1502, %v1536
        %v1631 = vadd.f32 %v1503, %v1538
        %v1632 = vadd.f32 %v1504, %v1540
        %v1633 = vadd.f32 %v1505, %v1542
        %v1634 = vadd.f32 %v1506, %v1544
        %v1635 = vadd.f32 %v1507, %v1546
        %v1636 = vadd.f32 %v1508, %v1548
        %v1637 = vadd.f32 %v1509, %v1550
        %v1638 = vadd.f32 %v1510, %v1552
        %v1639 = vadd.f32 %v1511, %v1554
        %v1640 = vadd.f32 %v1512, %v1556
        %v1641 = vadd.f32 %v1513, %v1558
        %v1642 = vadd.f32 %v1514, %v1560
        %v1643 = vadd.f32 %v1515, %v1562
        %v1644 = vadd.f32 %v1516, %v1564
        %v1645 = vadd.f32 %v1517, %v1566
        %v1646 = vadd.f32 %v1518, %v1568
        %v1647 = vadd.f32 %v1519, %v1570
        %v1648 = vadd.f32 %v1520, %v1572
        %v1649 = vadd.f32 %v1521, %v1574
        %v1650 = vadd.f32 %v1522, %v1576
        %v1651 = vadd.f32 %v1523, %v1578
        %v1652 = vadd.f32 %v1524, %v1580
        %v1653 = vadd.f32 %v1525, %v1582
        %v1654 = vadd.f32 %v1526, %v1584
        %v1655 = vadd.f32 %v1527, %v1586
        %v1656 = vadd.f32 %v1528, %v1588
        %v1657 = vadd.f32 %v1529, %v1590
        %v1658 = vadd.f32 %v1530, %v1592
        %v1659 = vadd.f32 %v1531, %v1594
        %v1660 = vadd.f32 %v1532, %v1596
        %1661 = vst.msk [vmem:[%s1212] sm:$0xff] %vm310, %v1629
        %1662 = vst.msk [vmem:[%s1212 + $0x8] sm:$0xff] %vm310, %v1630
        %1663 = vst.msk [vmem:[%s1212 + $0x18] sm:$0xff] %vm310, %v1631
        %1664 = vst.msk [vmem:[%s1212 + $0x20] sm:$0xff] %vm310, %v1632
        %1665 = vst.msk [vmem:[%s1212 + $0x30] sm:$0xff] %vm310, %v1633
        %1666 = vst.msk [vmem:[%s1212 + $0x38] sm:$0xff] %vm310, %v1634
        %1667 = vst.msk [vmem:[%s1212 + $0x48] sm:$0xff] %vm310, %v1635
        %1668 = vst.msk [vmem:[%s1212 + $0x50] sm:$0xff] %vm310, %v1636
        %1669 = vst.msk [vmem:[%s1212 + $0x60] sm:$0xff] %vm310, %v1637
        %1670 = vst.msk [vmem:[%s1212 + $0x68] sm:$0xff] %vm310, %v1638
        %1671 = vst.msk [vmem:[%s1212 + $0x78] sm:$0xff] %vm310, %v1639
        %1672 = vst.msk [vmem:[%s1212 + $0x80] sm:$0xff] %vm310, %v1640
        %1673 = vst.msk [vmem:[%s1212 + $0x90] sm:$0xff] %vm310, %v1641
        %1674 = vst.msk [vmem:[%s1212 + $0x98] sm:$0xff] %vm310, %v1642
        %1675 = vst.msk [vmem:[%s1212 + $0xa8] sm:$0xff] %vm310, %v1643
        %1676 = vst.msk [vmem:[%s1212 + $0xb0] sm:$0xff] %vm310, %v1644
        %1677 = vst.msk [vmem:[%s1212 + $0xc0] sm:$0xff] %vm310, %v1645
        %1678 = vst.msk [vmem:[%s1212 + $0xc8] sm:$0xff] %vm310, %v1646
        %1679 = vst.msk [vmem:[%s1212 + $0xd8] sm:$0xff] %vm310, %v1647
        %1680 = vst.msk [vmem:[%s1212 + $0xe0] sm:$0xff] %vm310, %v1648
        %1681 = vst.msk [vmem:[%s1212 + $0xf0] sm:$0xff] %vm310, %v1649
        %1682 = vst.msk [vmem:[%s1212 + $0xf8] sm:$0xff] %vm310, %v1650
        %1683 = vst.msk [vmem:[%s1212 + $0x108] sm:$0xff] %vm310, %v1651
        %1684 = vst.msk [vmem:[%s1212 + $0x110] sm:$0xff] %vm310, %v1652
        %1685 = vst.msk [vmem:[%s1212 + $0x120] sm:$0xff] %vm310, %v1653
        %1686 = vst.msk [vmem:[%s1212 + $0x128] sm:$0xff] %vm310, %v1654
        %1687 = vst.msk [vmem:[%s1212 + $0x138] sm:$0xff] %vm310, %v1655
        %1688 = vst.msk [vmem:[%s1212 + $0x140] sm:$0xff] %vm310, %v1656
        %1689 = vst.msk [vmem:[%s1212 + $0x150] sm:$0xff] %vm310, %v1657
        %1690 = vst.msk [vmem:[%s1212 + $0x158] sm:$0xff] %vm310, %v1658
        %1691 = vst.msk [vmem:[%s1212 + $0x168] sm:$0xff] %vm310, %v1659
        %1692 = vst.msk [vmem:[%s1212 + $0x170] sm:$0xff] %vm310, %v1660
        %v1693 = vld [vmem:[%s1179 + $0x2] sm:$0xff]
        %v1694 = vld [vmem:[%s1179 + $0xa] sm:$0xff]
        %v1695 = vld [vmem:[%s1179 + $0x1a] sm:$0xff]
        %v1696 = vld [vmem:[%s1179 + $0x22] sm:$0xff]
        %v1697 = vld [vmem:[%s1179 + $0x32] sm:$0xff]
        %v1698 = vld [vmem:[%s1179 + $0x3a] sm:$0xff]
        %v1699 = vld [vmem:[%s1179 + $0x4a] sm:$0xff]
        %v1700 = vld [vmem:[%s1179 + $0x52] sm:$0xff]
        %v1701 = vld [vmem:[%s1179 + $0x62] sm:$0xff]
        %v1702 = vld [vmem:[%s1179 + $0x6a] sm:$0xff]
        %v1703 = vld [vmem:[%s1179 + $0x7a] sm:$0xff]
        %v1704 = vld [vmem:[%s1179 + $0x82] sm:$0xff]
        %v1705 = vld [vmem:[%s1179 + $0x92] sm:$0xff]
        %v1706 = vld [vmem:[%s1179 + $0x9a] sm:$0xff]
        %v1707 = vld [vmem:[%s1179 + $0xaa] sm:$0xff]
        %v1708 = vld [vmem:[%s1179 + $0xb2] sm:$0xff]
        %v1709 = vld [vmem:[%s1179 + $0xc2] sm:$0xff]
        %v1710 = vld [vmem:[%s1179 + $0xca] sm:$0xff]
        %v1711 = vld [vmem:[%s1179 + $0xda] sm:$0xff]
        %v1712 = vld [vmem:[%s1179 + $0xe2] sm:$0xff]
        %v1713 = vld [vmem:[%s1179 + $0xf2] sm:$0xff]
        %v1714 = vld [vmem:[%s1179 + $0xfa] sm:$0xff]
        %v1715 = vld [vmem:[%s1179 + $0x10a] sm:$0xff]
        %v1716 = vld [vmem:[%s1179 + $0x112] sm:$0xff]
        %v1717 = vld [vmem:[%s1179 + $0x122] sm:$0xff]
        %v1718 = vld [vmem:[%s1179 + $0x12a] sm:$0xff]
        %v1719 = vld [vmem:[%s1179 + $0x13a] sm:$0xff]
        %v1720 = vld [vmem:[%s1179 + $0x142] sm:$0xff]
        %v1721 = vld [vmem:[%s1179 + $0x152] sm:$0xff]
        %v1722 = vld [vmem:[%s1179 + $0x15a] sm:$0xff]
        %v1723 = vld [vmem:[%s1179 + $0x16a] sm:$0xff]
        %v1724 = vld [vmem:[%s1179 + $0x172] sm:$0xff]
        %1725 = vrot.lane.b32.xlu0 %v925, 104
        %v1726 = vpop.permute.xlu0 %1725
        %1727 = vrot.lane.b32.xlu0 %v928, 104
        %v1728 = vpop.permute.xlu0 %1727
        %1729 = vrot.lane.b32.xlu0 %v933, 104
        %v1730 = vpop.permute.xlu0 %1729
        %1731 = vrot.lane.b32.xlu0 %v936, 104
        %v1732 = vpop.permute.xlu0 %1731
        %1733 = vrot.lane.b32.xlu0 %v941, 104
        %v1734 = vpop.permute.xlu0 %1733
        %1735 = vrot.lane.b32.xlu0 %v944, 104
        %v1736 = vpop.permute.xlu0 %1735
        %1737 = vrot.lane.b32.xlu0 %v949, 104
        %v1738 = vpop.permute.xlu0 %1737
        %1739 = vrot.lane.b32.xlu0 %v952, 104
        %v1740 = vpop.permute.xlu0 %1739
        %1741 = vrot.lane.b32.xlu0 %v957, 104
        %v1742 = vpop.permute.xlu0 %1741
        %1743 = vrot.lane.b32.xlu0 %v960, 104
        %v1744 = vpop.permute.xlu0 %1743
        %1745 = vrot.lane.b32.xlu0 %v965, 104
        %v1746 = vpop.permute.xlu0 %1745
        %1747 = vrot.lane.b32.xlu0 %v968, 104
        %v1748 = vpop.permute.xlu0 %1747
        %1749 = vrot.lane.b32.xlu0 %v973, 104
        %v1750 = vpop.permute.xlu0 %1749
        %1751 = vrot.lane.b32.xlu0 %v976, 104
        %v1752 = vpop.permute.xlu0 %1751
        %1753 = vrot.lane.b32.xlu0 %v981, 104
        %v1754 = vpop.permute.xlu0 %1753
        %1755 = vrot.lane.b32.xlu0 %v984, 104
        %v1756 = vpop.permute.xlu0 %1755
        %1757 = vrot.lane.b32.xlu0 %v989, 104
        %v1758 = vpop.permute.xlu0 %1757
        %1759 = vrot.lane.b32.xlu0 %v992, 104
        %v1760 = vpop.permute.xlu0 %1759
        %1761 = vrot.lane.b32.xlu0 %v997, 104
        %v1762 = vpop.permute.xlu0 %1761
        %1763 = vrot.lane.b32.xlu0 %v1000, 104
        %v1764 = vpop.permute.xlu0 %1763
        %1765 = vrot.lane.b32.xlu0 %v1005, 104
        %v1766 = vpop.permute.xlu0 %1765
        %1767 = vrot.lane.b32.xlu0 %v1008, 104
        %v1768 = vpop.permute.xlu0 %1767
        %1769 = vrot.lane.b32.xlu0 %v1013, 104
        %v1770 = vpop.permute.xlu0 %1769
        %1771 = vrot.lane.b32.xlu0 %v1016, 104
        %v1772 = vpop.permute.xlu0 %1771
        %1773 = vrot.lane.b32.xlu0 %v1021, 104
        %v1774 = vpop.permute.xlu0 %1773
        %1775 = vrot.lane.b32.xlu0 %v1024, 104
        %v1776 = vpop.permute.xlu0 %1775
        %1777 = vrot.lane.b32.xlu0 %v1029, 104
        %v1778 = vpop.permute.xlu0 %1777
        %1779 = vrot.lane.b32.xlu0 %v1032, 104
        %v1780 = vpop.permute.xlu0 %1779
        %1781 = vrot.lane.b32.xlu0 %v1037, 104
        %v1782 = vpop.permute.xlu0 %1781
        %1783 = vrot.lane.b32.xlu0 %v1040, 104
        %v1784 = vpop.permute.xlu0 %1783
        %1785 = vrot.lane.b32.xlu0 %v1045, 104
        %v1786 = vpop.permute.xlu0 %1785
        %1787 = vrot.lane.b32.xlu0 %v1048, 104
        %v1788 = vpop.permute.xlu0 %1787
        %v1821 = vadd.f32 %v1693, %v1726
        %v1822 = vadd.f32 %v1694, %v1728
        %v1823 = vadd.f32 %v1695, %v1730
        %v1824 = vadd.f32 %v1696, %v1732
        %v1825 = vadd.f32 %v1697, %v1734
        %v1826 = vadd.f32 %v1698, %v1736
        %v1827 = vadd.f32 %v1699, %v1738
        %v1828 = vadd.f32 %v1700, %v1740
        %v1829 = vadd.f32 %v1701, %v1742
        %v1830 = vadd.f32 %v1702, %v1744
        %v1831 = vadd.f32 %v1703, %v1746
        %v1832 = vadd.f32 %v1704, %v1748
        %v1833 = vadd.f32 %v1705, %v1750
        %v1834 = vadd.f32 %v1706, %v1752
        %v1835 = vadd.f32 %v1707, %v1754
        %v1836 = vadd.f32 %v1708, %v1756
        %v1837 = vadd.f32 %v1709, %v1758
        %v1838 = vadd.f32 %v1710, %v1760
        %v1839 = vadd.f32 %v1711, %v1762
        %v1840 = vadd.f32 %v1712, %v1764
        %v1841 = vadd.f32 %v1713, %v1766
        %v1842 = vadd.f32 %v1714, %v1768
        %v1843 = vadd.f32 %v1715, %v1770
        %v1844 = vadd.f32 %v1716, %v1772
        %v1845 = vadd.f32 %v1717, %v1774
        %v1846 = vadd.f32 %v1718, %v1776
        %v1847 = vadd.f32 %v1719, %v1778
        %v1848 = vadd.f32 %v1720, %v1780
        %v1849 = vadd.f32 %v1721, %v1782
        %v1850 = vadd.f32 %v1722, %v1784
        %v1851 = vadd.f32 %v1723, %v1786
        %v1852 = vadd.f32 %v1724, %v1788
        %1853 = vst.msk [vmem:[%s1179 + $0x2] sm:$0xff] %vm310, %v1821
        %1854 = vst.msk [vmem:[%s1179 + $0xa] sm:$0xff] %vm310, %v1822
        %1855 = vst.msk [vmem:[%s1179 + $0x1a] sm:$0xff] %vm310, %v1823
        %1856 = vst.msk [vmem:[%s1179 + $0x22] sm:$0xff] %vm310, %v1824
        %1857 = vst.msk [vmem:[%s1179 + $0x32] sm:$0xff] %vm310, %v1825
        %1858 = vst.msk [vmem:[%s1179 + $0x3a] sm:$0xff] %vm310, %v1826
        %1859 = vst.msk [vmem:[%s1179 + $0x4a] sm:$0xff] %vm310, %v1827
        %1860 = vst.msk [vmem:[%s1179 + $0x52] sm:$0xff] %vm310, %v1828
        %1861 = vst.msk [vmem:[%s1179 + $0x62] sm:$0xff] %vm310, %v1829
        %1862 = vst.msk [vmem:[%s1179 + $0x6a] sm:$0xff] %vm310, %v1830
        %1863 = vst.msk [vmem:[%s1179 + $0x7a] sm:$0xff] %vm310, %v1831
        %1864 = vst.msk [vmem:[%s1179 + $0x82] sm:$0xff] %vm310, %v1832
        %1865 = vst.msk [vmem:[%s1179 + $0x92] sm:$0xff] %vm310, %v1833
        %1866 = vst.msk [vmem:[%s1179 + $0x9a] sm:$0xff] %vm310, %v1834
        %1867 = vst.msk [vmem:[%s1179 + $0xaa] sm:$0xff] %vm310, %v1835
        %1868 = vst.msk [vmem:[%s1179 + $0xb2] sm:$0xff] %vm310, %v1836
        %1869 = vst.msk [vmem:[%s1179 + $0xc2] sm:$0xff] %vm310, %v1837
        %1870 = vst.msk [vmem:[%s1179 + $0xca] sm:$0xff] %vm310, %v1838
        %1871 = vst.msk [vmem:[%s1179 + $0xda] sm:$0xff] %vm310, %v1839
        %1872 = vst.msk [vmem:[%s1179 + $0xe2] sm:$0xff] %vm310, %v1840
        %1873 = vst.msk [vmem:[%s1179 + $0xf2] sm:$0xff] %vm310, %v1841
        %1874 = vst.msk [vmem:[%s1179 + $0xfa] sm:$0xff] %vm310, %v1842
        %1875 = vst.msk [vmem:[%s1179 + $0x10a] sm:$0xff] %vm310, %v1843
        %1876 = vst.msk [vmem:[%s1179 + $0x112] sm:$0xff] %vm310, %v1844
        %1877 = vst.msk [vmem:[%s1179 + $0x122] sm:$0xff] %vm310, %v1845
        %1878 = vst.msk [vmem:[%s1179 + $0x12a] sm:$0xff] %vm310, %v1846
        %1879 = vst.msk [vmem:[%s1179 + $0x13a] sm:$0xff] %vm310, %v1847
        %1880 = vst.msk [vmem:[%s1179 + $0x142] sm:$0xff] %vm310, %v1848
        %1881 = vst.msk [vmem:[%s1179 + $0x152] sm:$0xff] %vm310, %v1849
        %1882 = vst.msk [vmem:[%s1179 + $0x15a] sm:$0xff] %vm310, %v1850
        %1883 = vst.msk [vmem:[%s1179 + $0x16a] sm:$0xff] %vm310, %v1851
        %1884 = vst.msk [vmem:[%s1179 + $0x172] sm:$0xff] %vm310, %v1852
        %v1885 = vld [vmem:[%s1179] sm:$0xff]
        %v1886 = vld [vmem:[%s1179 + $0x8] sm:$0xff]
        %v1887 = vld [vmem:[%s1179 + $0x18] sm:$0xff]
        %v1888 = vld [vmem:[%s1179 + $0x20] sm:$0xff]
        %v1889 = vld [vmem:[%s1179 + $0x30] sm:$0xff]
        %v1890 = vld [vmem:[%s1179 + $0x38] sm:$0xff]
        %v1891 = vld [vmem:[%s1179 + $0x48] sm:$0xff]
        %v1892 = vld [vmem:[%s1179 + $0x50] sm:$0xff]
        %v1893 = vld [vmem:[%s1179 + $0x60] sm:$0xff]
        %v1894 = vld [vmem:[%s1179 + $0x68] sm:$0xff]
        %v1895 = vld [vmem:[%s1179 + $0x78] sm:$0xff]
        %v1896 = vld [vmem:[%s1179 + $0x80] sm:$0xff]
        %v1897 = vld [vmem:[%s1179 + $0x90] sm:$0xff]
        %v1898 = vld [vmem:[%s1179 + $0x98] sm:$0xff]
        %v1899 = vld [vmem:[%s1179 + $0xa8] sm:$0xff]
        %v1900 = vld [vmem:[%s1179 + $0xb0] sm:$0xff]
        %v1901 = vld [vmem:[%s1179 + $0xc0] sm:$0xff]
        %v1902 = vld [vmem:[%s1179 + $0xc8] sm:$0xff]
        %v1903 = vld [vmem:[%s1179 + $0xd8] sm:$0xff]
        %v1904 = vld [vmem:[%s1179 + $0xe0] sm:$0xff]
        %v1905 = vld [vmem:[%s1179 + $0xf0] sm:$0xff]
        %v1906 = vld [vmem:[%s1179 + $0xf8] sm:$0xff]
        %v1907 = vld [vmem:[%s1179 + $0x108] sm:$0xff]
        %v1908 = vld [vmem:[%s1179 + $0x110] sm:$0xff]
        %v1909 = vld [vmem:[%s1179 + $0x120] sm:$0xff]
        %v1910 = vld [vmem:[%s1179 + $0x128] sm:$0xff]
        %v1911 = vld [vmem:[%s1179 + $0x138] sm:$0xff]
        %v1912 = vld [vmem:[%s1179 + $0x140] sm:$0xff]
        %v1913 = vld [vmem:[%s1179 + $0x150] sm:$0xff]
        %v1914 = vld [vmem:[%s1179 + $0x158] sm:$0xff]
        %v1915 = vld [vmem:[%s1179 + $0x168] sm:$0xff]
        %v1916 = vld [vmem:[%s1179 + $0x170] sm:$0xff]
        %1917 = vrot.lane.b32.xlu0 %v925, 88
        %v1918 = vpop.permute.xlu0 %1917
        %1919 = vrot.lane.b32.xlu0 %v928, 88
        %v1920 = vpop.permute.xlu0 %1919
        %1921 = vrot.lane.b32.xlu0 %v933, 88
        %v1922 = vpop.permute.xlu0 %1921
        %1923 = vrot.lane.b32.xlu0 %v936, 88
        %v1924 = vpop.permute.xlu0 %1923
        %1925 = vrot.lane.b32.xlu0 %v941, 88
        %v1926 = vpop.permute.xlu0 %1925
        %1927 = vrot.lane.b32.xlu0 %v944, 88
        %v1928 = vpop.permute.xlu0 %1927
        %1929 = vrot.lane.b32.xlu0 %v949, 88
        %v1930 = vpop.permute.xlu0 %1929
        %1931 = vrot.lane.b32.xlu0 %v952, 88
        %v1932 = vpop.permute.xlu0 %1931
        %1933 = vrot.lane.b32.xlu0 %v957, 88
        %v1934 = vpop.permute.xlu0 %1933
        %1935 = vrot.lane.b32.xlu0 %v960, 88
        %v1936 = vpop.permute.xlu0 %1935
        %1937 = vrot.lane.b32.xlu0 %v965, 88
        %v1938 = vpop.permute.xlu0 %1937
        %1939 = vrot.lane.b32.xlu0 %v968, 88
        %v1940 = vpop.permute.xlu0 %1939
        %1941 = vrot.lane.b32.xlu0 %v973, 88
        %v1942 = vpop.permute.xlu0 %1941
        %1943 = vrot.lane.b32.xlu0 %v976, 88
        %v1944 = vpop.permute.xlu0 %1943
        %1945 = vrot.lane.b32.xlu0 %v981, 88
        %v1946 = vpop.permute.xlu0 %1945
        %1947 = vrot.lane.b32.xlu0 %v984, 88
        %v1948 = vpop.permute.xlu0 %1947
        %1949 = vrot.lane.b32.xlu0 %v989, 88
        %v1950 = vpop.permute.xlu0 %1949
        %1951 = vrot.lane.b32.xlu0 %v992, 88
        %v1952 = vpop.permute.xlu0 %1951
        %1953 = vrot.lane.b32.xlu0 %v997, 88
        %v1954 = vpop.permute.xlu0 %1953
        %1955 = vrot.lane.b32.xlu0 %v1000, 88
        %v1956 = vpop.permute.xlu0 %1955
        %1957 = vrot.lane.b32.xlu0 %v1005, 88
        %v1958 = vpop.permute.xlu0 %1957
        %1959 = vrot.lane.b32.xlu0 %v1008, 88
        %v1960 = vpop.permute.xlu0 %1959
        %1961 = vrot.lane.b32.xlu0 %v1013, 88
        %v1962 = vpop.permute.xlu0 %1961
        %1963 = vrot.lane.b32.xlu0 %v1016, 88
        %v1964 = vpop.permute.xlu0 %1963
        %1965 = vrot.lane.b32.xlu0 %v1021, 88
        %v1966 = vpop.permute.xlu0 %1965
        %1967 = vrot.lane.b32.xlu0 %v1024, 88
        %v1968 = vpop.permute.xlu0 %1967
        %1969 = vrot.lane.b32.xlu0 %v1029, 88
        %v1970 = vpop.permute.xlu0 %1969
        %1971 = vrot.lane.b32.xlu0 %v1032, 88
        %v1972 = vpop.permute.xlu0 %1971
        %1973 = vrot.lane.b32.xlu0 %v1037, 88
        %v1974 = vpop.permute.xlu0 %1973
        %1975 = vrot.lane.b32.xlu0 %v1040, 88
        %v1976 = vpop.permute.xlu0 %1975
        %1977 = vrot.lane.b32.xlu0 %v1045, 88
        %v1978 = vpop.permute.xlu0 %1977
        %1979 = vrot.lane.b32.xlu0 %v1048, 88
        %v1980 = vpop.permute.xlu0 %1979
        %v2013 = vadd.f32 %v1885, %v1918
        %v2014 = vadd.f32 %v1886, %v1920
        %v2015 = vadd.f32 %v1887, %v1922
        %v2016 = vadd.f32 %v1888, %v1924
        %v2017 = vadd.f32 %v1889, %v1926
        %v2018 = vadd.f32 %v1890, %v1928
        %v2019 = vadd.f32 %v1891, %v1930
        %v2020 = vadd.f32 %v1892, %v1932
        %v2021 = vadd.f32 %v1893, %v1934
        %v2022 = vadd.f32 %v1894, %v1936
        %v2023 = vadd.f32 %v1895, %v1938
        %v2024 = vadd.f32 %v1896, %v1940
        %v2025 = vadd.f32 %v1897, %v1942
        %v2026 = vadd.f32 %v1898, %v1944
        %v2027 = vadd.f32 %v1899, %v1946
        %v2028 = vadd.f32 %v1900, %v1948
        %v2029 = vadd.f32 %v1901, %v1950
        %v2030 = vadd.f32 %v1902, %v1952
        %v2031 = vadd.f32 %v1903, %v1954
        %v2032 = vadd.f32 %v1904, %v1956
        %v2033 = vadd.f32 %v1905, %v1958
        %v2034 = vadd.f32 %v1906, %v1960
        %v2035 = vadd.f32 %v1907, %v1962
        %v2036 = vadd.f32 %v1908, %v1964
        %v2037 = vadd.f32 %v1909, %v1966
        %v2038 = vadd.f32 %v1910, %v1968
        %v2039 = vadd.f32 %v1911, %v1970
        %v2040 = vadd.f32 %v1912, %v1972
        %v2041 = vadd.f32 %v1913, %v1974
        %v2042 = vadd.f32 %v1914, %v1976
        %v2043 = vadd.f32 %v1915, %v1978
        %v2044 = vadd.f32 %v1916, %v1980
        %2045 = vst.msk [vmem:[%s1179] sm:$0xff] %vm310, %v2013
        %2046 = vst.msk [vmem:[%s1179 + $0x8] sm:$0xff] %vm310, %v2014
        %2047 = vst.msk [vmem:[%s1179 + $0x18] sm:$0xff] %vm310, %v2015
        %2048 = vst.msk [vmem:[%s1179 + $0x20] sm:$0xff] %vm310, %v2016
        %2049 = vst.msk [vmem:[%s1179 + $0x30] sm:$0xff] %vm310, %v2017
        %2050 = vst.msk [vmem:[%s1179 + $0x38] sm:$0xff] %vm310, %v2018
        %2051 = vst.msk [vmem:[%s1179 + $0x48] sm:$0xff] %vm310, %v2019
        %2052 = vst.msk [vmem:[%s1179 + $0x50] sm:$0xff] %vm310, %v2020
        %2053 = vst.msk [vmem:[%s1179 + $0x60] sm:$0xff] %vm310, %v2021
        %2054 = vst.msk [vmem:[%s1179 + $0x68] sm:$0xff] %vm310, %v2022
        %2055 = vst.msk [vmem:[%s1179 + $0x78] sm:$0xff] %vm310, %v2023
        %2056 = vst.msk [vmem:[%s1179 + $0x80] sm:$0xff] %vm310, %v2024
        %2057 = vst.msk [vmem:[%s1179 + $0x90] sm:$0xff] %vm310, %v2025
        %2058 = vst.msk [vmem:[%s1179 + $0x98] sm:$0xff] %vm310, %v2026
        %2059 = vst.msk [vmem:[%s1179 + $0xa8] sm:$0xff] %vm310, %v2027
        %2060 = vst.msk [vmem:[%s1179 + $0xb0] sm:$0xff] %vm310, %v2028
        %2061 = vst.msk [vmem:[%s1179 + $0xc0] sm:$0xff] %vm310, %v2029
        %2062 = vst.msk [vmem:[%s1179 + $0xc8] sm:$0xff] %vm310, %v2030
        %2063 = vst.msk [vmem:[%s1179 + $0xd8] sm:$0xff] %vm310, %v2031
        %2064 = vst.msk [vmem:[%s1179 + $0xe0] sm:$0xff] %vm310, %v2032
        %2065 = vst.msk [vmem:[%s1179 + $0xf0] sm:$0xff] %vm310, %v2033
        %2066 = vst.msk [vmem:[%s1179 + $0xf8] sm:$0xff] %vm310, %v2034
        %2067 = vst.msk [vmem:[%s1179 + $0x108] sm:$0xff] %vm310, %v2035
        %2068 = vst.msk [vmem:[%s1179 + $0x110] sm:$0xff] %vm310, %v2036
        %2069 = vst.msk [vmem:[%s1179 + $0x120] sm:$0xff] %vm310, %v2037
        %2070 = vst.msk [vmem:[%s1179 + $0x128] sm:$0xff] %vm310, %v2038
        %2071 = vst.msk [vmem:[%s1179 + $0x138] sm:$0xff] %vm310, %v2039
        %2072 = vst.msk [vmem:[%s1179 + $0x140] sm:$0xff] %vm310, %v2040
        %2073 = vst.msk [vmem:[%s1179 + $0x150] sm:$0xff] %vm310, %v2041
        %2074 = vst.msk [vmem:[%s1179 + $0x158] sm:$0xff] %vm310, %v2042
        %2075 = vst.msk [vmem:[%s1179 + $0x168] sm:$0xff] %vm310, %v2043
        %2076 = vst.msk [vmem:[%s1179 + $0x170] sm:$0xff] %vm310, %v2044
        %v2077 = vld [vmem:[#allocation2 + $0x2] sm:$0xff]
        %v2078 = vld [vmem:[#allocation2 + $0xa] sm:$0xff]
        %v2079 = vld [vmem:[#allocation2 + $0x1a] sm:$0xff]
        %v2080 = vld [vmem:[#allocation2 + $0x22] sm:$0xff]
        %v2081 = vld [vmem:[#allocation2 + $0x32] sm:$0xff]
        %v2082 = vld [vmem:[#allocation2 + $0x3a] sm:$0xff]
        %v2083 = vld [vmem:[#allocation2 + $0x4a] sm:$0xff]
        %v2084 = vld [vmem:[#allocation2 + $0x52] sm:$0xff]
        %v2085 = vld [vmem:[#allocation2 + $0x62] sm:$0xff]
        %v2086 = vld [vmem:[#allocation2 + $0x6a] sm:$0xff]
        %v2087 = vld [vmem:[#allocation2 + $0x7a] sm:$0xff]
        %v2088 = vld [vmem:[#allocation2 + $0x82] sm:$0xff]
        %v2089 = vld [vmem:[#allocation2 + $0x92] sm:$0xff]
        %v2090 = vld [vmem:[#allocation2 + $0x9a] sm:$0xff]
        %v2091 = vld [vmem:[#allocation2 + $0xaa] sm:$0xff]
        %v2092 = vld [vmem:[#allocation2 + $0xb2] sm:$0xff]
        %v2093 = vld [vmem:[#allocation2 + $0xc2] sm:$0xff]
        %v2094 = vld [vmem:[#allocation2 + $0xca] sm:$0xff]
        %v2095 = vld [vmem:[#allocation2 + $0xda] sm:$0xff]
        %v2096 = vld [vmem:[#allocation2 + $0xe2] sm:$0xff]
        %v2097 = vld [vmem:[#allocation2 + $0xf2] sm:$0xff]
        %v2098 = vld [vmem:[#allocation2 + $0xfa] sm:$0xff]
        %v2099 = vld [vmem:[#allocation2 + $0x10a] sm:$0xff]
        %v2100 = vld [vmem:[#allocation2 + $0x112] sm:$0xff]
        %v2101 = vld [vmem:[#allocation2 + $0x122] sm:$0xff]
        %v2102 = vld [vmem:[#allocation2 + $0x12a] sm:$0xff]
        %v2103 = vld [vmem:[#allocation2 + $0x13a] sm:$0xff]
        %v2104 = vld [vmem:[#allocation2 + $0x142] sm:$0xff]
        %v2105 = vld [vmem:[#allocation2 + $0x152] sm:$0xff]
        %v2106 = vld [vmem:[#allocation2 + $0x15a] sm:$0xff]
        %v2107 = vld [vmem:[#allocation2 + $0x16a] sm:$0xff]
        %v2108 = vld [vmem:[#allocation2 + $0x172] sm:$0xff]
        %2109 = vrot.lane.b32.xlu0 %v925, 80
        %v2110 = vpop.permute.xlu0 %2109
        %2111 = vrot.lane.b32.xlu0 %v928, 80
        %v2112 = vpop.permute.xlu0 %2111
        %2113 = vrot.lane.b32.xlu0 %v933, 80
        %v2114 = vpop.permute.xlu0 %2113
        %2115 = vrot.lane.b32.xlu0 %v936, 80
        %v2116 = vpop.permute.xlu0 %2115
        %2117 = vrot.lane.b32.xlu0 %v941, 80
        %v2118 = vpop.permute.xlu0 %2117
        %2119 = vrot.lane.b32.xlu0 %v944, 80
        %v2120 = vpop.permute.xlu0 %2119
        %2121 = vrot.lane.b32.xlu0 %v949, 80
        %v2122 = vpop.permute.xlu0 %2121
        %2123 = vrot.lane.b32.xlu0 %v952, 80
        %v2124 = vpop.permute.xlu0 %2123
        %2125 = vrot.lane.b32.xlu0 %v957, 80
        %v2126 = vpop.permute.xlu0 %2125
        %2127 = vrot.lane.b32.xlu0 %v960, 80
        %v2128 = vpop.permute.xlu0 %2127
        %2129 = vrot.lane.b32.xlu0 %v965, 80
        %v2130 = vpop.permute.xlu0 %2129
        %2131 = vrot.lane.b32.xlu0 %v968, 80
        %v2132 = vpop.permute.xlu0 %2131
        %2133 = vrot.lane.b32.xlu0 %v973, 80
        %v2134 = vpop.permute.xlu0 %2133
        %2135 = vrot.lane.b32.xlu0 %v976, 80
        %v2136 = vpop.permute.xlu0 %2135
        %2137 = vrot.lane.b32.xlu0 %v981, 80
        %v2138 = vpop.permute.xlu0 %2137
        %2139 = vrot.lane.b32.xlu0 %v984, 80
        %v2140 = vpop.permute.xlu0 %2139
        %2141 = vrot.lane.b32.xlu0 %v989, 80
        %v2142 = vpop.permute.xlu0 %2141
        %2143 = vrot.lane.b32.xlu0 %v992, 80
        %v2144 = vpop.permute.xlu0 %2143
        %2145 = vrot.lane.b32.xlu0 %v997, 80
        %v2146 = vpop.permute.xlu0 %2145
        %2147 = vrot.lane.b32.xlu0 %v1000, 80
        %v2148 = vpop.permute.xlu0 %2147
        %2149 = vrot.lane.b32.xlu0 %v1005, 80
        %v2150 = vpop.permute.xlu0 %2149
        %2151 = vrot.lane.b32.xlu0 %v1008, 80
        %v2152 = vpop.permute.xlu0 %2151
        %2153 = vrot.lane.b32.xlu0 %v1013, 80
        %v2154 = vpop.permute.xlu0 %2153
        %2155 = vrot.lane.b32.xlu0 %v1016, 80
        %v2156 = vpop.permute.xlu0 %2155
        %2157 = vrot.lane.b32.xlu0 %v1021, 80
        %v2158 = vpop.permute.xlu0 %2157
        %2159 = vrot.lane.b32.xlu0 %v1024, 80
        %v2160 = vpop.permute.xlu0 %2159
        %2161 = vrot.lane.b32.xlu0 %v1029, 80
        %v2162 = vpop.permute.xlu0 %2161
        %2163 = vrot.lane.b32.xlu0 %v1032, 80
        %v2164 = vpop.permute.xlu0 %2163
        %2165 = vrot.lane.b32.xlu0 %v1037, 80
        %v2166 = vpop.permute.xlu0 %2165
        %2167 = vrot.lane.b32.xlu0 %v1040, 80
        %v2168 = vpop.permute.xlu0 %2167
        %2169 = vrot.lane.b32.xlu0 %v1045, 80
        %v2170 = vpop.permute.xlu0 %2169
        %2171 = vrot.lane.b32.xlu0 %v1048, 80
        %v2172 = vpop.permute.xlu0 %2171
        %v2205 = vadd.f32 %v2077, %v2110
        %v2206 = vadd.f32 %v2078, %v2112
        %v2207 = vadd.f32 %v2079, %v2114
        %v2208 = vadd.f32 %v2080, %v2116
        %v2209 = vadd.f32 %v2081, %v2118
        %v2210 = vadd.f32 %v2082, %v2120
        %v2211 = vadd.f32 %v2083, %v2122
        %v2212 = vadd.f32 %v2084, %v2124
        %v2213 = vadd.f32 %v2085, %v2126
        %v2214 = vadd.f32 %v2086, %v2128
        %v2215 = vadd.f32 %v2087, %v2130
        %v2216 = vadd.f32 %v2088, %v2132
        %v2217 = vadd.f32 %v2089, %v2134
        %v2218 = vadd.f32 %v2090, %v2136
        %v2219 = vadd.f32 %v2091, %v2138
        %v2220 = vadd.f32 %v2092, %v2140
        %v2221 = vadd.f32 %v2093, %v2142
        %v2222 = vadd.f32 %v2094, %v2144
        %v2223 = vadd.f32 %v2095, %v2146
        %v2224 = vadd.f32 %v2096, %v2148
        %v2225 = vadd.f32 %v2097, %v2150
        %v2226 = vadd.f32 %v2098, %v2152
        %v2227 = vadd.f32 %v2099, %v2154
        %v2228 = vadd.f32 %v2100, %v2156
        %v2229 = vadd.f32 %v2101, %v2158
        %v2230 = vadd.f32 %v2102, %v2160
        %v2231 = vadd.f32 %v2103, %v2162
        %v2232 = vadd.f32 %v2104, %v2164
        %v2233 = vadd.f32 %v2105, %v2166
        %v2234 = vadd.f32 %v2106, %v2168
        %v2235 = vadd.f32 %v2107, %v2170
        %v2236 = vadd.f32 %v2108, %v2172
        %2237 = vst.msk [vmem:[#allocation2 + $0x2] sm:$0xff] %vm310, %v2205
        %2238 = vst.msk [vmem:[#allocation2 + $0xa] sm:$0xff] %vm310, %v2206
        %2239 = vst.msk [vmem:[#allocation2 + $0x1a] sm:$0xff] %vm310, %v2207
        %2240 = vst.msk [vmem:[#allocation2 + $0x22] sm:$0xff] %vm310, %v2208
        %2241 = vst.msk [vmem:[#allocation2 + $0x32] sm:$0xff] %vm310, %v2209
        %2242 = vst.msk [vmem:[#allocation2 + $0x3a] sm:$0xff] %vm310, %v2210
        %2243 = vst.msk [vmem:[#allocation2 + $0x4a] sm:$0xff] %vm310, %v2211
        %2244 = vst.msk [vmem:[#allocation2 + $0x52] sm:$0xff] %vm310, %v2212
        %2245 = vst.msk [vmem:[#allocation2 + $0x62] sm:$0xff] %vm310, %v2213
        %2246 = vst.msk [vmem:[#allocation2 + $0x6a] sm:$0xff] %vm310, %v2214
        %2247 = vst.msk [vmem:[#allocation2 + $0x7a] sm:$0xff] %vm310, %v2215
        %2248 = vst.msk [vmem:[#allocation2 + $0x82] sm:$0xff] %vm310, %v2216
        %2249 = vst.msk [vmem:[#allocation2 + $0x92] sm:$0xff] %vm310, %v2217
        %2250 = vst.msk [vmem:[#allocation2 + $0x9a] sm:$0xff] %vm310, %v2218
        %2251 = vst.msk [vmem:[#allocation2 + $0xaa] sm:$0xff] %vm310, %v2219
        %2252 = vst.msk [vmem:[#allocation2 + $0xb2] sm:$0xff] %vm310, %v2220
        %2253 = vst.msk [vmem:[#allocation2 + $0xc2] sm:$0xff] %vm310, %v2221
        %2254 = vst.msk [vmem:[#allocation2 + $0xca] sm:$0xff] %vm310, %v2222
        %2255 = vst.msk [vmem:[#allocation2 + $0xda] sm:$0xff] %vm310, %v2223
        %2256 = vst.msk [vmem:[#allocation2 + $0xe2] sm:$0xff] %vm310, %v2224
        %2257 = vst.msk [vmem:[#allocation2 + $0xf2] sm:$0xff] %vm310, %v2225
        %2258 = vst.msk [vmem:[#allocation2 + $0xfa] sm:$0xff] %vm310, %v2226
        %2259 = vst.msk [vmem:[#allocation2 + $0x10a] sm:$0xff] %vm310, %v2227
        %2260 = vst.msk [vmem:[#allocation2 + $0x112] sm:$0xff] %vm310, %v2228
        %2261 = vst.msk [vmem:[#allocation2 + $0x122] sm:$0xff] %vm310, %v2229
        %2262 = vst.msk [vmem:[#allocation2 + $0x12a] sm:$0xff] %vm310, %v2230
        %2263 = vst.msk [vmem:[#allocation2 + $0x13a] sm:$0xff] %vm310, %v2231
        %2264 = vst.msk [vmem:[#allocation2 + $0x142] sm:$0xff] %vm310, %v2232
        %2265 = vst.msk [vmem:[#allocation2 + $0x152] sm:$0xff] %vm310, %v2233
        %2266 = vst.msk [vmem:[#allocation2 + $0x15a] sm:$0xff] %vm310, %v2234
        %2267 = vst.msk [vmem:[#allocation2 + $0x16a] sm:$0xff] %vm310, %v2235
        %2268 = vst.msk [vmem:[#allocation2 + $0x172] sm:$0xff] %vm310, %v2236
        %v2269 = vld [vmem:[#allocation2 + $0x1] sm:$0xff]
        %v2270 = vld [vmem:[#allocation2 + $0x9] sm:$0xff]
        %v2271 = vld [vmem:[#allocation2 + $0x19] sm:$0xff]
        %v2272 = vld [vmem:[#allocation2 + $0x21] sm:$0xff]
        %v2273 = vld [vmem:[#allocation2 + $0x31] sm:$0xff]
        %v2274 = vld [vmem:[#allocation2 + $0x39] sm:$0xff]
        %v2275 = vld [vmem:[#allocation2 + $0x49] sm:$0xff]
        %v2276 = vld [vmem:[#allocation2 + $0x51] sm:$0xff]
        %v2277 = vld [vmem:[#allocation2 + $0x61] sm:$0xff]
        %v2278 = vld [vmem:[#allocation2 + $0x69] sm:$0xff]
        %v2279 = vld [vmem:[#allocation2 + $0x79] sm:$0xff]
        %v2280 = vld [vmem:[#allocation2 + $0x81] sm:$0xff]
        %v2281 = vld [vmem:[#allocation2 + $0x91] sm:$0xff]
        %v2282 = vld [vmem:[#allocation2 + $0x99] sm:$0xff]
        %v2283 = vld [vmem:[#allocation2 + $0xa9] sm:$0xff]
        %v2284 = vld [vmem:[#allocation2 + $0xb1] sm:$0xff]
        %v2285 = vld [vmem:[#allocation2 + $0xc1] sm:$0xff]
        %v2286 = vld [vmem:[#allocation2 + $0xc9] sm:$0xff]
        %v2287 = vld [vmem:[#allocation2 + $0xd9] sm:$0xff]
        %v2288 = vld [vmem:[#allocation2 + $0xe1] sm:$0xff]
        %v2289 = vld [vmem:[#allocation2 + $0xf1] sm:$0xff]
        %v2290 = vld [vmem:[#allocation2 + $0xf9] sm:$0xff]
        %v2291 = vld [vmem:[#allocation2 + $0x109] sm:$0xff]
        %v2292 = vld [vmem:[#allocation2 + $0x111] sm:$0xff]
        %v2293 = vld [vmem:[#allocation2 + $0x121] sm:$0xff]
        %v2294 = vld [vmem:[#allocation2 + $0x129] sm:$0xff]
        %v2295 = vld [vmem:[#allocation2 + $0x139] sm:$0xff]
        %v2296 = vld [vmem:[#allocation2 + $0x141] sm:$0xff]
        %v2297 = vld [vmem:[#allocation2 + $0x151] sm:$0xff]
        %v2298 = vld [vmem:[#allocation2 + $0x159] sm:$0xff]
        %v2299 = vld [vmem:[#allocation2 + $0x169] sm:$0xff]
        %v2300 = vld [vmem:[#allocation2 + $0x171] sm:$0xff]
        %2301 = vrot.lane.b32.xlu0 %v925, 72
        %v2302 = vpop.permute.xlu0 %2301
        %2303 = vrot.lane.b32.xlu0 %v928, 72
        %v2304 = vpop.permute.xlu0 %2303
        %2305 = vrot.lane.b32.xlu0 %v933, 72
        %v2306 = vpop.permute.xlu0 %2305
        %2307 = vrot.lane.b32.xlu0 %v936, 72
        %v2308 = vpop.permute.xlu0 %2307
        %2309 = vrot.lane.b32.xlu0 %v941, 72
        %v2310 = vpop.permute.xlu0 %2309
        %2311 = vrot.lane.b32.xlu0 %v944, 72
        %v2312 = vpop.permute.xlu0 %2311
        %2313 = vrot.lane.b32.xlu0 %v949, 72
        %v2314 = vpop.permute.xlu0 %2313
        %2315 = vrot.lane.b32.xlu0 %v952, 72
        %v2316 = vpop.permute.xlu0 %2315
        %2317 = vrot.lane.b32.xlu0 %v957, 72
        %v2318 = vpop.permute.xlu0 %2317
        %2319 = vrot.lane.b32.xlu0 %v960, 72
        %v2320 = vpop.permute.xlu0 %2319
        %2321 = vrot.lane.b32.xlu0 %v965, 72
        %v2322 = vpop.permute.xlu0 %2321
        %2323 = vrot.lane.b32.xlu0 %v968, 72
        %v2324 = vpop.permute.xlu0 %2323
        %2325 = vrot.lane.b32.xlu0 %v973, 72
        %v2326 = vpop.permute.xlu0 %2325
        %2327 = vrot.lane.b32.xlu0 %v976, 72
        %v2328 = vpop.permute.xlu0 %2327
        %2329 = vrot.lane.b32.xlu0 %v981, 72
        %v2330 = vpop.permute.xlu0 %2329
        %2331 = vrot.lane.b32.xlu0 %v984, 72
        %v2332 = vpop.permute.xlu0 %2331
        %2333 = vrot.lane.b32.xlu0 %v989, 72
        %v2334 = vpop.permute.xlu0 %2333
        %2335 = vrot.lane.b32.xlu0 %v992, 72
        %v2336 = vpop.permute.xlu0 %2335
        %2337 = vrot.lane.b32.xlu0 %v997, 72
        %v2338 = vpop.permute.xlu0 %2337
        %2339 = vrot.lane.b32.xlu0 %v1000, 72
        %v2340 = vpop.permute.xlu0 %2339
        %2341 = vrot.lane.b32.xlu0 %v1005, 72
        %v2342 = vpop.permute.xlu0 %2341
        %2343 = vrot.lane.b32.xlu0 %v1008, 72
        %v2344 = vpop.permute.xlu0 %2343
        %2345 = vrot.lane.b32.xlu0 %v1013, 72
        %v2346 = vpop.permute.xlu0 %2345
        %2347 = vrot.lane.b32.xlu0 %v1016, 72
        %v2348 = vpop.permute.xlu0 %2347
        %2349 = vrot.lane.b32.xlu0 %v1021, 72
        %v2350 = vpop.permute.xlu0 %2349
        %2351 = vrot.lane.b32.xlu0 %v1024, 72
        %v2352 = vpop.permute.xlu0 %2351
        %2353 = vrot.lane.b32.xlu0 %v1029, 72
        %v2354 = vpop.permute.xlu0 %2353
        %2355 = vrot.lane.b32.xlu0 %v1032, 72
        %v2356 = vpop.permute.xlu0 %2355
        %2357 = vrot.lane.b32.xlu0 %v1037, 72
        %v2358 = vpop.permute.xlu0 %2357
        %2359 = vrot.lane.b32.xlu0 %v1040, 72
        %v2360 = vpop.permute.xlu0 %2359
        %2361 = vrot.lane.b32.xlu0 %v1045, 72
        %v2362 = vpop.permute.xlu0 %2361
        %2363 = vrot.lane.b32.xlu0 %v1048, 72
        %v2364 = vpop.permute.xlu0 %2363
        %v2397 = vadd.f32 %v2269, %v2302
        %v2398 = vadd.f32 %v2270, %v2304
        %v2399 = vadd.f32 %v2271, %v2306
        %v2400 = vadd.f32 %v2272, %v2308
        %v2401 = vadd.f32 %v2273, %v2310
        %v2402 = vadd.f32 %v2274, %v2312
        %v2403 = vadd.f32 %v2275, %v2314
        %v2404 = vadd.f32 %v2276, %v2316
        %v2405 = vadd.f32 %v2277, %v2318
        %v2406 = vadd.f32 %v2278, %v2320
        %v2407 = vadd.f32 %v2279, %v2322
        %v2408 = vadd.f32 %v2280, %v2324
        %v2409 = vadd.f32 %v2281, %v2326
        %v2410 = vadd.f32 %v2282, %v2328
        %v2411 = vadd.f32 %v2283, %v2330
        %v2412 = vadd.f32 %v2284, %v2332
        %v2413 = vadd.f32 %v2285, %v2334
        %v2414 = vadd.f32 %v2286, %v2336
        %v2415 = vadd.f32 %v2287, %v2338
        %v2416 = vadd.f32 %v2288, %v2340
        %v2417 = vadd.f32 %v2289, %v2342
        %v2418 = vadd.f32 %v2290, %v2344
        %v2419 = vadd.f32 %v2291, %v2346
        %v2420 = vadd.f32 %v2292, %v2348
        %v2421 = vadd.f32 %v2293, %v2350
        %v2422 = vadd.f32 %v2294, %v2352
        %v2423 = vadd.f32 %v2295, %v2354
        %v2424 = vadd.f32 %v2296, %v2356
        %v2425 = vadd.f32 %v2297, %v2358
        %v2426 = vadd.f32 %v2298, %v2360
        %v2427 = vadd.f32 %v2299, %v2362
        %v2428 = vadd.f32 %v2300, %v2364
        %2429 = vst.msk [vmem:[#allocation2 + $0x1] sm:$0xff] %vm310, %v2397
        %2430 = vst.msk [vmem:[#allocation2 + $0x9] sm:$0xff] %vm310, %v2398
        %2431 = vst.msk [vmem:[#allocation2 + $0x19] sm:$0xff] %vm310, %v2399
        %2432 = vst.msk [vmem:[#allocation2 + $0x21] sm:$0xff] %vm310, %v2400
        %2433 = vst.msk [vmem:[#allocation2 + $0x31] sm:$0xff] %vm310, %v2401
        %2434 = vst.msk [vmem:[#allocation2 + $0x39] sm:$0xff] %vm310, %v2402
        %2435 = vst.msk [vmem:[#allocation2 + $0x49] sm:$0xff] %vm310, %v2403
        %2436 = vst.msk [vmem:[#allocation2 + $0x51] sm:$0xff] %vm310, %v2404
        %2437 = vst.msk [vmem:[#allocation2 + $0x61] sm:$0xff] %vm310, %v2405
        %2438 = vst.msk [vmem:[#allocation2 + $0x69] sm:$0xff] %vm310, %v2406
        %2439 = vst.msk [vmem:[#allocation2 + $0x79] sm:$0xff] %vm310, %v2407
        %2440 = vst.msk [vmem:[#allocation2 + $0x81] sm:$0xff] %vm310, %v2408
        %2441 = vst.msk [vmem:[#allocation2 + $0x91] sm:$0xff] %vm310, %v2409
        %2442 = vst.msk [vmem:[#allocation2 + $0x99] sm:$0xff] %vm310, %v2410
        %2443 = vst.msk [vmem:[#allocation2 + $0xa9] sm:$0xff] %vm310, %v2411
        %2444 = vst.msk [vmem:[#allocation2 + $0xb1] sm:$0xff] %vm310, %v2412
        %2445 = vst.msk [vmem:[#allocation2 + $0xc1] sm:$0xff] %vm310, %v2413
        %2446 = vst.msk [vmem:[#allocation2 + $0xc9] sm:$0xff] %vm310, %v2414
        %2447 = vst.msk [vmem:[#allocation2 + $0xd9] sm:$0xff] %vm310, %v2415
        %2448 = vst.msk [vmem:[#allocation2 + $0xe1] sm:$0xff] %vm310, %v2416
        %2449 = vst.msk [vmem:[#allocation2 + $0xf1] sm:$0xff] %vm310, %v2417
        %2450 = vst.msk [vmem:[#allocation2 + $0xf9] sm:$0xff] %vm310, %v2418
        %2451 = vst.msk [vmem:[#allocation2 + $0x109] sm:$0xff] %vm310, %v2419
        %2452 = vst.msk [vmem:[#allocation2 + $0x111] sm:$0xff] %vm310, %v2420
        %2453 = vst.msk [vmem:[#allocation2 + $0x121] sm:$0xff] %vm310, %v2421
        %2454 = vst.msk [vmem:[#allocation2 + $0x129] sm:$0xff] %vm310, %v2422
        %2455 = vst.msk [vmem:[#allocation2 + $0x139] sm:$0xff] %vm310, %v2423
        %2456 = vst.msk [vmem:[#allocation2 + $0x141] sm:$0xff] %vm310, %v2424
        %2457 = vst.msk [vmem:[#allocation2 + $0x151] sm:$0xff] %vm310, %v2425
        %2458 = vst.msk [vmem:[#allocation2 + $0x159] sm:$0xff] %vm310, %v2426
        %2459 = vst.msk [vmem:[#allocation2 + $0x169] sm:$0xff] %vm310, %v2427
        %2460 = vst.msk [vmem:[#allocation2 + $0x171] sm:$0xff] %vm310, %v2428
        %v2461 = vld [vmem:[#allocation2] sm:$0xff]
        %v2462 = vld [vmem:[#allocation2 + $0x8] sm:$0xff]
        %v2463 = vld [vmem:[#allocation2 + $0x18] sm:$0xff]
        %v2464 = vld [vmem:[#allocation2 + $0x20] sm:$0xff]
        %v2465 = vld [vmem:[#allocation2 + $0x30] sm:$0xff]
        %v2466 = vld [vmem:[#allocation2 + $0x38] sm:$0xff]
        %v2467 = vld [vmem:[#allocation2 + $0x48] sm:$0xff]
        %v2468 = vld [vmem:[#allocation2 + $0x50] sm:$0xff]
        %v2469 = vld [vmem:[#allocation2 + $0x60] sm:$0xff]
        %v2470 = vld [vmem:[#allocation2 + $0x68] sm:$0xff]
        %v2471 = vld [vmem:[#allocation2 + $0x78] sm:$0xff]
        %v2472 = vld [vmem:[#allocation2 + $0x80] sm:$0xff]
        %v2473 = vld [vmem:[#allocation2 + $0x90] sm:$0xff]
        %v2474 = vld [vmem:[#allocation2 + $0x98] sm:$0xff]
        %v2475 = vld [vmem:[#allocation2 + $0xa8] sm:$0xff]
        %v2476 = vld [vmem:[#allocation2 + $0xb0] sm:$0xff]
        %v2477 = vld [vmem:[#allocation2 + $0xc0] sm:$0xff]
        %v2478 = vld [vmem:[#allocation2 + $0xc8] sm:$0xff]
        %v2479 = vld [vmem:[#allocation2 + $0xd8] sm:$0xff]
        %v2480 = vld [vmem:[#allocation2 + $0xe0] sm:$0xff]
        %v2481 = vld [vmem:[#allocation2 + $0xf0] sm:$0xff]
        %v2482 = vld [vmem:[#allocation2 + $0xf8] sm:$0xff]
        %v2483 = vld [vmem:[#allocation2 + $0x108] sm:$0xff]
        %v2484 = vld [vmem:[#allocation2 + $0x110] sm:$0xff]
        %v2485 = vld [vmem:[#allocation2 + $0x120] sm:$0xff]
        %v2486 = vld [vmem:[#allocation2 + $0x128] sm:$0xff]
        %v2487 = vld [vmem:[#allocation2 + $0x138] sm:$0xff]
        %v2488 = vld [vmem:[#allocation2 + $0x140] sm:$0xff]
        %v2489 = vld [vmem:[#allocation2 + $0x150] sm:$0xff]
        %v2490 = vld [vmem:[#allocation2 + $0x158] sm:$0xff]
        %v2491 = vld [vmem:[#allocation2 + $0x168] sm:$0xff]
        %v2492 = vld [vmem:[#allocation2 + $0x170] sm:$0xff]
        %2493 = vrot.lane.b32.xlu0 %v925, 64
        %v2494 = vpop.permute.xlu0 %2493
        %2495 = vrot.lane.b32.xlu0 %v928, 64
        %v2496 = vpop.permute.xlu0 %2495
        %2497 = vrot.lane.b32.xlu0 %v933, 64
        %v2498 = vpop.permute.xlu0 %2497
        %2499 = vrot.lane.b32.xlu0 %v936, 64
        %v2500 = vpop.permute.xlu0 %2499
        %2501 = vrot.lane.b32.xlu0 %v941, 64
        %v2502 = vpop.permute.xlu0 %2501
        %2503 = vrot.lane.b32.xlu0 %v944, 64
        %v2504 = vpop.permute.xlu0 %2503
        %2505 = vrot.lane.b32.xlu0 %v949, 64
        %v2506 = vpop.permute.xlu0 %2505
        %2507 = vrot.lane.b32.xlu0 %v952, 64
        %v2508 = vpop.permute.xlu0 %2507
        %2509 = vrot.lane.b32.xlu0 %v957, 64
        %v2510 = vpop.permute.xlu0 %2509
        %2511 = vrot.lane.b32.xlu0 %v960, 64
        %v2512 = vpop.permute.xlu0 %2511
        %2513 = vrot.lane.b32.xlu0 %v965, 64
        %v2514 = vpop.permute.xlu0 %2513
        %2515 = vrot.lane.b32.xlu0 %v968, 64
        %v2516 = vpop.permute.xlu0 %2515
        %2517 = vrot.lane.b32.xlu0 %v973, 64
        %v2518 = vpop.permute.xlu0 %2517
        %2519 = vrot.lane.b32.xlu0 %v976, 64
        %v2520 = vpop.permute.xlu0 %2519
        %2521 = vrot.lane.b32.xlu0 %v981, 64
        %v2522 = vpop.permute.xlu0 %2521
        %2523 = vrot.lane.b32.xlu0 %v984, 64
        %v2524 = vpop.permute.xlu0 %2523
        %2525 = vrot.lane.b32.xlu0 %v989, 64
        %v2526 = vpop.permute.xlu0 %2525
        %2527 = vrot.lane.b32.xlu0 %v992, 64
        %v2528 = vpop.permute.xlu0 %2527
        %2529 = vrot.lane.b32.xlu0 %v997, 64
        %v2530 = vpop.permute.xlu0 %2529
        %2531 = vrot.lane.b32.xlu0 %v1000, 64
        %v2532 = vpop.permute.xlu0 %2531
        %2533 = vrot.lane.b32.xlu0 %v1005, 64
        %v2534 = vpop.permute.xlu0 %2533
        %2535 = vrot.lane.b32.xlu0 %v1008, 64
        %v2536 = vpop.permute.xlu0 %2535
        %2537 = vrot.lane.b32.xlu0 %v1013, 64
        %v2538 = vpop.permute.xlu0 %2537
        %2539 = vrot.lane.b32.xlu0 %v1016, 64
        %v2540 = vpop.permute.xlu0 %2539
        %2541 = vrot.lane.b32.xlu0 %v1021, 64
        %v2542 = vpop.permute.xlu0 %2541
        %2543 = vrot.lane.b32.xlu0 %v1024, 64
        %v2544 = vpop.permute.xlu0 %2543
        %2545 = vrot.lane.b32.xlu0 %v1029, 64
        %v2546 = vpop.permute.xlu0 %2545
        %2547 = vrot.lane.b32.xlu0 %v1032, 64
        %v2548 = vpop.permute.xlu0 %2547
        %2549 = vrot.lane.b32.xlu0 %v1037, 64
        %v2550 = vpop.permute.xlu0 %2549
        %2551 = vrot.lane.b32.xlu0 %v1040, 64
        %v2552 = vpop.permute.xlu0 %2551
        %2553 = vrot.lane.b32.xlu0 %v1045, 64
        %v2554 = vpop.permute.xlu0 %2553
        %2555 = vrot.lane.b32.xlu0 %v1048, 64
        %v2556 = vpop.permute.xlu0 %2555
        %v2589 = vadd.f32 %v2461, %v2494
        %v2590 = vadd.f32 %v2462, %v2496
        %v2591 = vadd.f32 %v2463, %v2498
        %v2592 = vadd.f32 %v2464, %v2500
        %v2593 = vadd.f32 %v2465, %v2502
        %v2594 = vadd.f32 %v2466, %v2504
        %v2595 = vadd.f32 %v2467, %v2506
        %v2596 = vadd.f32 %v2468, %v2508
        %v2597 = vadd.f32 %v2469, %v2510
        %v2598 = vadd.f32 %v2470, %v2512
        %v2599 = vadd.f32 %v2471, %v2514
        %v2600 = vadd.f32 %v2472, %v2516
        %v2601 = vadd.f32 %v2473, %v2518
        %v2602 = vadd.f32 %v2474, %v2520
        %v2603 = vadd.f32 %v2475, %v2522
        %v2604 = vadd.f32 %v2476, %v2524
        %v2605 = vadd.f32 %v2477, %v2526
        %v2606 = vadd.f32 %v2478, %v2528
        %v2607 = vadd.f32 %v2479, %v2530
        %v2608 = vadd.f32 %v2480, %v2532
        %v2609 = vadd.f32 %v2481, %v2534
        %v2610 = vadd.f32 %v2482, %v2536
        %v2611 = vadd.f32 %v2483, %v2538
        %v2612 = vadd.f32 %v2484, %v2540
        %v2613 = vadd.f32 %v2485, %v2542
        %v2614 = vadd.f32 %v2486, %v2544
        %v2615 = vadd.f32 %v2487, %v2546
        %v2616 = vadd.f32 %v2488, %v2548
        %v2617 = vadd.f32 %v2489, %v2550
        %v2618 = vadd.f32 %v2490, %v2552
        %v2619 = vadd.f32 %v2491, %v2554
        %v2620 = vadd.f32 %v2492, %v2556
        %2621 = vst.msk [vmem:[#allocation2] sm:$0xff] %vm310, %v2589
        %2622 = vst.msk [vmem:[#allocation2 + $0x8] sm:$0xff] %vm310, %v2590
        %2623 = vst.msk [vmem:[#allocation2 + $0x18] sm:$0xff] %vm310, %v2591
        %2624 = vst.msk [vmem:[#allocation2 + $0x20] sm:$0xff] %vm310, %v2592
        %2625 = vst.msk [vmem:[#allocation2 + $0x30] sm:$0xff] %vm310, %v2593
        %2626 = vst.msk [vmem:[#allocation2 + $0x38] sm:$0xff] %vm310, %v2594
        %2627 = vst.msk [vmem:[#allocation2 + $0x48] sm:$0xff] %vm310, %v2595
        %2628 = vst.msk [vmem:[#allocation2 + $0x50] sm:$0xff] %vm310, %v2596
        %2629 = vst.msk [vmem:[#allocation2 + $0x60] sm:$0xff] %vm310, %v2597
        %2630 = vst.msk [vmem:[#allocation2 + $0x68] sm:$0xff] %vm310, %v2598
        %2631 = vst.msk [vmem:[#allocation2 + $0x78] sm:$0xff] %vm310, %v2599
        %2632 = vst.msk [vmem:[#allocation2 + $0x80] sm:$0xff] %vm310, %v2600
        %2633 = vst.msk [vmem:[#allocation2 + $0x90] sm:$0xff] %vm310, %v2601
        %2634 = vst.msk [vmem:[#allocation2 + $0x98] sm:$0xff] %vm310, %v2602
        %2635 = vst.msk [vmem:[#allocation2 + $0xa8] sm:$0xff] %vm310, %v2603
        %2636 = vst.msk [vmem:[#allocation2 + $0xb0] sm:$0xff] %vm310, %v2604
        %2637 = vst.msk [vmem:[#allocation2 + $0xc0] sm:$0xff] %vm310, %v2605
        %2638 = vst.msk [vmem:[#allocation2 + $0xc8] sm:$0xff] %vm310, %v2606
        %2639 = vst.msk [vmem:[#allocation2 + $0xd8] sm:$0xff] %vm310, %v2607
        %2640 = vst.msk [vmem:[#allocation2 + $0xe0] sm:$0xff] %vm310, %v2608
        %2641 = vst.msk [vmem:[#allocation2 + $0xf0] sm:$0xff] %vm310, %v2609
        %2642 = vst.msk [vmem:[#allocation2 + $0xf8] sm:$0xff] %vm310, %v2610
        %2643 = vst.msk [vmem:[#allocation2 + $0x108] sm:$0xff] %vm310, %v2611
        %2644 = vst.msk [vmem:[#allocation2 + $0x110] sm:$0xff] %vm310, %v2612
        %2645 = vst.msk [vmem:[#allocation2 + $0x120] sm:$0xff] %vm310, %v2613
        %2646 = vst.msk [vmem:[#allocation2 + $0x128] sm:$0xff] %vm310, %v2614
        %2647 = vst.msk [vmem:[#allocation2 + $0x138] sm:$0xff] %vm310, %v2615
        %2648 = vst.msk [vmem:[#allocation2 + $0x140] sm:$0xff] %vm310, %v2616
        %2649 = vst.msk [vmem:[#allocation2 + $0x150] sm:$0xff] %vm310, %v2617
        %2650 = vst.msk [vmem:[#allocation2 + $0x158] sm:$0xff] %vm310, %v2618
        %2651 = vst.msk [vmem:[#allocation2 + $0x168] sm:$0xff] %vm310, %v2619
        %2652 = vst.msk [vmem:[#allocation2 + $0x170] sm:$0xff] %vm310, %v2620
        %v2653 = vld [vmem:[%s1179 + $0x1] sm:$0xff]
        %v2654 = vld [vmem:[%s1179 + $0x9] sm:$0xff]
        %v2655 = vld [vmem:[%s1179 + $0x19] sm:$0xff]
        %v2656 = vld [vmem:[%s1179 + $0x21] sm:$0xff]
        %v2657 = vld [vmem:[%s1179 + $0x31] sm:$0xff]
        %v2658 = vld [vmem:[%s1179 + $0x39] sm:$0xff]
        %v2659 = vld [vmem:[%s1179 + $0x49] sm:$0xff]
        %v2660 = vld [vmem:[%s1179 + $0x51] sm:$0xff]
        %v2661 = vld [vmem:[%s1179 + $0x61] sm:$0xff]
        %v2662 = vld [vmem:[%s1179 + $0x69] sm:$0xff]
        %v2663 = vld [vmem:[%s1179 + $0x79] sm:$0xff]
        %v2664 = vld [vmem:[%s1179 + $0x81] sm:$0xff]
        %v2665 = vld [vmem:[%s1179 + $0x91] sm:$0xff]
        %v2666 = vld [vmem:[%s1179 + $0x99] sm:$0xff]
        %v2667 = vld [vmem:[%s1179 + $0xa9] sm:$0xff]
        %v2668 = vld [vmem:[%s1179 + $0xb1] sm:$0xff]
        %v2669 = vld [vmem:[%s1179 + $0xc1] sm:$0xff]
        %v2670 = vld [vmem:[%s1179 + $0xc9] sm:$0xff]
        %v2671 = vld [vmem:[%s1179 + $0xd9] sm:$0xff]
        %v2672 = vld [vmem:[%s1179 + $0xe1] sm:$0xff]
        %v2673 = vld [vmem:[%s1179 + $0xf1] sm:$0xff]
        %v2674 = vld [vmem:[%s1179 + $0xf9] sm:$0xff]
        %v2675 = vld [vmem:[%s1179 + $0x109] sm:$0xff]
        %v2676 = vld [vmem:[%s1179 + $0x111] sm:$0xff]
        %v2677 = vld [vmem:[%s1179 + $0x121] sm:$0xff]
        %v2678 = vld [vmem:[%s1179 + $0x129] sm:$0xff]
        %v2679 = vld [vmem:[%s1179 + $0x139] sm:$0xff]
        %v2680 = vld [vmem:[%s1179 + $0x141] sm:$0xff]
        %v2681 = vld [vmem:[%s1179 + $0x151] sm:$0xff]
        %v2682 = vld [vmem:[%s1179 + $0x159] sm:$0xff]
        %v2683 = vld [vmem:[%s1179 + $0x169] sm:$0xff]
        %v2684 = vld [vmem:[%s1179 + $0x171] sm:$0xff]
        %2717 = vrot.lane.b32.xlu0 %v2653, 8
        %v2718 = vpop.permute.xlu0 %2717
        %2719 = vrot.lane.b32.xlu0 %v2654, 8
        %v2720 = vpop.permute.xlu0 %2719
        %2721 = vrot.lane.b32.xlu0 %v2655, 8
        %v2722 = vpop.permute.xlu0 %2721
        %2723 = vrot.lane.b32.xlu0 %v2656, 8
        %v2724 = vpop.permute.xlu0 %2723
        %2725 = vrot.lane.b32.xlu0 %v2657, 8
        %v2726 = vpop.permute.xlu0 %2725
        %2727 = vrot.lane.b32.xlu0 %v2658, 8
        %v2728 = vpop.permute.xlu0 %2727
        %2729 = vrot.lane.b32.xlu0 %v2659, 8
        %v2730 = vpop.permute.xlu0 %2729
        %2731 = vrot.lane.b32.xlu0 %v2660, 8
        %v2732 = vpop.permute.xlu0 %2731
        %2733 = vrot.lane.b32.xlu0 %v2661, 8
        %v2734 = vpop.permute.xlu0 %2733
        %2735 = vrot.lane.b32.xlu0 %v2662, 8
        %v2736 = vpop.permute.xlu0 %2735
        %2737 = vrot.lane.b32.xlu0 %v2663, 8
        %v2738 = vpop.permute.xlu0 %2737
        %2739 = vrot.lane.b32.xlu0 %v2664, 8
        %v2740 = vpop.permute.xlu0 %2739
        %2741 = vrot.lane.b32.xlu0 %v2665, 8
        %v2742 = vpop.permute.xlu0 %2741
        %2743 = vrot.lane.b32.xlu0 %v2666, 8
        %v2744 = vpop.permute.xlu0 %2743
        %2745 = vrot.lane.b32.xlu0 %v2667, 8
        %v2746 = vpop.permute.xlu0 %2745
        %2747 = vrot.lane.b32.xlu0 %v2668, 8
        %v2748 = vpop.permute.xlu0 %2747
        %2749 = vrot.lane.b32.xlu0 %v2669, 8
        %v2750 = vpop.permute.xlu0 %2749
        %2751 = vrot.lane.b32.xlu0 %v2670, 8
        %v2752 = vpop.permute.xlu0 %2751
        %2753 = vrot.lane.b32.xlu0 %v2671, 8
        %v2754 = vpop.permute.xlu0 %2753
        %2755 = vrot.lane.b32.xlu0 %v2672, 8
        %v2756 = vpop.permute.xlu0 %2755
        %2757 = vrot.lane.b32.xlu0 %v2673, 8
        %v2758 = vpop.permute.xlu0 %2757
        %2759 = vrot.lane.b32.xlu0 %v2674, 8
        %v2760 = vpop.permute.xlu0 %2759
        %2761 = vrot.lane.b32.xlu0 %v2675, 8
        %v2762 = vpop.permute.xlu0 %2761
        %2763 = vrot.lane.b32.xlu0 %v2676, 8
        %v2764 = vpop.permute.xlu0 %2763
        %2765 = vrot.lane.b32.xlu0 %v2677, 8
        %v2766 = vpop.permute.xlu0 %2765
        %2767 = vrot.lane.b32.xlu0 %v2678, 8
        %v2768 = vpop.permute.xlu0 %2767
        %2769 = vrot.lane.b32.xlu0 %v2679, 8
        %v2770 = vpop.permute.xlu0 %2769
        %2771 = vrot.lane.b32.xlu0 %v2680, 8
        %v2772 = vpop.permute.xlu0 %2771
        %2773 = vrot.lane.b32.xlu0 %v2681, 8
        %v2774 = vpop.permute.xlu0 %2773
        %2775 = vrot.lane.b32.xlu0 %v2682, 8
        %v2776 = vpop.permute.xlu0 %2775
        %2777 = vrot.lane.b32.xlu0 %v2683, 8
        %v2778 = vpop.permute.xlu0 %2777
        %2779 = vrot.lane.b32.xlu0 %v2684, 8
        %v2780 = vpop.permute.xlu0 %2779
        %vm2813 = vcmask 130112
        %2814 = vst.msk [vmem:[%s271] sm:$0xff] %vm2813, %v2718
        %2815 = vst.msk [vmem:[%s271 + $0x8] sm:$0xff] %vm2813, %v2720
        %2816 = vst.msk [vmem:[%s271 + $0x10] sm:$0xff] %vm2813, %v2722
        %2817 = vst.msk [vmem:[%s271 + $0x18] sm:$0xff] %vm2813, %v2724
        %2818 = vst.msk [vmem:[%s271 + $0x20] sm:$0xff] %vm2813, %v2726
        %2819 = vst.msk [vmem:[%s271 + $0x28] sm:$0xff] %vm2813, %v2728
        %2820 = vst.msk [vmem:[%s271 + $0x30] sm:$0xff] %vm2813, %v2730
        %2821 = vst.msk [vmem:[%s271 + $0x38] sm:$0xff] %vm2813, %v2732
        %2822 = vst.msk [vmem:[%s271 + $0x40] sm:$0xff] %vm2813, %v2734
        %2823 = vst.msk [vmem:[%s271 + $0x48] sm:$0xff] %vm2813, %v2736
        %2824 = vst.msk [vmem:[%s271 + $0x50] sm:$0xff] %vm2813, %v2738
        %2825 = vst.msk [vmem:[%s271 + $0x58] sm:$0xff] %vm2813, %v2740
        %2826 = vst.msk [vmem:[%s271 + $0x60] sm:$0xff] %vm2813, %v2742
        %2827 = vst.msk [vmem:[%s271 + $0x68] sm:$0xff] %vm2813, %v2744
        %2828 = vst.msk [vmem:[%s271 + $0x70] sm:$0xff] %vm2813, %v2746
        %2829 = vst.msk [vmem:[%s271 + $0x78] sm:$0xff] %vm2813, %v2748
        %2830 = vst.msk [vmem:[%s271 + $0x80] sm:$0xff] %vm2813, %v2750
        %2831 = vst.msk [vmem:[%s271 + $0x88] sm:$0xff] %vm2813, %v2752
        %2832 = vst.msk [vmem:[%s271 + $0x90] sm:$0xff] %vm2813, %v2754
        %2833 = vst.msk [vmem:[%s271 + $0x98] sm:$0xff] %vm2813, %v2756
        %2834 = vst.msk [vmem:[%s271 + $0xa0] sm:$0xff] %vm2813, %v2758
        %2835 = vst.msk [vmem:[%s271 + $0xa8] sm:$0xff] %vm2813, %v2760
        %2836 = vst.msk [vmem:[%s271 + $0xb0] sm:$0xff] %vm2813, %v2762
        %2837 = vst.msk [vmem:[%s271 + $0xb8] sm:$0xff] %vm2813, %v2764
        %2838 = vst.msk [vmem:[%s271 + $0xc0] sm:$0xff] %vm2813, %v2766
        %2839 = vst.msk [vmem:[%s271 + $0xc8] sm:$0xff] %vm2813, %v2768
        %2840 = vst.msk [vmem:[%s271 + $0xd0] sm:$0xff] %vm2813, %v2770
        %2841 = vst.msk [vmem:[%s271 + $0xd8] sm:$0xff] %vm2813, %v2772
        %2842 = vst.msk [vmem:[%s271 + $0xe0] sm:$0xff] %vm2813, %v2774
        %2843 = vst.msk [vmem:[%s271 + $0xe8] sm:$0xff] %vm2813, %v2776
        %2844 = vst.msk [vmem:[%s271 + $0xf0] sm:$0xff] %vm2813, %v2778
        %2845 = vst.msk [vmem:[%s271 + $0xf8] sm:$0xff] %vm2813, %v2780
        %v2846 = vld [vmem:[%s1 + $0x2] sm:$0x1]
        %v2847 = vld [vmem:[%s1 + $0x3] sm:$0x1]
        %v2848 = vld [vmem:[%s271] sm:$0xff]
        %v2849 = vld [vmem:[%s271 + $0x8] sm:$0xff]
        %v2850 = vld [vmem:[%s271 + $0x10] sm:$0xff]
        %v2851 = vld [vmem:[%s271 + $0x18] sm:$0xff]
        %v2852 = vld [vmem:[%s271 + $0x20] sm:$0xff]
        %v2853 = vld [vmem:[%s271 + $0x28] sm:$0xff]
        %v2854 = vld [vmem:[%s271 + $0x30] sm:$0xff]
        %v2855 = vld [vmem:[%s271 + $0x38] sm:$0xff]
        %v2856 = vld [vmem:[%s271 + $0x40] sm:$0xff]
        %v2857 = vld [vmem:[%s271 + $0x48] sm:$0xff]
        %v2858 = vld [vmem:[%s271 + $0x50] sm:$0xff]
        %v2859 = vld [vmem:[%s271 + $0x58] sm:$0xff]
        %v2860 = vld [vmem:[%s271 + $0x60] sm:$0xff]
        %v2861 = vld [vmem:[%s271 + $0x68] sm:$0xff]
        %v2862 = vld [vmem:[%s271 + $0x70] sm:$0xff]
        %v2863 = vld [vmem:[%s271 + $0x78] sm:$0xff]
        %v2864 = vld [vmem:[%s271 + $0x80] sm:$0xff]
        %v2865 = vld [vmem:[%s271 + $0x88] sm:$0xff]
        %v2866 = vld [vmem:[%s271 + $0x90] sm:$0xff]
        %v2867 = vld [vmem:[%s271 + $0x98] sm:$0xff]
        %v2868 = vld [vmem:[%s271 + $0xa0] sm:$0xff]
        %v2869 = vld [vmem:[%s271 + $0xa8] sm:$0xff]
        %v2870 = vld [vmem:[%s271 + $0xb0] sm:$0xff]
        %v2871 = vld [vmem:[%s271 + $0xb8] sm:$0xff]
        %v2872 = vld [vmem:[%s271 + $0xc0] sm:$0xff]
        %v2873 = vld [vmem:[%s271 + $0xc8] sm:$0xff]
        %v2874 = vld [vmem:[%s271 + $0xd0] sm:$0xff]
        %v2875 = vld [vmem:[%s271 + $0xd8] sm:$0xff]
        %v2876 = vld [vmem:[%s271 + $0xe0] sm:$0xff]
        %v2877 = vld [vmem:[%s271 + $0xe8] sm:$0xff]
        %v2878 = vld [vmem:[%s271 + $0xf0] sm:$0xff]
        %v2879 = vld [vmem:[%s271 + $0xf8] sm:$0xff]
        %v2880 = vlaneseq
        %v2881 = vshrl.u32 %v2880, 7
        %v2882 = vsub.s32 0, %v2881
        %v2883 = vrot.slane %v2846, %v2882
        %v2884 = vmul.f32 %v2848, %v2883
        %v2885 = vmul.f32 %v2849, %v2883
        %v2886 = vmul.f32 %v2850, %v2883
        %v2887 = vmul.f32 %v2851, %v2883
        %v2888 = vmul.f32 %v2852, %v2883
        %v2889 = vmul.f32 %v2853, %v2883
        %v2890 = vmul.f32 %v2854, %v2883
        %v2891 = vmul.f32 %v2855, %v2883
        %v2892 = vmul.f32 %v2856, %v2883
        %v2893 = vmul.f32 %v2857, %v2883
        %v2894 = vmul.f32 %v2858, %v2883
        %v2895 = vmul.f32 %v2859, %v2883
        %v2896 = vmul.f32 %v2860, %v2883
        %v2897 = vmul.f32 %v2861, %v2883
        %v2898 = vmul.f32 %v2862, %v2883
        %v2899 = vmul.f32 %v2863, %v2883
        %v2900 = vmul.f32 %v2864, %v2883
        %v2901 = vmul.f32 %v2865, %v2883
        %v2902 = vmul.f32 %v2866, %v2883
        %v2903 = vmul.f32 %v2867, %v2883
        %v2904 = vmul.f32 %v2868, %v2883
        %v2905 = vmul.f32 %v2869, %v2883
        %v2906 = vmul.f32 %v2870, %v2883
        %v2907 = vmul.f32 %v2871, %v2883
        %v2908 = vmul.f32 %v2872, %v2883
        %v2909 = vmul.f32 %v2873, %v2883
        %v2910 = vmul.f32 %v2874, %v2883
        %v2911 = vmul.f32 %v2875, %v2883
        %v2912 = vmul.f32 %v2876, %v2883
        %v2913 = vmul.f32 %v2877, %v2883
        %v2914 = vmul.f32 %v2878, %v2883
        %v2915 = vmul.f32 %v2879, %v2883
        %v2916 = vlaneseq
        %v2917 = vshrl.u32 %v2916, 7
        %v2918 = vsub.s32 0, %v2917
        %v2919 = vrot.slane %v2847, %v2918
        %v2920 = vadd.f32 %v2884, %v2919
        %v2921 = vadd.f32 %v2885, %v2919
        %v2922 = vadd.f32 %v2886, %v2919
        %v2923 = vadd.f32 %v2887, %v2919
        %v2924 = vadd.f32 %v2888, %v2919
        %v2925 = vadd.f32 %v2889, %v2919
        %v2926 = vadd.f32 %v2890, %v2919
        %v2927 = vadd.f32 %v2891, %v2919
        %v2928 = vadd.f32 %v2892, %v2919
        %v2929 = vadd.f32 %v2893, %v2919
        %v2930 = vadd.f32 %v2894, %v2919
        %v2931 = vadd.f32 %v2895, %v2919
        %v2932 = vadd.f32 %v2896, %v2919
        %v2933 = vadd.f32 %v2897, %v2919
        %v2934 = vadd.f32 %v2898, %v2919
        %v2935 = vadd.f32 %v2899, %v2919
        %v2936 = vadd.f32 %v2900, %v2919
        %v2937 = vadd.f32 %v2901, %v2919
        %v2938 = vadd.f32 %v2902, %v2919
        %v2939 = vadd.f32 %v2903, %v2919
        %v2940 = vadd.f32 %v2904, %v2919
        %v2941 = vadd.f32 %v2905, %v2919
        %v2942 = vadd.f32 %v2906, %v2919
        %v2943 = vadd.f32 %v2907, %v2919
        %v2944 = vadd.f32 %v2908, %v2919
        %v2945 = vadd.f32 %v2909, %v2919
        %v2946 = vadd.f32 %v2910, %v2919
        %v2947 = vadd.f32 %v2911, %v2919
        %v2948 = vadd.f32 %v2912, %v2919
        %v2949 = vadd.f32 %v2913, %v2919
        %v2950 = vadd.f32 %v2914, %v2919
        %v2951 = vadd.f32 %v2915, %v2919
        %v2952 = vmax.f32 %v2920, 0.0
        %v2953 = vmax.f32 %v2921, 0.0
        %v2954 = vmax.f32 %v2922, 0.0
        %v2955 = vmax.f32 %v2923, 0.0
        %v2956 = vmax.f32 %v2924, 0.0
        %v2957 = vmax.f32 %v2925, 0.0
        %v2958 = vmax.f32 %v2926, 0.0
        %v2959 = vmax.f32 %v2927, 0.0
        %v2960 = vmax.f32 %v2928, 0.0
        %v2961 = vmax.f32 %v2929, 0.0
        %v2962 = vmax.f32 %v2930, 0.0
        %v2963 = vmax.f32 %v2931, 0.0
        %v2964 = vmax.f32 %v2932, 0.0
        %v2965 = vmax.f32 %v2933, 0.0
        %v2966 = vmax.f32 %v2934, 0.0
        %v2967 = vmax.f32 %v2935, 0.0
        %v2968 = vmax.f32 %v2936, 0.0
        %v2969 = vmax.f32 %v2937, 0.0
        %v2970 = vmax.f32 %v2938, 0.0
        %v2971 = vmax.f32 %v2939, 0.0
        %v2972 = vmax.f32 %v2940, 0.0
        %v2973 = vmax.f32 %v2941, 0.0
        %v2974 = vmax.f32 %v2942, 0.0
        %v2975 = vmax.f32 %v2943, 0.0
        %v2976 = vmax.f32 %v2944, 0.0
        %v2977 = vmax.f32 %v2945, 0.0
        %v2978 = vmax.f32 %v2946, 0.0
        %v2979 = vmax.f32 %v2947, 0.0
        %v2980 = vmax.f32 %v2948, 0.0
        %v2981 = vmax.f32 %v2949, 0.0
        %v2982 = vmax.f32 %v2950, 0.0
        %v2983 = vmax.f32 %v2951, 0.0
        %v2984 = vpack.c.bf16 %v2953, %v2952
        %v2985 = vpack.c.bf16 %v2955, %v2954
        %v2986 = vpack.c.bf16 %v2957, %v2956
        %v2987 = vpack.c.bf16 %v2959, %v2958
        %v2988 = vpack.c.bf16 %v2961, %v2960
        %v2989 = vpack.c.bf16 %v2963, %v2962
        %v2990 = vpack.c.bf16 %v2965, %v2964
        %v2991 = vpack.c.bf16 %v2967, %v2966
        %v2992 = vpack.c.bf16 %v2969, %v2968
        %v2993 = vpack.c.bf16 %v2971, %v2970
        %v2994 = vpack.c.bf16 %v2973, %v2972
        %v2995 = vpack.c.bf16 %v2975, %v2974
        %v2996 = vpack.c.bf16 %v2977, %v2976
        %v2997 = vpack.c.bf16 %v2979, %v2978
        %v2998 = vpack.c.bf16 %v2981, %v2980
        %v2999 = vpack.c.bf16 %v2983, %v2982
        %v3000 = vld [vmem:[%s5] sm:$0xf]
        %v3001 = vld [vmem:[%s5 + $0x4] sm:$0xf]
        %v3004 = vunpack.c.l.b16 %v3000
        %v3005 = vunpack.c.l.b16 %v3001
        %v3006 = vpack.c.b16 %v3005, %v3004
        %v3009 = vsel %vm841, %v2984, 0
        %v3012 = vsel %vm841, %v2985, 0
        %v3015 = vsel %vm841, %v2986, 0
        %v3018 = vsel %vm841, %v2987, 0
        %v3021 = vsel %vm841, %v2988, 0
        %v3024 = vsel %vm841, %v2989, 0
        %v3027 = vsel %vm841, %v2990, 0
        %v3030 = vsel %vm841, %v2991, 0
        %v3033 = vsel %vm841, %v2992, 0
        %v3036 = vsel %vm841, %v2993, 0
        %v3039 = vsel %vm841, %v2994, 0
        %v3042 = vsel %vm841, %v2995, 0
        %v3045 = vsel %vm841, %v2996, 0
        %v3048 = vsel %vm841, %v2997, 0
        %v3051 = vsel %vm841, %v2998, 0
        %v3054 = vsel %vm841, %v2999, 0
        %3056 = vmatprep.subr.bf16.mxu0 0
        %3057 = vmatpush1.bf16.msra.mxu0 %v3006
        %3058 = vmatprep.subr.bf16.mxu0 0
        %3059 = vmatpush1.bf16.msra.mxu0 0
        %3060 = vmatprep.subr.bf16.mxu0 0
        %3061 = vmatpush1.bf16.msra.mxu0 0
        %3062 = vmatprep.subr.bf16.mxu0 0
        %3063 = vmatpush1.bf16.msra.mxu0 0
        %3064 = vmatprep.subr.bf16.mxu0 0
        %3065 = vmatpush1.bf16.msra.mxu0 0
        %3066 = vmatprep.subr.bf16.mxu0 0
        %3067 = vmatpush1.bf16.msra.mxu0 0
        %3068 = vmatprep.subr.bf16.mxu0 0
        %3069 = vmatpush1.bf16.msra.mxu0 0
        %3070 = vmatprep.subr.bf16.mxu0 0
        %3071 = vmatpush1.bf16.msra.mxu0 0
        %3072 = vmatprep.subr.bf16.mxu0 0
        %3073 = vmatpush1.bf16.msra.mxu0 0
        %3074 = vmatprep.subr.bf16.mxu0 0
        %3075 = vmatpush1.bf16.msra.mxu0 0
        %3076 = vmatprep.subr.bf16.mxu0 0
        %3077 = vmatpush1.bf16.msra.mxu0 0
        %3078 = vmatprep.subr.bf16.mxu0 0
        %3079 = vmatpush1.bf16.msra.mxu0 0
        %3080 = vmatprep.subr.bf16.mxu0 0
        %3081 = vmatpush1.bf16.msra.mxu0 0
        %3082 = vmatprep.subr.bf16.mxu0 0
        %3083 = vmatpush1.bf16.msra.mxu0 0
        %3084 = vmatprep.subr.bf16.mxu0 0
        %3085 = vmatpush1.bf16.msra.mxu0 0
        %3086 = vmatprep.subr.bf16.mxu0 0
        %3087 = vmatpush1.bf16.msra.mxu0 0
        %3088 = vmatprep.mubr.bf16.mxu0 0
        %3089 = vmatmul.mubr.bf16.gmra.mrb[0].mxu0 %v3009
        %v3090 = vpop.f32.mrb[0].mxu0
        %v3091 = vadd.f32 0.0, %v3090
        %v3092 = vpop.f32.mrb[0].mxu0
        %v3093 = vpop.f32.mrb[0].mxu0
        %v3094 = vadd.f32 0.0, %v3093
        %v3095 = vpop.f32.mrb[0].mxu0
        %3096 = vmatprep.mubr.bf16.mxu0 0
        %3097 = vmatmul.mubr.bf16.gmra.mrb[0].mxu0 %v3012
        %v3098 = vpop.f32.mrb[0].mxu0
        %v3099 = vadd.f32 0.0, %v3098
        %v3100 = vpop.f32.mrb[0].mxu0
        %v3101 = vpop.f32.mrb[0].mxu0
        %v3102 = vadd.f32 0.0, %v3101
        %v3103 = vpop.f32.mrb[0].mxu0
        %3104 = vmatprep.mubr.bf16.mxu0 0
        %3105 = vmatmul.mubr.bf16.gmra.mrb[0].mxu0 %v3015
        %v3106 = vpop.f32.mrb[0].mxu0
        %v3107 = vadd.f32 0.0, %v3106
        %v3108 = vpop.f32.mrb[0].mxu0
        %v3109 = vpop.f32.mrb[0].mxu0
        %v3110 = vadd.f32 0.0, %v3109
        %v3111 = vpop.f32.mrb[0].mxu0
        %3112 = vmatprep.mubr.bf16.mxu0 0
        %3113 = vmatmul.mubr.bf16.gmra.mrb[0].mxu0 %v3018
        %v3114 = vpop.f32.mrb[0].mxu0
        %v3115 = vadd.f32 0.0, %v3114
        %v3116 = vpop.f32.mrb[0].mxu0
        %v3117 = vpop.f32.mrb[0].mxu0
        %v3118 = vadd.f32 0.0, %v3117
        %v3119 = vpop.f32.mrb[0].mxu0
        %3120 = vmatprep.mubr.bf16.mxu0 0
        %3121 = vmatmul.mubr.bf16.gmra.mrb[0].mxu0 %v3021
        %v3122 = vpop.f32.mrb[0].mxu0
        %v3123 = vadd.f32 0.0, %v3122
        %v3124 = vpop.f32.mrb[0].mxu0
        %v3125 = vpop.f32.mrb[0].mxu0
        %v3126 = vadd.f32 0.0, %v3125
        %v3127 = vpop.f32.mrb[0].mxu0
        %3128 = vmatprep.mubr.bf16.mxu0 0
        %3129 = vmatmul.mubr.bf16.gmra.mrb[0].mxu0 %v3024
        %v3130 = vpop.f32.mrb[0].mxu0
        %v3131 = vadd.f32 0.0, %v3130
        %v3132 = vpop.f32.mrb[0].mxu0
        %v3133 = vpop.f32.mrb[0].mxu0
        %v3134 = vadd.f32 0.0, %v3133
        %v3135 = vpop.f32.mrb[0].mxu0
        %3136 = vmatprep.mubr.bf16.mxu0 0
        %3137 = vmatmul.mubr.bf16.gmra.mrb[0].mxu0 %v3027
        %v3138 = vpop.f32.mrb[0].mxu0
        %v3139 = vadd.f32 0.0, %v3138
        %v3140 = vpop.f32.mrb[0].mxu0
        %v3141 = vpop.f32.mrb[0].mxu0
        %v3142 = vadd.f32 0.0, %v3141
        %v3143 = vpop.f32.mrb[0].mxu0
        %3144 = vmatprep.mubr.bf16.mxu0 0
        %3145 = vmatmul.mubr.bf16.gmra.mrb[0].mxu0 %v3030
        %v3146 = vpop.f32.mrb[0].mxu0
        %v3147 = vadd.f32 0.0, %v3146
        %v3148 = vpop.f32.mrb[0].mxu0
        %v3149 = vpop.f32.mrb[0].mxu0
        %v3150 = vadd.f32 0.0, %v3149
        %v3151 = vpop.f32.mrb[0].mxu0
        %3152 = vmatprep.mubr.bf16.mxu0 0
        %3153 = vmatmul.mubr.bf16.gmra.mrb[0].mxu0 %v3033
        %v3154 = vpop.f32.mrb[0].mxu0
        %v3155 = vadd.f32 0.0, %v3154
        %v3156 = vpop.f32.mrb[0].mxu0
        %v3157 = vpop.f32.mrb[0].mxu0
        %v3158 = vadd.f32 0.0, %v3157
        %v3159 = vpop.f32.mrb[0].mxu0
        %3160 = vmatprep.mubr.bf16.mxu0 0
        %3161 = vmatmul.mubr.bf16.gmra.mrb[0].mxu0 %v3036
        %v3162 = vpop.f32.mrb[0].mxu0
        %v3163 = vadd.f32 0.0, %v3162
        %v3164 = vpop.f32.mrb[0].mxu0
        %v3165 = vpop.f32.mrb[0].mxu0
        %v3166 = vadd.f32 0.0, %v3165
        %v3167 = vpop.f32.mrb[0].mxu0
        %3168 = vmatprep.mubr.bf16.mxu0 0
        %3169 = vmatmul.mubr.bf16.gmra.mrb[0].mxu0 %v3039
        %v3170 = vpop.f32.mrb[0].mxu0
        %v3171 = vadd.f32 0.0, %v3170
        %v3172 = vpop.f32.mrb[0].mxu0
        %v3173 = vpop.f32.mrb[0].mxu0
        %v3174 = vadd.f32 0.0, %v3173
        %v3175 = vpop.f32.mrb[0].mxu0
        %3176 = vmatprep.mubr.bf16.mxu0 0
        %3177 = vmatmul.mubr.bf16.gmra.mrb[0].mxu0 %v3042
        %v3178 = vpop.f32.mrb[0].mxu0
        %v3179 = vadd.f32 0.0, %v3178
        %v3180 = vpop.f32.mrb[0].mxu0
        %v3181 = vpop.f32.mrb[0].mxu0
        %v3182 = vadd.f32 0.0, %v3181
        %v3183 = vpop.f32.mrb[0].mxu0
        %3184 = vmatprep.mubr.bf16.mxu0 0
        %3185 = vmatmul.mubr.bf16.gmra.mrb[0].mxu0 %v3045
        %v3186 = vpop.f32.mrb[0].mxu0
        %v3187 = vadd.f32 0.0, %v3186
        %v3188 = vpop.f32.mrb[0].mxu0
        %v3189 = vpop.f32.mrb[0].mxu0
        %v3190 = vadd.f32 0.0, %v3189
        %v3191 = vpop.f32.mrb[0].mxu0
        %3192 = vmatprep.mubr.bf16.mxu0 0
        %3193 = vmatmul.mubr.bf16.gmra.mrb[0].mxu0 %v3048
        %v3194 = vpop.f32.mrb[0].mxu0
        %v3195 = vadd.f32 0.0, %v3194
        %v3196 = vpop.f32.mrb[0].mxu0
        %v3197 = vpop.f32.mrb[0].mxu0
        %v3198 = vadd.f32 0.0, %v3197
        %v3199 = vpop.f32.mrb[0].mxu0
        %3200 = vmatprep.mubr.bf16.mxu0 0
        %3201 = vmatmul.mubr.bf16.gmra.mrb[0].mxu0 %v3051
        %v3202 = vpop.f32.mrb[0].mxu0
        %v3203 = vadd.f32 0.0, %v3202
        %v3204 = vpop.f32.mrb[0].mxu0
        %v3205 = vpop.f32.mrb[0].mxu0
        %v3206 = vadd.f32 0.0, %v3205
        %v3207 = vpop.f32.mrb[0].mxu0
        %3208 = vmatprep.mubr.bf16.mxu0 0
        %3209 = vmatmul.mubr.bf16.gmra.mrb[0].mxu0 %v3054
        %v3210 = vpop.f32.mrb[0].mxu0
        %v3211 = vadd.f32 0.0, %v3210
        %v3212 = vpop.f32.mrb[0].mxu0
        %v3213 = vpop.f32.mrb[0].mxu0
        %v3214 = vadd.f32 0.0, %v3213
        %v3215 = vpop.f32.mrb[0].mxu0
        %3216 = vdwg.mxu0
        %v3217 = vld [vmem:[%s2 + $0x2] sm:$0x1]
        %v3218 = vld [vmem:[%s2 + $0x3] sm:$0x1]
        %v3219 = vlaneseq
        %v3220 = vshrl.u32 %v3219, 7
        %v3221 = vsub.s32 0, %v3220
        %v3222 = vrot.slane %v3217, %v3221
        %v3223 = vmul.f32 %v3091, %v3222
        %v3224 = vmul.f32 %v3094, %v3222
        %v3225 = vmul.f32 %v3099, %v3222
        %v3226 = vmul.f32 %v3102, %v3222
        %v3227 = vmul.f32 %v3107, %v3222
        %v3228 = vmul.f32 %v3110, %v3222
        %v3229 = vmul.f32 %v3115, %v3222
        %v3230 = vmul.f32 %v3118, %v3222
        %v3231 = vmul.f32 %v3123, %v3222
        %v3232 = vmul.f32 %v3126, %v3222
        %v3233 = vmul.f32 %v3131, %v3222
        %v3234 = vmul.f32 %v3134, %v3222
        %v3235 = vmul.f32 %v3139, %v3222
        %v3236 = vmul.f32 %v3142, %v3222
        %v3237 = vmul.f32 %v3147, %v3222
        %v3238 = vmul.f32 %v3150, %v3222
        %v3239 = vmul.f32 %v3155, %v3222
        %v3240 = vmul.f32 %v3158, %v3222
        %v3241 = vmul.f32 %v3163, %v3222
        %v3242 = vmul.f32 %v3166, %v3222
        %v3243 = vmul.f32 %v3171, %v3222
        %v3244 = vmul.f32 %v3174, %v3222
        %v3245 = vmul.f32 %v3179, %v3222
        %v3246 = vmul.f32 %v3182, %v3222
        %v3247 = vmul.f32 %v3187, %v3222
        %v3248 = vmul.f32 %v3190, %v3222
        %v3249 = vmul.f32 %v3195, %v3222
        %v3250 = vmul.f32 %v3198, %v3222
        %v3251 = vmul.f32 %v3203, %v3222
        %v3252 = vmul.f32 %v3206, %v3222
        %v3253 = vmul.f32 %v3211, %v3222
        %v3254 = vmul.f32 %v3214, %v3222
        %v3255 = vlaneseq
        %v3256 = vshrl.u32 %v3255, 7
        %v3257 = vsub.s32 0, %v3256
        %v3258 = vrot.slane %v3218, %v3257
        %v3259 = vadd.f32 %v3223, %v3258
        %v3260 = vadd.f32 %v3224, %v3258
        %v3261 = vadd.f32 %v3225, %v3258
        %v3262 = vadd.f32 %v3226, %v3258
        %v3263 = vadd.f32 %v3227, %v3258
        %v3264 = vadd.f32 %v3228, %v3258
        %v3265 = vadd.f32 %v3229, %v3258
        %v3266 = vadd.f32 %v3230, %v3258
        %v3267 = vadd.f32 %v3231, %v3258
        %v3268 = vadd.f32 %v3232, %v3258
        %v3269 = vadd.f32 %v3233, %v3258
        %v3270 = vadd.f32 %v3234, %v3258
        %v3271 = vadd.f32 %v3235, %v3258
        %v3272 = vadd.f32 %v3236, %v3258
        %v3273 = vadd.f32 %v3237, %v3258
        %v3274 = vadd.f32 %v3238, %v3258
        %v3275 = vadd.f32 %v3239, %v3258
        %v3276 = vadd.f32 %v3240, %v3258
        %v3277 = vadd.f32 %v3241, %v3258
        %v3278 = vadd.f32 %v3242, %v3258
        %v3279 = vadd.f32 %v3243, %v3258
        %v3280 = vadd.f32 %v3244, %v3258
        %v3281 = vadd.f32 %v3245, %v3258
        %v3282 = vadd.f32 %v3246, %v3258
        %v3283 = vadd.f32 %v3247, %v3258
        %v3284 = vadd.f32 %v3248, %v3258
        %v3285 = vadd.f32 %v3249, %v3258
        %v3286 = vadd.f32 %v3250, %v3258
        %v3287 = vadd.f32 %v3251, %v3258
        %v3288 = vadd.f32 %v3252, %v3258
        %v3289 = vadd.f32 %v3253, %v3258
        %v3290 = vadd.f32 %v3254, %v3258
        %v3291 = vmax.f32 %v3259, 0.0
        %v3292 = vmax.f32 %v3260, 0.0
        %v3293 = vmax.f32 %v3261, 0.0
        %v3294 = vmax.f32 %v3262, 0.0
        %v3295 = vmax.f32 %v3263, 0.0
        %v3296 = vmax.f32 %v3264, 0.0
        %v3297 = vmax.f32 %v3265, 0.0
        %v3298 = vmax.f32 %v3266, 0.0
        %v3299 = vmax.f32 %v3267, 0.0
        %v3300 = vmax.f32 %v3268, 0.0
        %v3301 = vmax.f32 %v3269, 0.0
        %v3302 = vmax.f32 %v3270, 0.0
        %v3303 = vmax.f32 %v3271, 0.0
        %v3304 = vmax.f32 %v3272, 0.0
        %v3305 = vmax.f32 %v3273, 0.0
        %v3306 = vmax.f32 %v3274, 0.0
        %v3307 = vmax.f32 %v3275, 0.0
        %v3308 = vmax.f32 %v3276, 0.0
        %v3309 = vmax.f32 %v3277, 0.0
        %v3310 = vmax.f32 %v3278, 0.0
        %v3311 = vmax.f32 %v3279, 0.0
        %v3312 = vmax.f32 %v3280, 0.0
        %v3313 = vmax.f32 %v3281, 0.0
        %v3314 = vmax.f32 %v3282, 0.0
        %v3315 = vmax.f32 %v3283, 0.0
        %v3316 = vmax.f32 %v3284, 0.0
        %v3317 = vmax.f32 %v3285, 0.0
        %v3318 = vmax.f32 %v3286, 0.0
        %v3319 = vmax.f32 %v3287, 0.0
        %v3320 = vmax.f32 %v3288, 0.0
        %v3321 = vmax.f32 %v3289, 0.0
        %v3322 = vmax.f32 %v3290, 0.0
        %v3323 = vpack.c.bf16 %v3292, %v3291
        %v3324 = vpack.c.bf16 %v3294, %v3293
        %v3325 = vpack.c.bf16 %v3296, %v3295
        %v3326 = vpack.c.bf16 %v3298, %v3297
        %v3327 = vpack.c.bf16 %v3300, %v3299
        %v3328 = vpack.c.bf16 %v3302, %v3301
        %v3329 = vpack.c.bf16 %v3304, %v3303
        %v3330 = vpack.c.bf16 %v3306, %v3305
        %v3331 = vpack.c.bf16 %v3308, %v3307
        %v3332 = vpack.c.bf16 %v3310, %v3309
        %v3333 = vpack.c.bf16 %v3312, %v3311
        %v3334 = vpack.c.bf16 %v3314, %v3313
        %v3335 = vpack.c.bf16 %v3316, %v3315
        %v3336 = vpack.c.bf16 %v3318, %v3317
        %v3337 = vpack.c.bf16 %v3320, %v3319
        %v3338 = vpack.c.bf16 %v3322, %v3321
        %s3339 = scalar_lea.vmem %s3, 8
        %v3340 = vld [vmem:[%s3339] sm:$0xf]
        %v3341 = vld [vmem:[%s3339 + $0x4] sm:$0xf]
        %v3344 = vunpack.c.l.b16 %v3340
        %v3345 = vunpack.c.l.b16 %v3341
        %v3346 = vpack.c.b16 %v3345, %v3344
        %v3349 = vsel %vm841, %v3323, 0
        %v3352 = vsel %vm841, %v3324, 0
        %v3355 = vsel %vm841, %v3325, 0
        %v3358 = vsel %vm841, %v3326, 0
        %v3361 = vsel %vm841, %v3327, 0
        %v3364 = vsel %vm841, %v3328, 0
        %v3367 = vsel %vm841, %v3329, 0
        %v3370 = vsel %vm841, %v3330, 0
        %v3373 = vsel %vm841, %v3331, 0
        %v3376 = vsel %vm841, %v3332, 0
        %v3379 = vsel %vm841, %v3333, 0
        %v3382 = vsel %vm841, %v3334, 0
        %v3385 = vsel %vm841, %v3335, 0
        %v3388 = vsel %vm841, %v3336, 0
        %v3391 = vsel %vm841, %v3337, 0
        %v3394 = vsel %vm841, %v3338, 0
        %3396 = vmatprep.subr.bf16.mxu0 0
        %3397 = vmatpush1.bf16.msra.mxu0 %v3346
        %3398 = vmatprep.subr.bf16.mxu0 0
        %3399 = vmatpush1.bf16.msra.mxu0 0
        %3400 = vmatprep.subr.bf16.mxu0 0
        %3401 = vmatpush1.bf16.msra.mxu0 0
        %3402 = vmatprep.subr.bf16.mxu0 0
        %3403 = vmatpush1.bf16.msra.mxu0 0
        %3404 = vmatprep.subr.bf16.mxu0 0
        %3405 = vmatpush1.bf16.msra.mxu0 0
        %3406 = vmatprep.subr.bf16.mxu0 0
        %3407 = vmatpush1.bf16.msra.mxu0 0
        %3408 = vmatprep.subr.bf16.mxu0 0
        %3409 = vmatpush1.bf16.msra.mxu0 0
        %3410 = vmatprep.subr.bf16.mxu0 0
        %3411 = vmatpush1.bf16.msra.mxu0 0
        %3412 = vmatprep.subr.bf16.mxu0 0
        %3413 = vmatpush1.bf16.msra.mxu0 0
        %3414 = vmatprep.subr.bf16.mxu0 0
        %3415 = vmatpush1.bf16.msra.mxu0 0
        %3416 = vmatprep.subr.bf16.mxu0 0
        %3417 = vmatpush1.bf16.msra.mxu0 0
        %3418 = vmatprep.subr.bf16.mxu0 0
        %3419 = vmatpush1.bf16.msra.mxu0 0
        %3420 = vmatprep.subr.bf16.mxu0 0
        %3421 = vmatpush1.bf16.msra.mxu0 0
        %3422 = vmatprep.subr.bf16.mxu0 0
        %3423 = vmatpush1.bf16.msra.mxu0 0
        %3424 = vmatprep.subr.bf16.mxu0 0
        %3425 = vmatpush1.bf16.msra.mxu0 0
        %3426 = vmatprep.subr.bf16.mxu0 0
        %3427 = vmatpush1.bf16.msra.mxu0 0
        %3428 = vmatprep.mubr.bf16.mxu0 0
        %3429 = vmatmul.mubr.bf16.gmra.mrb[0].mxu0 %v3349
        %v3430 = vpop.f32.mrb[0].mxu0
        %v3431 = vadd.f32 0.0, %v3430
        %v3432 = vpop.f32.mrb[0].mxu0
        %v3433 = vpop.f32.mrb[0].mxu0
        %v3434 = vadd.f32 0.0, %v3433
        %v3435 = vpop.f32.mrb[0].mxu0
        %3436 = vmatprep.mubr.bf16.mxu0 0
        %3437 = vmatmul.mubr.bf16.gmra.mrb[0].mxu0 %v3352
        %v3438 = vpop.f32.mrb[0].mxu0
        %v3439 = vadd.f32 0.0, %v3438
        %v3440 = vpop.f32.mrb[0].mxu0
        %v3441 = vpop.f32.mrb[0].mxu0
        %v3442 = vadd.f32 0.0, %v3441
        %v3443 = vpop.f32.mrb[0].mxu0
        %3444 = vmatprep.mubr.bf16.mxu0 0
        %3445 = vmatmul.mubr.bf16.gmra.mrb[0].mxu0 %v3355
        %v3446 = vpop.f32.mrb[0].mxu0
        %v3447 = vadd.f32 0.0, %v3446
        %v3448 = vpop.f32.mrb[0].mxu0
        %v3449 = vpop.f32.mrb[0].mxu0
        %v3450 = vadd.f32 0.0, %v3449
        %v3451 = vpop.f32.mrb[0].mxu0
        %3452 = vmatprep.mubr.bf16.mxu0 0
        %3453 = vmatmul.mubr.bf16.gmra.mrb[0].mxu0 %v3358
        %v3454 = vpop.f32.mrb[0].mxu0
        %v3455 = vadd.f32 0.0, %v3454
        %v3456 = vpop.f32.mrb[0].mxu0
        %v3457 = vpop.f32.mrb[0].mxu0
        %v3458 = vadd.f32 0.0, %v3457
        %v3459 = vpop.f32.mrb[0].mxu0
        %3460 = vmatprep.mubr.bf16.mxu0 0
        %3461 = vmatmul.mubr.bf16.gmra.mrb[0].mxu0 %v3361
        %v3462 = vpop.f32.mrb[0].mxu0
        %v3463 = vadd.f32 0.0, %v3462
        %v3464 = vpop.f32.mrb[0].mxu0
        %v3465 = vpop.f32.mrb[0].mxu0
        %v3466 = vadd.f32 0.0, %v3465
        %v3467 = vpop.f32.mrb[0].mxu0
        %3468 = vmatprep.mubr.bf16.mxu0 0
        %3469 = vmatmul.mubr.bf16.gmra.mrb[0].mxu0 %v3364
        %v3470 = vpop.f32.mrb[0].mxu0
        %v3471 = vadd.f32 0.0, %v3470
        %v3472 = vpop.f32.mrb[0].mxu0
        %v3473 = vpop.f32.mrb[0].mxu0
        %v3474 = vadd.f32 0.0, %v3473
        %v3475 = vpop.f32.mrb[0].mxu0
        %3476 = vmatprep.mubr.bf16.mxu0 0
        %3477 = vmatmul.mubr.bf16.gmra.mrb[0].mxu0 %v3367
        %v3478 = vpop.f32.mrb[0].mxu0
        %v3479 = vadd.f32 0.0, %v3478
        %v3480 = vpop.f32.mrb[0].mxu0
        %v3481 = vpop.f32.mrb[0].mxu0
        %v3482 = vadd.f32 0.0, %v3481
        %v3483 = vpop.f32.mrb[0].mxu0
        %3484 = vmatprep.mubr.bf16.mxu0 0
        %3485 = vmatmul.mubr.bf16.gmra.mrb[0].mxu0 %v3370
        %v3486 = vpop.f32.mrb[0].mxu0
        %v3487 = vadd.f32 0.0, %v3486
        %v3488 = vpop.f32.mrb[0].mxu0
        %v3489 = vpop.f32.mrb[0].mxu0
        %v3490 = vadd.f32 0.0, %v3489
        %v3491 = vpop.f32.mrb[0].mxu0
        %3492 = vmatprep.mubr.bf16.mxu0 0
        %3493 = vmatmul.mubr.bf16.gmra.mrb[0].mxu0 %v3373
        %v3494 = vpop.f32.mrb[0].mxu0
        %v3495 = vadd.f32 0.0, %v3494
        %v3496 = vpop.f32.mrb[0].mxu0
        %v3497 = vpop.f32.mrb[0].mxu0
        %v3498 = vadd.f32 0.0, %v3497
        %v3499 = vpop.f32.mrb[0].mxu0
        %3500 = vmatprep.mubr.bf16.mxu0 0
        %3501 = vmatmul.mubr.bf16.gmra.mrb[0].mxu0 %v3376
        %v3502 = vpop.f32.mrb[0].mxu0
        %v3503 = vadd.f32 0.0, %v3502
        %v3504 = vpop.f32.mrb[0].mxu0
        %v3505 = vpop.f32.mrb[0].mxu0
        %v3506 = vadd.f32 0.0, %v3505
        %v3507 = vpop.f32.mrb[0].mxu0
        %3508 = vmatprep.mubr.bf16.mxu0 0
        %3509 = vmatmul.mubr.bf16.gmra.mrb[0].mxu0 %v3379
        %v3510 = vpop.f32.mrb[0].mxu0
        %v3511 = vadd.f32 0.0, %v3510
        %v3512 = vpop.f32.mrb[0].mxu0
        %v3513 = vpop.f32.mrb[0].mxu0
        %v3514 = vadd.f32 0.0, %v3513
        %v3515 = vpop.f32.mrb[0].mxu0
        %3516 = vmatprep.mubr.bf16.mxu0 0
        %3517 = vmatmul.mubr.bf16.gmra.mrb[0].mxu0 %v3382
        %v3518 = vpop.f32.mrb[0].mxu0
        %v3519 = vadd.f32 0.0, %v3518
        %v3520 = vpop.f32.mrb[0].mxu0
        %v3521 = vpop.f32.mrb[0].mxu0
        %v3522 = vadd.f32 0.0, %v3521
        %v3523 = vpop.f32.mrb[0].mxu0
        %3524 = vmatprep.mubr.bf16.mxu0 0
        %3525 = vmatmul.mubr.bf16.gmra.mrb[0].mxu0 %v3385
        %v3526 = vpop.f32.mrb[0].mxu0
        %v3527 = vadd.f32 0.0, %v3526
        %v3528 = vpop.f32.mrb[0].mxu0
        %v3529 = vpop.f32.mrb[0].mxu0
        %v3530 = vadd.f32 0.0, %v3529
        %v3531 = vpop.f32.mrb[0].mxu0
        %3532 = vmatprep.mubr.bf16.mxu0 0
        %3533 = vmatmul.mubr.bf16.gmra.mrb[0].mxu0 %v3388
        %v3534 = vpop.f32.mrb[0].mxu0
        %v3535 = vadd.f32 0.0, %v3534
        %v3536 = vpop.f32.mrb[0].mxu0
        %v3537 = vpop.f32.mrb[0].mxu0
        %v3538 = vadd.f32 0.0, %v3537
        %v3539 = vpop.f32.mrb[0].mxu0
        %3540 = vmatprep.mubr.bf16.mxu0 0
        %3541 = vmatmul.mubr.bf16.gmra.mrb[0].mxu0 %v3391
        %v3542 = vpop.f32.mrb[0].mxu0
        %v3543 = vadd.f32 0.0, %v3542
        %v3544 = vpop.f32.mrb[0].mxu0
        %v3545 = vpop.f32.mrb[0].mxu0
        %v3546 = vadd.f32 0.0, %v3545
        %v3547 = vpop.f32.mrb[0].mxu0
        %3548 = vmatprep.mubr.bf16.mxu0 0
        %3549 = vmatmul.mubr.bf16.gmra.mrb[0].mxu0 %v3394
        %v3550 = vpop.f32.mrb[0].mxu0
        %v3551 = vadd.f32 0.0, %v3550
        %v3552 = vpop.f32.mrb[0].mxu0
        %v3553 = vpop.f32.mrb[0].mxu0
        %v3554 = vadd.f32 0.0, %v3553
        %v3555 = vpop.f32.mrb[0].mxu0
        %3556 = vdwg.mxu0
        %3589 = vrot.lane.b32.xlu0 %v3431, 96
        %v3590 = vpop.permute.xlu0 %3589
        %3591 = vrot.lane.b32.xlu0 %v3434, 96
        %v3592 = vpop.permute.xlu0 %3591
        %3593 = vrot.lane.b32.xlu0 %v3439, 96
        %v3594 = vpop.permute.xlu0 %3593
        %3595 = vrot.lane.b32.xlu0 %v3442, 96
        %v3596 = vpop.permute.xlu0 %3595
        %3597 = vrot.lane.b32.xlu0 %v3447, 96
        %v3598 = vpop.permute.xlu0 %3597
        %3599 = vrot.lane.b32.xlu0 %v3450, 96
        %v3600 = vpop.permute.xlu0 %3599
        %3601 = vrot.lane.b32.xlu0 %v3455, 96
        %v3602 = vpop.permute.xlu0 %3601
        %3603 = vrot.lane.b32.xlu0 %v3458, 96
        %v3604 = vpop.permute.xlu0 %3603
        %3605 = vrot.lane.b32.xlu0 %v3463, 96
        %v3606 = vpop.permute.xlu0 %3605
        %3607 = vrot.lane.b32.xlu0 %v3466, 96
        %v3608 = vpop.permute.xlu0 %3607
        %3609 = vrot.lane.b32.xlu0 %v3471, 96
        %v3610 = vpop.permute.xlu0 %3609
        %3611 = vrot.lane.b32.xlu0 %v3474, 96
        %v3612 = vpop.permute.xlu0 %3611
        %3613 = vrot.lane.b32.xlu0 %v3479, 96
        %v3614 = vpop.permute.xlu0 %3613
        %3615 = vrot.lane.b32.xlu0 %v3482, 96
        %v3616 = vpop.permute.xlu0 %3615
        %3617 = vrot.lane.b32.xlu0 %v3487, 96
        %v3618 = vpop.permute.xlu0 %3617
        %3619 = vrot.lane.b32.xlu0 %v3490, 96
        %v3620 = vpop.permute.xlu0 %3619
        %3621 = vrot.lane.b32.xlu0 %v3495, 96
        %v3622 = vpop.permute.xlu0 %3621
        %3623 = vrot.lane.b32.xlu0 %v3498, 96
        %v3624 = vpop.permute.xlu0 %3623
        %3625 = vrot.lane.b32.xlu0 %v3503, 96
        %v3626 = vpop.permute.xlu0 %3625
        %3627 = vrot.lane.b32.xlu0 %v3506, 96
        %v3628 = vpop.permute.xlu0 %3627
        %3629 = vrot.lane.b32.xlu0 %v3511, 96
        %v3630 = vpop.permute.xlu0 %3629
        %3631 = vrot.lane.b32.xlu0 %v3514, 96
        %v3632 = vpop.permute.xlu0 %3631
        %3633 = vrot.lane.b32.xlu0 %v3519, 96
        %v3634 = vpop.permute.xlu0 %3633
        %3635 = vrot.lane.b32.xlu0 %v3522, 96
        %v3636 = vpop.permute.xlu0 %3635
        %3637 = vrot.lane.b32.xlu0 %v3527, 96
        %v3638 = vpop.permute.xlu0 %3637
        %3639 = vrot.lane.b32.xlu0 %v3530, 96
        %v3640 = vpop.permute.xlu0 %3639
        %3641 = vrot.lane.b32.xlu0 %v3535, 96
        %v3642 = vpop.permute.xlu0 %3641
        %3643 = vrot.lane.b32.xlu0 %v3538, 96
        %v3644 = vpop.permute.xlu0 %3643
        %3645 = vrot.lane.b32.xlu0 %v3543, 96
        %v3646 = vpop.permute.xlu0 %3645
        %3647 = vrot.lane.b32.xlu0 %v3546, 96
        %v3648 = vpop.permute.xlu0 %3647
        %3649 = vrot.lane.b32.xlu0 %v3551, 96
        %v3650 = vpop.permute.xlu0 %3649
        %3651 = vrot.lane.b32.xlu0 %v3554, 96
        %v3652 = vpop.permute.xlu0 %3651
        %3685 = vst.msk [vmem:[%s1179 + $0x1] sm:$0xff] %vm310, %v3590
        %3686 = vst.msk [vmem:[%s1179 + $0x9] sm:$0xff] %vm310, %v3592
        %3687 = vst.msk [vmem:[%s1179 + $0x19] sm:$0xff] %vm310, %v3594
        %3688 = vst.msk [vmem:[%s1179 + $0x21] sm:$0xff] %vm310, %v3596
        %3689 = vst.msk [vmem:[%s1179 + $0x31] sm:$0xff] %vm310, %v3598
        %3690 = vst.msk [vmem:[%s1179 + $0x39] sm:$0xff] %vm310, %v3600
        %3691 = vst.msk [vmem:[%s1179 + $0x49] sm:$0xff] %vm310, %v3602
        %3692 = vst.msk [vmem:[%s1179 + $0x51] sm:$0xff] %vm310, %v3604
        %3693 = vst.msk [vmem:[%s1179 + $0x61] sm:$0xff] %vm310, %v3606
        %3694 = vst.msk [vmem:[%s1179 + $0x69] sm:$0xff] %vm310, %v3608
        %3695 = vst.msk [vmem:[%s1179 + $0x79] sm:$0xff] %vm310, %v3610
        %3696 = vst.msk [vmem:[%s1179 + $0x81] sm:$0xff] %vm310, %v3612
        %3697 = vst.msk [vmem:[%s1179 + $0x91] sm:$0xff] %vm310, %v3614
        %3698 = vst.msk [vmem:[%s1179 + $0x99] sm:$0xff] %vm310, %v3616
        %3699 = vst.msk [vmem:[%s1179 + $0xa9] sm:$0xff] %vm310, %v3618
        %3700 = vst.msk [vmem:[%s1179 + $0xb1] sm:$0xff] %vm310, %v3620
        %3701 = vst.msk [vmem:[%s1179 + $0xc1] sm:$0xff] %vm310, %v3622
        %3702 = vst.msk [vmem:[%s1179 + $0xc9] sm:$0xff] %vm310, %v3624
        %3703 = vst.msk [vmem:[%s1179 + $0xd9] sm:$0xff] %vm310, %v3626
        %3704 = vst.msk [vmem:[%s1179 + $0xe1] sm:$0xff] %vm310, %v3628
        %3705 = vst.msk [vmem:[%s1179 + $0xf1] sm:$0xff] %vm310, %v3630
        %3706 = vst.msk [vmem:[%s1179 + $0xf9] sm:$0xff] %vm310, %v3632
        %3707 = vst.msk [vmem:[%s1179 + $0x109] sm:$0xff] %vm310, %v3634
        %3708 = vst.msk [vmem:[%s1179 + $0x111] sm:$0xff] %vm310, %v3636
        %3709 = vst.msk [vmem:[%s1179 + $0x121] sm:$0xff] %vm310, %v3638
        %3710 = vst.msk [vmem:[%s1179 + $0x129] sm:$0xff] %vm310, %v3640
        %3711 = vst.msk [vmem:[%s1179 + $0x139] sm:$0xff] %vm310, %v3642
        %3712 = vst.msk [vmem:[%s1179 + $0x141] sm:$0xff] %vm310, %v3644
        %3713 = vst.msk [vmem:[%s1179 + $0x151] sm:$0xff] %vm310, %v3646
        %3714 = vst.msk [vmem:[%s1179 + $0x159] sm:$0xff] %vm310, %v3648
        %3715 = vst.msk [vmem:[%s1179 + $0x169] sm:$0xff] %vm310, %v3650
        %3716 = vst.msk [vmem:[%s1179 + $0x171] sm:$0xff] %vm310, %v3652
        %v3717 = vld [vmem:[%s1212 + $0x2] sm:$0xff]
        %v3718 = vld [vmem:[%s1212 + $0xa] sm:$0xff]
        %v3719 = vld [vmem:[%s1212 + $0x1a] sm:$0xff]
        %v3720 = vld [vmem:[%s1212 + $0x22] sm:$0xff]
        %v3721 = vld [vmem:[%s1212 + $0x32] sm:$0xff]
        %v3722 = vld [vmem:[%s1212 + $0x3a] sm:$0xff]
        %v3723 = vld [vmem:[%s1212 + $0x4a] sm:$0xff]
        %v3724 = vld [vmem:[%s1212 + $0x52] sm:$0xff]
        %v3725 = vld [vmem:[%s1212 + $0x62] sm:$0xff]
        %v3726 = vld [vmem:[%s1212 + $0x6a] sm:$0xff]
        %v3727 = vld [vmem:[%s1212 + $0x7a] sm:$0xff]
        %v3728 = vld [vmem:[%s1212 + $0x82] sm:$0xff]
        %v3729 = vld [vmem:[%s1212 + $0x92] sm:$0xff]
        %v3730 = vld [vmem:[%s1212 + $0x9a] sm:$0xff]
        %v3731 = vld [vmem:[%s1212 + $0xaa] sm:$0xff]
        %v3732 = vld [vmem:[%s1212 + $0xb2] sm:$0xff]
        %v3733 = vld [vmem:[%s1212 + $0xc2] sm:$0xff]
        %v3734 = vld [vmem:[%s1212 + $0xca] sm:$0xff]
        %v3735 = vld [vmem:[%s1212 + $0xda] sm:$0xff]
        %v3736 = vld [vmem:[%s1212 + $0xe2] sm:$0xff]
        %v3737 = vld [vmem:[%s1212 + $0xf2] sm:$0xff]
        %v3738 = vld [vmem:[%s1212 + $0xfa] sm:$0xff]
        %v3739 = vld [vmem:[%s1212 + $0x10a] sm:$0xff]
        %v3740 = vld [vmem:[%s1212 + $0x112] sm:$0xff]
        %v3741 = vld [vmem:[%s1212 + $0x122] sm:$0xff]
        %v3742 = vld [vmem:[%s1212 + $0x12a] sm:$0xff]
        %v3743 = vld [vmem:[%s1212 + $0x13a] sm:$0xff]
        %v3744 = vld [vmem:[%s1212 + $0x142] sm:$0xff]
        %v3745 = vld [vmem:[%s1212 + $0x152] sm:$0xff]
        %v3746 = vld [vmem:[%s1212 + $0x15a] sm:$0xff]
        %v3747 = vld [vmem:[%s1212 + $0x16a] sm:$0xff]
        %v3748 = vld [vmem:[%s1212 + $0x172] sm:$0xff]
        %v3749 = vadd.f32 %v3717, %v3431
        %v3750 = vadd.f32 %v3718, %v3434
        %v3751 = vadd.f32 %v3719, %v3439
        %v3752 = vadd.f32 %v3720, %v3442
        %v3753 = vadd.f32 %v3721, %v3447
        %v3754 = vadd.f32 %v3722, %v3450
        %v3755 = vadd.f32 %v3723, %v3455
        %v3756 = vadd.f32 %v3724, %v3458
        %v3757 = vadd.f32 %v3725, %v3463
        %v3758 = vadd.f32 %v3726, %v3466
        %v3759 = vadd.f32 %v3727, %v3471
        %v3760 = vadd.f32 %v3728, %v3474
        %v3761 = vadd.f32 %v3729, %v3479
        %v3762 = vadd.f32 %v3730, %v3482
        %v3763 = vadd.f32 %v3731, %v3487
        %v3764 = vadd.f32 %v3732, %v3490
        %v3765 = vadd.f32 %v3733, %v3495
        %v3766 = vadd.f32 %v3734, %v3498
        %v3767 = vadd.f32 %v3735, %v3503
        %v3768 = vadd.f32 %v3736, %v3506
        %v3769 = vadd.f32 %v3737, %v3511
        %v3770 = vadd.f32 %v3738, %v3514
        %v3771 = vadd.f32 %v3739, %v3519
        %v3772 = vadd.f32 %v3740, %v3522
        %v3773 = vadd.f32 %v3741, %v3527
        %v3774 = vadd.f32 %v3742, %v3530
        %v3775 = vadd.f32 %v3743, %v3535
        %v3776 = vadd.f32 %v3744, %v3538
        %v3777 = vadd.f32 %v3745, %v3543
        %v3778 = vadd.f32 %v3746, %v3546
        %v3779 = vadd.f32 %v3747, %v3551
        %v3780 = vadd.f32 %v3748, %v3554
        %3781 = vst.msk [vmem:[%s1212 + $0x2] sm:$0xff] %vm310, %v3749
        %3782 = vst.msk [vmem:[%s1212 + $0xa] sm:$0xff] %vm310, %v3750
        %3783 = vst.msk [vmem:[%s1212 + $0x1a] sm:$0xff] %vm310, %v3751
        %3784 = vst.msk [vmem:[%s1212 + $0x22] sm:$0xff] %vm310, %v3752
        %3785 = vst.msk [vmem:[%s1212 + $0x32] sm:$0xff] %vm310, %v3753
        %3786 = vst.msk [vmem:[%s1212 + $0x3a] sm:$0xff] %vm310, %v3754
        %3787 = vst.msk [vmem:[%s1212 + $0x4a] sm:$0xff] %vm310, %v3755
        %3788 = vst.msk [vmem:[%s1212 + $0x52] sm:$0xff] %vm310, %v3756
        %3789 = vst.msk [vmem:[%s1212 + $0x62] sm:$0xff] %vm310, %v3757
        %3790 = vst.msk [vmem:[%s1212 + $0x6a] sm:$0xff] %vm310, %v3758
        %3791 = vst.msk [vmem:[%s1212 + $0x7a] sm:$0xff] %vm310, %v3759
        %3792 = vst.msk [vmem:[%s1212 + $0x82] sm:$0xff] %vm310, %v3760
        %3793 = vst.msk [vmem:[%s1212 + $0x92] sm:$0xff] %vm310, %v3761
        %3794 = vst.msk [vmem:[%s1212 + $0x9a] sm:$0xff] %vm310, %v3762
        %3795 = vst.msk [vmem:[%s1212 + $0xaa] sm:$0xff] %vm310, %v3763
        %3796 = vst.msk [vmem:[%s1212 + $0xb2] sm:$0xff] %vm310, %v3764
        %3797 = vst.msk [vmem:[%s1212 + $0xc2] sm:$0xff] %vm310, %v3765
        %3798 = vst.msk [vmem:[%s1212 + $0xca] sm:$0xff] %vm310, %v3766
        %3799 = vst.msk [vmem:[%s1212 + $0xda] sm:$0xff] %vm310, %v3767
        %3800 = vst.msk [vmem:[%s1212 + $0xe2] sm:$0xff] %vm310, %v3768
        %3801 = vst.msk [vmem:[%s1212 + $0xf2] sm:$0xff] %vm310, %v3769
        %3802 = vst.msk [vmem:[%s1212 + $0xfa] sm:$0xff] %vm310, %v3770
        %3803 = vst.msk [vmem:[%s1212 + $0x10a] sm:$0xff] %vm310, %v3771
        %3804 = vst.msk [vmem:[%s1212 + $0x112] sm:$0xff] %vm310, %v3772
        %3805 = vst.msk [vmem:[%s1212 + $0x122] sm:$0xff] %vm310, %v3773
        %3806 = vst.msk [vmem:[%s1212 + $0x12a] sm:$0xff] %vm310, %v3774
        %3807 = vst.msk [vmem:[%s1212 + $0x13a] sm:$0xff] %vm310, %v3775
        %3808 = vst.msk [vmem:[%s1212 + $0x142] sm:$0xff] %vm310, %v3776
        %3809 = vst.msk [vmem:[%s1212 + $0x152] sm:$0xff] %vm310, %v3777
        %3810 = vst.msk [vmem:[%s1212 + $0x15a] sm:$0xff] %vm310, %v3778
        %3811 = vst.msk [vmem:[%s1212 + $0x16a] sm:$0xff] %vm310, %v3779
        %3812 = vst.msk [vmem:[%s1212 + $0x172] sm:$0xff] %vm310, %v3780
        %v3813 = vld [vmem:[%s1212 + $0x1] sm:$0xff]
        %v3814 = vld [vmem:[%s1212 + $0x9] sm:$0xff]
        %v3815 = vld [vmem:[%s1212 + $0x19] sm:$0xff]
        %v3816 = vld [vmem:[%s1212 + $0x21] sm:$0xff]
        %v3817 = vld [vmem:[%s1212 + $0x31] sm:$0xff]
        %v3818 = vld [vmem:[%s1212 + $0x39] sm:$0xff]
        %v3819 = vld [vmem:[%s1212 + $0x49] sm:$0xff]
        %v3820 = vld [vmem:[%s1212 + $0x51] sm:$0xff]
        %v3821 = vld [vmem:[%s1212 + $0x61] sm:$0xff]
        %v3822 = vld [vmem:[%s1212 + $0x69] sm:$0xff]
        %v3823 = vld [vmem:[%s1212 + $0x79] sm:$0xff]
        %v3824 = vld [vmem:[%s1212 + $0x81] sm:$0xff]
        %v3825 = vld [vmem:[%s1212 + $0x91] sm:$0xff]
        %v3826 = vld [vmem:[%s1212 + $0x99] sm:$0xff]
        %v3827 = vld [vmem:[%s1212 + $0xa9] sm:$0xff]
        %v3828 = vld [vmem:[%s1212 + $0xb1] sm:$0xff]
        %v3829 = vld [vmem:[%s1212 + $0xc1] sm:$0xff]
        %v3830 = vld [vmem:[%s1212 + $0xc9] sm:$0xff]
        %v3831 = vld [vmem:[%s1212 + $0xd9] sm:$0xff]
        %v3832 = vld [vmem:[%s1212 + $0xe1] sm:$0xff]
        %v3833 = vld [vmem:[%s1212 + $0xf1] sm:$0xff]
        %v3834 = vld [vmem:[%s1212 + $0xf9] sm:$0xff]
        %v3835 = vld [vmem:[%s1212 + $0x109] sm:$0xff]
        %v3836 = vld [vmem:[%s1212 + $0x111] sm:$0xff]
        %v3837 = vld [vmem:[%s1212 + $0x121] sm:$0xff]
        %v3838 = vld [vmem:[%s1212 + $0x129] sm:$0xff]
        %v3839 = vld [vmem:[%s1212 + $0x139] sm:$0xff]
        %v3840 = vld [vmem:[%s1212 + $0x141] sm:$0xff]
        %v3841 = vld [vmem:[%s1212 + $0x151] sm:$0xff]
        %v3842 = vld [vmem:[%s1212 + $0x159] sm:$0xff]
        %v3843 = vld [vmem:[%s1212 + $0x169] sm:$0xff]
        %v3844 = vld [vmem:[%s1212 + $0x171] sm:$0xff]
        %3845 = vrot.lane.b32.xlu0 %v3431, 120
        %v3846 = vpop.permute.xlu0 %3845
        %3847 = vrot.lane.b32.xlu0 %v3434, 120
        %v3848 = vpop.permute.xlu0 %3847
        %3849 = vrot.lane.b32.xlu0 %v3439, 120
        %v3850 = vpop.permute.xlu0 %3849
        %3851 = vrot.lane.b32.xlu0 %v3442, 120
        %v3852 = vpop.permute.xlu0 %3851
        %3853 = vrot.lane.b32.xlu0 %v3447, 120
        %v3854 = vpop.permute.xlu0 %3853
        %3855 = vrot.lane.b32.xlu0 %v3450, 120
        %v3856 = vpop.permute.xlu0 %3855
        %3857 = vrot.lane.b32.xlu0 %v3455, 120
        %v3858 = vpop.permute.xlu0 %3857
        %3859 = vrot.lane.b32.xlu0 %v3458, 120
        %v3860 = vpop.permute.xlu0 %3859
        %3861 = vrot.lane.b32.xlu0 %v3463, 120
        %v3862 = vpop.permute.xlu0 %3861
        %3863 = vrot.lane.b32.xlu0 %v3466, 120
        %v3864 = vpop.permute.xlu0 %3863
        %3865 = vrot.lane.b32.xlu0 %v3471, 120
        %v3866 = vpop.permute.xlu0 %3865
        %3867 = vrot.lane.b32.xlu0 %v3474, 120
        %v3868 = vpop.permute.xlu0 %3867
        %3869 = vrot.lane.b32.xlu0 %v3479, 120
        %v3870 = vpop.permute.xlu0 %3869
        %3871 = vrot.lane.b32.xlu0 %v3482, 120
        %v3872 = vpop.permute.xlu0 %3871
        %3873 = vrot.lane.b32.xlu0 %v3487, 120
        %v3874 = vpop.permute.xlu0 %3873
        %3875 = vrot.lane.b32.xlu0 %v3490, 120
        %v3876 = vpop.permute.xlu0 %3875
        %3877 = vrot.lane.b32.xlu0 %v3495, 120
        %v3878 = vpop.permute.xlu0 %3877
        %3879 = vrot.lane.b32.xlu0 %v3498, 120
        %v3880 = vpop.permute.xlu0 %3879
        %3881 = vrot.lane.b32.xlu0 %v3503, 120
        %v3882 = vpop.permute.xlu0 %3881
        %3883 = vrot.lane.b32.xlu0 %v3506, 120
        %v3884 = vpop.permute.xlu0 %3883
        %3885 = vrot.lane.b32.xlu0 %v3511, 120
        %v3886 = vpop.permute.xlu0 %3885
        %3887 = vrot.lane.b32.xlu0 %v3514, 120
        %v3888 = vpop.permute.xlu0 %3887
        %3889 = vrot.lane.b32.xlu0 %v3519, 120
        %v3890 = vpop.permute.xlu0 %3889
        %3891 = vrot.lane.b32.xlu0 %v3522, 120
        %v3892 = vpop.permute.xlu0 %3891
        %3893 = vrot.lane.b32.xlu0 %v3527, 120
        %v3894 = vpop.permute.xlu0 %3893
        %3895 = vrot.lane.b32.xlu0 %v3530, 120
        %v3896 = vpop.permute.xlu0 %3895
        %3897 = vrot.lane.b32.xlu0 %v3535, 120
        %v3898 = vpop.permute.xlu0 %3897
        %3899 = vrot.lane.b32.xlu0 %v3538, 120
        %v3900 = vpop.permute.xlu0 %3899
        %3901 = vrot.lane.b32.xlu0 %v3543, 120
        %v3902 = vpop.permute.xlu0 %3901
        %3903 = vrot.lane.b32.xlu0 %v3546, 120
        %v3904 = vpop.permute.xlu0 %3903
        %3905 = vrot.lane.b32.xlu0 %v3551, 120
        %v3906 = vpop.permute.xlu0 %3905
        %3907 = vrot.lane.b32.xlu0 %v3554, 120
        %v3908 = vpop.permute.xlu0 %3907
        %v3941 = vadd.f32 %v3813, %v3846
        %v3942 = vadd.f32 %v3814, %v3848
        %v3943 = vadd.f32 %v3815, %v3850
        %v3944 = vadd.f32 %v3816, %v3852
        %v3945 = vadd.f32 %v3817, %v3854
        %v3946 = vadd.f32 %v3818, %v3856
        %v3947 = vadd.f32 %v3819, %v3858
        %v3948 = vadd.f32 %v3820, %v3860
        %v3949 = vadd.f32 %v3821, %v3862
        %v3950 = vadd.f32 %v3822, %v3864
        %v3951 = vadd.f32 %v3823, %v3866
        %v3952 = vadd.f32 %v3824, %v3868
        %v3953 = vadd.f32 %v3825, %v3870
        %v3954 = vadd.f32 %v3826, %v3872
        %v3955 = vadd.f32 %v3827, %v3874
        %v3956 = vadd.f32 %v3828, %v3876
        %v3957 = vadd.f32 %v3829, %v3878
        %v3958 = vadd.f32 %v3830, %v3880
        %v3959 = vadd.f32 %v3831, %v3882
        %v3960 = vadd.f32 %v3832, %v3884
        %v3961 = vadd.f32 %v3833, %v3886
        %v3962 = vadd.f32 %v3834, %v3888
        %v3963 = vadd.f32 %v3835, %v3890
        %v3964 = vadd.f32 %v3836, %v3892
        %v3965 = vadd.f32 %v3837, %v3894
        %v3966 = vadd.f32 %v3838, %v3896
        %v3967 = vadd.f32 %v3839, %v3898
        %v3968 = vadd.f32 %v3840, %v3900
        %v3969 = vadd.f32 %v3841, %v3902
        %v3970 = vadd.f32 %v3842, %v3904
        %v3971 = vadd.f32 %v3843, %v3906
        %v3972 = vadd.f32 %v3844, %v3908
        %3973 = vst.msk [vmem:[%s1212 + $0x1] sm:$0xff] %vm310, %v3941
        %3974 = vst.msk [vmem:[%s1212 + $0x9] sm:$0xff] %vm310, %v3942
        %3975 = vst.msk [vmem:[%s1212 + $0x19] sm:$0xff] %vm310, %v3943
        %3976 = vst.msk [vmem:[%s1212 + $0x21] sm:$0xff] %vm310, %v3944
        %3977 = vst.msk [vmem:[%s1212 + $0x31] sm:$0xff] %vm310, %v3945
        %3978 = vst.msk [vmem:[%s1212 + $0x39] sm:$0xff] %vm310, %v3946
        %3979 = vst.msk [vmem:[%s1212 + $0x49] sm:$0xff] %vm310, %v3947
        %3980 = vst.msk [vmem:[%s1212 + $0x51] sm:$0xff] %vm310, %v3948
        %3981 = vst.msk [vmem:[%s1212 + $0x61] sm:$0xff] %vm310, %v3949
        %3982 = vst.msk [vmem:[%s1212 + $0x69] sm:$0xff] %vm310, %v3950
        %3983 = vst.msk [vmem:[%s1212 + $0x79] sm:$0xff] %vm310, %v3951
        %3984 = vst.msk [vmem:[%s1212 + $0x81] sm:$0xff] %vm310, %v3952
        %3985 = vst.msk [vmem:[%s1212 + $0x91] sm:$0xff] %vm310, %v3953
        %3986 = vst.msk [vmem:[%s1212 + $0x99] sm:$0xff] %vm310, %v3954
        %3987 = vst.msk [vmem:[%s1212 + $0xa9] sm:$0xff] %vm310, %v3955
        %3988 = vst.msk [vmem:[%s1212 + $0xb1] sm:$0xff] %vm310, %v3956
        %3989 = vst.msk [vmem:[%s1212 + $0xc1] sm:$0xff] %vm310, %v3957
        %3990 = vst.msk [vmem:[%s1212 + $0xc9] sm:$0xff] %vm310, %v3958
        %3991 = vst.msk [vmem:[%s1212 + $0xd9] sm:$0xff] %vm310, %v3959
        %3992 = vst.msk [vmem:[%s1212 + $0xe1] sm:$0xff] %vm310, %v3960
        %3993 = vst.msk [vmem:[%s1212 + $0xf1] sm:$0xff] %vm310, %v3961
        %3994 = vst.msk [vmem:[%s1212 + $0xf9] sm:$0xff] %vm310, %v3962
        %3995 = vst.msk [vmem:[%s1212 + $0x109] sm:$0xff] %vm310, %v3963
        %3996 = vst.msk [vmem:[%s1212 + $0x111] sm:$0xff] %vm310, %v3964
        %3997 = vst.msk [vmem:[%s1212 + $0x121] sm:$0xff] %vm310, %v3965
        %3998 = vst.msk [vmem:[%s1212 + $0x129] sm:$0xff] %vm310, %v3966
        %3999 = vst.msk [vmem:[%s1212 + $0x139] sm:$0xff] %vm310, %v3967
        %4000 = vst.msk [vmem:[%s1212 + $0x141] sm:$0xff] %vm310, %v3968
        %4001 = vst.msk [vmem:[%s1212 + $0x151] sm:$0xff] %vm310, %v3969
        %4002 = vst.msk [vmem:[%s1212 + $0x159] sm:$0xff] %vm310, %v3970
        %4003 = vst.msk [vmem:[%s1212 + $0x169] sm:$0xff] %vm310, %v3971
        %4004 = vst.msk [vmem:[%s1212 + $0x171] sm:$0xff] %vm310, %v3972
        %v4005 = vld [vmem:[%s1212] sm:$0xff]
        %v4006 = vld [vmem:[%s1212 + $0x8] sm:$0xff]
        %v4007 = vld [vmem:[%s1212 + $0x18] sm:$0xff]
        %v4008 = vld [vmem:[%s1212 + $0x20] sm:$0xff]
        %v4009 = vld [vmem:[%s1212 + $0x30] sm:$0xff]
        %v4010 = vld [vmem:[%s1212 + $0x38] sm:$0xff]
        %v4011 = vld [vmem:[%s1212 + $0x48] sm:$0xff]
        %v4012 = vld [vmem:[%s1212 + $0x50] sm:$0xff]
        %v4013 = vld [vmem:[%s1212 + $0x60] sm:$0xff]
        %v4014 = vld [vmem:[%s1212 + $0x68] sm:$0xff]
        %v4015 = vld [vmem:[%s1212 + $0x78] sm:$0xff]
        %v4016 = vld [vmem:[%s1212 + $0x80] sm:$0xff]
        %v4017 = vld [vmem:[%s1212 + $0x90] sm:$0xff]
        %v4018 = vld [vmem:[%s1212 + $0x98] sm:$0xff]
        %v4019 = vld [vmem:[%s1212 + $0xa8] sm:$0xff]
        %v4020 = vld [vmem:[%s1212 + $0xb0] sm:$0xff]
        %v4021 = vld [vmem:[%s1212 + $0xc0] sm:$0xff]
        %v4022 = vld [vmem:[%s1212 + $0xc8] sm:$0xff]
        %v4023 = vld [vmem:[%s1212 + $0xd8] sm:$0xff]
        %v4024 = vld [vmem:[%s1212 + $0xe0] sm:$0xff]
        %v4025 = vld [vmem:[%s1212 + $0xf0] sm:$0xff]
        %v4026 = vld [vmem:[%s1212 + $0xf8] sm:$0xff]
        %v4027 = vld [vmem:[%s1212 + $0x108] sm:$0xff]
        %v4028 = vld [vmem:[%s1212 + $0x110] sm:$0xff]
        %v4029 = vld [vmem:[%s1212 + $0x120] sm:$0xff]
        %v4030 = vld [vmem:[%s1212 + $0x128] sm:$0xff]
        %v4031 = vld [vmem:[%s1212 + $0x138] sm:$0xff]
        %v4032 = vld [vmem:[%s1212 + $0x140] sm:$0xff]
        %v4033 = vld [vmem:[%s1212 + $0x150] sm:$0xff]
        %v4034 = vld [vmem:[%s1212 + $0x158] sm:$0xff]
        %v4035 = vld [vmem:[%s1212 + $0x168] sm:$0xff]
        %v4036 = vld [vmem:[%s1212 + $0x170] sm:$0xff]
        %4037 = vrot.lane.b32.xlu0 %v3431, 112
        %v4038 = vpop.permute.xlu0 %4037
        %4039 = vrot.lane.b32.xlu0 %v3434, 112
        %v4040 = vpop.permute.xlu0 %4039
        %4041 = vrot.lane.b32.xlu0 %v3439, 112
        %v4042 = vpop.permute.xlu0 %4041
        %4043 = vrot.lane.b32.xlu0 %v3442, 112
        %v4044 = vpop.permute.xlu0 %4043
        %4045 = vrot.lane.b32.xlu0 %v3447, 112
        %v4046 = vpop.permute.xlu0 %4045
        %4047 = vrot.lane.b32.xlu0 %v3450, 112
        %v4048 = vpop.permute.xlu0 %4047
        %4049 = vrot.lane.b32.xlu0 %v3455, 112
        %v4050 = vpop.permute.xlu0 %4049
        %4051 = vrot.lane.b32.xlu0 %v3458, 112
        %v4052 = vpop.permute.xlu0 %4051
        %4053 = vrot.lane.b32.xlu0 %v3463, 112
        %v4054 = vpop.permute.xlu0 %4053
        %4055 = vrot.lane.b32.xlu0 %v3466, 112
        %v4056 = vpop.permute.xlu0 %4055
        %4057 = vrot.lane.b32.xlu0 %v3471, 112
        %v4058 = vpop.permute.xlu0 %4057
        %4059 = vrot.lane.b32.xlu0 %v3474, 112
        %v4060 = vpop.permute.xlu0 %4059
        %4061 = vrot.lane.b32.xlu0 %v3479, 112
        %v4062 = vpop.permute.xlu0 %4061
        %4063 = vrot.lane.b32.xlu0 %v3482, 112
        %v4064 = vpop.permute.xlu0 %4063
        %4065 = vrot.lane.b32.xlu0 %v3487, 112
        %v4066 = vpop.permute.xlu0 %4065
        %4067 = vrot.lane.b32.xlu0 %v3490, 112
        %v4068 = vpop.permute.xlu0 %4067
        %4069 = vrot.lane.b32.xlu0 %v3495, 112
        %v4070 = vpop.permute.xlu0 %4069
        %4071 = vrot.lane.b32.xlu0 %v3498, 112
        %v4072 = vpop.permute.xlu0 %4071
        %4073 = vrot.lane.b32.xlu0 %v3503, 112
        %v4074 = vpop.permute.xlu0 %4073
        %4075 = vrot.lane.b32.xlu0 %v3506, 112
        %v4076 = vpop.permute.xlu0 %4075
        %4077 = vrot.lane.b32.xlu0 %v3511, 112
        %v4078 = vpop.permute.xlu0 %4077
        %4079 = vrot.lane.b32.xlu0 %v3514, 112
        %v4080 = vpop.permute.xlu0 %4079
        %4081 = vrot.lane.b32.xlu0 %v3519, 112
        %v4082 = vpop.permute.xlu0 %4081
        %4083 = vrot.lane.b32.xlu0 %v3522, 112
        %v4084 = vpop.permute.xlu0 %4083
        %4085 = vrot.lane.b32.xlu0 %v3527, 112
        %v4086 = vpop.permute.xlu0 %4085
        %4087 = vrot.lane.b32.xlu0 %v3530, 112
        %v4088 = vpop.permute.xlu0 %4087
        %4089 = vrot.lane.b32.xlu0 %v3535, 112
        %v4090 = vpop.permute.xlu0 %4089
        %4091 = vrot.lane.b32.xlu0 %v3538, 112
        %v4092 = vpop.permute.xlu0 %4091
        %4093 = vrot.lane.b32.xlu0 %v3543, 112
        %v4094 = vpop.permute.xlu0 %4093
        %4095 = vrot.lane.b32.xlu0 %v3546, 112
        %v4096 = vpop.permute.xlu0 %4095
        %4097 = vrot.lane.b32.xlu0 %v3551, 112
        %v4098 = vpop.permute.xlu0 %4097
        %4099 = vrot.lane.b32.xlu0 %v3554, 112
        %v4100 = vpop.permute.xlu0 %4099
        %v4133 = vadd.f32 %v4005, %v4038
        %v4134 = vadd.f32 %v4006, %v4040
        %v4135 = vadd.f32 %v4007, %v4042
        %v4136 = vadd.f32 %v4008, %v4044
        %v4137 = vadd.f32 %v4009, %v4046
        %v4138 = vadd.f32 %v4010, %v4048
        %v4139 = vadd.f32 %v4011, %v4050
        %v4140 = vadd.f32 %v4012, %v4052
        %v4141 = vadd.f32 %v4013, %v4054
        %v4142 = vadd.f32 %v4014, %v4056
        %v4143 = vadd.f32 %v4015, %v4058
        %v4144 = vadd.f32 %v4016, %v4060
        %v4145 = vadd.f32 %v4017, %v4062
        %v4146 = vadd.f32 %v4018, %v4064
        %v4147 = vadd.f32 %v4019, %v4066
        %v4148 = vadd.f32 %v4020, %v4068
        %v4149 = vadd.f32 %v4021, %v4070
        %v4150 = vadd.f32 %v4022, %v4072
        %v4151 = vadd.f32 %v4023, %v4074
        %v4152 = vadd.f32 %v4024, %v4076
        %v4153 = vadd.f32 %v4025, %v4078
        %v4154 = vadd.f32 %v4026, %v4080
        %v4155 = vadd.f32 %v4027, %v4082
        %v4156 = vadd.f32 %v4028, %v4084
        %v4157 = vadd.f32 %v4029, %v4086
        %v4158 = vadd.f32 %v4030, %v4088
        %v4159 = vadd.f32 %v4031, %v4090
        %v4160 = vadd.f32 %v4032, %v4092
        %v4161 = vadd.f32 %v4033, %v4094
        %v4162 = vadd.f32 %v4034, %v4096
        %v4163 = vadd.f32 %v4035, %v4098
        %v4164 = vadd.f32 %v4036, %v4100
        %4165 = vst.msk [vmem:[%s1212] sm:$0xff] %vm310, %v4133
        %4166 = vst.msk [vmem:[%s1212 + $0x8] sm:$0xff] %vm310, %v4134
        %4167 = vst.msk [vmem:[%s1212 + $0x18] sm:$0xff] %vm310, %v4135
        %4168 = vst.msk [vmem:[%s1212 + $0x20] sm:$0xff] %vm310, %v4136
        %4169 = vst.msk [vmem:[%s1212 + $0x30] sm:$0xff] %vm310, %v4137
        %4170 = vst.msk [vmem:[%s1212 + $0x38] sm:$0xff] %vm310, %v4138
        %4171 = vst.msk [vmem:[%s1212 + $0x48] sm:$0xff] %vm310, %v4139
        %4172 = vst.msk [vmem:[%s1212 + $0x50] sm:$0xff] %vm310, %v4140
        %4173 = vst.msk [vmem:[%s1212 + $0x60] sm:$0xff] %vm310, %v4141
        %4174 = vst.msk [vmem:[%s1212 + $0x68] sm:$0xff] %vm310, %v4142
        %4175 = vst.msk [vmem:[%s1212 + $0x78] sm:$0xff] %vm310, %v4143
        %4176 = vst.msk [vmem:[%s1212 + $0x80] sm:$0xff] %vm310, %v4144
        %4177 = vst.msk [vmem:[%s1212 + $0x90] sm:$0xff] %vm310, %v4145
        %4178 = vst.msk [vmem:[%s1212 + $0x98] sm:$0xff] %vm310, %v4146
        %4179 = vst.msk [vmem:[%s1212 + $0xa8] sm:$0xff] %vm310, %v4147
        %4180 = vst.msk [vmem:[%s1212 + $0xb0] sm:$0xff] %vm310, %v4148
        %4181 = vst.msk [vmem:[%s1212 + $0xc0] sm:$0xff] %vm310, %v4149
        %4182 = vst.msk [vmem:[%s1212 + $0xc8] sm:$0xff] %vm310, %v4150
        %4183 = vst.msk [vmem:[%s1212 + $0xd8] sm:$0xff] %vm310, %v4151
        %4184 = vst.msk [vmem:[%s1212 + $0xe0] sm:$0xff] %vm310, %v4152
        %4185 = vst.msk [vmem:[%s1212 + $0xf0] sm:$0xff] %vm310, %v4153
        %4186 = vst.msk [vmem:[%s1212 + $0xf8] sm:$0xff] %vm310, %v4154
        %4187 = vst.msk [vmem:[%s1212 + $0x108] sm:$0xff] %vm310, %v4155
        %4188 = vst.msk [vmem:[%s1212 + $0x110] sm:$0xff] %vm310, %v4156
        %4189 = vst.msk [vmem:[%s1212 + $0x120] sm:$0xff] %vm310, %v4157
        %4190 = vst.msk [vmem:[%s1212 + $0x128] sm:$0xff] %vm310, %v4158
        %4191 = vst.msk [vmem:[%s1212 + $0x138] sm:$0xff] %vm310, %v4159
        %4192 = vst.msk [vmem:[%s1212 + $0x140] sm:$0xff] %vm310, %v4160
        %4193 = vst.msk [vmem:[%s1212 + $0x150] sm:$0xff] %vm310, %v4161
        %4194 = vst.msk [vmem:[%s1212 + $0x158] sm:$0xff] %vm310, %v4162
        %4195 = vst.msk [vmem:[%s1212 + $0x168] sm:$0xff] %vm310, %v4163
        %4196 = vst.msk [vmem:[%s1212 + $0x170] sm:$0xff] %vm310, %v4164
        %v4197 = vld [vmem:[%s1179 + $0x2] sm:$0xff]
        %v4198 = vld [vmem:[%s1179 + $0xa] sm:$0xff]
        %v4199 = vld [vmem:[%s1179 + $0x1a] sm:$0xff]
        %v4200 = vld [vmem:[%s1179 + $0x22] sm:$0xff]
        %v4201 = vld [vmem:[%s1179 + $0x32] sm:$0xff]
        %v4202 = vld [vmem:[%s1179 + $0x3a] sm:$0xff]
        %v4203 = vld [vmem:[%s1179 + $0x4a] sm:$0xff]
        %v4204 = vld [vmem:[%s1179 + $0x52] sm:$0xff]
        %v4205 = vld [vmem:[%s1179 + $0x62] sm:$0xff]
        %v4206 = vld [vmem:[%s1179 + $0x6a] sm:$0xff]
        %v4207 = vld [vmem:[%s1179 + $0x7a] sm:$0xff]
        %v4208 = vld [vmem:[%s1179 + $0x82] sm:$0xff]
        %v4209 = vld [vmem:[%s1179 + $0x92] sm:$0xff]
        %v4210 = vld [vmem:[%s1179 + $0x9a] sm:$0xff]
        %v4211 = vld [vmem:[%s1179 + $0xaa] sm:$0xff]
        %v4212 = vld [vmem:[%s1179 + $0xb2] sm:$0xff]
        %v4213 = vld [vmem:[%s1179 + $0xc2] sm:$0xff]
        %v4214 = vld [vmem:[%s1179 + $0xca] sm:$0xff]
        %v4215 = vld [vmem:[%s1179 + $0xda] sm:$0xff]
        %v4216 = vld [vmem:[%s1179 + $0xe2] sm:$0xff]
        %v4217 = vld [vmem:[%s1179 + $0xf2] sm:$0xff]
        %v4218 = vld [vmem:[%s1179 + $0xfa] sm:$0xff]
        %v4219 = vld [vmem:[%s1179 + $0x10a] sm:$0xff]
        %v4220 = vld [vmem:[%s1179 + $0x112] sm:$0xff]
        %v4221 = vld [vmem:[%s1179 + $0x122] sm:$0xff]
        %v4222 = vld [vmem:[%s1179 + $0x12a] sm:$0xff]
        %v4223 = vld [vmem:[%s1179 + $0x13a] sm:$0xff]
        %v4224 = vld [vmem:[%s1179 + $0x142] sm:$0xff]
        %v4225 = vld [vmem:[%s1179 + $0x152] sm:$0xff]
        %v4226 = vld [vmem:[%s1179 + $0x15a] sm:$0xff]
        %v4227 = vld [vmem:[%s1179 + $0x16a] sm:$0xff]
        %v4228 = vld [vmem:[%s1179 + $0x172] sm:$0xff]
        %4229 = vrot.lane.b32.xlu0 %v3431, 104
        %v4230 = vpop.permute.xlu0 %4229
        %4231 = vrot.lane.b32.xlu0 %v3434, 104
        %v4232 = vpop.permute.xlu0 %4231
        %4233 = vrot.lane.b32.xlu0 %v3439, 104
        %v4234 = vpop.permute.xlu0 %4233
        %4235 = vrot.lane.b32.xlu0 %v3442, 104
        %v4236 = vpop.permute.xlu0 %4235
        %4237 = vrot.lane.b32.xlu0 %v3447, 104
        %v4238 = vpop.permute.xlu0 %4237
        %4239 = vrot.lane.b32.xlu0 %v3450, 104
        %v4240 = vpop.permute.xlu0 %4239
        %4241 = vrot.lane.b32.xlu0 %v3455, 104
        %v4242 = vpop.permute.xlu0 %4241
        %4243 = vrot.lane.b32.xlu0 %v3458, 104
        %v4244 = vpop.permute.xlu0 %4243
        %4245 = vrot.lane.b32.xlu0 %v3463, 104
        %v4246 = vpop.permute.xlu0 %4245
        %4247 = vrot.lane.b32.xlu0 %v3466, 104
        %v4248 = vpop.permute.xlu0 %4247
        %4249 = vrot.lane.b32.xlu0 %v3471, 104
        %v4250 = vpop.permute.xlu0 %4249
        %4251 = vrot.lane.b32.xlu0 %v3474, 104
        %v4252 = vpop.permute.xlu0 %4251
        %4253 = vrot.lane.b32.xlu0 %v3479, 104
        %v4254 = vpop.permute.xlu0 %4253
        %4255 = vrot.lane.b32.xlu0 %v3482, 104
        %v4256 = vpop.permute.xlu0 %4255
        %4257 = vrot.lane.b32.xlu0 %v3487, 104
        %v4258 = vpop.permute.xlu0 %4257
        %4259 = vrot.lane.b32.xlu0 %v3490, 104
        %v4260 = vpop.permute.xlu0 %4259
        %4261 = vrot.lane.b32.xlu0 %v3495, 104
        %v4262 = vpop.permute.xlu0 %4261
        %4263 = vrot.lane.b32.xlu0 %v3498, 104
        %v4264 = vpop.permute.xlu0 %4263
        %4265 = vrot.lane.b32.xlu0 %v3503, 104
        %v4266 = vpop.permute.xlu0 %4265
        %4267 = vrot.lane.b32.xlu0 %v3506, 104
        %v4268 = vpop.permute.xlu0 %4267
        %4269 = vrot.lane.b32.xlu0 %v3511, 104
        %v4270 = vpop.permute.xlu0 %4269
        %4271 = vrot.lane.b32.xlu0 %v3514, 104
        %v4272 = vpop.permute.xlu0 %4271
        %4273 = vrot.lane.b32.xlu0 %v3519, 104
        %v4274 = vpop.permute.xlu0 %4273
        %4275 = vrot.lane.b32.xlu0 %v3522, 104
        %v4276 = vpop.permute.xlu0 %4275
        %4277 = vrot.lane.b32.xlu0 %v3527, 104
        %v4278 = vpop.permute.xlu0 %4277
        %4279 = vrot.lane.b32.xlu0 %v3530, 104
        %v4280 = vpop.permute.xlu0 %4279
        %4281 = vrot.lane.b32.xlu0 %v3535, 104
        %v4282 = vpop.permute.xlu0 %4281
        %4283 = vrot.lane.b32.xlu0 %v3538, 104
        %v4284 = vpop.permute.xlu0 %4283
        %4285 = vrot.lane.b32.xlu0 %v3543, 104
        %v4286 = vpop.permute.xlu0 %4285
        %4287 = vrot.lane.b32.xlu0 %v3546, 104
        %v4288 = vpop.permute.xlu0 %4287
        %4289 = vrot.lane.b32.xlu0 %v3551, 104
        %v4290 = vpop.permute.xlu0 %4289
        %4291 = vrot.lane.b32.xlu0 %v3554, 104
        %v4292 = vpop.permute.xlu0 %4291
        %v4325 = vadd.f32 %v4197, %v4230
        %v4326 = vadd.f32 %v4198, %v4232
        %v4327 = vadd.f32 %v4199, %v4234
        %v4328 = vadd.f32 %v4200, %v4236
        %v4329 = vadd.f32 %v4201, %v4238
        %v4330 = vadd.f32 %v4202, %v4240
        %v4331 = vadd.f32 %v4203, %v4242
        %v4332 = vadd.f32 %v4204, %v4244
        %v4333 = vadd.f32 %v4205, %v4246
        %v4334 = vadd.f32 %v4206, %v4248
        %v4335 = vadd.f32 %v4207, %v4250
        %v4336 = vadd.f32 %v4208, %v4252
        %v4337 = vadd.f32 %v4209, %v4254
        %v4338 = vadd.f32 %v4210, %v4256
        %v4339 = vadd.f32 %v4211, %v4258
        %v4340 = vadd.f32 %v4212, %v4260
        %v4341 = vadd.f32 %v4213, %v4262
        %v4342 = vadd.f32 %v4214, %v4264
        %v4343 = vadd.f32 %v4215, %v4266
        %v4344 = vadd.f32 %v4216, %v4268
        %v4345 = vadd.f32 %v4217, %v4270
        %v4346 = vadd.f32 %v4218, %v4272
        %v4347 = vadd.f32 %v4219, %v4274
        %v4348 = vadd.f32 %v4220, %v4276
        %v4349 = vadd.f32 %v4221, %v4278
        %v4350 = vadd.f32 %v4222, %v4280
        %v4351 = vadd.f32 %v4223, %v4282
        %v4352 = vadd.f32 %v4224, %v4284
        %v4353 = vadd.f32 %v4225, %v4286
        %v4354 = vadd.f32 %v4226, %v4288
        %v4355 = vadd.f32 %v4227, %v4290
        %v4356 = vadd.f32 %v4228, %v4292
        %4357 = vst.msk [vmem:[%s1179 + $0x2] sm:$0xff] %vm310, %v4325
        %4358 = vst.msk [vmem:[%s1179 + $0xa] sm:$0xff] %vm310, %v4326
        %4359 = vst.msk [vmem:[%s1179 + $0x1a] sm:$0xff] %vm310, %v4327
        %4360 = vst.msk [vmem:[%s1179 + $0x22] sm:$0xff] %vm310, %v4328
        %4361 = vst.msk [vmem:[%s1179 + $0x32] sm:$0xff] %vm310, %v4329
        %4362 = vst.msk [vmem:[%s1179 + $0x3a] sm:$0xff] %vm310, %v4330
        %4363 = vst.msk [vmem:[%s1179 + $0x4a] sm:$0xff] %vm310, %v4331
        %4364 = vst.msk [vmem:[%s1179 + $0x52] sm:$0xff] %vm310, %v4332
        %4365 = vst.msk [vmem:[%s1179 + $0x62] sm:$0xff] %vm310, %v4333
        %4366 = vst.msk [vmem:[%s1179 + $0x6a] sm:$0xff] %vm310, %v4334
        %4367 = vst.msk [vmem:[%s1179 + $0x7a] sm:$0xff] %vm310, %v4335
        %4368 = vst.msk [vmem:[%s1179 + $0x82] sm:$0xff] %vm310, %v4336
        %4369 = vst.msk [vmem:[%s1179 + $0x92] sm:$0xff] %vm310, %v4337
        %4370 = vst.msk [vmem:[%s1179 + $0x9a] sm:$0xff] %vm310, %v4338
        %4371 = vst.msk [vmem:[%s1179 + $0xaa] sm:$0xff] %vm310, %v4339
        %4372 = vst.msk [vmem:[%s1179 + $0xb2] sm:$0xff] %vm310, %v4340
        %4373 = vst.msk [vmem:[%s1179 + $0xc2] sm:$0xff] %vm310, %v4341
        %4374 = vst.msk [vmem:[%s1179 + $0xca] sm:$0xff] %vm310, %v4342
        %4375 = vst.msk [vmem:[%s1179 + $0xda] sm:$0xff] %vm310, %v4343
        %4376 = vst.msk [vmem:[%s1179 + $0xe2] sm:$0xff] %vm310, %v4344
        %4377 = vst.msk [vmem:[%s1179 + $0xf2] sm:$0xff] %vm310, %v4345
        %4378 = vst.msk [vmem:[%s1179 + $0xfa] sm:$0xff] %vm310, %v4346
        %4379 = vst.msk [vmem:[%s1179 + $0x10a] sm:$0xff] %vm310, %v4347
        %4380 = vst.msk [vmem:[%s1179 + $0x112] sm:$0xff] %vm310, %v4348
        %4381 = vst.msk [vmem:[%s1179 + $0x122] sm:$0xff] %vm310, %v4349
        %4382 = vst.msk [vmem:[%s1179 + $0x12a] sm:$0xff] %vm310, %v4350
        %4383 = vst.msk [vmem:[%s1179 + $0x13a] sm:$0xff] %vm310, %v4351
        %4384 = vst.msk [vmem:[%s1179 + $0x142] sm:$0xff] %vm310, %v4352
        %4385 = vst.msk [vmem:[%s1179 + $0x152] sm:$0xff] %vm310, %v4353
        %4386 = vst.msk [vmem:[%s1179 + $0x15a] sm:$0xff] %vm310, %v4354
        %4387 = vst.msk [vmem:[%s1179 + $0x16a] sm:$0xff] %vm310, %v4355
        %4388 = vst.msk [vmem:[%s1179 + $0x172] sm:$0xff] %vm310, %v4356
        %v4389 = vld [vmem:[%s1179] sm:$0xff]
        %v4390 = vld [vmem:[%s1179 + $0x8] sm:$0xff]
        %v4391 = vld [vmem:[%s1179 + $0x18] sm:$0xff]
        %v4392 = vld [vmem:[%s1179 + $0x20] sm:$0xff]
        %v4393 = vld [vmem:[%s1179 + $0x30] sm:$0xff]
        %v4394 = vld [vmem:[%s1179 + $0x38] sm:$0xff]
        %v4395 = vld [vmem:[%s1179 + $0x48] sm:$0xff]
        %v4396 = vld [vmem:[%s1179 + $0x50] sm:$0xff]
        %v4397 = vld [vmem:[%s1179 + $0x60] sm:$0xff]
        %v4398 = vld [vmem:[%s1179 + $0x68] sm:$0xff]
        %v4399 = vld [vmem:[%s1179 + $0x78] sm:$0xff]
        %v4400 = vld [vmem:[%s1179 + $0x80] sm:$0xff]
        %v4401 = vld [vmem:[%s1179 + $0x90] sm:$0xff]
        %v4402 = vld [vmem:[%s1179 + $0x98] sm:$0xff]
        %v4403 = vld [vmem:[%s1179 + $0xa8] sm:$0xff]
        %v4404 = vld [vmem:[%s1179 + $0xb0] sm:$0xff]
        %v4405 = vld [vmem:[%s1179 + $0xc0] sm:$0xff]
        %v4406 = vld [vmem:[%s1179 + $0xc8] sm:$0xff]
        %v4407 = vld [vmem:[%s1179 + $0xd8] sm:$0xff]
        %v4408 = vld [vmem:[%s1179 + $0xe0] sm:$0xff]
        %v4409 = vld [vmem:[%s1179 + $0xf0] sm:$0xff]
        %v4410 = vld [vmem:[%s1179 + $0xf8] sm:$0xff]
        %v4411 = vld [vmem:[%s1179 + $0x108] sm:$0xff]
        %v4412 = vld [vmem:[%s1179 + $0x110] sm:$0xff]
        %v4413 = vld [vmem:[%s1179 + $0x120] sm:$0xff]
        %v4414 = vld [vmem:[%s1179 + $0x128] sm:$0xff]
        %v4415 = vld [vmem:[%s1179 + $0x138] sm:$0xff]
        %v4416 = vld [vmem:[%s1179 + $0x140] sm:$0xff]
        %v4417 = vld [vmem:[%s1179 + $0x150] sm:$0xff]
        %v4418 = vld [vmem:[%s1179 + $0x158] sm:$0xff]
        %v4419 = vld [vmem:[%s1179 + $0x168] sm:$0xff]
        %v4420 = vld [vmem:[%s1179 + $0x170] sm:$0xff]
        %4421 = vrot.lane.b32.xlu0 %v3431, 88
        %v4422 = vpop.permute.xlu0 %4421
        %4423 = vrot.lane.b32.xlu0 %v3434, 88
        %v4424 = vpop.permute.xlu0 %4423
        %4425 = vrot.lane.b32.xlu0 %v3439, 88
        %v4426 = vpop.permute.xlu0 %4425
        %4427 = vrot.lane.b32.xlu0 %v3442, 88
        %v4428 = vpop.permute.xlu0 %4427
        %4429 = vrot.lane.b32.xlu0 %v3447, 88
        %v4430 = vpop.permute.xlu0 %4429
        %4431 = vrot.lane.b32.xlu0 %v3450, 88
        %v4432 = vpop.permute.xlu0 %4431
        %4433 = vrot.lane.b32.xlu0 %v3455, 88
        %v4434 = vpop.permute.xlu0 %4433
        %4435 = vrot.lane.b32.xlu0 %v3458, 88
        %v4436 = vpop.permute.xlu0 %4435
        %4437 = vrot.lane.b32.xlu0 %v3463, 88
        %v4438 = vpop.permute.xlu0 %4437
        %4439 = vrot.lane.b32.xlu0 %v3466, 88
        %v4440 = vpop.permute.xlu0 %4439
        %4441 = vrot.lane.b32.xlu0 %v3471, 88
        %v4442 = vpop.permute.xlu0 %4441
        %4443 = vrot.lane.b32.xlu0 %v3474, 88
        %v4444 = vpop.permute.xlu0 %4443
        %4445 = vrot.lane.b32.xlu0 %v3479, 88
        %v4446 = vpop.permute.xlu0 %4445
        %4447 = vrot.lane.b32.xlu0 %v3482, 88
        %v4448 = vpop.permute.xlu0 %4447
        %4449 = vrot.lane.b32.xlu0 %v3487, 88
        %v4450 = vpop.permute.xlu0 %4449
        %4451 = vrot.lane.b32.xlu0 %v3490, 88
        %v4452 = vpop.permute.xlu0 %4451
        %4453 = vrot.lane.b32.xlu0 %v3495, 88
        %v4454 = vpop.permute.xlu0 %4453
        %4455 = vrot.lane.b32.xlu0 %v3498, 88
        %v4456 = vpop.permute.xlu0 %4455
        %4457 = vrot.lane.b32.xlu0 %v3503, 88
        %v4458 = vpop.permute.xlu0 %4457
        %4459 = vrot.lane.b32.xlu0 %v3506, 88
        %v4460 = vpop.permute.xlu0 %4459
        %4461 = vrot.lane.b32.xlu0 %v3511, 88
        %v4462 = vpop.permute.xlu0 %4461
        %4463 = vrot.lane.b32.xlu0 %v3514, 88
        %v4464 = vpop.permute.xlu0 %4463
        %4465 = vrot.lane.b32.xlu0 %v3519, 88
        %v4466 = vpop.permute.xlu0 %4465
        %4467 = vrot.lane.b32.xlu0 %v3522, 88
        %v4468 = vpop.permute.xlu0 %4467
        %4469 = vrot.lane.b32.xlu0 %v3527, 88
        %v4470 = vpop.permute.xlu0 %4469
        %4471 = vrot.lane.b32.xlu0 %v3530, 88
        %v4472 = vpop.permute.xlu0 %4471
        %4473 = vrot.lane.b32.xlu0 %v3535, 88
        %v4474 = vpop.permute.xlu0 %4473
        %4475 = vrot.lane.b32.xlu0 %v3538, 88
        %v4476 = vpop.permute.xlu0 %4475
        %4477 = vrot.lane.b32.xlu0 %v3543, 88
        %v4478 = vpop.permute.xlu0 %4477
        %4479 = vrot.lane.b32.xlu0 %v3546, 88
        %v4480 = vpop.permute.xlu0 %4479
        %4481 = vrot.lane.b32.xlu0 %v3551, 88
        %v4482 = vpop.permute.xlu0 %4481
        %4483 = vrot.lane.b32.xlu0 %v3554, 88
        %v4484 = vpop.permute.xlu0 %4483
        %v4517 = vadd.f32 %v4389, %v4422
        %v4518 = vadd.f32 %v4390, %v4424
        %v4519 = vadd.f32 %v4391, %v4426
        %v4520 = vadd.f32 %v4392, %v4428
        %v4521 = vadd.f32 %v4393, %v4430
        %v4522 = vadd.f32 %v4394, %v4432
        %v4523 = vadd.f32 %v4395, %v4434
        %v4524 = vadd.f32 %v4396, %v4436
        %v4525 = vadd.f32 %v4397, %v4438
        %v4526 = vadd.f32 %v4398, %v4440
        %v4527 = vadd.f32 %v4399, %v4442
        %v4528 = vadd.f32 %v4400, %v4444
        %v4529 = vadd.f32 %v4401, %v4446
        %v4530 = vadd.f32 %v4402, %v4448
        %v4531 = vadd.f32 %v4403, %v4450
        %v4532 = vadd.f32 %v4404, %v4452
        %v4533 = vadd.f32 %v4405, %v4454
        %v4534 = vadd.f32 %v4406, %v4456
        %v4535 = vadd.f32 %v4407, %v4458
        %v4536 = vadd.f32 %v4408, %v4460
        %v4537 = vadd.f32 %v4409, %v4462
        %v4538 = vadd.f32 %v4410, %v4464
        %v4539 = vadd.f32 %v4411, %v4466
        %v4540 = vadd.f32 %v4412, %v4468
        %v4541 = vadd.f32 %v4413, %v4470
        %v4542 = vadd.f32 %v4414, %v4472
        %v4543 = vadd.f32 %v4415, %v4474
        %v4544 = vadd.f32 %v4416, %v4476
        %v4545 = vadd.f32 %v4417, %v4478
        %v4546 = vadd.f32 %v4418, %v4480
        %v4547 = vadd.f32 %v4419, %v4482
        %v4548 = vadd.f32 %v4420, %v4484
        %4549 = vst.msk [vmem:[%s1179] sm:$0xff] %vm310, %v4517
        %4550 = vst.msk [vmem:[%s1179 + $0x8] sm:$0xff] %vm310, %v4518
        %4551 = vst.msk [vmem:[%s1179 + $0x18] sm:$0xff] %vm310, %v4519
        %4552 = vst.msk [vmem:[%s1179 + $0x20] sm:$0xff] %vm310, %v4520
        %4553 = vst.msk [vmem:[%s1179 + $0x30] sm:$0xff] %vm310, %v4521
        %4554 = vst.msk [vmem:[%s1179 + $0x38] sm:$0xff] %vm310, %v4522
        %4555 = vst.msk [vmem:[%s1179 + $0x48] sm:$0xff] %vm310, %v4523
        %4556 = vst.msk [vmem:[%s1179 + $0x50] sm:$0xff] %vm310, %v4524
        %4557 = vst.msk [vmem:[%s1179 + $0x60] sm:$0xff] %vm310, %v4525
        %4558 = vst.msk [vmem:[%s1179 + $0x68] sm:$0xff] %vm310, %v4526
        %4559 = vst.msk [vmem:[%s1179 + $0x78] sm:$0xff] %vm310, %v4527
        %4560 = vst.msk [vmem:[%s1179 + $0x80] sm:$0xff] %vm310, %v4528
        %4561 = vst.msk [vmem:[%s1179 + $0x90] sm:$0xff] %vm310, %v4529
        %4562 = vst.msk [vmem:[%s1179 + $0x98] sm:$0xff] %vm310, %v4530
        %4563 = vst.msk [vmem:[%s1179 + $0xa8] sm:$0xff] %vm310, %v4531
        %4564 = vst.msk [vmem:[%s1179 + $0xb0] sm:$0xff] %vm310, %v4532
        %4565 = vst.msk [vmem:[%s1179 + $0xc0] sm:$0xff] %vm310, %v4533
        %4566 = vst.msk [vmem:[%s1179 + $0xc8] sm:$0xff] %vm310, %v4534
        %4567 = vst.msk [vmem:[%s1179 + $0xd8] sm:$0xff] %vm310, %v4535
        %4568 = vst.msk [vmem:[%s1179 + $0xe0] sm:$0xff] %vm310, %v4536
        %4569 = vst.msk [vmem:[%s1179 + $0xf0] sm:$0xff] %vm310, %v4537
        %4570 = vst.msk [vmem:[%s1179 + $0xf8] sm:$0xff] %vm310, %v4538
        %4571 = vst.msk [vmem:[%s1179 + $0x108] sm:$0xff] %vm310, %v4539
        %4572 = vst.msk [vmem:[%s1179 + $0x110] sm:$0xff] %vm310, %v4540
        %4573 = vst.msk [vmem:[%s1179 + $0x120] sm:$0xff] %vm310, %v4541
        %4574 = vst.msk [vmem:[%s1179 + $0x128] sm:$0xff] %vm310, %v4542
        %4575 = vst.msk [vmem:[%s1179 + $0x138] sm:$0xff] %vm310, %v4543
        %4576 = vst.msk [vmem:[%s1179 + $0x140] sm:$0xff] %vm310, %v4544
        %4577 = vst.msk [vmem:[%s1179 + $0x150] sm:$0xff] %vm310, %v4545
        %4578 = vst.msk [vmem:[%s1179 + $0x158] sm:$0xff] %vm310, %v4546
        %4579 = vst.msk [vmem:[%s1179 + $0x168] sm:$0xff] %vm310, %v4547
        %4580 = vst.msk [vmem:[%s1179 + $0x170] sm:$0xff] %vm310, %v4548
        %v4581 = vld [vmem:[#allocation2 + $0x2] sm:$0xff]
        %v4582 = vld [vmem:[#allocation2 + $0xa] sm:$0xff]
        %v4583 = vld [vmem:[#allocation2 + $0x1a] sm:$0xff]
        %v4584 = vld [vmem:[#allocation2 + $0x22] sm:$0xff]
        %v4585 = vld [vmem:[#allocation2 + $0x32] sm:$0xff]
        %v4586 = vld [vmem:[#allocation2 + $0x3a] sm:$0xff]
        %v4587 = vld [vmem:[#allocation2 + $0x4a] sm:$0xff]
        %v4588 = vld [vmem:[#allocation2 + $0x52] sm:$0xff]
        %v4589 = vld [vmem:[#allocation2 + $0x62] sm:$0xff]
        %v4590 = vld [vmem:[#allocation2 + $0x6a] sm:$0xff]
        %v4591 = vld [vmem:[#allocation2 + $0x7a] sm:$0xff]
        %v4592 = vld [vmem:[#allocation2 + $0x82] sm:$0xff]
        %v4593 = vld [vmem:[#allocation2 + $0x92] sm:$0xff]
        %v4594 = vld [vmem:[#allocation2 + $0x9a] sm:$0xff]
        %v4595 = vld [vmem:[#allocation2 + $0xaa] sm:$0xff]
        %v4596 = vld [vmem:[#allocation2 + $0xb2] sm:$0xff]
        %v4597 = vld [vmem:[#allocation2 + $0xc2] sm:$0xff]
        %v4598 = vld [vmem:[#allocation2 + $0xca] sm:$0xff]
        %v4599 = vld [vmem:[#allocation2 + $0xda] sm:$0xff]
        %v4600 = vld [vmem:[#allocation2 + $0xe2] sm:$0xff]
        %v4601 = vld [vmem:[#allocation2 + $0xf2] sm:$0xff]
        %v4602 = vld [vmem:[#allocation2 + $0xfa] sm:$0xff]
        %v4603 = vld [vmem:[#allocation2 + $0x10a] sm:$0xff]
        %v4604 = vld [vmem:[#allocation2 + $0x112] sm:$0xff]
        %v4605 = vld [vmem:[#allocation2 + $0x122] sm:$0xff]
        %v4606 = vld [vmem:[#allocation2 + $0x12a] sm:$0xff]
        %v4607 = vld [vmem:[#allocation2 + $0x13a] sm:$0xff]
        %v4608 = vld [vmem:[#allocation2 + $0x142] sm:$0xff]
        %v4609 = vld [vmem:[#allocation2 + $0x152] sm:$0xff]
        %v4610 = vld [vmem:[#allocation2 + $0x15a] sm:$0xff]
        %v4611 = vld [vmem:[#allocation2 + $0x16a] sm:$0xff]
        %v4612 = vld [vmem:[#allocation2 + $0x172] sm:$0xff]
        %4613 = vrot.lane.b32.xlu0 %v3431, 80
        %v4614 = vpop.permute.xlu0 %4613
        %4615 = vrot.lane.b32.xlu0 %v3434, 80
        %v4616 = vpop.permute.xlu0 %4615
        %4617 = vrot.lane.b32.xlu0 %v3439, 80
        %v4618 = vpop.permute.xlu0 %4617
        %4619 = vrot.lane.b32.xlu0 %v3442, 80
        %v4620 = vpop.permute.xlu0 %4619
        %4621 = vrot.lane.b32.xlu0 %v3447, 80
        %v4622 = vpop.permute.xlu0 %4621
        %4623 = vrot.lane.b32.xlu0 %v3450, 80
        %v4624 = vpop.permute.xlu0 %4623
        %4625 = vrot.lane.b32.xlu0 %v3455, 80
        %v4626 = vpop.permute.xlu0 %4625
        %4627 = vrot.lane.b32.xlu0 %v3458, 80
        %v4628 = vpop.permute.xlu0 %4627
        %4629 = vrot.lane.b32.xlu0 %v3463, 80
        %v4630 = vpop.permute.xlu0 %4629
        %4631 = vrot.lane.b32.xlu0 %v3466, 80
        %v4632 = vpop.permute.xlu0 %4631
        %4633 = vrot.lane.b32.xlu0 %v3471, 80
        %v4634 = vpop.permute.xlu0 %4633
        %4635 = vrot.lane.b32.xlu0 %v3474, 80
        %v4636 = vpop.permute.xlu0 %4635
        %4637 = vrot.lane.b32.xlu0 %v3479, 80
        %v4638 = vpop.permute.xlu0 %4637
        %4639 = vrot.lane.b32.xlu0 %v3482, 80
        %v4640 = vpop.permute.xlu0 %4639
        %4641 = vrot.lane.b32.xlu0 %v3487, 80
        %v4642 = vpop.permute.xlu0 %4641
        %4643 = vrot.lane.b32.xlu0 %v3490, 80
        %v4644 = vpop.permute.xlu0 %4643
        %4645 = vrot.lane.b32.xlu0 %v3495, 80
        %v4646 = vpop.permute.xlu0 %4645
        %4647 = vrot.lane.b32.xlu0 %v3498, 80
        %v4648 = vpop.permute.xlu0 %4647
        %4649 = vrot.lane.b32.xlu0 %v3503, 80
        %v4650 = vpop.permute.xlu0 %4649
        %4651 = vrot.lane.b32.xlu0 %v3506, 80
        %v4652 = vpop.permute.xlu0 %4651
        %4653 = vrot.lane.b32.xlu0 %v3511, 80
        %v4654 = vpop.permute.xlu0 %4653
        %4655 = vrot.lane.b32.xlu0 %v3514, 80
        %v4656 = vpop.permute.xlu0 %4655
        %4657 = vrot.lane.b32.xlu0 %v3519, 80
        %v4658 = vpop.permute.xlu0 %4657
        %4659 = vrot.lane.b32.xlu0 %v3522, 80
        %v4660 = vpop.permute.xlu0 %4659
        %4661 = vrot.lane.b32.xlu0 %v3527, 80
        %v4662 = vpop.permute.xlu0 %4661
        %4663 = vrot.lane.b32.xlu0 %v3530, 80
        %v4664 = vpop.permute.xlu0 %4663
        %4665 = vrot.lane.b32.xlu0 %v3535, 80
        %v4666 = vpop.permute.xlu0 %4665
        %4667 = vrot.lane.b32.xlu0 %v3538, 80
        %v4668 = vpop.permute.xlu0 %4667
        %4669 = vrot.lane.b32.xlu0 %v3543, 80
        %v4670 = vpop.permute.xlu0 %4669
        %4671 = vrot.lane.b32.xlu0 %v3546, 80
        %v4672 = vpop.permute.xlu0 %4671
        %4673 = vrot.lane.b32.xlu0 %v3551, 80
        %v4674 = vpop.permute.xlu0 %4673
        %4675 = vrot.lane.b32.xlu0 %v3554, 80
        %v4676 = vpop.permute.xlu0 %4675
        %v4709 = vadd.f32 %v4581, %v4614
        %v4710 = vadd.f32 %v4582, %v4616
        %v4711 = vadd.f32 %v4583, %v4618
        %v4712 = vadd.f32 %v4584, %v4620
        %v4713 = vadd.f32 %v4585, %v4622
        %v4714 = vadd.f32 %v4586, %v4624
        %v4715 = vadd.f32 %v4587, %v4626
        %v4716 = vadd.f32 %v4588, %v4628
        %v4717 = vadd.f32 %v4589, %v4630
        %v4718 = vadd.f32 %v4590, %v4632
        %v4719 = vadd.f32 %v4591, %v4634
        %v4720 = vadd.f32 %v4592, %v4636
        %v4721 = vadd.f32 %v4593, %v4638
        %v4722 = vadd.f32 %v4594, %v4640
        %v4723 = vadd.f32 %v4595, %v4642
        %v4724 = vadd.f32 %v4596, %v4644
        %v4725 = vadd.f32 %v4597, %v4646
        %v4726 = vadd.f32 %v4598, %v4648
        %v4727 = vadd.f32 %v4599, %v4650
        %v4728 = vadd.f32 %v4600, %v4652
        %v4729 = vadd.f32 %v4601, %v4654
        %v4730 = vadd.f32 %v4602, %v4656
        %v4731 = vadd.f32 %v4603, %v4658
        %v4732 = vadd.f32 %v4604, %v4660
        %v4733 = vadd.f32 %v4605, %v4662
        %v4734 = vadd.f32 %v4606, %v4664
        %v4735 = vadd.f32 %v4607, %v4666
        %v4736 = vadd.f32 %v4608, %v4668
        %v4737 = vadd.f32 %v4609, %v4670
        %v4738 = vadd.f32 %v4610, %v4672
        %v4739 = vadd.f32 %v4611, %v4674
        %v4740 = vadd.f32 %v4612, %v4676
        %4741 = vst.msk [vmem:[#allocation2 + $0x2] sm:$0xff] %vm310, %v4709
        %4742 = vst.msk [vmem:[#allocation2 + $0xa] sm:$0xff] %vm310, %v4710
        %4743 = vst.msk [vmem:[#allocation2 + $0x1a] sm:$0xff] %vm310, %v4711
        %4744 = vst.msk [vmem:[#allocation2 + $0x22] sm:$0xff] %vm310, %v4712
        %4745 = vst.msk [vmem:[#allocation2 + $0x32] sm:$0xff] %vm310, %v4713
        %4746 = vst.msk [vmem:[#allocation2 + $0x3a] sm:$0xff] %vm310, %v4714
        %4747 = vst.msk [vmem:[#allocation2 + $0x4a] sm:$0xff] %vm310, %v4715
        %4748 = vst.msk [vmem:[#allocation2 + $0x52] sm:$0xff] %vm310, %v4716
        %4749 = vst.msk [vmem:[#allocation2 + $0x62] sm:$0xff] %vm310, %v4717
        %4750 = vst.msk [vmem:[#allocation2 + $0x6a] sm:$0xff] %vm310, %v4718
        %4751 = vst.msk [vmem:[#allocation2 + $0x7a] sm:$0xff] %vm310, %v4719
        %4752 = vst.msk [vmem:[#allocation2 + $0x82] sm:$0xff] %vm310, %v4720
        %4753 = vst.msk [vmem:[#allocation2 + $0x92] sm:$0xff] %vm310, %v4721
        %4754 = vst.msk [vmem:[#allocation2 + $0x9a] sm:$0xff] %vm310, %v4722
        %4755 = vst.msk [vmem:[#allocation2 + $0xaa] sm:$0xff] %vm310, %v4723
        %4756 = vst.msk [vmem:[#allocation2 + $0xb2] sm:$0xff] %vm310, %v4724
        %4757 = vst.msk [vmem:[#allocation2 + $0xc2] sm:$0xff] %vm310, %v4725
        %4758 = vst.msk [vmem:[#allocation2 + $0xca] sm:$0xff] %vm310, %v4726
        %4759 = vst.msk [vmem:[#allocation2 + $0xda] sm:$0xff] %vm310, %v4727
        %4760 = vst.msk [vmem:[#allocation2 + $0xe2] sm:$0xff] %vm310, %v4728
        %4761 = vst.msk [vmem:[#allocation2 + $0xf2] sm:$0xff] %vm310, %v4729
        %4762 = vst.msk [vmem:[#allocation2 + $0xfa] sm:$0xff] %vm310, %v4730
        %4763 = vst.msk [vmem:[#allocation2 + $0x10a] sm:$0xff] %vm310, %v4731
        %4764 = vst.msk [vmem:[#allocation2 + $0x112] sm:$0xff] %vm310, %v4732
        %4765 = vst.msk [vmem:[#allocation2 + $0x122] sm:$0xff] %vm310, %v4733
        %4766 = vst.msk [vmem:[#allocation2 + $0x12a] sm:$0xff] %vm310, %v4734
        %4767 = vst.msk [vmem:[#allocation2 + $0x13a] sm:$0xff] %vm310, %v4735
        %4768 = vst.msk [vmem:[#allocation2 + $0x142] sm:$0xff] %vm310, %v4736
        %4769 = vst.msk [vmem:[#allocation2 + $0x152] sm:$0xff] %vm310, %v4737
        %4770 = vst.msk [vmem:[#allocation2 + $0x15a] sm:$0xff] %vm310, %v4738
        %4771 = vst.msk [vmem:[#allocation2 + $0x16a] sm:$0xff] %vm310, %v4739
        %4772 = vst.msk [vmem:[#allocation2 + $0x172] sm:$0xff] %vm310, %v4740
        %v4773 = vld [vmem:[#allocation2 + $0x1] sm:$0xff]
        %v4774 = vld [vmem:[#allocation2 + $0x9] sm:$0xff]
        %v4775 = vld [vmem:[#allocation2 + $0x19] sm:$0xff]
        %v4776 = vld [vmem:[#allocation2 + $0x21] sm:$0xff]
        %v4777 = vld [vmem:[#allocation2 + $0x31] sm:$0xff]
        %v4778 = vld [vmem:[#allocation2 + $0x39] sm:$0xff]
        %v4779 = vld [vmem:[#allocation2 + $0x49] sm:$0xff]
        %v4780 = vld [vmem:[#allocation2 + $0x51] sm:$0xff]
        %v4781 = vld [vmem:[#allocation2 + $0x61] sm:$0xff]
        %v4782 = vld [vmem:[#allocation2 + $0x69] sm:$0xff]
        %v4783 = vld [vmem:[#allocation2 + $0x79] sm:$0xff]
        %v4784 = vld [vmem:[#allocation2 + $0x81] sm:$0xff]
        %v4785 = vld [vmem:[#allocation2 + $0x91] sm:$0xff]
        %v4786 = vld [vmem:[#allocation2 + $0x99] sm:$0xff]
        %v4787 = vld [vmem:[#allocation2 + $0xa9] sm:$0xff]
        %v4788 = vld [vmem:[#allocation2 + $0xb1] sm:$0xff]
        %v4789 = vld [vmem:[#allocation2 + $0xc1] sm:$0xff]
        %v4790 = vld [vmem:[#allocation2 + $0xc9] sm:$0xff]
        %v4791 = vld [vmem:[#allocation2 + $0xd9] sm:$0xff]
        %v4792 = vld [vmem:[#allocation2 + $0xe1] sm:$0xff]
        %v4793 = vld [vmem:[#allocation2 + $0xf1] sm:$0xff]
        %v4794 = vld [vmem:[#allocation2 + $0xf9] sm:$0xff]
        %v4795 = vld [vmem:[#allocation2 + $0x109] sm:$0xff]
        %v4796 = vld [vmem:[#allocation2 + $0x111] sm:$0xff]
        %v4797 = vld [vmem:[#allocation2 + $0x121] sm:$0xff]
        %v4798 = vld [vmem:[#allocation2 + $0x129] sm:$0xff]
        %v4799 = vld [vmem:[#allocation2 + $0x139] sm:$0xff]
        %v4800 = vld [vmem:[#allocation2 + $0x141] sm:$0xff]
        %v4801 = vld [vmem:[#allocation2 + $0x151] sm:$0xff]
        %v4802 = vld [vmem:[#allocation2 + $0x159] sm:$0xff]
        %v4803 = vld [vmem:[#allocation2 + $0x169] sm:$0xff]
        %v4804 = vld [vmem:[#allocation2 + $0x171] sm:$0xff]
        %4805 = vrot.lane.b32.xlu0 %v3431, 72
        %v4806 = vpop.permute.xlu0 %4805
        %4807 = vrot.lane.b32.xlu0 %v3434, 72
        %v4808 = vpop.permute.xlu0 %4807
        %4809 = vrot.lane.b32.xlu0 %v3439, 72
        %v4810 = vpop.permute.xlu0 %4809
        %4811 = vrot.lane.b32.xlu0 %v3442, 72
        %v4812 = vpop.permute.xlu0 %4811
        %4813 = vrot.lane.b32.xlu0 %v3447, 72
        %v4814 = vpop.permute.xlu0 %4813
        %4815 = vrot.lane.b32.xlu0 %v3450, 72
        %v4816 = vpop.permute.xlu0 %4815
        %4817 = vrot.lane.b32.xlu0 %v3455, 72
        %v4818 = vpop.permute.xlu0 %4817
        %4819 = vrot.lane.b32.xlu0 %v3458, 72
        %v4820 = vpop.permute.xlu0 %4819
        %4821 = vrot.lane.b32.xlu0 %v3463, 72
        %v4822 = vpop.permute.xlu0 %4821
        %4823 = vrot.lane.b32.xlu0 %v3466, 72
        %v4824 = vpop.permute.xlu0 %4823
        %4825 = vrot.lane.b32.xlu0 %v3471, 72
        %v4826 = vpop.permute.xlu0 %4825
        %4827 = vrot.lane.b32.xlu0 %v3474, 72
        %v4828 = vpop.permute.xlu0 %4827
        %4829 = vrot.lane.b32.xlu0 %v3479, 72
        %v4830 = vpop.permute.xlu0 %4829
        %4831 = vrot.lane.b32.xlu0 %v3482, 72
        %v4832 = vpop.permute.xlu0 %4831
        %4833 = vrot.lane.b32.xlu0 %v3487, 72
        %v4834 = vpop.permute.xlu0 %4833
        %4835 = vrot.lane.b32.xlu0 %v3490, 72
        %v4836 = vpop.permute.xlu0 %4835
        %4837 = vrot.lane.b32.xlu0 %v3495, 72
        %v4838 = vpop.permute.xlu0 %4837
        %4839 = vrot.lane.b32.xlu0 %v3498, 72
        %v4840 = vpop.permute.xlu0 %4839
        %4841 = vrot.lane.b32.xlu0 %v3503, 72
        %v4842 = vpop.permute.xlu0 %4841
        %4843 = vrot.lane.b32.xlu0 %v3506, 72
        %v4844 = vpop.permute.xlu0 %4843
        %4845 = vrot.lane.b32.xlu0 %v3511, 72
        %v4846 = vpop.permute.xlu0 %4845
        %4847 = vrot.lane.b32.xlu0 %v3514, 72
        %v4848 = vpop.permute.xlu0 %4847
        %4849 = vrot.lane.b32.xlu0 %v3519, 72
        %v4850 = vpop.permute.xlu0 %4849
        %4851 = vrot.lane.b32.xlu0 %v3522, 72
        %v4852 = vpop.permute.xlu0 %4851
        %4853 = vrot.lane.b32.xlu0 %v3527, 72
        %v4854 = vpop.permute.xlu0 %4853
        %4855 = vrot.lane.b32.xlu0 %v3530, 72
        %v4856 = vpop.permute.xlu0 %4855
        %4857 = vrot.lane.b32.xlu0 %v3535, 72
        %v4858 = vpop.permute.xlu0 %4857
        %4859 = vrot.lane.b32.xlu0 %v3538, 72
        %v4860 = vpop.permute.xlu0 %4859
        %4861 = vrot.lane.b32.xlu0 %v3543, 72
        %v4862 = vpop.permute.xlu0 %4861
        %4863 = vrot.lane.b32.xlu0 %v3546, 72
        %v4864 = vpop.permute.xlu0 %4863
        %4865 = vrot.lane.b32.xlu0 %v3551, 72
        %v4866 = vpop.permute.xlu0 %4865
        %4867 = vrot.lane.b32.xlu0 %v3554, 72
        %v4868 = vpop.permute.xlu0 %4867
        %v4901 = vadd.f32 %v4773, %v4806
        %v4902 = vadd.f32 %v4774, %v4808
        %v4903 = vadd.f32 %v4775, %v4810
        %v4904 = vadd.f32 %v4776, %v4812
        %v4905 = vadd.f32 %v4777, %v4814
        %v4906 = vadd.f32 %v4778, %v4816
        %v4907 = vadd.f32 %v4779, %v4818
        %v4908 = vadd.f32 %v4780, %v4820
        %v4909 = vadd.f32 %v4781, %v4822
        %v4910 = vadd.f32 %v4782, %v4824
        %v4911 = vadd.f32 %v4783, %v4826
        %v4912 = vadd.f32 %v4784, %v4828
        %v4913 = vadd.f32 %v4785, %v4830
        %v4914 = vadd.f32 %v4786, %v4832
        %v4915 = vadd.f32 %v4787, %v4834
        %v4916 = vadd.f32 %v4788, %v4836
        %v4917 = vadd.f32 %v4789, %v4838
        %v4918 = vadd.f32 %v4790, %v4840
        %v4919 = vadd.f32 %v4791, %v4842
        %v4920 = vadd.f32 %v4792, %v4844
        %v4921 = vadd.f32 %v4793, %v4846
        %v4922 = vadd.f32 %v4794, %v4848
        %v4923 = vadd.f32 %v4795, %v4850
        %v4924 = vadd.f32 %v4796, %v4852
        %v4925 = vadd.f32 %v4797, %v4854
        %v4926 = vadd.f32 %v4798, %v4856
        %v4927 = vadd.f32 %v4799, %v4858
        %v4928 = vadd.f32 %v4800, %v4860
        %v4929 = vadd.f32 %v4801, %v4862
        %v4930 = vadd.f32 %v4802, %v4864
        %v4931 = vadd.f32 %v4803, %v4866
        %v4932 = vadd.f32 %v4804, %v4868
        %4933 = vst.msk [vmem:[#allocation2 + $0x1] sm:$0xff] %vm310, %v4901
        %4934 = vst.msk [vmem:[#allocation2 + $0x9] sm:$0xff] %vm310, %v4902
        %4935 = vst.msk [vmem:[#allocation2 + $0x19] sm:$0xff] %vm310, %v4903
        %4936 = vst.msk [vmem:[#allocation2 + $0x21] sm:$0xff] %vm310, %v4904
        %4937 = vst.msk [vmem:[#allocation2 + $0x31] sm:$0xff] %vm310, %v4905
        %4938 = vst.msk [vmem:[#allocation2 + $0x39] sm:$0xff] %vm310, %v4906
        %4939 = vst.msk [vmem:[#allocation2 + $0x49] sm:$0xff] %vm310, %v4907
        %4940 = vst.msk [vmem:[#allocation2 + $0x51] sm:$0xff] %vm310, %v4908
        %4941 = vst.msk [vmem:[#allocation2 + $0x61] sm:$0xff] %vm310, %v4909
        %4942 = vst.msk [vmem:[#allocation2 + $0x69] sm:$0xff] %vm310, %v4910
        %4943 = vst.msk [vmem:[#allocation2 + $0x79] sm:$0xff] %vm310, %v4911
        %4944 = vst.msk [vmem:[#allocation2 + $0x81] sm:$0xff] %vm310, %v4912
        %4945 = vst.msk [vmem:[#allocation2 + $0x91] sm:$0xff] %vm310, %v4913
        %4946 = vst.msk [vmem:[#allocation2 + $0x99] sm:$0xff] %vm310, %v4914
        %4947 = vst.msk [vmem:[#allocation2 + $0xa9] sm:$0xff] %vm310, %v4915
        %4948 = vst.msk [vmem:[#allocation2 + $0xb1] sm:$0xff] %vm310, %v4916
        %4949 = vst.msk [vmem:[#allocation2 + $0xc1] sm:$0xff] %vm310, %v4917
        %4950 = vst.msk [vmem:[#allocation2 + $0xc9] sm:$0xff] %vm310, %v4918
        %4951 = vst.msk [vmem:[#allocation2 + $0xd9] sm:$0xff] %vm310, %v4919
        %4952 = vst.msk [vmem:[#allocation2 + $0xe1] sm:$0xff] %vm310, %v4920
        %4953 = vst.msk [vmem:[#allocation2 + $0xf1] sm:$0xff] %vm310, %v4921
        %4954 = vst.msk [vmem:[#allocation2 + $0xf9] sm:$0xff] %vm310, %v4922
        %4955 = vst.msk [vmem:[#allocation2 + $0x109] sm:$0xff] %vm310, %v4923
        %4956 = vst.msk [vmem:[#allocation2 + $0x111] sm:$0xff] %vm310, %v4924
        %4957 = vst.msk [vmem:[#allocation2 + $0x121] sm:$0xff] %vm310, %v4925
        %4958 = vst.msk [vmem:[#allocation2 + $0x129] sm:$0xff] %vm310, %v4926
        %4959 = vst.msk [vmem:[#allocation2 + $0x139] sm:$0xff] %vm310, %v4927
        %4960 = vst.msk [vmem:[#allocation2 + $0x141] sm:$0xff] %vm310, %v4928
        %4961 = vst.msk [vmem:[#allocation2 + $0x151] sm:$0xff] %vm310, %v4929
        %4962 = vst.msk [vmem:[#allocation2 + $0x159] sm:$0xff] %vm310, %v4930
        %4963 = vst.msk [vmem:[#allocation2 + $0x169] sm:$0xff] %vm310, %v4931
        %4964 = vst.msk [vmem:[#allocation2 + $0x171] sm:$0xff] %vm310, %v4932
        %v4965 = vld [vmem:[#allocation2] sm:$0xff]
        %v4966 = vld [vmem:[#allocation2 + $0x8] sm:$0xff]
        %v4967 = vld [vmem:[#allocation2 + $0x18] sm:$0xff]
        %v4968 = vld [vmem:[#allocation2 + $0x20] sm:$0xff]
        %v4969 = vld [vmem:[#allocation2 + $0x30] sm:$0xff]
        %v4970 = vld [vmem:[#allocation2 + $0x38] sm:$0xff]
        %v4971 = vld [vmem:[#allocation2 + $0x48] sm:$0xff]
        %v4972 = vld [vmem:[#allocation2 + $0x50] sm:$0xff]
        %v4973 = vld [vmem:[#allocation2 + $0x60] sm:$0xff]
        %v4974 = vld [vmem:[#allocation2 + $0x68] sm:$0xff]
        %v4975 = vld [vmem:[#allocation2 + $0x78] sm:$0xff]
        %v4976 = vld [vmem:[#allocation2 + $0x80] sm:$0xff]
        %v4977 = vld [vmem:[#allocation2 + $0x90] sm:$0xff]
        %v4978 = vld [vmem:[#allocation2 + $0x98] sm:$0xff]
        %v4979 = vld [vmem:[#allocation2 + $0xa8] sm:$0xff]
        %v4980 = vld [vmem:[#allocation2 + $0xb0] sm:$0xff]
        %v4981 = vld [vmem:[#allocation2 + $0xc0] sm:$0xff]
        %v4982 = vld [vmem:[#allocation2 + $0xc8] sm:$0xff]
        %v4983 = vld [vmem:[#allocation2 + $0xd8] sm:$0xff]
        %v4984 = vld [vmem:[#allocation2 + $0xe0] sm:$0xff]
        %v4985 = vld [vmem:[#allocation2 + $0xf0] sm:$0xff]
        %v4986 = vld [vmem:[#allocation2 + $0xf8] sm:$0xff]
        %v4987 = vld [vmem:[#allocation2 + $0x108] sm:$0xff]
        %v4988 = vld [vmem:[#allocation2 + $0x110] sm:$0xff]
        %v4989 = vld [vmem:[#allocation2 + $0x120] sm:$0xff]
        %v4990 = vld [vmem:[#allocation2 + $0x128] sm:$0xff]
        %v4991 = vld [vmem:[#allocation2 + $0x138] sm:$0xff]
        %v4992 = vld [vmem:[#allocation2 + $0x140] sm:$0xff]
        %v4993 = vld [vmem:[#allocation2 + $0x150] sm:$0xff]
        %v4994 = vld [vmem:[#allocation2 + $0x158] sm:$0xff]
        %v4995 = vld [vmem:[#allocation2 + $0x168] sm:$0xff]
        %v4996 = vld [vmem:[#allocation2 + $0x170] sm:$0xff]
        %4997 = vrot.lane.b32.xlu0 %v3431, 64
        %v4998 = vpop.permute.xlu0 %4997
        %4999 = vrot.lane.b32.xlu0 %v3434, 64
        %v5000 = vpop.permute.xlu0 %4999
        %5001 = vrot.lane.b32.xlu0 %v3439, 64
        %v5002 = vpop.permute.xlu0 %5001
        %5003 = vrot.lane.b32.xlu0 %v3442, 64
        %v5004 = vpop.permute.xlu0 %5003
        %5005 = vrot.lane.b32.xlu0 %v3447, 64
        %v5006 = vpop.permute.xlu0 %5005
        %5007 = vrot.lane.b32.xlu0 %v3450, 64
        %v5008 = vpop.permute.xlu0 %5007
        %5009 = vrot.lane.b32.xlu0 %v3455, 64
        %v5010 = vpop.permute.xlu0 %5009
        %5011 = vrot.lane.b32.xlu0 %v3458, 64
        %v5012 = vpop.permute.xlu0 %5011
        %5013 = vrot.lane.b32.xlu0 %v3463, 64
        %v5014 = vpop.permute.xlu0 %5013
        %5015 = vrot.lane.b32.xlu0 %v3466, 64
        %v5016 = vpop.permute.xlu0 %5015
        %5017 = vrot.lane.b32.xlu0 %v3471, 64
        %v5018 = vpop.permute.xlu0 %5017
        %5019 = vrot.lane.b32.xlu0 %v3474, 64
        %v5020 = vpop.permute.xlu0 %5019
        %5021 = vrot.lane.b32.xlu0 %v3479, 64
        %v5022 = vpop.permute.xlu0 %5021
        %5023 = vrot.lane.b32.xlu0 %v3482, 64
        %v5024 = vpop.permute.xlu0 %5023
        %5025 = vrot.lane.b32.xlu0 %v3487, 64
        %v5026 = vpop.permute.xlu0 %5025
        %5027 = vrot.lane.b32.xlu0 %v3490, 64
        %v5028 = vpop.permute.xlu0 %5027
        %5029 = vrot.lane.b32.xlu0 %v3495, 64
        %v5030 = vpop.permute.xlu0 %5029
        %5031 = vrot.lane.b32.xlu0 %v3498, 64
        %v5032 = vpop.permute.xlu0 %5031
        %5033 = vrot.lane.b32.xlu0 %v3503, 64
        %v5034 = vpop.permute.xlu0 %5033
        %5035 = vrot.lane.b32.xlu0 %v3506, 64
        %v5036 = vpop.permute.xlu0 %5035
        %5037 = vrot.lane.b32.xlu0 %v3511, 64
        %v5038 = vpop.permute.xlu0 %5037
        %5039 = vrot.lane.b32.xlu0 %v3514, 64
        %v5040 = vpop.permute.xlu0 %5039
        %5041 = vrot.lane.b32.xlu0 %v3519, 64
        %v5042 = vpop.permute.xlu0 %5041
        %5043 = vrot.lane.b32.xlu0 %v3522, 64
        %v5044 = vpop.permute.xlu0 %5043
        %5045 = vrot.lane.b32.xlu0 %v3527, 64
        %v5046 = vpop.permute.xlu0 %5045
        %5047 = vrot.lane.b32.xlu0 %v3530, 64
        %v5048 = vpop.permute.xlu0 %5047
        %5049 = vrot.lane.b32.xlu0 %v3535, 64
        %v5050 = vpop.permute.xlu0 %5049
        %5051 = vrot.lane.b32.xlu0 %v3538, 64
        %v5052 = vpop.permute.xlu0 %5051
        %5053 = vrot.lane.b32.xlu0 %v3543, 64
        %v5054 = vpop.permute.xlu0 %5053
        %5055 = vrot.lane.b32.xlu0 %v3546, 64
        %v5056 = vpop.permute.xlu0 %5055
        %5057 = vrot.lane.b32.xlu0 %v3551, 64
        %v5058 = vpop.permute.xlu0 %5057
        %5059 = vrot.lane.b32.xlu0 %v3554, 64
        %v5060 = vpop.permute.xlu0 %5059
        %v5093 = vadd.f32 %v4965, %v4998
        %v5094 = vadd.f32 %v4966, %v5000
        %v5095 = vadd.f32 %v4967, %v5002
        %v5096 = vadd.f32 %v4968, %v5004
        %v5097 = vadd.f32 %v4969, %v5006
        %v5098 = vadd.f32 %v4970, %v5008
        %v5099 = vadd.f32 %v4971, %v5010
        %v5100 = vadd.f32 %v4972, %v5012
        %v5101 = vadd.f32 %v4973, %v5014
        %v5102 = vadd.f32 %v4974, %v5016
        %v5103 = vadd.f32 %v4975, %v5018
        %v5104 = vadd.f32 %v4976, %v5020
        %v5105 = vadd.f32 %v4977, %v5022
        %v5106 = vadd.f32 %v4978, %v5024
        %v5107 = vadd.f32 %v4979, %v5026
        %v5108 = vadd.f32 %v4980, %v5028
        %v5109 = vadd.f32 %v4981, %v5030
        %v5110 = vadd.f32 %v4982, %v5032
        %v5111 = vadd.f32 %v4983, %v5034
        %v5112 = vadd.f32 %v4984, %v5036
        %v5113 = vadd.f32 %v4985, %v5038
        %v5114 = vadd.f32 %v4986, %v5040
        %v5115 = vadd.f32 %v4987, %v5042
        %v5116 = vadd.f32 %v4988, %v5044
        %v5117 = vadd.f32 %v4989, %v5046
        %v5118 = vadd.f32 %v4990, %v5048
        %v5119 = vadd.f32 %v4991, %v5050
        %v5120 = vadd.f32 %v4992, %v5052
        %v5121 = vadd.f32 %v4993, %v5054
        %v5122 = vadd.f32 %v4994, %v5056
        %v5123 = vadd.f32 %v4995, %v5058
        %v5124 = vadd.f32 %v4996, %v5060
        %5125 = vst.msk [vmem:[#allocation2] sm:$0xff] %vm310, %v5093
        %5126 = vst.msk [vmem:[#allocation2 + $0x8] sm:$0xff] %vm310, %v5094
        %5127 = vst.msk [vmem:[#allocation2 + $0x18] sm:$0xff] %vm310, %v5095
        %5128 = vst.msk [vmem:[#allocation2 + $0x20] sm:$0xff] %vm310, %v5096
        %5129 = vst.msk [vmem:[#allocation2 + $0x30] sm:$0xff] %vm310, %v5097
        %5130 = vst.msk [vmem:[#allocation2 + $0x38] sm:$0xff] %vm310, %v5098
        %5131 = vst.msk [vmem:[#allocation2 + $0x48] sm:$0xff] %vm310, %v5099
        %5132 = vst.msk [vmem:[#allocation2 + $0x50] sm:$0xff] %vm310, %v5100
        %5133 = vst.msk [vmem:[#allocation2 + $0x60] sm:$0xff] %vm310, %v5101
        %5134 = vst.msk [vmem:[#allocation2 + $0x68] sm:$0xff] %vm310, %v5102
        %5135 = vst.msk [vmem:[#allocation2 + $0x78] sm:$0xff] %vm310, %v5103
        %5136 = vst.msk [vmem:[#allocation2 + $0x80] sm:$0xff] %vm310, %v5104
        %5137 = vst.msk [vmem:[#allocation2 + $0x90] sm:$0xff] %vm310, %v5105
        %5138 = vst.msk [vmem:[#allocation2 + $0x98] sm:$0xff] %vm310, %v5106
        %5139 = vst.msk [vmem:[#allocation2 + $0xa8] sm:$0xff] %vm310, %v5107
        %5140 = vst.msk [vmem:[#allocation2 + $0xb0] sm:$0xff] %vm310, %v5108
        %5141 = vst.msk [vmem:[#allocation2 + $0xc0] sm:$0xff] %vm310, %v5109
        %5142 = vst.msk [vmem:[#allocation2 + $0xc8] sm:$0xff] %vm310, %v5110
        %5143 = vst.msk [vmem:[#allocation2 + $0xd8] sm:$0xff] %vm310, %v5111
        %5144 = vst.msk [vmem:[#allocation2 + $0xe0] sm:$0xff] %vm310, %v5112
        %5145 = vst.msk [vmem:[#allocation2 + $0xf0] sm:$0xff] %vm310, %v5113
        %5146 = vst.msk [vmem:[#allocation2 + $0xf8] sm:$0xff] %vm310, %v5114
        %5147 = vst.msk [vmem:[#allocation2 + $0x108] sm:$0xff] %vm310, %v5115
        %5148 = vst.msk [vmem:[#allocation2 + $0x110] sm:$0xff] %vm310, %v5116
        %5149 = vst.msk [vmem:[#allocation2 + $0x120] sm:$0xff] %vm310, %v5117
        %5150 = vst.msk [vmem:[#allocation2 + $0x128] sm:$0xff] %vm310, %v5118
        %5151 = vst.msk [vmem:[#allocation2 + $0x138] sm:$0xff] %vm310, %v5119
        %5152 = vst.msk [vmem:[#allocation2 + $0x140] sm:$0xff] %vm310, %v5120
        %5153 = vst.msk [vmem:[#allocation2 + $0x150] sm:$0xff] %vm310, %v5121
        %5154 = vst.msk [vmem:[#allocation2 + $0x158] sm:$0xff] %vm310, %v5122
        %5155 = vst.msk [vmem:[#allocation2 + $0x168] sm:$0xff] %vm310, %v5123
        %5156 = vst.msk [vmem:[#allocation2 + $0x170] sm:$0xff] %vm310, %v5124
        %v5157 = vld [vmem:[%s1179 + $0x1] sm:$0xff]
        %v5158 = vld [vmem:[%s1179 + $0x9] sm:$0xff]
        %v5159 = vld [vmem:[%s1179 + $0x19] sm:$0xff]
        %v5160 = vld [vmem:[%s1179 + $0x21] sm:$0xff]
        %v5161 = vld [vmem:[%s1179 + $0x31] sm:$0xff]
        %v5162 = vld [vmem:[%s1179 + $0x39] sm:$0xff]
        %v5163 = vld [vmem:[%s1179 + $0x49] sm:$0xff]
        %v5164 = vld [vmem:[%s1179 + $0x51] sm:$0xff]
        %v5165 = vld [vmem:[%s1179 + $0x61] sm:$0xff]
        %v5166 = vld [vmem:[%s1179 + $0x69] sm:$0xff]
        %v5167 = vld [vmem:[%s1179 + $0x79] sm:$0xff]
        %v5168 = vld [vmem:[%s1179 + $0x81] sm:$0xff]
        %v5169 = vld [vmem:[%s1179 + $0x91] sm:$0xff]
        %v5170 = vld [vmem:[%s1179 + $0x99] sm:$0xff]
        %v5171 = vld [vmem:[%s1179 + $0xa9] sm:$0xff]
        %v5172 = vld [vmem:[%s1179 + $0xb1] sm:$0xff]
        %v5173 = vld [vmem:[%s1179 + $0xc1] sm:$0xff]
        %v5174 = vld [vmem:[%s1179 + $0xc9] sm:$0xff]
        %v5175 = vld [vmem:[%s1179 + $0xd9] sm:$0xff]
        %v5176 = vld [vmem:[%s1179 + $0xe1] sm:$0xff]
        %v5177 = vld [vmem:[%s1179 + $0xf1] sm:$0xff]
        %v5178 = vld [vmem:[%s1179 + $0xf9] sm:$0xff]
        %v5179 = vld [vmem:[%s1179 + $0x109] sm:$0xff]
        %v5180 = vld [vmem:[%s1179 + $0x111] sm:$0xff]
        %v5181 = vld [vmem:[%s1179 + $0x121] sm:$0xff]
        %v5182 = vld [vmem:[%s1179 + $0x129] sm:$0xff]
        %v5183 = vld [vmem:[%s1179 + $0x139] sm:$0xff]
        %v5184 = vld [vmem:[%s1179 + $0x141] sm:$0xff]
        %v5185 = vld [vmem:[%s1179 + $0x151] sm:$0xff]
        %v5186 = vld [vmem:[%s1179 + $0x159] sm:$0xff]
        %v5187 = vld [vmem:[%s1179 + $0x169] sm:$0xff]
        %v5188 = vld [vmem:[%s1179 + $0x171] sm:$0xff]
        %5221 = vrot.lane.b32.xlu0 %v5157, 16
        %v5222 = vpop.permute.xlu0 %5221
        %5223 = vrot.lane.b32.xlu0 %v5158, 16
        %v5224 = vpop.permute.xlu0 %5223
        %5225 = vrot.lane.b32.xlu0 %v5159, 16
        %v5226 = vpop.permute.xlu0 %5225
        %5227 = vrot.lane.b32.xlu0 %v5160, 16
        %v5228 = vpop.permute.xlu0 %5227
        %5229 = vrot.lane.b32.xlu0 %v5161, 16
        %v5230 = vpop.permute.xlu0 %5229
        %5231 = vrot.lane.b32.xlu0 %v5162, 16
        %v5232 = vpop.permute.xlu0 %5231
        %5233 = vrot.lane.b32.xlu0 %v5163, 16
        %v5234 = vpop.permute.xlu0 %5233
        %5235 = vrot.lane.b32.xlu0 %v5164, 16
        %v5236 = vpop.permute.xlu0 %5235
        %5237 = vrot.lane.b32.xlu0 %v5165, 16
        %v5238 = vpop.permute.xlu0 %5237
        %5239 = vrot.lane.b32.xlu0 %v5166, 16
        %v5240 = vpop.permute.xlu0 %5239
        %5241 = vrot.lane.b32.xlu0 %v5167, 16
        %v5242 = vpop.permute.xlu0 %5241
        %5243 = vrot.lane.b32.xlu0 %v5168, 16
        %v5244 = vpop.permute.xlu0 %5243
        %5245 = vrot.lane.b32.xlu0 %v5169, 16
        %v5246 = vpop.permute.xlu0 %5245
        %5247 = vrot.lane.b32.xlu0 %v5170, 16
        %v5248 = vpop.permute.xlu0 %5247
        %5249 = vrot.lane.b32.xlu0 %v5171, 16
        %v5250 = vpop.permute.xlu0 %5249
        %5251 = vrot.lane.b32.xlu0 %v5172, 16
        %v5252 = vpop.permute.xlu0 %5251
        %5253 = vrot.lane.b32.xlu0 %v5173, 16
        %v5254 = vpop.permute.xlu0 %5253
        %5255 = vrot.lane.b32.xlu0 %v5174, 16
        %v5256 = vpop.permute.xlu0 %5255
        %5257 = vrot.lane.b32.xlu0 %v5175, 16
        %v5258 = vpop.permute.xlu0 %5257
        %5259 = vrot.lane.b32.xlu0 %v5176, 16
        %v5260 = vpop.permute.xlu0 %5259
        %5261 = vrot.lane.b32.xlu0 %v5177, 16
        %v5262 = vpop.permute.xlu0 %5261
        %5263 = vrot.lane.b32.xlu0 %v5178, 16
        %v5264 = vpop.permute.xlu0 %5263
        %5265 = vrot.lane.b32.xlu0 %v5179, 16
        %v5266 = vpop.permute.xlu0 %5265
        %5267 = vrot.lane.b32.xlu0 %v5180, 16
        %v5268 = vpop.permute.xlu0 %5267
        %5269 = vrot.lane.b32.xlu0 %v5181, 16
        %v5270 = vpop.permute.xlu0 %5269
        %5271 = vrot.lane.b32.xlu0 %v5182, 16
        %v5272 = vpop.permute.xlu0 %5271
        %5273 = vrot.lane.b32.xlu0 %v5183, 16
        %v5274 = vpop.permute.xlu0 %5273
        %5275 = vrot.lane.b32.xlu0 %v5184, 16
        %v5276 = vpop.permute.xlu0 %5275
        %5277 = vrot.lane.b32.xlu0 %v5185, 16
        %v5278 = vpop.permute.xlu0 %5277
        %5279 = vrot.lane.b32.xlu0 %v5186, 16
        %v5280 = vpop.permute.xlu0 %5279
        %5281 = vrot.lane.b32.xlu0 %v5187, 16
        %v5282 = vpop.permute.xlu0 %5281
        %5283 = vrot.lane.b32.xlu0 %v5188, 16
        %v5284 = vpop.permute.xlu0 %5283
        %vm5317 = vcmask 195712
        %5318 = vst.msk [vmem:[%s271] sm:$0xff] %vm5317, %v5222
        %5319 = vst.msk [vmem:[%s271 + $0x8] sm:$0xff] %vm5317, %v5224
        %5320 = vst.msk [vmem:[%s271 + $0x10] sm:$0xff] %vm5317, %v5226
        %5321 = vst.msk [vmem:[%s271 + $0x18] sm:$0xff] %vm5317, %v5228
        %5322 = vst.msk [vmem:[%s271 + $0x20] sm:$0xff] %vm5317, %v5230
        %5323 = vst.msk [vmem:[%s271 + $0x28] sm:$0xff] %vm5317, %v5232
        %5324 = vst.msk [vmem:[%s271 + $0x30] sm:$0xff] %vm5317, %v5234
        %5325 = vst.msk [vmem:[%s271 + $0x38] sm:$0xff] %vm5317, %v5236
        %5326 = vst.msk [vmem:[%s271 + $0x40] sm:$0xff] %vm5317, %v5238
        %5327 = vst.msk [vmem:[%s271 + $0x48] sm:$0xff] %vm5317, %v5240
        %5328 = vst.msk [vmem:[%s271 + $0x50] sm:$0xff] %vm5317, %v5242
        %5329 = vst.msk [vmem:[%s271 + $0x58] sm:$0xff] %vm5317, %v5244
        %5330 = vst.msk [vmem:[%s271 + $0x60] sm:$0xff] %vm5317, %v5246
        %5331 = vst.msk [vmem:[%s271 + $0x68] sm:$0xff] %vm5317, %v5248
        %5332 = vst.msk [vmem:[%s271 + $0x70] sm:$0xff] %vm5317, %v5250
        %5333 = vst.msk [vmem:[%s271 + $0x78] sm:$0xff] %vm5317, %v5252
        %5334 = vst.msk [vmem:[%s271 + $0x80] sm:$0xff] %vm5317, %v5254
        %5335 = vst.msk [vmem:[%s271 + $0x88] sm:$0xff] %vm5317, %v5256
        %5336 = vst.msk [vmem:[%s271 + $0x90] sm:$0xff] %vm5317, %v5258
        %5337 = vst.msk [vmem:[%s271 + $0x98] sm:$0xff] %vm5317, %v5260
        %5338 = vst.msk [vmem:[%s271 + $0xa0] sm:$0xff] %vm5317, %v5262
        %5339 = vst.msk [vmem:[%s271 + $0xa8] sm:$0xff] %vm5317, %v5264
        %5340 = vst.msk [vmem:[%s271 + $0xb0] sm:$0xff] %vm5317, %v5266
        %5341 = vst.msk [vmem:[%s271 + $0xb8] sm:$0xff] %vm5317, %v5268
        %5342 = vst.msk [vmem:[%s271 + $0xc0] sm:$0xff] %vm5317, %v5270
        %5343 = vst.msk [vmem:[%s271 + $0xc8] sm:$0xff] %vm5317, %v5272
        %5344 = vst.msk [vmem:[%s271 + $0xd0] sm:$0xff] %vm5317, %v5274
        %5345 = vst.msk [vmem:[%s271 + $0xd8] sm:$0xff] %vm5317, %v5276
        %5346 = vst.msk [vmem:[%s271 + $0xe0] sm:$0xff] %vm5317, %v5278
        %5347 = vst.msk [vmem:[%s271 + $0xe8] sm:$0xff] %vm5317, %v5280
        %5348 = vst.msk [vmem:[%s271 + $0xf0] sm:$0xff] %vm5317, %v5282
        %5349 = vst.msk [vmem:[%s271 + $0xf8] sm:$0xff] %vm5317, %v5284
        %v5350 = vld [vmem:[%s1 + $0x4] sm:$0x1]
        %v5351 = vld [vmem:[%s1 + $0x5] sm:$0x1]
        %v5352 = vld [vmem:[%s271] sm:$0xff]
        %v5353 = vld [vmem:[%s271 + $0x8] sm:$0xff]
        %v5354 = vld [vmem:[%s271 + $0x10] sm:$0xff]
        %v5355 = vld [vmem:[%s271 + $0x18] sm:$0xff]
        %v5356 = vld [vmem:[%s271 + $0x20] sm:$0xff]
        %v5357 = vld [vmem:[%s271 + $0x28] sm:$0xff]
        %v5358 = vld [vmem:[%s271 + $0x30] sm:$0xff]
        %v5359 = vld [vmem:[%s271 + $0x38] sm:$0xff]
        %v5360 = vld [vmem:[%s271 + $0x40] sm:$0xff]
        %v5361 = vld [vmem:[%s271 + $0x48] sm:$0xff]
        %v5362 = vld [vmem:[%s271 + $0x50] sm:$0xff]
        %v5363 = vld [vmem:[%s271 + $0x58] sm:$0xff]
        %v5364 = vld [vmem:[%s271 + $0x60] sm:$0xff]
        %v5365 = vld [vmem:[%s271 + $0x68] sm:$0xff]
        %v5366 = vld [vmem:[%s271 + $0x70] sm:$0xff]
        %v5367 = vld [vmem:[%s271 + $0x78] sm:$0xff]
        %v5368 = vld [vmem:[%s271 + $0x80] sm:$0xff]
        %v5369 = vld [vmem:[%s271 + $0x88] sm:$0xff]
        %v5370 = vld [vmem:[%s271 + $0x90] sm:$0xff]
        %v5371 = vld [vmem:[%s271 + $0x98] sm:$0xff]
        %v5372 = vld [vmem:[%s271 + $0xa0] sm:$0xff]
        %v5373 = vld [vmem:[%s271 + $0xa8] sm:$0xff]
        %v5374 = vld [vmem:[%s271 + $0xb0] sm:$0xff]
        %v5375 = vld [vmem:[%s271 + $0xb8] sm:$0xff]
        %v5376 = vld [vmem:[%s271 + $0xc0] sm:$0xff]
        %v5377 = vld [vmem:[%s271 + $0xc8] sm:$0xff]
        %v5378 = vld [vmem:[%s271 + $0xd0] sm:$0xff]
        %v5379 = vld [vmem:[%s271 + $0xd8] sm:$0xff]
        %v5380 = vld [vmem:[%s271 + $0xe0] sm:$0xff]
        %v5381 = vld [vmem:[%s271 + $0xe8] sm:$0xff]
        %v5382 = vld [vmem:[%s271 + $0xf0] sm:$0xff]
        %v5383 = vld [vmem:[%s271 + $0xf8] sm:$0xff]
        %v5384 = vlaneseq
        %v5385 = vshrl.u32 %v5384, 7
        %v5386 = vsub.s32 0, %v5385
        %v5387 = vrot.slane %v5350, %v5386
        %v5388 = vmul.f32 %v5352, %v5387
        %v5389 = vmul.f32 %v5353, %v5387
        %v5390 = vmul.f32 %v5354, %v5387
        %v5391 = vmul.f32 %v5355, %v5387
        %v5392 = vmul.f32 %v5356, %v5387
        %v5393 = vmul.f32 %v5357, %v5387
        %v5394 = vmul.f32 %v5358, %v5387
        %v5395 = vmul.f32 %v5359, %v5387
        %v5396 = vmul.f32 %v5360, %v5387
        %v5397 = vmul.f32 %v5361, %v5387
        %v5398 = vmul.f32 %v5362, %v5387
        %v5399 = vmul.f32 %v5363, %v5387
        %v5400 = vmul.f32 %v5364, %v5387
        %v5401 = vmul.f32 %v5365, %v5387
        %v5402 = vmul.f32 %v5366, %v5387
        %v5403 = vmul.f32 %v5367, %v5387
        %v5404 = vmul.f32 %v5368, %v5387
        %v5405 = vmul.f32 %v5369, %v5387
        %v5406 = vmul.f32 %v5370, %v5387
        %v5407 = vmul.f32 %v5371, %v5387
        %v5408 = vmul.f32 %v5372, %v5387
        %v5409 = vmul.f32 %v5373, %v5387
        %v5410 = vmul.f32 %v5374, %v5387
        %v5411 = vmul.f32 %v5375, %v5387
        %v5412 = vmul.f32 %v5376, %v5387
        %v5413 = vmul.f32 %v5377, %v5387
        %v5414 = vmul.f32 %v5378, %v5387
        %v5415 = vmul.f32 %v5379, %v5387
        %v5416 = vmul.f32 %v5380, %v5387
        %v5417 = vmul.f32 %v5381, %v5387
        %v5418 = vmul.f32 %v5382, %v5387
        %v5419 = vmul.f32 %v5383, %v5387
        %v5420 = vlaneseq
        %v5421 = vshrl.u32 %v5420, 7
        %v5422 = vsub.s32 0, %v5421
        %v5423 = vrot.slane %v5351, %v5422
        %v5424 = vadd.f32 %v5388, %v5423
        %v5425 = vadd.f32 %v5389, %v5423
        %v5426 = vadd.f32 %v5390, %v5423
        %v5427 = vadd.f32 %v5391, %v5423
        %v5428 = vadd.f32 %v5392, %v5423
        %v5429 = vadd.f32 %v5393, %v5423
        %v5430 = vadd.f32 %v5394, %v5423
        %v5431 = vadd.f32 %v5395, %v5423
        %v5432 = vadd.f32 %v5396, %v5423
        %v5433 = vadd.f32 %v5397, %v5423
        %v5434 = vadd.f32 %v5398, %v5423
        %v5435 = vadd.f32 %v5399, %v5423
        %v5436 = vadd.f32 %v5400, %v5423
        %v5437 = vadd.f32 %v5401, %v5423
        %v5438 = vadd.f32 %v5402, %v5423
        %v5439 = vadd.f32 %v5403, %v5423
        %v5440 = vadd.f32 %v5404, %v5423
        %v5441 = vadd.f32 %v5405, %v5423
        %v5442 = vadd.f32 %v5406, %v5423
        %v5443 = vadd.f32 %v5407, %v5423
        %v5444 = vadd.f32 %v5408, %v5423
        %v5445 = vadd.f32 %v5409, %v5423
        %v5446 = vadd.f32 %v5410, %v5423
        %v5447 = vadd.f32 %v5411, %v5423
        %v5448 = vadd.f32 %v5412, %v5423
        %v5449 = vadd.f32 %v5413, %v5423
        %v5450 = vadd.f32 %v5414, %v5423
        %v5451 = vadd.f32 %v5415, %v5423
        %v5452 = vadd.f32 %v5416, %v5423
        %v5453 = vadd.f32 %v5417, %v5423
        %v5454 = vadd.f32 %v5418, %v5423
        %v5455 = vadd.f32 %v5419, %v5423
        %v5456 = vmax.f32 %v5424, 0.0
        %v5457 = vmax.f32 %v5425, 0.0
        %v5458 = vmax.f32 %v5426, 0.0
        %v5459 = vmax.f32 %v5427, 0.0
        %v5460 = vmax.f32 %v5428, 0.0
        %v5461 = vmax.f32 %v5429, 0.0
        %v5462 = vmax.f32 %v5430, 0.0
        %v5463 = vmax.f32 %v5431, 0.0
        %v5464 = vmax.f32 %v5432, 0.0
        %v5465 = vmax.f32 %v5433, 0.0
        %v5466 = vmax.f32 %v5434, 0.0
        %v5467 = vmax.f32 %v5435, 0.0
        %v5468 = vmax.f32 %v5436, 0.0
        %v5469 = vmax.f32 %v5437, 0.0
        %v5470 = vmax.f32 %v5438, 0.0
        %v5471 = vmax.f32 %v5439, 0.0
        %v5472 = vmax.f32 %v5440, 0.0
        %v5473 = vmax.f32 %v5441, 0.0
        %v5474 = vmax.f32 %v5442, 0.0
        %v5475 = vmax.f32 %v5443, 0.0
        %v5476 = vmax.f32 %v5444, 0.0
        %v5477 = vmax.f32 %v5445, 0.0
        %v5478 = vmax.f32 %v5446, 0.0
        %v5479 = vmax.f32 %v5447, 0.0
        %v5480 = vmax.f32 %v5448, 0.0
        %v5481 = vmax.f32 %v5449, 0.0
        %v5482 = vmax.f32 %v5450, 0.0
        %v5483 = vmax.f32 %v5451, 0.0
        %v5484 = vmax.f32 %v5452, 0.0
        %v5485 = vmax.f32 %v5453, 0.0
        %v5486 = vmax.f32 %v5454, 0.0
        %v5487 = vmax.f32 %v5455, 0.0
        %v5488 = vpack.c.bf16 %v5457, %v5456
        %v5489 = vpack.c.bf16 %v5459, %v5458
        %v5490 = vpack.c.bf16 %v5461, %v5460
        %v5491 = vpack.c.bf16 %v5463, %v5462
        %v5492 = vpack.c.bf16 %v5465, %v5464
        %v5493 = vpack.c.bf16 %v5467, %v5466
        %v5494 = vpack.c.bf16 %v5469, %v5468
        %v5495 = vpack.c.bf16 %v5471, %v5470
        %v5496 = vpack.c.bf16 %v5473, %v5472
        %v5497 = vpack.c.bf16 %v5475, %v5474
        %v5498 = vpack.c.bf16 %v5477, %v5476
        %v5499 = vpack.c.bf16 %v5479, %v5478
        %v5500 = vpack.c.bf16 %v5481, %v5480
        %v5501 = vpack.c.bf16 %v5483, %v5482
        %v5502 = vpack.c.bf16 %v5485, %v5484
        %v5503 = vpack.c.bf16 %v5487, %v5486
        %v5504 = vld [vmem:[%s6] sm:$0xf]
        %v5505 = vld [vmem:[%s6 + $0x4] sm:$0xf]
        %v5506 = vld [vmem:[%s6 + $0x8] sm:$0xf]
        %v5510 = vunpack.c.l.b16 %v5504
        %v5511 = vunpack.c.l.b16 %v5505
        %v5512 = vunpack.c.l.b16 %v5506
        %v5513 = vpack.c.b16 %v5511, %v5510
        %v5514 = vpack.c.b16 %v5512, %v5512
        %vm5516 = vcmask 195584
        %v5518 = vsel %vm5516, %v5488, 0
        %v5521 = vsel %vm5516, %v5489, 0
        %v5524 = vsel %vm5516, %v5490, 0
        %v5527 = vsel %vm5516, %v5491, 0
        %v5530 = vsel %vm5516, %v5492, 0
        %v5533 = vsel %vm5516, %v5493, 0
        %v5536 = vsel %vm5516, %v5494, 0
        %v5539 = vsel %vm5516, %v5495, 0
        %v5542 = vsel %vm5516, %v5496, 0
        %v5545 = vsel %vm5516, %v5497, 0
        %v5548 = vsel %vm5516, %v5498, 0
        %v5551 = vsel %vm5516, %v5499, 0
        %v5554 = vsel %vm5516, %v5500, 0
        %v5557 = vsel %vm5516, %v5501, 0
        %v5560 = vsel %vm5516, %v5502, 0
        %v5563 = vsel %vm5516, %v5503, 0
        %v5566 = vsel %vm546, %v5514, 0
        %5568 = vmatprep.subr.bf16.mxu0 0
        %5569 = vmatpush1.bf16.msra.mxu0 %v5513
        %5570 = vmatprep.subr.bf16.mxu0 0
        %5571 = vmatpush1.bf16.msra.mxu0 %v5566
        %5572 = vmatprep.subr.bf16.mxu0 0
        %5573 = vmatpush1.bf16.msra.mxu0 0
        %5574 = vmatprep.subr.bf16.mxu0 0
        %5575 = vmatpush1.bf16.msra.mxu0 0
        %5576 = vmatprep.subr.bf16.mxu0 0
        %5577 = vmatpush1.bf16.msra.mxu0 0
        %5578 = vmatprep.subr.bf16.mxu0 0
        %5579 = vmatpush1.bf16.msra.mxu0 0
        %5580 = vmatprep.subr.bf16.mxu0 0
        %5581 = vmatpush1.bf16.msra.mxu0 0
        %5582 = vmatprep.subr.bf16.mxu0 0
        %5583 = vmatpush1.bf16.msra.mxu0 0
        %5584 = vmatprep.subr.bf16.mxu0 0
        %5585 = vmatpush1.bf16.msra.mxu0 0
        %5586 = vmatprep.subr.bf16.mxu0 0
        %5587 = vmatpush1.bf16.msra.mxu0 0
        %5588 = vmatprep.subr.bf16.mxu0 0
        %5589 = vmatpush1.bf16.msra.mxu0 0
        %5590 = vmatprep.subr.bf16.mxu0 0
        %5591 = vmatpush1.bf16.msra.mxu0 0
        %5592 = vmatprep.subr.bf16.mxu0 0
        %5593 = vmatpush1.bf16.msra.mxu0 0
        %5594 = vmatprep.subr.bf16.mxu0 0
        %5595 = vmatpush1.bf16.msra.mxu0 0
        %5596 = vmatprep.subr.bf16.mxu0 0
        %5597 = vmatpush1.bf16.msra.mxu0 0
        %5598 = vmatprep.subr.bf16.mxu0 0
        %5599 = vmatpush1.bf16.msra.mxu0 0
        %5600 = vmatprep.mubr.bf16.mxu0 0
        %5601 = vmatmul.mubr.bf16.gmra.mrb[0].mxu0 %v5518
        %v5602 = vpop.f32.mrb[0].mxu0
        %v5603 = vadd.f32 0.0, %v5602
        %v5604 = vpop.f32.mrb[0].mxu0
        %v5605 = vpop.f32.mrb[0].mxu0
        %v5606 = vadd.f32 0.0, %v5605
        %v5607 = vpop.f32.mrb[0].mxu0
        %5608 = vmatprep.mubr.bf16.mxu0 0
        %5609 = vmatmul.mubr.bf16.gmra.mrb[0].mxu0 %v5521
        %v5610 = vpop.f32.mrb[0].mxu0
        %v5611 = vadd.f32 0.0, %v5610
        %v5612 = vpop.f32.mrb[0].mxu0
        %v5613 = vpop.f32.mrb[0].mxu0
        %v5614 = vadd.f32 0.0, %v5613
        %v5615 = vpop.f32.mrb[0].mxu0
        %5616 = vmatprep.mubr.bf16.mxu0 0
        %5617 = vmatmul.mubr.bf16.gmra.mrb[0].mxu0 %v5524
        %v5618 = vpop.f32.mrb[0].mxu0
        %v5619 = vadd.f32 0.0, %v5618
        %v5620 = vpop.f32.mrb[0].mxu0
        %v5621 = vpop.f32.mrb[0].mxu0
        %v5622 = vadd.f32 0.0, %v5621
        %v5623 = vpop.f32.mrb[0].mxu0
        %5624 = vmatprep.mubr.bf16.mxu0 0
        %5625 = vmatmul.mubr.bf16.gmra.mrb[0].mxu0 %v5527
        %v5626 = vpop.f32.mrb[0].mxu0
        %v5627 = vadd.f32 0.0, %v5626
        %v5628 = vpop.f32.mrb[0].mxu0
        %v5629 = vpop.f32.mrb[0].mxu0
        %v5630 = vadd.f32 0.0, %v5629
        %v5631 = vpop.f32.mrb[0].mxu0
        %5632 = vmatprep.mubr.bf16.mxu0 0
        %5633 = vmatmul.mubr.bf16.gmra.mrb[0].mxu0 %v5530
        %v5634 = vpop.f32.mrb[0].mxu0
        %v5635 = vadd.f32 0.0, %v5634
        %v5636 = vpop.f32.mrb[0].mxu0
        %v5637 = vpop.f32.mrb[0].mxu0
        %v5638 = vadd.f32 0.0, %v5637
        %v5639 = vpop.f32.mrb[0].mxu0
        %5640 = vmatprep.mubr.bf16.mxu0 0
        %5641 = vmatmul.mubr.bf16.gmra.mrb[0].mxu0 %v5533
        %v5642 = vpop.f32.mrb[0].mxu0
        %v5643 = vadd.f32 0.0, %v5642
        %v5644 = vpop.f32.mrb[0].mxu0
        %v5645 = vpop.f32.mrb[0].mxu0
        %v5646 = vadd.f32 0.0, %v5645
        %v5647 = vpop.f32.mrb[0].mxu0
        %5648 = vmatprep.mubr.bf16.mxu0 0
        %5649 = vmatmul.mubr.bf16.gmra.mrb[0].mxu0 %v5536
        %v5650 = vpop.f32.mrb[0].mxu0
        %v5651 = vadd.f32 0.0, %v5650
        %v5652 = vpop.f32.mrb[0].mxu0
        %v5653 = vpop.f32.mrb[0].mxu0
        %v5654 = vadd.f32 0.0, %v5653
        %v5655 = vpop.f32.mrb[0].mxu0
        %5656 = vmatprep.mubr.bf16.mxu0 0
        %5657 = vmatmul.mubr.bf16.gmra.mrb[0].mxu0 %v5539
        %v5658 = vpop.f32.mrb[0].mxu0
        %v5659 = vadd.f32 0.0, %v5658
        %v5660 = vpop.f32.mrb[0].mxu0
        %v5661 = vpop.f32.mrb[0].mxu0
        %v5662 = vadd.f32 0.0, %v5661
        %v5663 = vpop.f32.mrb[0].mxu0
        %5664 = vmatprep.mubr.bf16.mxu0 0
        %5665 = vmatmul.mubr.bf16.gmra.mrb[0].mxu0 %v5542
        %v5666 = vpop.f32.mrb[0].mxu0
        %v5667 = vadd.f32 0.0, %v5666
        %v5668 = vpop.f32.mrb[0].mxu0
        %v5669 = vpop.f32.mrb[0].mxu0
        %v5670 = vadd.f32 0.0, %v5669
        %v5671 = vpop.f32.mrb[0].mxu0
        %5672 = vmatprep.mubr.bf16.mxu0 0
        %5673 = vmatmul.mubr.bf16.gmra.mrb[0].mxu0 %v5545
        %v5674 = vpop.f32.mrb[0].mxu0
        %v5675 = vadd.f32 0.0, %v5674
        %v5676 = vpop.f32.mrb[0].mxu0
        %v5677 = vpop.f32.mrb[0].mxu0
        %v5678 = vadd.f32 0.0, %v5677
        %v5679 = vpop.f32.mrb[0].mxu0
        %5680 = vmatprep.mubr.bf16.mxu0 0
        %5681 = vmatmul.mubr.bf16.gmra.mrb[0].mxu0 %v5548
        %v5682 = vpop.f32.mrb[0].mxu0
        %v5683 = vadd.f32 0.0, %v5682
        %v5684 = vpop.f32.mrb[0].mxu0
        %v5685 = vpop.f32.mrb[0].mxu0
        %v5686 = vadd.f32 0.0, %v5685
        %v5687 = vpop.f32.mrb[0].mxu0
        %5688 = vmatprep.mubr.bf16.mxu0 0
        %5689 = vmatmul.mubr.bf16.gmra.mrb[0].mxu0 %v5551
        %v5690 = vpop.f32.mrb[0].mxu0
        %v5691 = vadd.f32 0.0, %v5690
        %v5692 = vpop.f32.mrb[0].mxu0
        %v5693 = vpop.f32.mrb[0].mxu0
        %v5694 = vadd.f32 0.0, %v5693
        %v5695 = vpop.f32.mrb[0].mxu0
        %5696 = vmatprep.mubr.bf16.mxu0 0
        %5697 = vmatmul.mubr.bf16.gmra.mrb[0].mxu0 %v5554
        %v5698 = vpop.f32.mrb[0].mxu0
        %v5699 = vadd.f32 0.0, %v5698
        %v5700 = vpop.f32.mrb[0].mxu0
        %v5701 = vpop.f32.mrb[0].mxu0
        %v5702 = vadd.f32 0.0, %v5701
        %v5703 = vpop.f32.mrb[0].mxu0
        %5704 = vmatprep.mubr.bf16.mxu0 0
        %5705 = vmatmul.mubr.bf16.gmra.mrb[0].mxu0 %v5557
        %v5706 = vpop.f32.mrb[0].mxu0
        %v5707 = vadd.f32 0.0, %v5706
        %v5708 = vpop.f32.mrb[0].mxu0
        %v5709 = vpop.f32.mrb[0].mxu0
        %v5710 = vadd.f32 0.0, %v5709
        %v5711 = vpop.f32.mrb[0].mxu0
        %5712 = vmatprep.mubr.bf16.mxu0 0
        %5713 = vmatmul.mubr.bf16.gmra.mrb[0].mxu0 %v5560
        %v5714 = vpop.f32.mrb[0].mxu0
        %v5715 = vadd.f32 0.0, %v5714
        %v5716 = vpop.f32.mrb[0].mxu0
        %v5717 = vpop.f32.mrb[0].mxu0
        %v5718 = vadd.f32 0.0, %v5717
        %v5719 = vpop.f32.mrb[0].mxu0
        %5720 = vmatprep.mubr.bf16.mxu0 0
        %5721 = vmatmul.mubr.bf16.gmra.mrb[0].mxu0 %v5563
        %v5722 = vpop.f32.mrb[0].mxu0
        %v5723 = vadd.f32 0.0, %v5722
        %v5724 = vpop.f32.mrb[0].mxu0
        %v5725 = vpop.f32.mrb[0].mxu0
        %v5726 = vadd.f32 0.0, %v5725
        %v5727 = vpop.f32.mrb[0].mxu0
        %5728 = vdwg.mxu0
        %v5729 = vld [vmem:[%s2 + $0x4] sm:$0x1]
        %v5730 = vld [vmem:[%s2 + $0x5] sm:$0x1]
        %v5731 = vlaneseq
        %v5732 = vshrl.u32 %v5731, 7
        %v5733 = vsub.s32 0, %v5732
        %v5734 = vrot.slane %v5729, %v5733
        %v5735 = vmul.f32 %v5603, %v5734
        %v5736 = vmul.f32 %v5606, %v5734
        %v5737 = vmul.f32 %v5611, %v5734
        %v5738 = vmul.f32 %v5614, %v5734
        %v5739 = vmul.f32 %v5619, %v5734
        %v5740 = vmul.f32 %v5622, %v5734
        %v5741 = vmul.f32 %v5627, %v5734
        %v5742 = vmul.f32 %v5630, %v5734
        %v5743 = vmul.f32 %v5635, %v5734
        %v5744 = vmul.f32 %v5638, %v5734
        %v5745 = vmul.f32 %v5643, %v5734
        %v5746 = vmul.f32 %v5646, %v5734
        %v5747 = vmul.f32 %v5651, %v5734
        %v5748 = vmul.f32 %v5654, %v5734
        %v5749 = vmul.f32 %v5659, %v5734
        %v5750 = vmul.f32 %v5662, %v5734
        %v5751 = vmul.f32 %v5667, %v5734
        %v5752 = vmul.f32 %v5670, %v5734
        %v5753 = vmul.f32 %v5675, %v5734
        %v5754 = vmul.f32 %v5678, %v5734
        %v5755 = vmul.f32 %v5683, %v5734
        %v5756 = vmul.f32 %v5686, %v5734
        %v5757 = vmul.f32 %v5691, %v5734
        %v5758 = vmul.f32 %v5694, %v5734
        %v5759 = vmul.f32 %v5699, %v5734
        %v5760 = vmul.f32 %v5702, %v5734
        %v5761 = vmul.f32 %v5707, %v5734
        %v5762 = vmul.f32 %v5710, %v5734
        %v5763 = vmul.f32 %v5715, %v5734
        %v5764 = vmul.f32 %v5718, %v5734
        %v5765 = vmul.f32 %v5723, %v5734
        %v5766 = vmul.f32 %v5726, %v5734
        %v5767 = vlaneseq
        %v5768 = vshrl.u32 %v5767, 7
        %v5769 = vsub.s32 0, %v5768
        %v5770 = vrot.slane %v5730, %v5769
        %v5771 = vadd.f32 %v5735, %v5770
        %v5772 = vadd.f32 %v5736, %v5770
        %v5773 = vadd.f32 %v5737, %v5770
        %v5774 = vadd.f32 %v5738, %v5770
        %v5775 = vadd.f32 %v5739, %v5770
        %v5776 = vadd.f32 %v5740, %v5770
        %v5777 = vadd.f32 %v5741, %v5770
        %v5778 = vadd.f32 %v5742, %v5770
        %v5779 = vadd.f32 %v5743, %v5770
        %v5780 = vadd.f32 %v5744, %v5770
        %v5781 = vadd.f32 %v5745, %v5770
        %v5782 = vadd.f32 %v5746, %v5770
        %v5783 = vadd.f32 %v5747, %v5770
        %v5784 = vadd.f32 %v5748, %v5770
        %v5785 = vadd.f32 %v5749, %v5770
        %v5786 = vadd.f32 %v5750, %v5770
        %v5787 = vadd.f32 %v5751, %v5770
        %v5788 = vadd.f32 %v5752, %v5770
        %v5789 = vadd.f32 %v5753, %v5770
        %v5790 = vadd.f32 %v5754, %v5770
        %v5791 = vadd.f32 %v5755, %v5770
        %v5792 = vadd.f32 %v5756, %v5770
        %v5793 = vadd.f32 %v5757, %v5770
        %v5794 = vadd.f32 %v5758, %v5770
        %v5795 = vadd.f32 %v5759, %v5770
        %v5796 = vadd.f32 %v5760, %v5770
        %v5797 = vadd.f32 %v5761, %v5770
        %v5798 = vadd.f32 %v5762, %v5770
        %v5799 = vadd.f32 %v5763, %v5770
        %v5800 = vadd.f32 %v5764, %v5770
        %v5801 = vadd.f32 %v5765, %v5770
        %v5802 = vadd.f32 %v5766, %v5770
        %v5803 = vmax.f32 %v5771, 0.0
        %v5804 = vmax.f32 %v5772, 0.0
        %v5805 = vmax.f32 %v5773, 0.0
        %v5806 = vmax.f32 %v5774, 0.0
        %v5807 = vmax.f32 %v5775, 0.0
        %v5808 = vmax.f32 %v5776, 0.0
        %v5809 = vmax.f32 %v5777, 0.0
        %v5810 = vmax.f32 %v5778, 0.0
        %v5811 = vmax.f32 %v5779, 0.0
        %v5812 = vmax.f32 %v5780, 0.0
        %v5813 = vmax.f32 %v5781, 0.0
        %v5814 = vmax.f32 %v5782, 0.0
        %v5815 = vmax.f32 %v5783, 0.0
        %v5816 = vmax.f32 %v5784, 0.0
        %v5817 = vmax.f32 %v5785, 0.0
        %v5818 = vmax.f32 %v5786, 0.0
        %v5819 = vmax.f32 %v5787, 0.0
        %v5820 = vmax.f32 %v5788, 0.0
        %v5821 = vmax.f32 %v5789, 0.0
        %v5822 = vmax.f32 %v5790, 0.0
        %v5823 = vmax.f32 %v5791, 0.0
        %v5824 = vmax.f32 %v5792, 0.0
        %v5825 = vmax.f32 %v5793, 0.0
        %v5826 = vmax.f32 %v5794, 0.0
        %v5827 = vmax.f32 %v5795, 0.0
        %v5828 = vmax.f32 %v5796, 0.0
        %v5829 = vmax.f32 %v5797, 0.0
        %v5830 = vmax.f32 %v5798, 0.0
        %v5831 = vmax.f32 %v5799, 0.0
        %v5832 = vmax.f32 %v5800, 0.0
        %v5833 = vmax.f32 %v5801, 0.0
        %v5834 = vmax.f32 %v5802, 0.0
        %v5835 = vpack.c.bf16 %v5804, %v5803
        %v5836 = vpack.c.bf16 %v5806, %v5805
        %v5837 = vpack.c.bf16 %v5808, %v5807
        %v5838 = vpack.c.bf16 %v5810, %v5809
        %v5839 = vpack.c.bf16 %v5812, %v5811
        %v5840 = vpack.c.bf16 %v5814, %v5813
        %v5841 = vpack.c.bf16 %v5816, %v5815
        %v5842 = vpack.c.bf16 %v5818, %v5817
        %v5843 = vpack.c.bf16 %v5820, %v5819
        %v5844 = vpack.c.bf16 %v5822, %v5821
        %v5845 = vpack.c.bf16 %v5824, %v5823
        %v5846 = vpack.c.bf16 %v5826, %v5825
        %v5847 = vpack.c.bf16 %v5828, %v5827
        %v5848 = vpack.c.bf16 %v5830, %v5829
        %v5849 = vpack.c.bf16 %v5832, %v5831
        %v5850 = vpack.c.bf16 %v5834, %v5833
        %s5851 = scalar_lea.vmem %s3, 16
        %v5852 = vld [vmem:[%s5851] sm:$0xf]
        %v5853 = vld [vmem:[%s5851 + $0x4] sm:$0xf]
        %v5856 = vunpack.c.l.b16 %v5852
        %v5857 = vunpack.c.l.b16 %v5853
        %v5858 = vpack.c.b16 %v5857, %v5856
        %v5861 = vsel %vm841, %v5835, 0
        %v5864 = vsel %vm841, %v5836, 0
        %v5867 = vsel %vm841, %v5837, 0
        %v5870 = vsel %vm841, %v5838, 0
        %v5873 = vsel %vm841, %v5839, 0
        %v5876 = vsel %vm841, %v5840, 0
        %v5879 = vsel %vm841, %v5841, 0
        %v5882 = vsel %vm841, %v5842, 0
        %v5885 = vsel %vm841, %v5843, 0
        %v5888 = vsel %vm841, %v5844, 0
        %v5891 = vsel %vm841, %v5845, 0
        %v5894 = vsel %vm841, %v5846, 0
        %v5897 = vsel %vm841, %v5847, 0
        %v5900 = vsel %vm841, %v5848, 0
        %v5903 = vsel %vm841, %v5849, 0
        %v5906 = vsel %vm841, %v5850, 0
        %5908 = vmatprep.subr.bf16.mxu0 0
        %5909 = vmatpush1.bf16.msra.mxu0 %v5858
        %5910 = vmatprep.subr.bf16.mxu0 0
        %5911 = vmatpush1.bf16.msra.mxu0 0
        %5912 = vmatprep.subr.bf16.mxu0 0
        %5913 = vmatpush1.bf16.msra.mxu0 0
        %5914 = vmatprep.subr.bf16.mxu0 0
        %5915 = vmatpush1.bf16.msra.mxu0 0
        %5916 = vmatprep.subr.bf16.mxu0 0
        %5917 = vmatpush1.bf16.msra.mxu0 0
        %5918 = vmatprep.subr.bf16.mxu0 0
        %5919 = vmatpush1.bf16.msra.mxu0 0
        %5920 = vmatprep.subr.bf16.mxu0 0
        %5921 = vmatpush1.bf16.msra.mxu0 0
        %5922 = vmatprep.subr.bf16.mxu0 0
        %5923 = vmatpush1.bf16.msra.mxu0 0
        %5924 = vmatprep.subr.bf16.mxu0 0
        %5925 = vmatpush1.bf16.msra.mxu0 0
        %5926 = vmatprep.subr.bf16.mxu0 0
        %5927 = vmatpush1.bf16.msra.mxu0 0
        %5928 = vmatprep.subr.bf16.mxu0 0
        %5929 = vmatpush1.bf16.msra.mxu0 0
        %5930 = vmatprep.subr.bf16.mxu0 0
        %5931 = vmatpush1.bf16.msra.mxu0 0
        %5932 = vmatprep.subr.bf16.mxu0 0
        %5933 = vmatpush1.bf16.msra.mxu0 0
        %5934 = vmatprep.subr.bf16.mxu0 0
        %5935 = vmatpush1.bf16.msra.mxu0 0
        %5936 = vmatprep.subr.bf16.mxu0 0
        %5937 = vmatpush1.bf16.msra.mxu0 0
        %5938 = vmatprep.subr.bf16.mxu0 0
        %5939 = vmatpush1.bf16.msra.mxu0 0
        %5940 = vmatprep.mubr.bf16.mxu0 0
        %5941 = vmatmul.mubr.bf16.gmra.mrb[0].mxu0 %v5861
        %v5942 = vpop.f32.mrb[0].mxu0
        %v5943 = vadd.f32 0.0, %v5942
        %v5944 = vpop.f32.mrb[0].mxu0
        %v5945 = vpop.f32.mrb[0].mxu0
        %v5946 = vadd.f32 0.0, %v5945
        %v5947 = vpop.f32.mrb[0].mxu0
        %5948 = vmatprep.mubr.bf16.mxu0 0
        %5949 = vmatmul.mubr.bf16.gmra.mrb[0].mxu0 %v5864
        %v5950 = vpop.f32.mrb[0].mxu0
        %v5951 = vadd.f32 0.0, %v5950
        %v5952 = vpop.f32.mrb[0].mxu0
        %v5953 = vpop.f32.mrb[0].mxu0
        %v5954 = vadd.f32 0.0, %v5953
        %v5955 = vpop.f32.mrb[0].mxu0
        %5956 = vmatprep.mubr.bf16.mxu0 0
        %5957 = vmatmul.mubr.bf16.gmra.mrb[0].mxu0 %v5867
        %v5958 = vpop.f32.mrb[0].mxu0
        %v5959 = vadd.f32 0.0, %v5958
        %v5960 = vpop.f32.mrb[0].mxu0
        %v5961 = vpop.f32.mrb[0].mxu0
        %v5962 = vadd.f32 0.0, %v5961
        %v5963 = vpop.f32.mrb[0].mxu0
        %5964 = vmatprep.mubr.bf16.mxu0 0
        %5965 = vmatmul.mubr.bf16.gmra.mrb[0].mxu0 %v5870
        %v5966 = vpop.f32.mrb[0].mxu0
        %v5967 = vadd.f32 0.0, %v5966
        %v5968 = vpop.f32.mrb[0].mxu0
        %v5969 = vpop.f32.mrb[0].mxu0
        %v5970 = vadd.f32 0.0, %v5969
        %v5971 = vpop.f32.mrb[0].mxu0
        %5972 = vmatprep.mubr.bf16.mxu0 0
        %5973 = vmatmul.mubr.bf16.gmra.mrb[0].mxu0 %v5873
        %v5974 = vpop.f32.mrb[0].mxu0
        %v5975 = vadd.f32 0.0, %v5974
        %v5976 = vpop.f32.mrb[0].mxu0
        %v5977 = vpop.f32.mrb[0].mxu0
        %v5978 = vadd.f32 0.0, %v5977
        %v5979 = vpop.f32.mrb[0].mxu0
        %5980 = vmatprep.mubr.bf16.mxu0 0
        %5981 = vmatmul.mubr.bf16.gmra.mrb[0].mxu0 %v5876
        %v5982 = vpop.f32.mrb[0].mxu0
        %v5983 = vadd.f32 0.0, %v5982
        %v5984 = vpop.f32.mrb[0].mxu0
        %v5985 = vpop.f32.mrb[0].mxu0
        %v5986 = vadd.f32 0.0, %v5985
        %v5987 = vpop.f32.mrb[0].mxu0
        %5988 = vmatprep.mubr.bf16.mxu0 0
        %5989 = vmatmul.mubr.bf16.gmra.mrb[0].mxu0 %v5879
        %v5990 = vpop.f32.mrb[0].mxu0
        %v5991 = vadd.f32 0.0, %v5990
        %v5992 = vpop.f32.mrb[0].mxu0
        %v5993 = vpop.f32.mrb[0].mxu0
        %v5994 = vadd.f32 0.0, %v5993
        %v5995 = vpop.f32.mrb[0].mxu0
        %5996 = vmatprep.mubr.bf16.mxu0 0
        %5997 = vmatmul.mubr.bf16.gmra.mrb[0].mxu0 %v5882
        %v5998 = vpop.f32.mrb[0].mxu0
        %v5999 = vadd.f32 0.0, %v5998
        %v6000 = vpop.f32.mrb[0].mxu0
        %v6001 = vpop.f32.mrb[0].mxu0
        %v6002 = vadd.f32 0.0, %v6001
        %v6003 = vpop.f32.mrb[0].mxu0
        %6004 = vmatprep.mubr.bf16.mxu0 0
        %6005 = vmatmul.mubr.bf16.gmra.mrb[0].mxu0 %v5885
        %v6006 = vpop.f32.mrb[0].mxu0
        %v6007 = vadd.f32 0.0, %v6006
        %v6008 = vpop.f32.mrb[0].mxu0
        %v6009 = vpop.f32.mrb[0].mxu0
        %v6010 = vadd.f32 0.0, %v6009
        %v6011 = vpop.f32.mrb[0].mxu0
        %6012 = vmatprep.mubr.bf16.mxu0 0
        %6013 = vmatmul.mubr.bf16.gmra.mrb[0].mxu0 %v5888
        %v6014 = vpop.f32.mrb[0].mxu0
        %v6015 = vadd.f32 0.0, %v6014
        %v6016 = vpop.f32.mrb[0].mxu0
        %v6017 = vpop.f32.mrb[0].mxu0
        %v6018 = vadd.f32 0.0, %v6017
        %v6019 = vpop.f32.mrb[0].mxu0
        %6020 = vmatprep.mubr.bf16.mxu0 0
        %6021 = vmatmul.mubr.bf16.gmra.mrb[0].mxu0 %v5891
        %v6022 = vpop.f32.mrb[0].mxu0
        %v6023 = vadd.f32 0.0, %v6022
        %v6024 = vpop.f32.mrb[0].mxu0
        %v6025 = vpop.f32.mrb[0].mxu0
        %v6026 = vadd.f32 0.0, %v6025
        %v6027 = vpop.f32.mrb[0].mxu0
        %6028 = vmatprep.mubr.bf16.mxu0 0
        %6029 = vmatmul.mubr.bf16.gmra.mrb[0].mxu0 %v5894
        %v6030 = vpop.f32.mrb[0].mxu0
        %v6031 = vadd.f32 0.0, %v6030
        %v6032 = vpop.f32.mrb[0].mxu0
        %v6033 = vpop.f32.mrb[0].mxu0
        %v6034 = vadd.f32 0.0, %v6033
        %v6035 = vpop.f32.mrb[0].mxu0
        %6036 = vmatprep.mubr.bf16.mxu0 0
        %6037 = vmatmul.mubr.bf16.gmra.mrb[0].mxu0 %v5897
        %v6038 = vpop.f32.mrb[0].mxu0
        %v6039 = vadd.f32 0.0, %v6038
        %v6040 = vpop.f32.mrb[0].mxu0
        %v6041 = vpop.f32.mrb[0].mxu0
        %v6042 = vadd.f32 0.0, %v6041
        %v6043 = vpop.f32.mrb[0].mxu0
        %6044 = vmatprep.mubr.bf16.mxu0 0
        %6045 = vmatmul.mubr.bf16.gmra.mrb[0].mxu0 %v5900
        %v6046 = vpop.f32.mrb[0].mxu0
        %v6047 = vadd.f32 0.0, %v6046
        %v6048 = vpop.f32.mrb[0].mxu0
        %v6049 = vpop.f32.mrb[0].mxu0
        %v6050 = vadd.f32 0.0, %v6049
        %v6051 = vpop.f32.mrb[0].mxu0
        %6052 = vmatprep.mubr.bf16.mxu0 0
        %6053 = vmatmul.mubr.bf16.gmra.mrb[0].mxu0 %v5903
        %v6054 = vpop.f32.mrb[0].mxu0
        %v6055 = vadd.f32 0.0, %v6054
        %v6056 = vpop.f32.mrb[0].mxu0
        %v6057 = vpop.f32.mrb[0].mxu0
        %v6058 = vadd.f32 0.0, %v6057
        %v6059 = vpop.f32.mrb[0].mxu0
        %6060 = vmatprep.mubr.bf16.mxu0 0
        %6061 = vmatmul.mubr.bf16.gmra.mrb[0].mxu0 %v5906
        %v6062 = vpop.f32.mrb[0].mxu0
        %v6063 = vadd.f32 0.0, %v6062
        %v6064 = vpop.f32.mrb[0].mxu0
        %v6065 = vpop.f32.mrb[0].mxu0
        %v6066 = vadd.f32 0.0, %v6065
        %v6067 = vpop.f32.mrb[0].mxu0
        %6068 = vdwg.mxu0
        %6101 = vrot.lane.b32.xlu0 %v5943, 96
        %v6102 = vpop.permute.xlu0 %6101
        %6103 = vrot.lane.b32.xlu0 %v5946, 96
        %v6104 = vpop.permute.xlu0 %6103
        %6105 = vrot.lane.b32.xlu0 %v5951, 96
        %v6106 = vpop.permute.xlu0 %6105
        %6107 = vrot.lane.b32.xlu0 %v5954, 96
        %v6108 = vpop.permute.xlu0 %6107
        %6109 = vrot.lane.b32.xlu0 %v5959, 96
        %v6110 = vpop.permute.xlu0 %6109
        %6111 = vrot.lane.b32.xlu0 %v5962, 96
        %v6112 = vpop.permute.xlu0 %6111
        %6113 = vrot.lane.b32.xlu0 %v5967, 96
        %v6114 = vpop.permute.xlu0 %6113
        %6115 = vrot.lane.b32.xlu0 %v5970, 96
        %v6116 = vpop.permute.xlu0 %6115
        %6117 = vrot.lane.b32.xlu0 %v5975, 96
        %v6118 = vpop.permute.xlu0 %6117
        %6119 = vrot.lane.b32.xlu0 %v5978, 96
        %v6120 = vpop.permute.xlu0 %6119
        %6121 = vrot.lane.b32.xlu0 %v5983, 96
        %v6122 = vpop.permute.xlu0 %6121
        %6123 = vrot.lane.b32.xlu0 %v5986, 96
        %v6124 = vpop.permute.xlu0 %6123
        %6125 = vrot.lane.b32.xlu0 %v5991, 96
        %v6126 = vpop.permute.xlu0 %6125
        %6127 = vrot.lane.b32.xlu0 %v5994, 96
        %v6128 = vpop.permute.xlu0 %6127
        %6129 = vrot.lane.b32.xlu0 %v5999, 96
        %v6130 = vpop.permute.xlu0 %6129
        %6131 = vrot.lane.b32.xlu0 %v6002, 96
        %v6132 = vpop.permute.xlu0 %6131
        %6133 = vrot.lane.b32.xlu0 %v6007, 96
        %v6134 = vpop.permute.xlu0 %6133
        %6135 = vrot.lane.b32.xlu0 %v6010, 96
        %v6136 = vpop.permute.xlu0 %6135
        %6137 = vrot.lane.b32.xlu0 %v6015, 96
        %v6138 = vpop.permute.xlu0 %6137
        %6139 = vrot.lane.b32.xlu0 %v6018, 96
        %v6140 = vpop.permute.xlu0 %6139
        %6141 = vrot.lane.b32.xlu0 %v6023, 96
        %v6142 = vpop.permute.xlu0 %6141
        %6143 = vrot.lane.b32.xlu0 %v6026, 96
        %v6144 = vpop.permute.xlu0 %6143
        %6145 = vrot.lane.b32.xlu0 %v6031, 96
        %v6146 = vpop.permute.xlu0 %6145
        %6147 = vrot.lane.b32.xlu0 %v6034, 96
        %v6148 = vpop.permute.xlu0 %6147
        %6149 = vrot.lane.b32.xlu0 %v6039, 96
        %v6150 = vpop.permute.xlu0 %6149
        %6151 = vrot.lane.b32.xlu0 %v6042, 96
        %v6152 = vpop.permute.xlu0 %6151
        %6153 = vrot.lane.b32.xlu0 %v6047, 96
        %v6154 = vpop.permute.xlu0 %6153
        %6155 = vrot.lane.b32.xlu0 %v6050, 96
        %v6156 = vpop.permute.xlu0 %6155
        %6157 = vrot.lane.b32.xlu0 %v6055, 96
        %v6158 = vpop.permute.xlu0 %6157
        %6159 = vrot.lane.b32.xlu0 %v6058, 96
        %v6160 = vpop.permute.xlu0 %6159
        %6161 = vrot.lane.b32.xlu0 %v6063, 96
        %v6162 = vpop.permute.xlu0 %6161
        %6163 = vrot.lane.b32.xlu0 %v6066, 96
        %v6164 = vpop.permute.xlu0 %6163
        %6197 = vst.msk [vmem:[%s1179 + $0x1] sm:$0xff] %vm310, %v6102
        %6198 = vst.msk [vmem:[%s1179 + $0x9] sm:$0xff] %vm310, %v6104
        %6199 = vst.msk [vmem:[%s1179 + $0x19] sm:$0xff] %vm310, %v6106
        %6200 = vst.msk [vmem:[%s1179 + $0x21] sm:$0xff] %vm310, %v6108
        %6201 = vst.msk [vmem:[%s1179 + $0x31] sm:$0xff] %vm310, %v6110
        %6202 = vst.msk [vmem:[%s1179 + $0x39] sm:$0xff] %vm310, %v6112
        %6203 = vst.msk [vmem:[%s1179 + $0x49] sm:$0xff] %vm310, %v6114
        %6204 = vst.msk [vmem:[%s1179 + $0x51] sm:$0xff] %vm310, %v6116
        %6205 = vst.msk [vmem:[%s1179 + $0x61] sm:$0xff] %vm310, %v6118
        %6206 = vst.msk [vmem:[%s1179 + $0x69] sm:$0xff] %vm310, %v6120
        %6207 = vst.msk [vmem:[%s1179 + $0x79] sm:$0xff] %vm310, %v6122
        %6208 = vst.msk [vmem:[%s1179 + $0x81] sm:$0xff] %vm310, %v6124
        %6209 = vst.msk [vmem:[%s1179 + $0x91] sm:$0xff] %vm310, %v6126
        %6210 = vst.msk [vmem:[%s1179 + $0x99] sm:$0xff] %vm310, %v6128
        %6211 = vst.msk [vmem:[%s1179 + $0xa9] sm:$0xff] %vm310, %v6130
        %6212 = vst.msk [vmem:[%s1179 + $0xb1] sm:$0xff] %vm310, %v6132
        %6213 = vst.msk [vmem:[%s1179 + $0xc1] sm:$0xff] %vm310, %v6134
        %6214 = vst.msk [vmem:[%s1179 + $0xc9] sm:$0xff] %vm310, %v6136
        %6215 = vst.msk [vmem:[%s1179 + $0xd9] sm:$0xff] %vm310, %v6138
        %6216 = vst.msk [vmem:[%s1179 + $0xe1] sm:$0xff] %vm310, %v6140
        %6217 = vst.msk [vmem:[%s1179 + $0xf1] sm:$0xff] %vm310, %v6142
        %6218 = vst.msk [vmem:[%s1179 + $0xf9] sm:$0xff] %vm310, %v6144
        %6219 = vst.msk [vmem:[%s1179 + $0x109] sm:$0xff] %vm310, %v6146
        %6220 = vst.msk [vmem:[%s1179 + $0x111] sm:$0xff] %vm310, %v6148
        %6221 = vst.msk [vmem:[%s1179 + $0x121] sm:$0xff] %vm310, %v6150
        %6222 = vst.msk [vmem:[%s1179 + $0x129] sm:$0xff] %vm310, %v6152
        %6223 = vst.msk [vmem:[%s1179 + $0x139] sm:$0xff] %vm310, %v6154
        %6224 = vst.msk [vmem:[%s1179 + $0x141] sm:$0xff] %vm310, %v6156
        %6225 = vst.msk [vmem:[%s1179 + $0x151] sm:$0xff] %vm310, %v6158
        %6226 = vst.msk [vmem:[%s1179 + $0x159] sm:$0xff] %vm310, %v6160
        %6227 = vst.msk [vmem:[%s1179 + $0x169] sm:$0xff] %vm310, %v6162
        %6228 = vst.msk [vmem:[%s1179 + $0x171] sm:$0xff] %vm310, %v6164
        %v6229 = vld [vmem:[%s1212 + $0x2] sm:$0xff]
        %v6230 = vld [vmem:[%s1212 + $0xa] sm:$0xff]
        %v6231 = vld [vmem:[%s1212 + $0x1a] sm:$0xff]
        %v6232 = vld [vmem:[%s1212 + $0x22] sm:$0xff]
        %v6233 = vld [vmem:[%s1212 + $0x32] sm:$0xff]
        %v6234 = vld [vmem:[%s1212 + $0x3a] sm:$0xff]
        %v6235 = vld [vmem:[%s1212 + $0x4a] sm:$0xff]
        %v6236 = vld [vmem:[%s1212 + $0x52] sm:$0xff]
        %v6237 = vld [vmem:[%s1212 + $0x62] sm:$0xff]
        %v6238 = vld [vmem:[%s1212 + $0x6a] sm:$0xff]
        %v6239 = vld [vmem:[%s1212 + $0x7a] sm:$0xff]
        %v6240 = vld [vmem:[%s1212 + $0x82] sm:$0xff]
        %v6241 = vld [vmem:[%s1212 + $0x92] sm:$0xff]
        %v6242 = vld [vmem:[%s1212 + $0x9a] sm:$0xff]
        %v6243 = vld [vmem:[%s1212 + $0xaa] sm:$0xff]
        %v6244 = vld [vmem:[%s1212 + $0xb2] sm:$0xff]
        %v6245 = vld [vmem:[%s1212 + $0xc2] sm:$0xff]
        %v6246 = vld [vmem:[%s1212 + $0xca] sm:$0xff]
        %v6247 = vld [vmem:[%s1212 + $0xda] sm:$0xff]
        %v6248 = vld [vmem:[%s1212 + $0xe2] sm:$0xff]
        %v6249 = vld [vmem:[%s1212 + $0xf2] sm:$0xff]
        %v6250 = vld [vmem:[%s1212 + $0xfa] sm:$0xff]
        %v6251 = vld [vmem:[%s1212 + $0x10a] sm:$0xff]
        %v6252 = vld [vmem:[%s1212 + $0x112] sm:$0xff]
        %v6253 = vld [vmem:[%s1212 + $0x122] sm:$0xff]
        %v6254 = vld [vmem:[%s1212 + $0x12a] sm:$0xff]
        %v6255 = vld [vmem:[%s1212 + $0x13a] sm:$0xff]
        %v6256 = vld [vmem:[%s1212 + $0x142] sm:$0xff]
        %v6257 = vld [vmem:[%s1212 + $0x152] sm:$0xff]
        %v6258 = vld [vmem:[%s1212 + $0x15a] sm:$0xff]
        %v6259 = vld [vmem:[%s1212 + $0x16a] sm:$0xff]
        %v6260 = vld [vmem:[%s1212 + $0x172] sm:$0xff]
        %v6261 = vadd.f32 %v6229, %v5943
        %v6262 = vadd.f32 %v6230, %v5946
        %v6263 = vadd.f32 %v6231, %v5951
        %v6264 = vadd.f32 %v6232, %v5954
        %v6265 = vadd.f32 %v6233, %v5959
        %v6266 = vadd.f32 %v6234, %v5962
        %v6267 = vadd.f32 %v6235, %v5967
        %v6268 = vadd.f32 %v6236, %v5970
        %v6269 = vadd.f32 %v6237, %v5975
        %v6270 = vadd.f32 %v6238, %v5978
        %v6271 = vadd.f32 %v6239, %v5983
        %v6272 = vadd.f32 %v6240, %v5986
        %v6273 = vadd.f32 %v6241, %v5991
        %v6274 = vadd.f32 %v6242, %v5994
        %v6275 = vadd.f32 %v6243, %v5999
        %v6276 = vadd.f32 %v6244, %v6002
        %v6277 = vadd.f32 %v6245, %v6007
        %v6278 = vadd.f32 %v6246, %v6010
        %v6279 = vadd.f32 %v6247, %v6015
        %v6280 = vadd.f32 %v6248, %v6018
        %v6281 = vadd.f32 %v6249, %v6023
        %v6282 = vadd.f32 %v6250, %v6026
        %v6283 = vadd.f32 %v6251, %v6031
        %v6284 = vadd.f32 %v6252, %v6034
        %v6285 = vadd.f32 %v6253, %v6039
        %v6286 = vadd.f32 %v6254, %v6042
        %v6287 = vadd.f32 %v6255, %v6047
        %v6288 = vadd.f32 %v6256, %v6050
        %v6289 = vadd.f32 %v6257, %v6055
        %v6290 = vadd.f32 %v6258, %v6058
        %v6291 = vadd.f32 %v6259, %v6063
        %v6292 = vadd.f32 %v6260, %v6066
        %6293 = vst.msk [vmem:[%s1212 + $0x2] sm:$0xff] %vm310, %v6261
        %6294 = vst.msk [vmem:[%s1212 + $0xa] sm:$0xff] %vm310, %v6262
        %6295 = vst.msk [vmem:[%s1212 + $0x1a] sm:$0xff] %vm310, %v6263
        %6296 = vst.msk [vmem:[%s1212 + $0x22] sm:$0xff] %vm310, %v6264
        %6297 = vst.msk [vmem:[%s1212 + $0x32] sm:$0xff] %vm310, %v6265
        %6298 = vst.msk [vmem:[%s1212 + $0x3a] sm:$0xff] %vm310, %v6266
        %6299 = vst.msk [vmem:[%s1212 + $0x4a] sm:$0xff] %vm310, %v6267
        %6300 = vst.msk [vmem:[%s1212 + $0x52] sm:$0xff] %vm310, %v6268
        %6301 = vst.msk [vmem:[%s1212 + $0x62] sm:$0xff] %vm310, %v6269
        %6302 = vst.msk [vmem:[%s1212 + $0x6a] sm:$0xff] %vm310, %v6270
        %6303 = vst.msk [vmem:[%s1212 + $0x7a] sm:$0xff] %vm310, %v6271
        %6304 = vst.msk [vmem:[%s1212 + $0x82] sm:$0xff] %vm310, %v6272
        %6305 = vst.msk [vmem:[%s1212 + $0x92] sm:$0xff] %vm310, %v6273
        %6306 = vst.msk [vmem:[%s1212 + $0x9a] sm:$0xff] %vm310, %v6274
        %6307 = vst.msk [vmem:[%s1212 + $0xaa] sm:$0xff] %vm310, %v6275
        %6308 = vst.msk [vmem:[%s1212 + $0xb2] sm:$0xff] %vm310, %v6276
        %6309 = vst.msk [vmem:[%s1212 + $0xc2] sm:$0xff] %vm310, %v6277
        %6310 = vst.msk [vmem:[%s1212 + $0xca] sm:$0xff] %vm310, %v6278
        %6311 = vst.msk [vmem:[%s1212 + $0xda] sm:$0xff] %vm310, %v6279
        %6312 = vst.msk [vmem:[%s1212 + $0xe2] sm:$0xff] %vm310, %v6280
        %6313 = vst.msk [vmem:[%s1212 + $0xf2] sm:$0xff] %vm310, %v6281
        %6314 = vst.msk [vmem:[%s1212 + $0xfa] sm:$0xff] %vm310, %v6282
        %6315 = vst.msk [vmem:[%s1212 + $0x10a] sm:$0xff] %vm310, %v6283
        %6316 = vst.msk [vmem:[%s1212 + $0x112] sm:$0xff] %vm310, %v6284
        %6317 = vst.msk [vmem:[%s1212 + $0x122] sm:$0xff] %vm310, %v6285
        %6318 = vst.msk [vmem:[%s1212 + $0x12a] sm:$0xff] %vm310, %v6286
        %6319 = vst.msk [vmem:[%s1212 + $0x13a] sm:$0xff] %vm310, %v6287
        %6320 = vst.msk [vmem:[%s1212 + $0x142] sm:$0xff] %vm310, %v6288
        %6321 = vst.msk [vmem:[%s1212 + $0x152] sm:$0xff] %vm310, %v6289
        %6322 = vst.msk [vmem:[%s1212 + $0x15a] sm:$0xff] %vm310, %v6290
        %6323 = vst.msk [vmem:[%s1212 + $0x16a] sm:$0xff] %vm310, %v6291
        %6324 = vst.msk [vmem:[%s1212 + $0x172] sm:$0xff] %vm310, %v6292
        %v6325 = vld [vmem:[%s1212 + $0x1] sm:$0xff]
        %v6326 = vld [vmem:[%s1212 + $0x9] sm:$0xff]
        %v6327 = vld [vmem:[%s1212 + $0x19] sm:$0xff]
        %v6328 = vld [vmem:[%s1212 + $0x21] sm:$0xff]
        %v6329 = vld [vmem:[%s1212 + $0x31] sm:$0xff]
        %v6330 = vld [vmem:[%s1212 + $0x39] sm:$0xff]
        %v6331 = vld [vmem:[%s1212 + $0x49] sm:$0xff]
        %v6332 = vld [vmem:[%s1212 + $0x51] sm:$0xff]
        %v6333 = vld [vmem:[%s1212 + $0x61] sm:$0xff]
        %v6334 = vld [vmem:[%s1212 + $0x69] sm:$0xff]
        %v6335 = vld [vmem:[%s1212 + $0x79] sm:$0xff]
        %v6336 = vld [vmem:[%s1212 + $0x81] sm:$0xff]
        %v6337 = vld [vmem:[%s1212 + $0x91] sm:$0xff]
        %v6338 = vld [vmem:[%s1212 + $0x99] sm:$0xff]
        %v6339 = vld [vmem:[%s1212 + $0xa9] sm:$0xff]
        %v6340 = vld [vmem:[%s1212 + $0xb1] sm:$0xff]
        %v6341 = vld [vmem:[%s1212 + $0xc1] sm:$0xff]
        %v6342 = vld [vmem:[%s1212 + $0xc9] sm:$0xff]
        %v6343 = vld [vmem:[%s1212 + $0xd9] sm:$0xff]
        %v6344 = vld [vmem:[%s1212 + $0xe1] sm:$0xff]
        %v6345 = vld [vmem:[%s1212 + $0xf1] sm:$0xff]
        %v6346 = vld [vmem:[%s1212 + $0xf9] sm:$0xff]
        %v6347 = vld [vmem:[%s1212 + $0x109] sm:$0xff]
        %v6348 = vld [vmem:[%s1212 + $0x111] sm:$0xff]
        %v6349 = vld [vmem:[%s1212 + $0x121] sm:$0xff]
        %v6350 = vld [vmem:[%s1212 + $0x129] sm:$0xff]
        %v6351 = vld [vmem:[%s1212 + $0x139] sm:$0xff]
        %v6352 = vld [vmem:[%s1212 + $0x141] sm:$0xff]
        %v6353 = vld [vmem:[%s1212 + $0x151] sm:$0xff]
        %v6354 = vld [vmem:[%s1212 + $0x159] sm:$0xff]
        %v6355 = vld [vmem:[%s1212 + $0x169] sm:$0xff]
        %v6356 = vld [vmem:[%s1212 + $0x171] sm:$0xff]
        %6357 = vrot.lane.b32.xlu0 %v5943, 120
        %v6358 = vpop.permute.xlu0 %6357
        %6359 = vrot.lane.b32.xlu0 %v5946, 120
        %v6360 = vpop.permute.xlu0 %6359
        %6361 = vrot.lane.b32.xlu0 %v5951, 120
        %v6362 = vpop.permute.xlu0 %6361
        %6363 = vrot.lane.b32.xlu0 %v5954, 120
        %v6364 = vpop.permute.xlu0 %6363
        %6365 = vrot.lane.b32.xlu0 %v5959, 120
        %v6366 = vpop.permute.xlu0 %6365
        %6367 = vrot.lane.b32.xlu0 %v5962, 120
        %v6368 = vpop.permute.xlu0 %6367
        %6369 = vrot.lane.b32.xlu0 %v5967, 120
        %v6370 = vpop.permute.xlu0 %6369
        %6371 = vrot.lane.b32.xlu0 %v5970, 120
        %v6372 = vpop.permute.xlu0 %6371
        %6373 = vrot.lane.b32.xlu0 %v5975, 120
        %v6374 = vpop.permute.xlu0 %6373
        %6375 = vrot.lane.b32.xlu0 %v5978, 120
        %v6376 = vpop.permute.xlu0 %6375
        %6377 = vrot.lane.b32.xlu0 %v5983, 120
        %v6378 = vpop.permute.xlu0 %6377
        %6379 = vrot.lane.b32.xlu0 %v5986, 120
        %v6380 = vpop.permute.xlu0 %6379
        %6381 = vrot.lane.b32.xlu0 %v5991, 120
        %v6382 = vpop.permute.xlu0 %6381
        %6383 = vrot.lane.b32.xlu0 %v5994, 120
        %v6384 = vpop.permute.xlu0 %6383
        %6385 = vrot.lane.b32.xlu0 %v5999, 120
        %v6386 = vpop.permute.xlu0 %6385
        %6387 = vrot.lane.b32.xlu0 %v6002, 120
        %v6388 = vpop.permute.xlu0 %6387
        %6389 = vrot.lane.b32.xlu0 %v6007, 120
        %v6390 = vpop.permute.xlu0 %6389
        %6391 = vrot.lane.b32.xlu0 %v6010, 120
        %v6392 = vpop.permute.xlu0 %6391
        %6393 = vrot.lane.b32.xlu0 %v6015, 120
        %v6394 = vpop.permute.xlu0 %6393
        %6395 = vrot.lane.b32.xlu0 %v6018, 120
        %v6396 = vpop.permute.xlu0 %6395
        %6397 = vrot.lane.b32.xlu0 %v6023, 120
        %v6398 = vpop.permute.xlu0 %6397
        %6399 = vrot.lane.b32.xlu0 %v6026, 120
        %v6400 = vpop.permute.xlu0 %6399
        %6401 = vrot.lane.b32.xlu0 %v6031, 120
        %v6402 = vpop.permute.xlu0 %6401
        %6403 = vrot.lane.b32.xlu0 %v6034, 120
        %v6404 = vpop.permute.xlu0 %6403
        %6405 = vrot.lane.b32.xlu0 %v6039, 120
        %v6406 = vpop.permute.xlu0 %6405
        %6407 = vrot.lane.b32.xlu0 %v6042, 120
        %v6408 = vpop.permute.xlu0 %6407
        %6409 = vrot.lane.b32.xlu0 %v6047, 120
        %v6410 = vpop.permute.xlu0 %6409
        %6411 = vrot.lane.b32.xlu0 %v6050, 120
        %v6412 = vpop.permute.xlu0 %6411
        %6413 = vrot.lane.b32.xlu0 %v6055, 120
        %v6414 = vpop.permute.xlu0 %6413
        %6415 = vrot.lane.b32.xlu0 %v6058, 120
        %v6416 = vpop.permute.xlu0 %6415
        %6417 = vrot.lane.b32.xlu0 %v6063, 120
        %v6418 = vpop.permute.xlu0 %6417
        %6419 = vrot.lane.b32.xlu0 %v6066, 120
        %v6420 = vpop.permute.xlu0 %6419
        %v6453 = vadd.f32 %v6325, %v6358
        %v6454 = vadd.f32 %v6326, %v6360
        %v6455 = vadd.f32 %v6327, %v6362
        %v6456 = vadd.f32 %v6328, %v6364
        %v6457 = vadd.f32 %v6329, %v6366
        %v6458 = vadd.f32 %v6330, %v6368
        %v6459 = vadd.f32 %v6331, %v6370
        %v6460 = vadd.f32 %v6332, %v6372
        %v6461 = vadd.f32 %v6333, %v6374
        %v6462 = vadd.f32 %v6334, %v6376
        %v6463 = vadd.f32 %v6335, %v6378
        %v6464 = vadd.f32 %v6336, %v6380
        %v6465 = vadd.f32 %v6337, %v6382
        %v6466 = vadd.f32 %v6338, %v6384
        %v6467 = vadd.f32 %v6339, %v6386
        %v6468 = vadd.f32 %v6340, %v6388
        %v6469 = vadd.f32 %v6341, %v6390
        %v6470 = vadd.f32 %v6342, %v6392
        %v6471 = vadd.f32 %v6343, %v6394
        %v6472 = vadd.f32 %v6344, %v6396
        %v6473 = vadd.f32 %v6345, %v6398
        %v6474 = vadd.f32 %v6346, %v6400
        %v6475 = vadd.f32 %v6347, %v6402
        %v6476 = vadd.f32 %v6348, %v6404
        %v6477 = vadd.f32 %v6349, %v6406
        %v6478 = vadd.f32 %v6350, %v6408
        %v6479 = vadd.f32 %v6351, %v6410
        %v6480 = vadd.f32 %v6352, %v6412
        %v6481 = vadd.f32 %v6353, %v6414
        %v6482 = vadd.f32 %v6354, %v6416
        %v6483 = vadd.f32 %v6355, %v6418
        %v6484 = vadd.f32 %v6356, %v6420
        %6485 = vst.msk [vmem:[%s1212 + $0x1] sm:$0xff] %vm310, %v6453
        %6486 = vst.msk [vmem:[%s1212 + $0x9] sm:$0xff] %vm310, %v6454
        %6487 = vst.msk [vmem:[%s1212 + $0x19] sm:$0xff] %vm310, %v6455
        %6488 = vst.msk [vmem:[%s1212 + $0x21] sm:$0xff] %vm310, %v6456
        %6489 = vst.msk [vmem:[%s1212 + $0x31] sm:$0xff] %vm310, %v6457
        %6490 = vst.msk [vmem:[%s1212 + $0x39] sm:$0xff] %vm310, %v6458
        %6491 = vst.msk [vmem:[%s1212 + $0x49] sm:$0xff] %vm310, %v6459
        %6492 = vst.msk [vmem:[%s1212 + $0x51] sm:$0xff] %vm310, %v6460
        %6493 = vst.msk [vmem:[%s1212 + $0x61] sm:$0xff] %vm310, %v6461
        %6494 = vst.msk [vmem:[%s1212 + $0x69] sm:$0xff] %vm310, %v6462
        %6495 = vst.msk [vmem:[%s1212 + $0x79] sm:$0xff] %vm310, %v6463
        %6496 = vst.msk [vmem:[%s1212 + $0x81] sm:$0xff] %vm310, %v6464
        %6497 = vst.msk [vmem:[%s1212 + $0x91] sm:$0xff] %vm310, %v6465
        %6498 = vst.msk [vmem:[%s1212 + $0x99] sm:$0xff] %vm310, %v6466
        %6499 = vst.msk [vmem:[%s1212 + $0xa9] sm:$0xff] %vm310, %v6467
        %6500 = vst.msk [vmem:[%s1212 + $0xb1] sm:$0xff] %vm310, %v6468
        %6501 = vst.msk [vmem:[%s1212 + $0xc1] sm:$0xff] %vm310, %v6469
        %6502 = vst.msk [vmem:[%s1212 + $0xc9] sm:$0xff] %vm310, %v6470
        %6503 = vst.msk [vmem:[%s1212 + $0xd9] sm:$0xff] %vm310, %v6471
        %6504 = vst.msk [vmem:[%s1212 + $0xe1] sm:$0xff] %vm310, %v6472
        %6505 = vst.msk [vmem:[%s1212 + $0xf1] sm:$0xff] %vm310, %v6473
        %6506 = vst.msk [vmem:[%s1212 + $0xf9] sm:$0xff] %vm310, %v6474
        %6507 = vst.msk [vmem:[%s1212 + $0x109] sm:$0xff] %vm310, %v6475
        %6508 = vst.msk [vmem:[%s1212 + $0x111] sm:$0xff] %vm310, %v6476
        %6509 = vst.msk [vmem:[%s1212 + $0x121] sm:$0xff] %vm310, %v6477
        %6510 = vst.msk [vmem:[%s1212 + $0x129] sm:$0xff] %vm310, %v6478
        %6511 = vst.msk [vmem:[%s1212 + $0x139] sm:$0xff] %vm310, %v6479
        %6512 = vst.msk [vmem:[%s1212 + $0x141] sm:$0xff] %vm310, %v6480
        %6513 = vst.msk [vmem:[%s1212 + $0x151] sm:$0xff] %vm310, %v6481
        %6514 = vst.msk [vmem:[%s1212 + $0x159] sm:$0xff] %vm310, %v6482
        %6515 = vst.msk [vmem:[%s1212 + $0x169] sm:$0xff] %vm310, %v6483
        %6516 = vst.msk [vmem:[%s1212 + $0x171] sm:$0xff] %vm310, %v6484
        %v6517 = vld [vmem:[%s1212] sm:$0xff]
        %v6518 = vld [vmem:[%s1212 + $0x8] sm:$0xff]
        %v6519 = vld [vmem:[%s1212 + $0x18] sm:$0xff]
        %v6520 = vld [vmem:[%s1212 + $0x20] sm:$0xff]
        %v6521 = vld [vmem:[%s1212 + $0x30] sm:$0xff]
        %v6522 = vld [vmem:[%s1212 + $0x38] sm:$0xff]
        %v6523 = vld [vmem:[%s1212 + $0x48] sm:$0xff]
        %v6524 = vld [vmem:[%s1212 + $0x50] sm:$0xff]
        %v6525 = vld [vmem:[%s1212 + $0x60] sm:$0xff]
        %v6526 = vld [vmem:[%s1212 + $0x68] sm:$0xff]
        %v6527 = vld [vmem:[%s1212 + $0x78] sm:$0xff]
        %v6528 = vld [vmem:[%s1212 + $0x80] sm:$0xff]
        %v6529 = vld [vmem:[%s1212 + $0x90] sm:$0xff]
        %v6530 = vld [vmem:[%s1212 + $0x98] sm:$0xff]
        %v6531 = vld [vmem:[%s1212 + $0xa8] sm:$0xff]
        %v6532 = vld [vmem:[%s1212 + $0xb0] sm:$0xff]
        %v6533 = vld [vmem:[%s1212 + $0xc0] sm:$0xff]
        %v6534 = vld [vmem:[%s1212 + $0xc8] sm:$0xff]
        %v6535 = vld [vmem:[%s1212 + $0xd8] sm:$0xff]
        %v6536 = vld [vmem:[%s1212 + $0xe0] sm:$0xff]
        %v6537 = vld [vmem:[%s1212 + $0xf0] sm:$0xff]
        %v6538 = vld [vmem:[%s1212 + $0xf8] sm:$0xff]
        %v6539 = vld [vmem:[%s1212 + $0x108] sm:$0xff]
        %v6540 = vld [vmem:[%s1212 + $0x110] sm:$0xff]
        %v6541 = vld [vmem:[%s1212 + $0x120] sm:$0xff]
        %v6542 = vld [vmem:[%s1212 + $0x128] sm:$0xff]
        %v6543 = vld [vmem:[%s1212 + $0x138] sm:$0xff]
        %v6544 = vld [vmem:[%s1212 + $0x140] sm:$0xff]
        %v6545 = vld [vmem:[%s1212 + $0x150] sm:$0xff]
        %v6546 = vld [vmem:[%s1212 + $0x158] sm:$0xff]
        %v6547 = vld [vmem:[%s1212 + $0x168] sm:$0xff]
        %v6548 = vld [vmem:[%s1212 + $0x170] sm:$0xff]
        %6549 = vrot.lane.b32.xlu0 %v5943, 112
        %v6550 = vpop.permute.xlu0 %6549
        %6551 = vrot.lane.b32.xlu0 %v5946, 112
        %v6552 = vpop.permute.xlu0 %6551
        %6553 = vrot.lane.b32.xlu0 %v5951, 112
        %v6554 = vpop.permute.xlu0 %6553
        %6555 = vrot.lane.b32.xlu0 %v5954, 112
        %v6556 = vpop.permute.xlu0 %6555
        %6557 = vrot.lane.b32.xlu0 %v5959, 112
        %v6558 = vpop.permute.xlu0 %6557
        %6559 = vrot.lane.b32.xlu0 %v5962, 112
        %v6560 = vpop.permute.xlu0 %6559
        %6561 = vrot.lane.b32.xlu0 %v5967, 112
        %v6562 = vpop.permute.xlu0 %6561
        %6563 = vrot.lane.b32.xlu0 %v5970, 112
        %v6564 = vpop.permute.xlu0 %6563
        %6565 = vrot.lane.b32.xlu0 %v5975, 112
        %v6566 = vpop.permute.xlu0 %6565
        %6567 = vrot.lane.b32.xlu0 %v5978, 112
        %v6568 = vpop.permute.xlu0 %6567
        %6569 = vrot.lane.b32.xlu0 %v5983, 112
        %v6570 = vpop.permute.xlu0 %6569
        %6571 = vrot.lane.b32.xlu0 %v5986, 112
        %v6572 = vpop.permute.xlu0 %6571
        %6573 = vrot.lane.b32.xlu0 %v5991, 112
        %v6574 = vpop.permute.xlu0 %6573
        %6575 = vrot.lane.b32.xlu0 %v5994, 112
        %v6576 = vpop.permute.xlu0 %6575
        %6577 = vrot.lane.b32.xlu0 %v5999, 112
        %v6578 = vpop.permute.xlu0 %6577
        %6579 = vrot.lane.b32.xlu0 %v6002, 112
        %v6580 = vpop.permute.xlu0 %6579
        %6581 = vrot.lane.b32.xlu0 %v6007, 112
        %v6582 = vpop.permute.xlu0 %6581
        %6583 = vrot.lane.b32.xlu0 %v6010, 112
        %v6584 = vpop.permute.xlu0 %6583
        %6585 = vrot.lane.b32.xlu0 %v6015, 112
        %v6586 = vpop.permute.xlu0 %6585
        %6587 = vrot.lane.b32.xlu0 %v6018, 112
        %v6588 = vpop.permute.xlu0 %6587
        %6589 = vrot.lane.b32.xlu0 %v6023, 112
        %v6590 = vpop.permute.xlu0 %6589
        %6591 = vrot.lane.b32.xlu0 %v6026, 112
        %v6592 = vpop.permute.xlu0 %6591
        %6593 = vrot.lane.b32.xlu0 %v6031, 112
        %v6594 = vpop.permute.xlu0 %6593
        %6595 = vrot.lane.b32.xlu0 %v6034, 112
        %v6596 = vpop.permute.xlu0 %6595
        %6597 = vrot.lane.b32.xlu0 %v6039, 112
        %v6598 = vpop.permute.xlu0 %6597
        %6599 = vrot.lane.b32.xlu0 %v6042, 112
        %v6600 = vpop.permute.xlu0 %6599
        %6601 = vrot.lane.b32.xlu0 %v6047, 112
        %v6602 = vpop.permute.xlu0 %6601
        %6603 = vrot.lane.b32.xlu0 %v6050, 112
        %v6604 = vpop.permute.xlu0 %6603
        %6605 = vrot.lane.b32.xlu0 %v6055, 112
        %v6606 = vpop.permute.xlu0 %6605
        %6607 = vrot.lane.b32.xlu0 %v6058, 112
        %v6608 = vpop.permute.xlu0 %6607
        %6609 = vrot.lane.b32.xlu0 %v6063, 112
        %v6610 = vpop.permute.xlu0 %6609
        %6611 = vrot.lane.b32.xlu0 %v6066, 112
        %v6612 = vpop.permute.xlu0 %6611
        %v6645 = vadd.f32 %v6517, %v6550
        %v6646 = vadd.f32 %v6518, %v6552
        %v6647 = vadd.f32 %v6519, %v6554
        %v6648 = vadd.f32 %v6520, %v6556
        %v6649 = vadd.f32 %v6521, %v6558
        %v6650 = vadd.f32 %v6522, %v6560
        %v6651 = vadd.f32 %v6523, %v6562
        %v6652 = vadd.f32 %v6524, %v6564
        %v6653 = vadd.f32 %v6525, %v6566
        %v6654 = vadd.f32 %v6526, %v6568
        %v6655 = vadd.f32 %v6527, %v6570
        %v6656 = vadd.f32 %v6528, %v6572
        %v6657 = vadd.f32 %v6529, %v6574
        %v6658 = vadd.f32 %v6530, %v6576
        %v6659 = vadd.f32 %v6531, %v6578
        %v6660 = vadd.f32 %v6532, %v6580
        %v6661 = vadd.f32 %v6533, %v6582
        %v6662 = vadd.f32 %v6534, %v6584
        %v6663 = vadd.f32 %v6535, %v6586
        %v6664 = vadd.f32 %v6536, %v6588
        %v6665 = vadd.f32 %v6537, %v6590
        %v6666 = vadd.f32 %v6538, %v6592
        %v6667 = vadd.f32 %v6539, %v6594
        %v6668 = vadd.f32 %v6540, %v6596
        %v6669 = vadd.f32 %v6541, %v6598
        %v6670 = vadd.f32 %v6542, %v6600
        %v6671 = vadd.f32 %v6543, %v6602
        %v6672 = vadd.f32 %v6544, %v6604
        %v6673 = vadd.f32 %v6545, %v6606
        %v6674 = vadd.f32 %v6546, %v6608
        %v6675 = vadd.f32 %v6547, %v6610
        %v6676 = vadd.f32 %v6548, %v6612
        %6677 = vst.msk [vmem:[%s1212] sm:$0xff] %vm310, %v6645
        %6678 = vst.msk [vmem:[%s1212 + $0x8] sm:$0xff] %vm310, %v6646
        %6679 = vst.msk [vmem:[%s1212 + $0x18] sm:$0xff] %vm310, %v6647
        %6680 = vst.msk [vmem:[%s1212 + $0x20] sm:$0xff] %vm310, %v6648
        %6681 = vst.msk [vmem:[%s1212 + $0x30] sm:$0xff] %vm310, %v6649
        %6682 = vst.msk [vmem:[%s1212 + $0x38] sm:$0xff] %vm310, %v6650
        %6683 = vst.msk [vmem:[%s1212 + $0x48] sm:$0xff] %vm310, %v6651
        %6684 = vst.msk [vmem:[%s1212 + $0x50] sm:$0xff] %vm310, %v6652
        %6685 = vst.msk [vmem:[%s1212 + $0x60] sm:$0xff] %vm310, %v6653
        %6686 = vst.msk [vmem:[%s1212 + $0x68] sm:$0xff] %vm310, %v6654
        %6687 = vst.msk [vmem:[%s1212 + $0x78] sm:$0xff] %vm310, %v6655
        %6688 = vst.msk [vmem:[%s1212 + $0x80] sm:$0xff] %vm310, %v6656
        %6689 = vst.msk [vmem:[%s1212 + $0x90] sm:$0xff] %vm310, %v6657
        %6690 = vst.msk [vmem:[%s1212 + $0x98] sm:$0xff] %vm310, %v6658
        %6691 = vst.msk [vmem:[%s1212 + $0xa8] sm:$0xff] %vm310, %v6659
        %6692 = vst.msk [vmem:[%s1212 + $0xb0] sm:$0xff] %vm310, %v6660
        %6693 = vst.msk [vmem:[%s1212 + $0xc0] sm:$0xff] %vm310, %v6661
        %6694 = vst.msk [vmem:[%s1212 + $0xc8] sm:$0xff] %vm310, %v6662
        %6695 = vst.msk [vmem:[%s1212 + $0xd8] sm:$0xff] %vm310, %v6663
        %6696 = vst.msk [vmem:[%s1212 + $0xe0] sm:$0xff] %vm310, %v6664
        %6697 = vst.msk [vmem:[%s1212 + $0xf0] sm:$0xff] %vm310, %v6665
        %6698 = vst.msk [vmem:[%s1212 + $0xf8] sm:$0xff] %vm310, %v6666
        %6699 = vst.msk [vmem:[%s1212 + $0x108] sm:$0xff] %vm310, %v6667
        %6700 = vst.msk [vmem:[%s1212 + $0x110] sm:$0xff] %vm310, %v6668
        %6701 = vst.msk [vmem:[%s1212 + $0x120] sm:$0xff] %vm310, %v6669
        %6702 = vst.msk [vmem:[%s1212 + $0x128] sm:$0xff] %vm310, %v6670
        %6703 = vst.msk [vmem:[%s1212 + $0x138] sm:$0xff] %vm310, %v6671
        %6704 = vst.msk [vmem:[%s1212 + $0x140] sm:$0xff] %vm310, %v6672
        %6705 = vst.msk [vmem:[%s1212 + $0x150] sm:$0xff] %vm310, %v6673
        %6706 = vst.msk [vmem:[%s1212 + $0x158] sm:$0xff] %vm310, %v6674
        %6707 = vst.msk [vmem:[%s1212 + $0x168] sm:$0xff] %vm310, %v6675
        %6708 = vst.msk [vmem:[%s1212 + $0x170] sm:$0xff] %vm310, %v6676
        %v6709 = vld [vmem:[%s1179 + $0x2] sm:$0xff]
        %v6710 = vld [vmem:[%s1179 + $0xa] sm:$0xff]
        %v6711 = vld [vmem:[%s1179 + $0x1a] sm:$0xff]
        %v6712 = vld [vmem:[%s1179 + $0x22] sm:$0xff]
        %v6713 = vld [vmem:[%s1179 + $0x32] sm:$0xff]
        %v6714 = vld [vmem:[%s1179 + $0x3a] sm:$0xff]
        %v6715 = vld [vmem:[%s1179 + $0x4a] sm:$0xff]
        %v6716 = vld [vmem:[%s1179 + $0x52] sm:$0xff]
        %v6717 = vld [vmem:[%s1179 + $0x62] sm:$0xff]
        %v6718 = vld [vmem:[%s1179 + $0x6a] sm:$0xff]
        %v6719 = vld [vmem:[%s1179 + $0x7a] sm:$0xff]
        %v6720 = vld [vmem:[%s1179 + $0x82] sm:$0xff]
        %v6721 = vld [vmem:[%s1179 + $0x92] sm:$0xff]
        %v6722 = vld [vmem:[%s1179 + $0x9a] sm:$0xff]
        %v6723 = vld [vmem:[%s1179 + $0xaa] sm:$0xff]
        %v6724 = vld [vmem:[%s1179 + $0xb2] sm:$0xff]
        %v6725 = vld [vmem:[%s1179 + $0xc2] sm:$0xff]
        %v6726 = vld [vmem:[%s1179 + $0xca] sm:$0xff]
        %v6727 = vld [vmem:[%s1179 + $0xda] sm:$0xff]
        %v6728 = vld [vmem:[%s1179 + $0xe2] sm:$0xff]
        %v6729 = vld [vmem:[%s1179 + $0xf2] sm:$0xff]
        %v6730 = vld [vmem:[%s1179 + $0xfa] sm:$0xff]
        %v6731 = vld [vmem:[%s1179 + $0x10a] sm:$0xff]
        %v6732 = vld [vmem:[%s1179 + $0x112] sm:$0xff]
        %v6733 = vld [vmem:[%s1179 + $0x122] sm:$0xff]
        %v6734 = vld [vmem:[%s1179 + $0x12a] sm:$0xff]
        %v6735 = vld [vmem:[%s1179 + $0x13a] sm:$0xff]
        %v6736 = vld [vmem:[%s1179 + $0x142] sm:$0xff]
        %v6737 = vld [vmem:[%s1179 + $0x152] sm:$0xff]
        %v6738 = vld [vmem:[%s1179 + $0x15a] sm:$0xff]
        %v6739 = vld [vmem:[%s1179 + $0x16a] sm:$0xff]
        %v6740 = vld [vmem:[%s1179 + $0x172] sm:$0xff]
        %6741 = vrot.lane.b32.xlu0 %v5943, 104
        %v6742 = vpop.permute.xlu0 %6741
        %6743 = vrot.lane.b32.xlu0 %v5946, 104
        %v6744 = vpop.permute.xlu0 %6743
        %6745 = vrot.lane.b32.xlu0 %v5951, 104
        %v6746 = vpop.permute.xlu0 %6745
        %6747 = vrot.lane.b32.xlu0 %v5954, 104
        %v6748 = vpop.permute.xlu0 %6747
        %6749 = vrot.lane.b32.xlu0 %v5959, 104
        %v6750 = vpop.permute.xlu0 %6749
        %6751 = vrot.lane.b32.xlu0 %v5962, 104
        %v6752 = vpop.permute.xlu0 %6751
        %6753 = vrot.lane.b32.xlu0 %v5967, 104
        %v6754 = vpop.permute.xlu0 %6753
        %6755 = vrot.lane.b32.xlu0 %v5970, 104
        %v6756 = vpop.permute.xlu0 %6755
        %6757 = vrot.lane.b32.xlu0 %v5975, 104
        %v6758 = vpop.permute.xlu0 %6757
        %6759 = vrot.lane.b32.xlu0 %v5978, 104
        %v6760 = vpop.permute.xlu0 %6759
        %6761 = vrot.lane.b32.xlu0 %v5983, 104
        %v6762 = vpop.permute.xlu0 %6761
        %6763 = vrot.lane.b32.xlu0 %v5986, 104
        %v6764 = vpop.permute.xlu0 %6763
        %6765 = vrot.lane.b32.xlu0 %v5991, 104
        %v6766 = vpop.permute.xlu0 %6765
        %6767 = vrot.lane.b32.xlu0 %v5994, 104
        %v6768 = vpop.permute.xlu0 %6767
        %6769 = vrot.lane.b32.xlu0 %v5999, 104
        %v6770 = vpop.permute.xlu0 %6769
        %6771 = vrot.lane.b32.xlu0 %v6002, 104
        %v6772 = vpop.permute.xlu0 %6771
        %6773 = vrot.lane.b32.xlu0 %v6007, 104
        %v6774 = vpop.permute.xlu0 %6773
        %6775 = vrot.lane.b32.xlu0 %v6010, 104
        %v6776 = vpop.permute.xlu0 %6775
        %6777 = vrot.lane.b32.xlu0 %v6015, 104
        %v6778 = vpop.permute.xlu0 %6777
        %6779 = vrot.lane.b32.xlu0 %v6018, 104
        %v6780 = vpop.permute.xlu0 %6779
        %6781 = vrot.lane.b32.xlu0 %v6023, 104
        %v6782 = vpop.permute.xlu0 %6781
        %6783 = vrot.lane.b32.xlu0 %v6026, 104
        %v6784 = vpop.permute.xlu0 %6783
        %6785 = vrot.lane.b32.xlu0 %v6031, 104
        %v6786 = vpop.permute.xlu0 %6785
        %6787 = vrot.lane.b32.xlu0 %v6034, 104
        %v6788 = vpop.permute.xlu0 %6787
        %6789 = vrot.lane.b32.xlu0 %v6039, 104
        %v6790 = vpop.permute.xlu0 %6789
        %6791 = vrot.lane.b32.xlu0 %v6042, 104
        %v6792 = vpop.permute.xlu0 %6791
        %6793 = vrot.lane.b32.xlu0 %v6047, 104
        %v6794 = vpop.permute.xlu0 %6793
        %6795 = vrot.lane.b32.xlu0 %v6050, 104
        %v6796 = vpop.permute.xlu0 %6795
        %6797 = vrot.lane.b32.xlu0 %v6055, 104
        %v6798 = vpop.permute.xlu0 %6797
        %6799 = vrot.lane.b32.xlu0 %v6058, 104
        %v6800 = vpop.permute.xlu0 %6799
        %6801 = vrot.lane.b32.xlu0 %v6063, 104
        %v6802 = vpop.permute.xlu0 %6801
        %6803 = vrot.lane.b32.xlu0 %v6066, 104
        %v6804 = vpop.permute.xlu0 %6803
        %v6837 = vadd.f32 %v6709, %v6742
        %v6838 = vadd.f32 %v6710, %v6744
        %v6839 = vadd.f32 %v6711, %v6746
        %v6840 = vadd.f32 %v6712, %v6748
        %v6841 = vadd.f32 %v6713, %v6750
        %v6842 = vadd.f32 %v6714, %v6752
        %v6843 = vadd.f32 %v6715, %v6754
        %v6844 = vadd.f32 %v6716, %v6756
        %v6845 = vadd.f32 %v6717, %v6758
        %v6846 = vadd.f32 %v6718, %v6760
        %v6847 = vadd.f32 %v6719, %v6762
        %v6848 = vadd.f32 %v6720, %v6764
        %v6849 = vadd.f32 %v6721, %v6766
        %v6850 = vadd.f32 %v6722, %v6768
        %v6851 = vadd.f32 %v6723, %v6770
        %v6852 = vadd.f32 %v6724, %v6772
        %v6853 = vadd.f32 %v6725, %v6774
        %v6854 = vadd.f32 %v6726, %v6776
        %v6855 = vadd.f32 %v6727, %v6778
        %v6856 = vadd.f32 %v6728, %v6780
        %v6857 = vadd.f32 %v6729, %v6782
        %v6858 = vadd.f32 %v6730, %v6784
        %v6859 = vadd.f32 %v6731, %v6786
        %v6860 = vadd.f32 %v6732, %v6788
        %v6861 = vadd.f32 %v6733, %v6790
        %v6862 = vadd.f32 %v6734, %v6792
        %v6863 = vadd.f32 %v6735, %v6794
        %v6864 = vadd.f32 %v6736, %v6796
        %v6865 = vadd.f32 %v6737, %v6798
        %v6866 = vadd.f32 %v6738, %v6800
        %v6867 = vadd.f32 %v6739, %v6802
        %v6868 = vadd.f32 %v6740, %v6804
        %6869 = vst.msk [vmem:[%s1179 + $0x2] sm:$0xff] %vm310, %v6837
        %6870 = vst.msk [vmem:[%s1179 + $0xa] sm:$0xff] %vm310, %v6838
        %6871 = vst.msk [vmem:[%s1179 + $0x1a] sm:$0xff] %vm310, %v6839
        %6872 = vst.msk [vmem:[%s1179 + $0x22] sm:$0xff] %vm310, %v6840
        %6873 = vst.msk [vmem:[%s1179 + $0x32] sm:$0xff] %vm310, %v6841
        %6874 = vst.msk [vmem:[%s1179 + $0x3a] sm:$0xff] %vm310, %v6842
        %6875 = vst.msk [vmem:[%s1179 + $0x4a] sm:$0xff] %vm310, %v6843
        %6876 = vst.msk [vmem:[%s1179 + $0x52] sm:$0xff] %vm310, %v6844
        %6877 = vst.msk [vmem:[%s1179 + $0x62] sm:$0xff] %vm310, %v6845
        %6878 = vst.msk [vmem:[%s1179 + $0x6a] sm:$0xff] %vm310, %v6846
        %6879 = vst.msk [vmem:[%s1179 + $0x7a] sm:$0xff] %vm310, %v6847
        %6880 = vst.msk [vmem:[%s1179 + $0x82] sm:$0xff] %vm310, %v6848
        %6881 = vst.msk [vmem:[%s1179 + $0x92] sm:$0xff] %vm310, %v6849
        %6882 = vst.msk [vmem:[%s1179 + $0x9a] sm:$0xff] %vm310, %v6850
        %6883 = vst.msk [vmem:[%s1179 + $0xaa] sm:$0xff] %vm310, %v6851
        %6884 = vst.msk [vmem:[%s1179 + $0xb2] sm:$0xff] %vm310, %v6852
        %6885 = vst.msk [vmem:[%s1179 + $0xc2] sm:$0xff] %vm310, %v6853
        %6886 = vst.msk [vmem:[%s1179 + $0xca] sm:$0xff] %vm310, %v6854
        %6887 = vst.msk [vmem:[%s1179 + $0xda] sm:$0xff] %vm310, %v6855
        %6888 = vst.msk [vmem:[%s1179 + $0xe2] sm:$0xff] %vm310, %v6856
        %6889 = vst.msk [vmem:[%s1179 + $0xf2] sm:$0xff] %vm310, %v6857
        %6890 = vst.msk [vmem:[%s1179 + $0xfa] sm:$0xff] %vm310, %v6858
        %6891 = vst.msk [vmem:[%s1179 + $0x10a] sm:$0xff] %vm310, %v6859
        %6892 = vst.msk [vmem:[%s1179 + $0x112] sm:$0xff] %vm310, %v6860
        %6893 = vst.msk [vmem:[%s1179 + $0x122] sm:$0xff] %vm310, %v6861
        %6894 = vst.msk [vmem:[%s1179 + $0x12a] sm:$0xff] %vm310, %v6862
        %6895 = vst.msk [vmem:[%s1179 + $0x13a] sm:$0xff] %vm310, %v6863
        %6896 = vst.msk [vmem:[%s1179 + $0x142] sm:$0xff] %vm310, %v6864
        %6897 = vst.msk [vmem:[%s1179 + $0x152] sm:$0xff] %vm310, %v6865
        %6898 = vst.msk [vmem:[%s1179 + $0x15a] sm:$0xff] %vm310, %v6866
        %6899 = vst.msk [vmem:[%s1179 + $0x16a] sm:$0xff] %vm310, %v6867
        %6900 = vst.msk [vmem:[%s1179 + $0x172] sm:$0xff] %vm310, %v6868
        %v6901 = vld [vmem:[%s1179] sm:$0xff]
        %v6902 = vld [vmem:[%s1179 + $0x8] sm:$0xff]
        %v6903 = vld [vmem:[%s1179 + $0x18] sm:$0xff]
        %v6904 = vld [vmem:[%s1179 + $0x20] sm:$0xff]
        %v6905 = vld [vmem:[%s1179 + $0x30] sm:$0xff]
        %v6906 = vld [vmem:[%s1179 + $0x38] sm:$0xff]
        %v6907 = vld [vmem:[%s1179 + $0x48] sm:$0xff]
        %v6908 = vld [vmem:[%s1179 + $0x50] sm:$0xff]
        %v6909 = vld [vmem:[%s1179 + $0x60] sm:$0xff]
        %v6910 = vld [vmem:[%s1179 + $0x68] sm:$0xff]
        %v6911 = vld [vmem:[%s1179 + $0x78] sm:$0xff]
        %v6912 = vld [vmem:[%s1179 + $0x80] sm:$0xff]
        %v6913 = vld [vmem:[%s1179 + $0x90] sm:$0xff]
        %v6914 = vld [vmem:[%s1179 + $0x98] sm:$0xff]
        %v6915 = vld [vmem:[%s1179 + $0xa8] sm:$0xff]
        %v6916 = vld [vmem:[%s1179 + $0xb0] sm:$0xff]
        %v6917 = vld [vmem:[%s1179 + $0xc0] sm:$0xff]
        %v6918 = vld [vmem:[%s1179 + $0xc8] sm:$0xff]
        %v6919 = vld [vmem:[%s1179 + $0xd8] sm:$0xff]
        %v6920 = vld [vmem:[%s1179 + $0xe0] sm:$0xff]
        %v6921 = vld [vmem:[%s1179 + $0xf0] sm:$0xff]
        %v6922 = vld [vmem:[%s1179 + $0xf8] sm:$0xff]
        %v6923 = vld [vmem:[%s1179 + $0x108] sm:$0xff]
        %v6924 = vld [vmem:[%s1179 + $0x110] sm:$0xff]
        %v6925 = vld [vmem:[%s1179 + $0x120] sm:$0xff]
        %v6926 = vld [vmem:[%s1179 + $0x128] sm:$0xff]
        %v6927 = vld [vmem:[%s1179 + $0x138] sm:$0xff]
        %v6928 = vld [vmem:[%s1179 + $0x140] sm:$0xff]
        %v6929 = vld [vmem:[%s1179 + $0x150] sm:$0xff]
        %v6930 = vld [vmem:[%s1179 + $0x158] sm:$0xff]
        %v6931 = vld [vmem:[%s1179 + $0x168] sm:$0xff]
        %v6932 = vld [vmem:[%s1179 + $0x170] sm:$0xff]
        %6933 = vrot.lane.b32.xlu0 %v5943, 88
        %v6934 = vpop.permute.xlu0 %6933
        %6935 = vrot.lane.b32.xlu0 %v5946, 88
        %v6936 = vpop.permute.xlu0 %6935
        %6937 = vrot.lane.b32.xlu0 %v5951, 88
        %v6938 = vpop.permute.xlu0 %6937
        %6939 = vrot.lane.b32.xlu0 %v5954, 88
        %v6940 = vpop.permute.xlu0 %6939
        %6941 = vrot.lane.b32.xlu0 %v5959, 88
        %v6942 = vpop.permute.xlu0 %6941
        %6943 = vrot.lane.b32.xlu0 %v5962, 88
        %v6944 = vpop.permute.xlu0 %6943
        %6945 = vrot.lane.b32.xlu0 %v5967, 88
        %v6946 = vpop.permute.xlu0 %6945
        %6947 = vrot.lane.b32.xlu0 %v5970, 88
        %v6948 = vpop.permute.xlu0 %6947
        %6949 = vrot.lane.b32.xlu0 %v5975, 88
        %v6950 = vpop.permute.xlu0 %6949
        %6951 = vrot.lane.b32.xlu0 %v5978, 88
        %v6952 = vpop.permute.xlu0 %6951
        %6953 = vrot.lane.b32.xlu0 %v5983, 88
        %v6954 = vpop.permute.xlu0 %6953
        %6955 = vrot.lane.b32.xlu0 %v5986, 88
        %v6956 = vpop.permute.xlu0 %6955
        %6957 = vrot.lane.b32.xlu0 %v5991, 88
        %v6958 = vpop.permute.xlu0 %6957
        %6959 = vrot.lane.b32.xlu0 %v5994, 88
        %v6960 = vpop.permute.xlu0 %6959
        %6961 = vrot.lane.b32.xlu0 %v5999, 88
        %v6962 = vpop.permute.xlu0 %6961
        %6963 = vrot.lane.b32.xlu0 %v6002, 88
        %v6964 = vpop.permute.xlu0 %6963
        %6965 = vrot.lane.b32.xlu0 %v6007, 88
        %v6966 = vpop.permute.xlu0 %6965
        %6967 = vrot.lane.b32.xlu0 %v6010, 88
        %v6968 = vpop.permute.xlu0 %6967
        %6969 = vrot.lane.b32.xlu0 %v6015, 88
        %v6970 = vpop.permute.xlu0 %6969
        %6971 = vrot.lane.b32.xlu0 %v6018, 88
        %v6972 = vpop.permute.xlu0 %6971
        %6973 = vrot.lane.b32.xlu0 %v6023, 88
        %v6974 = vpop.permute.xlu0 %6973
        %6975 = vrot.lane.b32.xlu0 %v6026, 88
        %v6976 = vpop.permute.xlu0 %6975
        %6977 = vrot.lane.b32.xlu0 %v6031, 88
        %v6978 = vpop.permute.xlu0 %6977
        %6979 = vrot.lane.b32.xlu0 %v6034, 88
        %v6980 = vpop.permute.xlu0 %6979
        %6981 = vrot.lane.b32.xlu0 %v6039, 88
        %v6982 = vpop.permute.xlu0 %6981
        %6983 = vrot.lane.b32.xlu0 %v6042, 88
        %v6984 = vpop.permute.xlu0 %6983
        %6985 = vrot.lane.b32.xlu0 %v6047, 88
        %v6986 = vpop.permute.xlu0 %6985
        %6987 = vrot.lane.b32.xlu0 %v6050, 88
        %v6988 = vpop.permute.xlu0 %6987
        %6989 = vrot.lane.b32.xlu0 %v6055, 88
        %v6990 = vpop.permute.xlu0 %6989
        %6991 = vrot.lane.b32.xlu0 %v6058, 88
        %v6992 = vpop.permute.xlu0 %6991
        %6993 = vrot.lane.b32.xlu0 %v6063, 88
        %v6994 = vpop.permute.xlu0 %6993
        %6995 = vrot.lane.b32.xlu0 %v6066, 88
        %v6996 = vpop.permute.xlu0 %6995
        %v7029 = vadd.f32 %v6901, %v6934
        %v7030 = vadd.f32 %v6902, %v6936
        %v7031 = vadd.f32 %v6903, %v6938
        %v7032 = vadd.f32 %v6904, %v6940
        %v7033 = vadd.f32 %v6905, %v6942
        %v7034 = vadd.f32 %v6906, %v6944
        %v7035 = vadd.f32 %v6907, %v6946
        %v7036 = vadd.f32 %v6908, %v6948
        %v7037 = vadd.f32 %v6909, %v6950
        %v7038 = vadd.f32 %v6910, %v6952
        %v7039 = vadd.f32 %v6911, %v6954
        %v7040 = vadd.f32 %v6912, %v6956
        %v7041 = vadd.f32 %v6913, %v6958
        %v7042 = vadd.f32 %v6914, %v6960
        %v7043 = vadd.f32 %v6915, %v6962
        %v7044 = vadd.f32 %v6916, %v6964
        %v7045 = vadd.f32 %v6917, %v6966
        %v7046 = vadd.f32 %v6918, %v6968
        %v7047 = vadd.f32 %v6919, %v6970
        %v7048 = vadd.f32 %v6920, %v6972
        %v7049 = vadd.f32 %v6921, %v6974
        %v7050 = vadd.f32 %v6922, %v6976
        %v7051 = vadd.f32 %v6923, %v6978
        %v7052 = vadd.f32 %v6924, %v6980
        %v7053 = vadd.f32 %v6925, %v6982
        %v7054 = vadd.f32 %v6926, %v6984
        %v7055 = vadd.f32 %v6927, %v6986
        %v7056 = vadd.f32 %v6928, %v6988
        %v7057 = vadd.f32 %v6929, %v6990
        %v7058 = vadd.f32 %v6930, %v6992
        %v7059 = vadd.f32 %v6931, %v6994
        %v7060 = vadd.f32 %v6932, %v6996
        %7061 = vst.msk [vmem:[%s1179] sm:$0xff] %vm310, %v7029
        %7062 = vst.msk [vmem:[%s1179 + $0x8] sm:$0xff] %vm310, %v7030
        %7063 = vst.msk [vmem:[%s1179 + $0x18] sm:$0xff] %vm310, %v7031
        %7064 = vst.msk [vmem:[%s1179 + $0x20] sm:$0xff] %vm310, %v7032
        %7065 = vst.msk [vmem:[%s1179 + $0x30] sm:$0xff] %vm310, %v7033
        %7066 = vst.msk [vmem:[%s1179 + $0x38] sm:$0xff] %vm310, %v7034
        %7067 = vst.msk [vmem:[%s1179 + $0x48] sm:$0xff] %vm310, %v7035
        %7068 = vst.msk [vmem:[%s1179 + $0x50] sm:$0xff] %vm310, %v7036
        %7069 = vst.msk [vmem:[%s1179 + $0x60] sm:$0xff] %vm310, %v7037
        %7070 = vst.msk [vmem:[%s1179 + $0x68] sm:$0xff] %vm310, %v7038
        %7071 = vst.msk [vmem:[%s1179 + $0x78] sm:$0xff] %vm310, %v7039
        %7072 = vst.msk [vmem:[%s1179 + $0x80] sm:$0xff] %vm310, %v7040
        %7073 = vst.msk [vmem:[%s1179 + $0x90] sm:$0xff] %vm310, %v7041
        %7074 = vst.msk [vmem:[%s1179 + $0x98] sm:$0xff] %vm310, %v7042
        %7075 = vst.msk [vmem:[%s1179 + $0xa8] sm:$0xff] %vm310, %v7043
        %7076 = vst.msk [vmem:[%s1179 + $0xb0] sm:$0xff] %vm310, %v7044
        %7077 = vst.msk [vmem:[%s1179 + $0xc0] sm:$0xff] %vm310, %v7045
        %7078 = vst.msk [vmem:[%s1179 + $0xc8] sm:$0xff] %vm310, %v7046
        %7079 = vst.msk [vmem:[%s1179 + $0xd8] sm:$0xff] %vm310, %v7047
        %7080 = vst.msk [vmem:[%s1179 + $0xe0] sm:$0xff] %vm310, %v7048
        %7081 = vst.msk [vmem:[%s1179 + $0xf0] sm:$0xff] %vm310, %v7049
        %7082 = vst.msk [vmem:[%s1179 + $0xf8] sm:$0xff] %vm310, %v7050
        %7083 = vst.msk [vmem:[%s1179 + $0x108] sm:$0xff] %vm310, %v7051
        %7084 = vst.msk [vmem:[%s1179 + $0x110] sm:$0xff] %vm310, %v7052
        %7085 = vst.msk [vmem:[%s1179 + $0x120] sm:$0xff] %vm310, %v7053
        %7086 = vst.msk [vmem:[%s1179 + $0x128] sm:$0xff] %vm310, %v7054
        %7087 = vst.msk [vmem:[%s1179 + $0x138] sm:$0xff] %vm310, %v7055
        %7088 = vst.msk [vmem:[%s1179 + $0x140] sm:$0xff] %vm310, %v7056
        %7089 = vst.msk [vmem:[%s1179 + $0x150] sm:$0xff] %vm310, %v7057
        %7090 = vst.msk [vmem:[%s1179 + $0x158] sm:$0xff] %vm310, %v7058
        %7091 = vst.msk [vmem:[%s1179 + $0x168] sm:$0xff] %vm310, %v7059
        %7092 = vst.msk [vmem:[%s1179 + $0x170] sm:$0xff] %vm310, %v7060
        %v7093 = vld [vmem:[#allocation2 + $0x2] sm:$0xff]
        %v7094 = vld [vmem:[#allocation2 + $0xa] sm:$0xff]
        %v7095 = vld [vmem:[#allocation2 + $0x1a] sm:$0xff]
        %v7096 = vld [vmem:[#allocation2 + $0x22] sm:$0xff]
        %v7097 = vld [vmem:[#allocation2 + $0x32] sm:$0xff]
        %v7098 = vld [vmem:[#allocation2 + $0x3a] sm:$0xff]
        %v7099 = vld [vmem:[#allocation2 + $0x4a] sm:$0xff]
        %v7100 = vld [vmem:[#allocation2 + $0x52] sm:$0xff]
        %v7101 = vld [vmem:[#allocation2 + $0x62] sm:$0xff]
        %v7102 = vld [vmem:[#allocation2 + $0x6a] sm:$0xff]
        %v7103 = vld [vmem:[#allocation2 + $0x7a] sm:$0xff]
        %v7104 = vld [vmem:[#allocation2 + $0x82] sm:$0xff]
        %v7105 = vld [vmem:[#allocation2 + $0x92] sm:$0xff]
        %v7106 = vld [vmem:[#allocation2 + $0x9a] sm:$0xff]
        %v7107 = vld [vmem:[#allocation2 + $0xaa] sm:$0xff]
        %v7108 = vld [vmem:[#allocation2 + $0xb2] sm:$0xff]
        %v7109 = vld [vmem:[#allocation2 + $0xc2] sm:$0xff]
        %v7110 = vld [vmem:[#allocation2 + $0xca] sm:$0xff]
        %v7111 = vld [vmem:[#allocation2 + $0xda] sm:$0xff]
        %v7112 = vld [vmem:[#allocation2 + $0xe2] sm:$0xff]
        %v7113 = vld [vmem:[#allocation2 + $0xf2] sm:$0xff]
        %v7114 = vld [vmem:[#allocation2 + $0xfa] sm:$0xff]
        %v7115 = vld [vmem:[#allocation2 + $0x10a] sm:$0xff]
        %v7116 = vld [vmem:[#allocation2 + $0x112] sm:$0xff]
        %v7117 = vld [vmem:[#allocation2 + $0x122] sm:$0xff]
        %v7118 = vld [vmem:[#allocation2 + $0x12a] sm:$0xff]
        %v7119 = vld [vmem:[#allocation2 + $0x13a] sm:$0xff]
        %v7120 = vld [vmem:[#allocation2 + $0x142] sm:$0xff]
        %v7121 = vld [vmem:[#allocation2 + $0x152] sm:$0xff]
        %v7122 = vld [vmem:[#allocation2 + $0x15a] sm:$0xff]
        %v7123 = vld [vmem:[#allocation2 + $0x16a] sm:$0xff]
        %v7124 = vld [vmem:[#allocation2 + $0x172] sm:$0xff]
        %7125 = vrot.lane.b32.xlu0 %v5943, 80
        %v7126 = vpop.permute.xlu0 %7125
        %7127 = vrot.lane.b32.xlu0 %v5946, 80
        %v7128 = vpop.permute.xlu0 %7127
        %7129 = vrot.lane.b32.xlu0 %v5951, 80
        %v7130 = vpop.permute.xlu0 %7129
        %7131 = vrot.lane.b32.xlu0 %v5954, 80
        %v7132 = vpop.permute.xlu0 %7131
        %7133 = vrot.lane.b32.xlu0 %v5959, 80
        %v7134 = vpop.permute.xlu0 %7133
        %7135 = vrot.lane.b32.xlu0 %v5962, 80
        %v7136 = vpop.permute.xlu0 %7135
        %7137 = vrot.lane.b32.xlu0 %v5967, 80
        %v7138 = vpop.permute.xlu0 %7137
        %7139 = vrot.lane.b32.xlu0 %v5970, 80
        %v7140 = vpop.permute.xlu0 %7139
        %7141 = vrot.lane.b32.xlu0 %v5975, 80
        %v7142 = vpop.permute.xlu0 %7141
        %7143 = vrot.lane.b32.xlu0 %v5978, 80
        %v7144 = vpop.permute.xlu0 %7143
        %7145 = vrot.lane.b32.xlu0 %v5983, 80
        %v7146 = vpop.permute.xlu0 %7145
        %7147 = vrot.lane.b32.xlu0 %v5986, 80
        %v7148 = vpop.permute.xlu0 %7147
        %7149 = vrot.lane.b32.xlu0 %v5991, 80
        %v7150 = vpop.permute.xlu0 %7149
        %7151 = vrot.lane.b32.xlu0 %v5994, 80
        %v7152 = vpop.permute.xlu0 %7151
        %7153 = vrot.lane.b32.xlu0 %v5999, 80
        %v7154 = vpop.permute.xlu0 %7153
        %7155 = vrot.lane.b32.xlu0 %v6002, 80
        %v7156 = vpop.permute.xlu0 %7155
        %7157 = vrot.lane.b32.xlu0 %v6007, 80
        %v7158 = vpop.permute.xlu0 %7157
        %7159 = vrot.lane.b32.xlu0 %v6010, 80
        %v7160 = vpop.permute.xlu0 %7159
        %7161 = vrot.lane.b32.xlu0 %v6015, 80
        %v7162 = vpop.permute.xlu0 %7161
        %7163 = vrot.lane.b32.xlu0 %v6018, 80
        %v7164 = vpop.permute.xlu0 %7163
        %7165 = vrot.lane.b32.xlu0 %v6023, 80
        %v7166 = vpop.permute.xlu0 %7165
        %7167 = vrot.lane.b32.xlu0 %v6026, 80
        %v7168 = vpop.permute.xlu0 %7167
        %7169 = vrot.lane.b32.xlu0 %v6031, 80
        %v7170 = vpop.permute.xlu0 %7169
        %7171 = vrot.lane.b32.xlu0 %v6034, 80
        %v7172 = vpop.permute.xlu0 %7171
        %7173 = vrot.lane.b32.xlu0 %v6039, 80
        %v7174 = vpop.permute.xlu0 %7173
        %7175 = vrot.lane.b32.xlu0 %v6042, 80
        %v7176 = vpop.permute.xlu0 %7175
        %7177 = vrot.lane.b32.xlu0 %v6047, 80
        %v7178 = vpop.permute.xlu0 %7177
        %7179 = vrot.lane.b32.xlu0 %v6050, 80
        %v7180 = vpop.permute.xlu0 %7179
        %7181 = vrot.lane.b32.xlu0 %v6055, 80
        %v7182 = vpop.permute.xlu0 %7181
        %7183 = vrot.lane.b32.xlu0 %v6058, 80
        %v7184 = vpop.permute.xlu0 %7183
        %7185 = vrot.lane.b32.xlu0 %v6063, 80
        %v7186 = vpop.permute.xlu0 %7185
        %7187 = vrot.lane.b32.xlu0 %v6066, 80
        %v7188 = vpop.permute.xlu0 %7187
        %v7221 = vadd.f32 %v7093, %v7126
        %v7222 = vadd.f32 %v7094, %v7128
        %v7223 = vadd.f32 %v7095, %v7130
        %v7224 = vadd.f32 %v7096, %v7132
        %v7225 = vadd.f32 %v7097, %v7134
        %v7226 = vadd.f32 %v7098, %v7136
        %v7227 = vadd.f32 %v7099, %v7138
        %v7228 = vadd.f32 %v7100, %v7140
        %v7229 = vadd.f32 %v7101, %v7142
        %v7230 = vadd.f32 %v7102, %v7144
        %v7231 = vadd.f32 %v7103, %v7146
        %v7232 = vadd.f32 %v7104, %v7148
        %v7233 = vadd.f32 %v7105, %v7150
        %v7234 = vadd.f32 %v7106, %v7152
        %v7235 = vadd.f32 %v7107, %v7154
        %v7236 = vadd.f32 %v7108, %v7156
        %v7237 = vadd.f32 %v7109, %v7158
        %v7238 = vadd.f32 %v7110, %v7160
        %v7239 = vadd.f32 %v7111, %v7162
        %v7240 = vadd.f32 %v7112, %v7164
        %v7241 = vadd.f32 %v7113, %v7166
        %v7242 = vadd.f32 %v7114, %v7168
        %v7243 = vadd.f32 %v7115, %v7170
        %v7244 = vadd.f32 %v7116, %v7172
        %v7245 = vadd.f32 %v7117, %v7174
        %v7246 = vadd.f32 %v7118, %v7176
        %v7247 = vadd.f32 %v7119, %v7178
        %v7248 = vadd.f32 %v7120, %v7180
        %v7249 = vadd.f32 %v7121, %v7182
        %v7250 = vadd.f32 %v7122, %v7184
        %v7251 = vadd.f32 %v7123, %v7186
        %v7252 = vadd.f32 %v7124, %v7188
        %7253 = vst.msk [vmem:[#allocation2 + $0x2] sm:$0xff] %vm310, %v7221
        %7254 = vst.msk [vmem:[#allocation2 + $0xa] sm:$0xff] %vm310, %v7222
        %7255 = vst.msk [vmem:[#allocation2 + $0x1a] sm:$0xff] %vm310, %v7223
        %7256 = vst.msk [vmem:[#allocation2 + $0x22] sm:$0xff] %vm310, %v7224
        %7257 = vst.msk [vmem:[#allocation2 + $0x32] sm:$0xff] %vm310, %v7225
        %7258 = vst.msk [vmem:[#allocation2 + $0x3a] sm:$0xff] %vm310, %v7226
        %7259 = vst.msk [vmem:[#allocation2 + $0x4a] sm:$0xff] %vm310, %v7227
        %7260 = vst.msk [vmem:[#allocation2 + $0x52] sm:$0xff] %vm310, %v7228
        %7261 = vst.msk [vmem:[#allocation2 + $0x62] sm:$0xff] %vm310, %v7229
        %7262 = vst.msk [vmem:[#allocation2 + $0x6a] sm:$0xff] %vm310, %v7230
        %7263 = vst.msk [vmem:[#allocation2 + $0x7a] sm:$0xff] %vm310, %v7231
        %7264 = vst.msk [vmem:[#allocation2 + $0x82] sm:$0xff] %vm310, %v7232
        %7265 = vst.msk [vmem:[#allocation2 + $0x92] sm:$0xff] %vm310, %v7233
        %7266 = vst.msk [vmem:[#allocation2 + $0x9a] sm:$0xff] %vm310, %v7234
        %7267 = vst.msk [vmem:[#allocation2 + $0xaa] sm:$0xff] %vm310, %v7235
        %7268 = vst.msk [vmem:[#allocation2 + $0xb2] sm:$0xff] %vm310, %v7236
        %7269 = vst.msk [vmem:[#allocation2 + $0xc2] sm:$0xff] %vm310, %v7237
        %7270 = vst.msk [vmem:[#allocation2 + $0xca] sm:$0xff] %vm310, %v7238
        %7271 = vst.msk [vmem:[#allocation2 + $0xda] sm:$0xff] %vm310, %v7239
        %7272 = vst.msk [vmem:[#allocation2 + $0xe2] sm:$0xff] %vm310, %v7240
        %7273 = vst.msk [vmem:[#allocation2 + $0xf2] sm:$0xff] %vm310, %v7241
        %7274 = vst.msk [vmem:[#allocation2 + $0xfa] sm:$0xff] %vm310, %v7242
        %7275 = vst.msk [vmem:[#allocation2 + $0x10a] sm:$0xff] %vm310, %v7243
        %7276 = vst.msk [vmem:[#allocation2 + $0x112] sm:$0xff] %vm310, %v7244
        %7277 = vst.msk [vmem:[#allocation2 + $0x122] sm:$0xff] %vm310, %v7245
        %7278 = vst.msk [vmem:[#allocation2 + $0x12a] sm:$0xff] %vm310, %v7246
        %7279 = vst.msk [vmem:[#allocation2 + $0x13a] sm:$0xff] %vm310, %v7247
        %7280 = vst.msk [vmem:[#allocation2 + $0x142] sm:$0xff] %vm310, %v7248
        %7281 = vst.msk [vmem:[#allocation2 + $0x152] sm:$0xff] %vm310, %v7249
        %7282 = vst.msk [vmem:[#allocation2 + $0x15a] sm:$0xff] %vm310, %v7250
        %7283 = vst.msk [vmem:[#allocation2 + $0x16a] sm:$0xff] %vm310, %v7251
        %7284 = vst.msk [vmem:[#allocation2 + $0x172] sm:$0xff] %vm310, %v7252
        %v7285 = vld [vmem:[#allocation2 + $0x1] sm:$0xff]
        %v7286 = vld [vmem:[#allocation2 + $0x9] sm:$0xff]
        %v7287 = vld [vmem:[#allocation2 + $0x19] sm:$0xff]
        %v7288 = vld [vmem:[#allocation2 + $0x21] sm:$0xff]
        %v7289 = vld [vmem:[#allocation2 + $0x31] sm:$0xff]
        %v7290 = vld [vmem:[#allocation2 + $0x39] sm:$0xff]
        %v7291 = vld [vmem:[#allocation2 + $0x49] sm:$0xff]
        %v7292 = vld [vmem:[#allocation2 + $0x51] sm:$0xff]
        %v7293 = vld [vmem:[#allocation2 + $0x61] sm:$0xff]
        %v7294 = vld [vmem:[#allocation2 + $0x69] sm:$0xff]
        %v7295 = vld [vmem:[#allocation2 + $0x79] sm:$0xff]
        %v7296 = vld [vmem:[#allocation2 + $0x81] sm:$0xff]
        %v7297 = vld [vmem:[#allocation2 + $0x91] sm:$0xff]
        %v7298 = vld [vmem:[#allocation2 + $0x99] sm:$0xff]
        %v7299 = vld [vmem:[#allocation2 + $0xa9] sm:$0xff]
        %v7300 = vld [vmem:[#allocation2 + $0xb1] sm:$0xff]
        %v7301 = vld [vmem:[#allocation2 + $0xc1] sm:$0xff]
        %v7302 = vld [vmem:[#allocation2 + $0xc9] sm:$0xff]
        %v7303 = vld [vmem:[#allocation2 + $0xd9] sm:$0xff]
        %v7304 = vld [vmem:[#allocation2 + $0xe1] sm:$0xff]
        %v7305 = vld [vmem:[#allocation2 + $0xf1] sm:$0xff]
        %v7306 = vld [vmem:[#allocation2 + $0xf9] sm:$0xff]
        %v7307 = vld [vmem:[#allocation2 + $0x109] sm:$0xff]
        %v7308 = vld [vmem:[#allocation2 + $0x111] sm:$0xff]
        %v7309 = vld [vmem:[#allocation2 + $0x121] sm:$0xff]
        %v7310 = vld [vmem:[#allocation2 + $0x129] sm:$0xff]
        %v7311 = vld [vmem:[#allocation2 + $0x139] sm:$0xff]
        %v7312 = vld [vmem:[#allocation2 + $0x141] sm:$0xff]
        %v7313 = vld [vmem:[#allocation2 + $0x151] sm:$0xff]
        %v7314 = vld [vmem:[#allocation2 + $0x159] sm:$0xff]
        %v7315 = vld [vmem:[#allocation2 + $0x169] sm:$0xff]
        %v7316 = vld [vmem:[#allocation2 + $0x171] sm:$0xff]
        %7317 = vrot.lane.b32.xlu0 %v5943, 72
        %v7318 = vpop.permute.xlu0 %7317
        %7319 = vrot.lane.b32.xlu0 %v5946, 72
        %v7320 = vpop.permute.xlu0 %7319
        %7321 = vrot.lane.b32.xlu0 %v5951, 72
        %v7322 = vpop.permute.xlu0 %7321
        %7323 = vrot.lane.b32.xlu0 %v5954, 72
        %v7324 = vpop.permute.xlu0 %7323
        %7325 = vrot.lane.b32.xlu0 %v5959, 72
        %v7326 = vpop.permute.xlu0 %7325
        %7327 = vrot.lane.b32.xlu0 %v5962, 72
        %v7328 = vpop.permute.xlu0 %7327
        %7329 = vrot.lane.b32.xlu0 %v5967, 72
        %v7330 = vpop.permute.xlu0 %7329
        %7331 = vrot.lane.b32.xlu0 %v5970, 72
        %v7332 = vpop.permute.xlu0 %7331
        %7333 = vrot.lane.b32.xlu0 %v5975, 72
        %v7334 = vpop.permute.xlu0 %7333
        %7335 = vrot.lane.b32.xlu0 %v5978, 72
        %v7336 = vpop.permute.xlu0 %7335
        %7337 = vrot.lane.b32.xlu0 %v5983, 72
        %v7338 = vpop.permute.xlu0 %7337
        %7339 = vrot.lane.b32.xlu0 %v5986, 72
        %v7340 = vpop.permute.xlu0 %7339
        %7341 = vrot.lane.b32.xlu0 %v5991, 72
        %v7342 = vpop.permute.xlu0 %7341
        %7343 = vrot.lane.b32.xlu0 %v5994, 72
        %v7344 = vpop.permute.xlu0 %7343
        %7345 = vrot.lane.b32.xlu0 %v5999, 72
        %v7346 = vpop.permute.xlu0 %7345
        %7347 = vrot.lane.b32.xlu0 %v6002, 72
        %v7348 = vpop.permute.xlu0 %7347
        %7349 = vrot.lane.b32.xlu0 %v6007, 72
        %v7350 = vpop.permute.xlu0 %7349
        %7351 = vrot.lane.b32.xlu0 %v6010, 72
        %v7352 = vpop.permute.xlu0 %7351
        %7353 = vrot.lane.b32.xlu0 %v6015, 72
        %v7354 = vpop.permute.xlu0 %7353
        %7355 = vrot.lane.b32.xlu0 %v6018, 72
        %v7356 = vpop.permute.xlu0 %7355
        %7357 = vrot.lane.b32.xlu0 %v6023, 72
        %v7358 = vpop.permute.xlu0 %7357
        %7359 = vrot.lane.b32.xlu0 %v6026, 72
        %v7360 = vpop.permute.xlu0 %7359
        %7361 = vrot.lane.b32.xlu0 %v6031, 72
        %v7362 = vpop.permute.xlu0 %7361
        %7363 = vrot.lane.b32.xlu0 %v6034, 72
        %v7364 = vpop.permute.xlu0 %7363
        %7365 = vrot.lane.b32.xlu0 %v6039, 72
        %v7366 = vpop.permute.xlu0 %7365
        %7367 = vrot.lane.b32.xlu0 %v6042, 72
        %v7368 = vpop.permute.xlu0 %7367
        %7369 = vrot.lane.b32.xlu0 %v6047, 72
        %v7370 = vpop.permute.xlu0 %7369
        %7371 = vrot.lane.b32.xlu0 %v6050, 72
        %v7372 = vpop.permute.xlu0 %7371
        %7373 = vrot.lane.b32.xlu0 %v6055, 72
        %v7374 = vpop.permute.xlu0 %7373
        %7375 = vrot.lane.b32.xlu0 %v6058, 72
        %v7376 = vpop.permute.xlu0 %7375
        %7377 = vrot.lane.b32.xlu0 %v6063, 72
        %v7378 = vpop.permute.xlu0 %7377
        %7379 = vrot.lane.b32.xlu0 %v6066, 72
        %v7380 = vpop.permute.xlu0 %7379
        %v7413 = vadd.f32 %v7285, %v7318
        %v7414 = vadd.f32 %v7286, %v7320
        %v7415 = vadd.f32 %v7287, %v7322
        %v7416 = vadd.f32 %v7288, %v7324
        %v7417 = vadd.f32 %v7289, %v7326
        %v7418 = vadd.f32 %v7290, %v7328
        %v7419 = vadd.f32 %v7291, %v7330
        %v7420 = vadd.f32 %v7292, %v7332
        %v7421 = vadd.f32 %v7293, %v7334
        %v7422 = vadd.f32 %v7294, %v7336
        %v7423 = vadd.f32 %v7295, %v7338
        %v7424 = vadd.f32 %v7296, %v7340
        %v7425 = vadd.f32 %v7297, %v7342
        %v7426 = vadd.f32 %v7298, %v7344
        %v7427 = vadd.f32 %v7299, %v7346
        %v7428 = vadd.f32 %v7300, %v7348
        %v7429 = vadd.f32 %v7301, %v7350
        %v7430 = vadd.f32 %v7302, %v7352
        %v7431 = vadd.f32 %v7303, %v7354
        %v7432 = vadd.f32 %v7304, %v7356
        %v7433 = vadd.f32 %v7305, %v7358
        %v7434 = vadd.f32 %v7306, %v7360
        %v7435 = vadd.f32 %v7307, %v7362
        %v7436 = vadd.f32 %v7308, %v7364
        %v7437 = vadd.f32 %v7309, %v7366
        %v7438 = vadd.f32 %v7310, %v7368
        %v7439 = vadd.f32 %v7311, %v7370
        %v7440 = vadd.f32 %v7312, %v7372
        %v7441 = vadd.f32 %v7313, %v7374
        %v7442 = vadd.f32 %v7314, %v7376
        %v7443 = vadd.f32 %v7315, %v7378
        %v7444 = vadd.f32 %v7316, %v7380
        %7445 = vst.msk [vmem:[#allocation2 + $0x1] sm:$0xff] %vm310, %v7413
        %7446 = vst.msk [vmem:[#allocation2 + $0x9] sm:$0xff] %vm310, %v7414
        %7447 = vst.msk [vmem:[#allocation2 + $0x19] sm:$0xff] %vm310, %v7415
        %7448 = vst.msk [vmem:[#allocation2 + $0x21] sm:$0xff] %vm310, %v7416
        %7449 = vst.msk [vmem:[#allocation2 + $0x31] sm:$0xff] %vm310, %v7417
        %7450 = vst.msk [vmem:[#allocation2 + $0x39] sm:$0xff] %vm310, %v7418
        %7451 = vst.msk [vmem:[#allocation2 + $0x49] sm:$0xff] %vm310, %v7419
        %7452 = vst.msk [vmem:[#allocation2 + $0x51] sm:$0xff] %vm310, %v7420
        %7453 = vst.msk [vmem:[#allocation2 + $0x61] sm:$0xff] %vm310, %v7421
        %7454 = vst.msk [vmem:[#allocation2 + $0x69] sm:$0xff] %vm310, %v7422
        %7455 = vst.msk [vmem:[#allocation2 + $0x79] sm:$0xff] %vm310, %v7423
        %7456 = vst.msk [vmem:[#allocation2 + $0x81] sm:$0xff] %vm310, %v7424
        %7457 = vst.msk [vmem:[#allocation2 + $0x91] sm:$0xff] %vm310, %v7425
        %7458 = vst.msk [vmem:[#allocation2 + $0x99] sm:$0xff] %vm310, %v7426
        %7459 = vst.msk [vmem:[#allocation2 + $0xa9] sm:$0xff] %vm310, %v7427
        %7460 = vst.msk [vmem:[#allocation2 + $0xb1] sm:$0xff] %vm310, %v7428
        %7461 = vst.msk [vmem:[#allocation2 + $0xc1] sm:$0xff] %vm310, %v7429
        %7462 = vst.msk [vmem:[#allocation2 + $0xc9] sm:$0xff] %vm310, %v7430
        %7463 = vst.msk [vmem:[#allocation2 + $0xd9] sm:$0xff] %vm310, %v7431
        %7464 = vst.msk [vmem:[#allocation2 + $0xe1] sm:$0xff] %vm310, %v7432
        %7465 = vst.msk [vmem:[#allocation2 + $0xf1] sm:$0xff] %vm310, %v7433
        %7466 = vst.msk [vmem:[#allocation2 + $0xf9] sm:$0xff] %vm310, %v7434
        %7467 = vst.msk [vmem:[#allocation2 + $0x109] sm:$0xff] %vm310, %v7435
        %7468 = vst.msk [vmem:[#allocation2 + $0x111] sm:$0xff] %vm310, %v7436
        %7469 = vst.msk [vmem:[#allocation2 + $0x121] sm:$0xff] %vm310, %v7437
        %7470 = vst.msk [vmem:[#allocation2 + $0x129] sm:$0xff] %vm310, %v7438
        %7471 = vst.msk [vmem:[#allocation2 + $0x139] sm:$0xff] %vm310, %v7439
        %7472 = vst.msk [vmem:[#allocation2 + $0x141] sm:$0xff] %vm310, %v7440
        %7473 = vst.msk [vmem:[#allocation2 + $0x151] sm:$0xff] %vm310, %v7441
        %7474 = vst.msk [vmem:[#allocation2 + $0x159] sm:$0xff] %vm310, %v7442
        %7475 = vst.msk [vmem:[#allocation2 + $0x169] sm:$0xff] %vm310, %v7443
        %7476 = vst.msk [vmem:[#allocation2 + $0x171] sm:$0xff] %vm310, %v7444
        %v7477 = vld [vmem:[#allocation2] sm:$0xff]
        %v7478 = vld [vmem:[#allocation2 + $0x8] sm:$0xff]
        %v7479 = vld [vmem:[#allocation2 + $0x18] sm:$0xff]
        %v7480 = vld [vmem:[#allocation2 + $0x20] sm:$0xff]
        %v7481 = vld [vmem:[#allocation2 + $0x30] sm:$0xff]
        %v7482 = vld [vmem:[#allocation2 + $0x38] sm:$0xff]
        %v7483 = vld [vmem:[#allocation2 + $0x48] sm:$0xff]
        %v7484 = vld [vmem:[#allocation2 + $0x50] sm:$0xff]
        %v7485 = vld [vmem:[#allocation2 + $0x60] sm:$0xff]
        %v7486 = vld [vmem:[#allocation2 + $0x68] sm:$0xff]
        %v7487 = vld [vmem:[#allocation2 + $0x78] sm:$0xff]
        %v7488 = vld [vmem:[#allocation2 + $0x80] sm:$0xff]
        %v7489 = vld [vmem:[#allocation2 + $0x90] sm:$0xff]
        %v7490 = vld [vmem:[#allocation2 + $0x98] sm:$0xff]
        %v7491 = vld [vmem:[#allocation2 + $0xa8] sm:$0xff]
        %v7492 = vld [vmem:[#allocation2 + $0xb0] sm:$0xff]
        %v7493 = vld [vmem:[#allocation2 + $0xc0] sm:$0xff]
        %v7494 = vld [vmem:[#allocation2 + $0xc8] sm:$0xff]
        %v7495 = vld [vmem:[#allocation2 + $0xd8] sm:$0xff]
        %v7496 = vld [vmem:[#allocation2 + $0xe0] sm:$0xff]
        %v7497 = vld [vmem:[#allocation2 + $0xf0] sm:$0xff]
        %v7498 = vld [vmem:[#allocation2 + $0xf8] sm:$0xff]
        %v7499 = vld [vmem:[#allocation2 + $0x108] sm:$0xff]
        %v7500 = vld [vmem:[#allocation2 + $0x110] sm:$0xff]
        %v7501 = vld [vmem:[#allocation2 + $0x120] sm:$0xff]
        %v7502 = vld [vmem:[#allocation2 + $0x128] sm:$0xff]
        %v7503 = vld [vmem:[#allocation2 + $0x138] sm:$0xff]
        %v7504 = vld [vmem:[#allocation2 + $0x140] sm:$0xff]
        %v7505 = vld [vmem:[#allocation2 + $0x150] sm:$0xff]
        %v7506 = vld [vmem:[#allocation2 + $0x158] sm:$0xff]
        %v7507 = vld [vmem:[#allocation2 + $0x168] sm:$0xff]
        %v7508 = vld [vmem:[#allocation2 + $0x170] sm:$0xff]
        %7509 = vrot.lane.b32.xlu0 %v5943, 64
        %v7510 = vpop.permute.xlu0 %7509
        %7511 = vrot.lane.b32.xlu0 %v5946, 64
        %v7512 = vpop.permute.xlu0 %7511
        %7513 = vrot.lane.b32.xlu0 %v5951, 64
        %v7514 = vpop.permute.xlu0 %7513
        %7515 = vrot.lane.b32.xlu0 %v5954, 64
        %v7516 = vpop.permute.xlu0 %7515
        %7517 = vrot.lane.b32.xlu0 %v5959, 64
        %v7518 = vpop.permute.xlu0 %7517
        %7519 = vrot.lane.b32.xlu0 %v5962, 64
        %v7520 = vpop.permute.xlu0 %7519
        %7521 = vrot.lane.b32.xlu0 %v5967, 64
        %v7522 = vpop.permute.xlu0 %7521
        %7523 = vrot.lane.b32.xlu0 %v5970, 64
        %v7524 = vpop.permute.xlu0 %7523
        %7525 = vrot.lane.b32.xlu0 %v5975, 64
        %v7526 = vpop.permute.xlu0 %7525
        %7527 = vrot.lane.b32.xlu0 %v5978, 64
        %v7528 = vpop.permute.xlu0 %7527
        %7529 = vrot.lane.b32.xlu0 %v5983, 64
        %v7530 = vpop.permute.xlu0 %7529
        %7531 = vrot.lane.b32.xlu0 %v5986, 64
        %v7532 = vpop.permute.xlu0 %7531
        %7533 = vrot.lane.b32.xlu0 %v5991, 64
        %v7534 = vpop.permute.xlu0 %7533
        %7535 = vrot.lane.b32.xlu0 %v5994, 64
        %v7536 = vpop.permute.xlu0 %7535
        %7537 = vrot.lane.b32.xlu0 %v5999, 64
        %v7538 = vpop.permute.xlu0 %7537
        %7539 = vrot.lane.b32.xlu0 %v6002, 64
        %v7540 = vpop.permute.xlu0 %7539
        %7541 = vrot.lane.b32.xlu0 %v6007, 64
        %v7542 = vpop.permute.xlu0 %7541
        %7543 = vrot.lane.b32.xlu0 %v6010, 64
        %v7544 = vpop.permute.xlu0 %7543
        %7545 = vrot.lane.b32.xlu0 %v6015, 64
        %v7546 = vpop.permute.xlu0 %7545
        %7547 = vrot.lane.b32.xlu0 %v6018, 64
        %v7548 = vpop.permute.xlu0 %7547
        %7549 = vrot.lane.b32.xlu0 %v6023, 64
        %v7550 = vpop.permute.xlu0 %7549
        %7551 = vrot.lane.b32.xlu0 %v6026, 64
        %v7552 = vpop.permute.xlu0 %7551
        %7553 = vrot.lane.b32.xlu0 %v6031, 64
        %v7554 = vpop.permute.xlu0 %7553
        %7555 = vrot.lane.b32.xlu0 %v6034, 64
        %v7556 = vpop.permute.xlu0 %7555
        %7557 = vrot.lane.b32.xlu0 %v6039, 64
        %v7558 = vpop.permute.xlu0 %7557
        %7559 = vrot.lane.b32.xlu0 %v6042, 64
        %v7560 = vpop.permute.xlu0 %7559
        %7561 = vrot.lane.b32.xlu0 %v6047, 64
        %v7562 = vpop.permute.xlu0 %7561
        %7563 = vrot.lane.b32.xlu0 %v6050, 64
        %v7564 = vpop.permute.xlu0 %7563
        %7565 = vrot.lane.b32.xlu0 %v6055, 64
        %v7566 = vpop.permute.xlu0 %7565
        %7567 = vrot.lane.b32.xlu0 %v6058, 64
        %v7568 = vpop.permute.xlu0 %7567
        %7569 = vrot.lane.b32.xlu0 %v6063, 64
        %v7570 = vpop.permute.xlu0 %7569
        %7571 = vrot.lane.b32.xlu0 %v6066, 64
        %v7572 = vpop.permute.xlu0 %7571
        %v7605 = vadd.f32 %v7477, %v7510
        %v7606 = vadd.f32 %v7478, %v7512
        %v7607 = vadd.f32 %v7479, %v7514
        %v7608 = vadd.f32 %v7480, %v7516
        %v7609 = vadd.f32 %v7481, %v7518
        %v7610 = vadd.f32 %v7482, %v7520
        %v7611 = vadd.f32 %v7483, %v7522
        %v7612 = vadd.f32 %v7484, %v7524
        %v7613 = vadd.f32 %v7485, %v7526
        %v7614 = vadd.f32 %v7486, %v7528
        %v7615 = vadd.f32 %v7487, %v7530
        %v7616 = vadd.f32 %v7488, %v7532
        %v7617 = vadd.f32 %v7489, %v7534
        %v7618 = vadd.f32 %v7490, %v7536
        %v7619 = vadd.f32 %v7491, %v7538
        %v7620 = vadd.f32 %v7492, %v7540
        %v7621 = vadd.f32 %v7493, %v7542
        %v7622 = vadd.f32 %v7494, %v7544
        %v7623 = vadd.f32 %v7495, %v7546
        %v7624 = vadd.f32 %v7496, %v7548
        %v7625 = vadd.f32 %v7497, %v7550
        %v7626 = vadd.f32 %v7498, %v7552
        %v7627 = vadd.f32 %v7499, %v7554
        %v7628 = vadd.f32 %v7500, %v7556
        %v7629 = vadd.f32 %v7501, %v7558
        %v7630 = vadd.f32 %v7502, %v7560
        %v7631 = vadd.f32 %v7503, %v7562
        %v7632 = vadd.f32 %v7504, %v7564
        %v7633 = vadd.f32 %v7505, %v7566
        %v7634 = vadd.f32 %v7506, %v7568
        %v7635 = vadd.f32 %v7507, %v7570
        %v7636 = vadd.f32 %v7508, %v7572
        %7637 = vst.msk [vmem:[#allocation2] sm:$0xff] %vm310, %v7605
        %7638 = vst.msk [vmem:[#allocation2 + $0x8] sm:$0xff] %vm310, %v7606
        %7639 = vst.msk [vmem:[#allocation2 + $0x18] sm:$0xff] %vm310, %v7607
        %7640 = vst.msk [vmem:[#allocation2 + $0x20] sm:$0xff] %vm310, %v7608
        %7641 = vst.msk [vmem:[#allocation2 + $0x30] sm:$0xff] %vm310, %v7609
        %7642 = vst.msk [vmem:[#allocation2 + $0x38] sm:$0xff] %vm310, %v7610
        %7643 = vst.msk [vmem:[#allocation2 + $0x48] sm:$0xff] %vm310, %v7611
        %7644 = vst.msk [vmem:[#allocation2 + $0x50] sm:$0xff] %vm310, %v7612
        %7645 = vst.msk [vmem:[#allocation2 + $0x60] sm:$0xff] %vm310, %v7613
        %7646 = vst.msk [vmem:[#allocation2 + $0x68] sm:$0xff] %vm310, %v7614
        %7647 = vst.msk [vmem:[#allocation2 + $0x78] sm:$0xff] %vm310, %v7615
        %7648 = vst.msk [vmem:[#allocation2 + $0x80] sm:$0xff] %vm310, %v7616
        %7649 = vst.msk [vmem:[#allocation2 + $0x90] sm:$0xff] %vm310, %v7617
        %7650 = vst.msk [vmem:[#allocation2 + $0x98] sm:$0xff] %vm310, %v7618
        %7651 = vst.msk [vmem:[#allocation2 + $0xa8] sm:$0xff] %vm310, %v7619
        %7652 = vst.msk [vmem:[#allocation2 + $0xb0] sm:$0xff] %vm310, %v7620
        %7653 = vst.msk [vmem:[#allocation2 + $0xc0] sm:$0xff] %vm310, %v7621
        %7654 = vst.msk [vmem:[#allocation2 + $0xc8] sm:$0xff] %vm310, %v7622
        %7655 = vst.msk [vmem:[#allocation2 + $0xd8] sm:$0xff] %vm310, %v7623
        %7656 = vst.msk [vmem:[#allocation2 + $0xe0] sm:$0xff] %vm310, %v7624
        %7657 = vst.msk [vmem:[#allocation2 + $0xf0] sm:$0xff] %vm310, %v7625
        %7658 = vst.msk [vmem:[#allocation2 + $0xf8] sm:$0xff] %vm310, %v7626
        %7659 = vst.msk [vmem:[#allocation2 + $0x108] sm:$0xff] %vm310, %v7627
        %7660 = vst.msk [vmem:[#allocation2 + $0x110] sm:$0xff] %vm310, %v7628
        %7661 = vst.msk [vmem:[#allocation2 + $0x120] sm:$0xff] %vm310, %v7629
        %7662 = vst.msk [vmem:[#allocation2 + $0x128] sm:$0xff] %vm310, %v7630
        %7663 = vst.msk [vmem:[#allocation2 + $0x138] sm:$0xff] %vm310, %v7631
        %7664 = vst.msk [vmem:[#allocation2 + $0x140] sm:$0xff] %vm310, %v7632
        %7665 = vst.msk [vmem:[#allocation2 + $0x150] sm:$0xff] %vm310, %v7633
        %7666 = vst.msk [vmem:[#allocation2 + $0x158] sm:$0xff] %vm310, %v7634
        %7667 = vst.msk [vmem:[#allocation2 + $0x168] sm:$0xff] %vm310, %v7635
        %7668 = vst.msk [vmem:[#allocation2 + $0x170] sm:$0xff] %vm310, %v7636
        %v7669 = vld [vmem:[%s1179 + $0x1] sm:$0xff]
        %v7670 = vld [vmem:[%s1179 + $0x9] sm:$0xff]
        %v7671 = vld [vmem:[%s1179 + $0x19] sm:$0xff]
        %v7672 = vld [vmem:[%s1179 + $0x21] sm:$0xff]
        %v7673 = vld [vmem:[%s1179 + $0x31] sm:$0xff]
        %v7674 = vld [vmem:[%s1179 + $0x39] sm:$0xff]
        %v7675 = vld [vmem:[%s1179 + $0x49] sm:$0xff]
        %v7676 = vld [vmem:[%s1179 + $0x51] sm:$0xff]
        %v7677 = vld [vmem:[%s1179 + $0x61] sm:$0xff]
        %v7678 = vld [vmem:[%s1179 + $0x69] sm:$0xff]
        %v7679 = vld [vmem:[%s1179 + $0x79] sm:$0xff]
        %v7680 = vld [vmem:[%s1179 + $0x81] sm:$0xff]
        %v7681 = vld [vmem:[%s1179 + $0x91] sm:$0xff]
        %v7682 = vld [vmem:[%s1179 + $0x99] sm:$0xff]
        %v7683 = vld [vmem:[%s1179 + $0xa9] sm:$0xff]
        %v7684 = vld [vmem:[%s1179 + $0xb1] sm:$0xff]
        %v7685 = vld [vmem:[%s1179 + $0xc1] sm:$0xff]
        %v7686 = vld [vmem:[%s1179 + $0xc9] sm:$0xff]
        %v7687 = vld [vmem:[%s1179 + $0xd9] sm:$0xff]
        %v7688 = vld [vmem:[%s1179 + $0xe1] sm:$0xff]
        %v7689 = vld [vmem:[%s1179 + $0xf1] sm:$0xff]
        %v7690 = vld [vmem:[%s1179 + $0xf9] sm:$0xff]
        %v7691 = vld [vmem:[%s1179 + $0x109] sm:$0xff]
        %v7692 = vld [vmem:[%s1179 + $0x111] sm:$0xff]
        %v7693 = vld [vmem:[%s1179 + $0x121] sm:$0xff]
        %v7694 = vld [vmem:[%s1179 + $0x129] sm:$0xff]
        %v7695 = vld [vmem:[%s1179 + $0x139] sm:$0xff]
        %v7696 = vld [vmem:[%s1179 + $0x141] sm:$0xff]
        %v7697 = vld [vmem:[%s1179 + $0x151] sm:$0xff]
        %v7698 = vld [vmem:[%s1179 + $0x159] sm:$0xff]
        %v7699 = vld [vmem:[%s1179 + $0x169] sm:$0xff]
        %v7700 = vld [vmem:[%s1179 + $0x171] sm:$0xff]
        %7733 = vrot.lane.b32.xlu0 %v7669, 24
        %v7734 = vpop.permute.xlu0 %7733
        %7735 = vrot.lane.b32.xlu0 %v7670, 24
        %v7736 = vpop.permute.xlu0 %7735
        %7737 = vrot.lane.b32.xlu0 %v7671, 24
        %v7738 = vpop.permute.xlu0 %7737
        %7739 = vrot.lane.b32.xlu0 %v7672, 24
        %v7740 = vpop.permute.xlu0 %7739
        %7741 = vrot.lane.b32.xlu0 %v7673, 24
        %v7742 = vpop.permute.xlu0 %7741
        %7743 = vrot.lane.b32.xlu0 %v7674, 24
        %v7744 = vpop.permute.xlu0 %7743
        %7745 = vrot.lane.b32.xlu0 %v7675, 24
        %v7746 = vpop.permute.xlu0 %7745
        %7747 = vrot.lane.b32.xlu0 %v7676, 24
        %v7748 = vpop.permute.xlu0 %7747
        %7749 = vrot.lane.b32.xlu0 %v7677, 24
        %v7750 = vpop.permute.xlu0 %7749
        %7751 = vrot.lane.b32.xlu0 %v7678, 24
        %v7752 = vpop.permute.xlu0 %7751
        %7753 = vrot.lane.b32.xlu0 %v7679, 24
        %v7754 = vpop.permute.xlu0 %7753
        %7755 = vrot.lane.b32.xlu0 %v7680, 24
        %v7756 = vpop.permute.xlu0 %7755
        %7757 = vrot.lane.b32.xlu0 %v7681, 24
        %v7758 = vpop.permute.xlu0 %7757
        %7759 = vrot.lane.b32.xlu0 %v7682, 24
        %v7760 = vpop.permute.xlu0 %7759
        %7761 = vrot.lane.b32.xlu0 %v7683, 24
        %v7762 = vpop.permute.xlu0 %7761
        %7763 = vrot.lane.b32.xlu0 %v7684, 24
        %v7764 = vpop.permute.xlu0 %7763
        %7765 = vrot.lane.b32.xlu0 %v7685, 24
        %v7766 = vpop.permute.xlu0 %7765
        %7767 = vrot.lane.b32.xlu0 %v7686, 24
        %v7768 = vpop.permute.xlu0 %7767
        %7769 = vrot.lane.b32.xlu0 %v7687, 24
        %v7770 = vpop.permute.xlu0 %7769
        %7771 = vrot.lane.b32.xlu0 %v7688, 24
        %v7772 = vpop.permute.xlu0 %7771
        %7773 = vrot.lane.b32.xlu0 %v7689, 24
        %v7774 = vpop.permute.xlu0 %7773
        %7775 = vrot.lane.b32.xlu0 %v7690, 24
        %v7776 = vpop.permute.xlu0 %7775
        %7777 = vrot.lane.b32.xlu0 %v7691, 24
        %v7778 = vpop.permute.xlu0 %7777
        %7779 = vrot.lane.b32.xlu0 %v7692, 24
        %v7780 = vpop.permute.xlu0 %7779
        %7781 = vrot.lane.b32.xlu0 %v7693, 24
        %v7782 = vpop.permute.xlu0 %7781
        %7783 = vrot.lane.b32.xlu0 %v7694, 24
        %v7784 = vpop.permute.xlu0 %7783
        %7785 = vrot.lane.b32.xlu0 %v7695, 24
        %v7786 = vpop.permute.xlu0 %7785
        %7787 = vrot.lane.b32.xlu0 %v7696, 24
        %v7788 = vpop.permute.xlu0 %7787
        %7789 = vrot.lane.b32.xlu0 %v7697, 24
        %v7790 = vpop.permute.xlu0 %7789
        %7791 = vrot.lane.b32.xlu0 %v7698, 24
        %v7792 = vpop.permute.xlu0 %7791
        %7793 = vrot.lane.b32.xlu0 %v7699, 24
        %v7794 = vpop.permute.xlu0 %7793
        %7795 = vrot.lane.b32.xlu0 %v7700, 24
        %v7796 = vpop.permute.xlu0 %7795
        %vm7829 = vcmask 261312
        %7830 = vst.msk [vmem:[%s271] sm:$0xff] %vm7829, %v7734
        %7831 = vst.msk [vmem:[%s271 + $0x8] sm:$0xff] %vm7829, %v7736
        %7832 = vst.msk [vmem:[%s271 + $0x10] sm:$0xff] %vm7829, %v7738
        %7833 = vst.msk [vmem:[%s271 + $0x18] sm:$0xff] %vm7829, %v7740
        %7834 = vst.msk [vmem:[%s271 + $0x20] sm:$0xff] %vm7829, %v7742
        %7835 = vst.msk [vmem:[%s271 + $0x28] sm:$0xff] %vm7829, %v7744
        %7836 = vst.msk [vmem:[%s271 + $0x30] sm:$0xff] %vm7829, %v7746
        %7837 = vst.msk [vmem:[%s271 + $0x38] sm:$0xff] %vm7829, %v7748
        %7838 = vst.msk [vmem:[%s271 + $0x40] sm:$0xff] %vm7829, %v7750
        %7839 = vst.msk [vmem:[%s271 + $0x48] sm:$0xff] %vm7829, %v7752
        %7840 = vst.msk [vmem:[%s271 + $0x50] sm:$0xff] %vm7829, %v7754
        %7841 = vst.msk [vmem:[%s271 + $0x58] sm:$0xff] %vm7829, %v7756
        %7842 = vst.msk [vmem:[%s271 + $0x60] sm:$0xff] %vm7829, %v7758
        %7843 = vst.msk [vmem:[%s271 + $0x68] sm:$0xff] %vm7829, %v7760
        %7844 = vst.msk [vmem:[%s271 + $0x70] sm:$0xff] %vm7829, %v7762
        %7845 = vst.msk [vmem:[%s271 + $0x78] sm:$0xff] %vm7829, %v7764
        %7846 = vst.msk [vmem:[%s271 + $0x80] sm:$0xff] %vm7829, %v7766
        %7847 = vst.msk [vmem:[%s271 + $0x88] sm:$0xff] %vm7829, %v7768
        %7848 = vst.msk [vmem:[%s271 + $0x90] sm:$0xff] %vm7829, %v7770
        %7849 = vst.msk [vmem:[%s271 + $0x98] sm:$0xff] %vm7829, %v7772
        %7850 = vst.msk [vmem:[%s271 + $0xa0] sm:$0xff] %vm7829, %v7774
        %7851 = vst.msk [vmem:[%s271 + $0xa8] sm:$0xff] %vm7829, %v7776
        %7852 = vst.msk [vmem:[%s271 + $0xb0] sm:$0xff] %vm7829, %v7778
        %7853 = vst.msk [vmem:[%s271 + $0xb8] sm:$0xff] %vm7829, %v7780
        %7854 = vst.msk [vmem:[%s271 + $0xc0] sm:$0xff] %vm7829, %v7782
        %7855 = vst.msk [vmem:[%s271 + $0xc8] sm:$0xff] %vm7829, %v7784
        %7856 = vst.msk [vmem:[%s271 + $0xd0] sm:$0xff] %vm7829, %v7786
        %7857 = vst.msk [vmem:[%s271 + $0xd8] sm:$0xff] %vm7829, %v7788
        %7858 = vst.msk [vmem:[%s271 + $0xe0] sm:$0xff] %vm7829, %v7790
        %7859 = vst.msk [vmem:[%s271 + $0xe8] sm:$0xff] %vm7829, %v7792
        %7860 = vst.msk [vmem:[%s271 + $0xf0] sm:$0xff] %vm7829, %v7794
        %7861 = vst.msk [vmem:[%s271 + $0xf8] sm:$0xff] %vm7829, %v7796
        %s7862 = sand.u32 %s181, 1
        %s7863 = scalar_lea.sflag [#allocation4], %s7862
        %s7864 = sand.u32 %s181, 1
        %s7865 = smul.addr %s7864, 256
        %s7866 = scalar_lea.vmem [#allocation3], %s7865
        // Predicated region
        $region49: #{dense_block_forward.1} parent=47 // pred_check
          %p7867 = pneg %p191
        $region50: #{dense_block_forward.1} parent=47 // pred_check_branch
          %7869 = sbr.rel (%p7867) target = $region52
        $region51: #{dense_block_forward.1} parent=47 // pred_region
          %s7871 = ssub.s32 4096, 4096
          %7872 = vsyncadd %s7863, %s7871
          %s7873 = smul.addr %s21, 32
          %s7874 = smul.addr %s7873, 128
          %s7875 = scalar_lea.hbm %s7, %s7874
          %s7876 = sshll.u32 %s7866, 4
          %s7877 = int_to_ptr.vmem [resolvable:$true] %s7876
          %7882 = dma.vmem_to_hbm [thread:$0]  %s7877, 4096, %s7875, %s7863, 128, 128, 8
        $region52: #{dense_block_forward.1} parent=47 // pred_fallthru
          _
      $region48: #{dense_block_forward.1} parent=5 // pred_fallthru
        _
      %p7883 = scmp.le.s32.totalorder 2, %s16
      // Predicated region
      $region53: #{dense_block_forward.1} parent=5 // pred_check
        %p7884 = pneg %p7883
      $region54: #{dense_block_forward.1} parent=5 // pred_check_branch
        %7886 = sbr.rel (%p7884) target = $region56
      $region55: #{dense_block_forward.1} parent=5 // pred_region
        %s7887 = ssub.s32 %s16, 2
        // Predicated region
        $region57: #{dense_block_forward.1} parent=55 // pred_check
          %p7888 = pneg %p197
        $region58: #{dense_block_forward.1} parent=55 // pred_check_branch
          %7890 = sbr.rel (%p7888) target = $region60
        $region59: #{dense_block_forward.1} parent=55 // pred_region
          %s7891 = sand.u32 %s182, 1
          %s7892 = scalar_lea.sflag [#allocation4], %s7891
          %s7893 = sand.u32 %s182, 1
          %s7894 = smul.addr %s7893, 256
          %s7895 = scalar_lea.vmem [#allocation3], %s7894
          %7896 = dma.done %s7892, 4096
        $region60: #{dense_block_forward.1} parent=55 // pred_fallthru
          _
      $region56: #{dense_block_forward.1} parent=5 // pred_fallthru
        _
    $region6: #{dense_block_forward.1} parent=1 // loop_footer
      %s20 = sadd.s32 1, %s16
    $region7: #{dense_block_forward.1} parent=1 // loop_footer_branch
      %15 = sbr.rel target = $region3
    $region8: #{dense_block_forward.1} parent=1 // loop_exit
      _
    %7897 = vsyncpa [#allocation4], 1
    %s7898 = scalar_lea.sflag [#allocation4], 1
    %7899 = vsyncpa %s7898, 1

</llo_original>
